<compile_context>
chip_gen: v5e
topology: v5e:2x2
jax: 0.10.0
libtpu: 0.0.40
codegen_flags: <defaults>
</compile_context>

<pallas_src>
import functools

import numpy as np

import jax
import jax.numpy as jnp
from jax.experimental import pallas as pl
from jax.experimental.pallas import tpu as pltpu


# ----------------------------- fused Pallas kernel ------------------------------- #

def _net_kernel(x_ref, wc1_ref, wc2_ref, wc3_ref, wf1_ref, wf2_ref,
                bc1_ref, bc2_ref, bc3_ref, bf1_ref, bf2_ref, out_ref,
                *, n_batch, neg_slope):
    f32, bf16 = jnp.float32, jnp.bfloat16

    def lrelu(v):
        return jnp.where(v > 0, v, neg_slope * v)

    def dot(a, b):  # bf16 MXU operands, f32 accumulation
        return jnp.dot(a.astype(bf16), b, preferred_element_type=f32)

    bc1 = bc1_ref[...]          # (1, 384) f32
    bc2 = bc2_ref[...]          # (1, 320)
    bc3 = bc3_ref[...]          # (1, 256)
    bf1 = bf1_ref[...]          # (1, 128)
    bf2 = bf2_ref[...]          # (1, 128)

    for n in range(n_batch):    # tiny static batch -> fully unrolled, all in VMEM
        # conv1: 5x5 / stride 2, Cin=1  ->  per-image slab (12, 12*32)
        acc = jnp.zeros((12, 12 * 32), f32)
        for di in range(5):
            p, a = di % 2, di // 2
            xp = x_ref[n * 2 + p]                       # (14, 28): input rows of parity p
            acc = acc + dot(xp[a:a + 12, :], wc1_ref[di])
        y1 = lrelu(acc + bc1)                           # (12, 384) f32

        # conv2: 3x3 / stride 1  ->  (10, 10*32)
        acc = jnp.zeros((10, 10 * 32), f32)
        for di in range(3):
            acc = acc + dot(y1[di:di + 10, :], wc2_ref[di])
        y2 = lrelu(acc + bc2)                           # (10, 320)

        # conv3: 3x3 / stride 1  ->  (8, 8*32)
        acc = jnp.zeros((8, 8 * 32), f32)
        for di in range(3):
            acc = acc + dot(y2[di:di + 8, :], wc3_ref[di])
        y3 = lrelu(acc + bc3)                           # (8, 256)

        # fc1: 2048 -> 128, contraction split over the 8 spatial rows (no flatten needed)
        acc = jnp.zeros((1, 128), f32)
        for h in range(8):
            acc = acc + dot(y3[h:h + 1, :], wf1_ref[h])
        z1 = lrelu(acc + bf1)                           # (1, 128)

        # fc2: 128 -> 10 (padded to 128 lanes for a lane-dense store; no activation)
        logits = dot(z1, wf2_ref[...]) + bf2            # (1, 128)
        out_ref[pl.ds(n, 1), :] = logits


def _full_spec(shape):
    zeros = (0,) * len(shape)
    return pl.BlockSpec(tuple(shape), lambda i, _z=zeros: _z)


# ------------------------------ host-side weight prep ----------------------------- #

def prepare_params(params):
    """One-time host-side repack of PyTorch-layout params into kernel layouts."""
    C = 32
    w1 = np.asarray(params["conv1_w"], np.float32)      # (32, 1, 5, 5)
    w2 = np.asarray(params["conv2_w"], np.float32)      # (32, 32, 3, 3)
    w3 = np.asarray(params["conv3_w"], np.float32)      # (32, 32, 3, 3)
    fw1 = np.asarray(params["fc1_w"], np.float32)       # (128, 2048)
    fw2 = np.asarray(params["fc2_w"], np.float32)       # (10, 128)

    # conv1 width-unrolled: wc1[di][2*ow+dj, ow*32+c] = w1[c, 0, di, dj]
    wc1 = np.zeros((5, 28, 12 * C), np.float32)
    for di in range(5):
        for dj in range(5):
            for ow in range(12):
                wc1[di, 2 * ow + dj, ow * C:(ow + 1) * C] = w1[:, 0, di, dj]

    # 3x3 convs width-unrolled: W[di][(ow+dj)*32+ci, ow*32+co] = w[co, ci, di, dj]
    def conv_wide(w, w_in, w_out):
        out = np.zeros((3, w_in * C, w_out * C), np.float32)
        for di in range(3):
            for dj in range(3):
                blk = w[:, :, di, dj].T                 # (Cin, Cout)
                for ow in range(w_out):
                    out[di, (ow + dj) * C:(ow + dj + 1) * C, ow * C:(ow + 1) * C] = blk
        return out

    wc2 = conv_wide(w2, 12, 10)                         # (3, 384, 320)
    wc3 = conv_wide(w3, 10, 8)                          # (3, 320, 256)

    # fc1: torch flatten order f = c*64 + h*8 + w ; kernel layout per row h: col = w*32 + c
    wf1 = fw1.reshape(128, 32, 8, 8).transpose(2, 3, 1, 0).reshape(8, 8 * C, 128)

    # fc2: (10, 128) -> (128, 128) zero-padded so the kernel store is 128 lanes wide
    wf2 = np.zeros((128, 128), np.float32)
    wf2[:, :10] = fw2.T

    bc1 = np.tile(np.asarray(params["conv1_b"], np.float32), 12).reshape(1, -1)
    bc2 = np.tile(np.asarray(params["conv2_b"], np.float32), 10).reshape(1, -1)
    bc3 = np.tile(np.asarray(params["conv3_b"], np.float32), 8).reshape(1, -1)
    bf1 = np.asarray(params["fc1_b"], np.float32).reshape(1, 128)
    bf2 = np.zeros((1, 128), np.float32)
    bf2[0, :10] = np.asarray(params["fc2_b"], np.float32)

    bf16 = jnp.bfloat16
    return {
        "wc1": jnp.asarray(wc1, bf16), "wc2": jnp.asarray(wc2, bf16),
        "wc3": jnp.asarray(wc3, bf16), "wf1": jnp.asarray(wf1, bf16),
        "wf2": jnp.asarray(wf2, bf16),
        "bc1": jnp.asarray(bc1), "bc2": jnp.asarray(bc2), "bc3": jnp.asarray(bc3),
        "bf1": jnp.asarray(bf1), "bf2": jnp.asarray(bf2),
    }


# ------------------------------------ wrapper ------------------------------------- #

@jax.jit
def net_forward(prep, x_nchw):
    """Fused Pallas forward. Input NCHW float32 (N, 1, 28, 28) -> (N, 10)."""
    n, cin, h, w = x_nchw.shape
    assert (cin, h, w) == (1, 28, 28), "fc1(2048) pins the input to (1, 28, 28)"

    x = x_nchw[:, 0].astype(jnp.float32)                            # (N, 28, 28)
    # Even/odd row phases so the stride-2 conv1 needs only unstrided in-kernel slices.
    x_ph = jnp.stack([x[:, 0::2, :], x[:, 1::2, :]], axis=1)        # (N, 2, 14, 28)
    x_ph = x_ph.reshape(n * 2, 14, 28)

    inputs = (x_ph, prep["wc1"], prep["wc2"], prep["wc3"], prep["wf1"], prep["wf2"],
              prep["bc1"], prep["bc2"], prep["bc3"], prep["bf1"], prep["bf2"])

    kern = functools.partial(_net_kernel, n_batch=n, neg_slope=0.1)
    out = pl.pallas_call(
        kern,
        out_shape=jax.ShapeDtypeStruct((n, 128), jnp.float32),
        grid=(1,),
        in_specs=[_full_spec(a.shape) for a in inputs],
        out_specs=_full_spec((n, 128)),
        compiler_params=pltpu.CompilerParams(dimension_semantics=("arbitrary",)),
    )(*inputs)
    return out[:, :10]


# ------------------------------- params / reference ------------------------------- #

def init_params(key):
    """Deterministic synthetic parameters, PyTorch shapes/layouts (Kaiming-uniform-ish)."""
    ks = jax.random.split(key, 10)

    def u(k, shape, fan_in):
        bound = 1.0 / jnp.sqrt(jnp.float32(fan_in))
        return jax.random.uniform(k, shape, jnp.float32, -bound, bound)

    return {
        "conv1_w": u(ks[0], (32, 1, 5, 5), 1 * 5 * 5),
        "conv1_b": u(ks[1], (32,), 1 * 5 * 5),
        "conv2_w": u(ks[2], (32, 32, 3, 3), 32 * 3 * 3),
        "conv2_b": u(ks[3], (32,), 32 * 3 * 3),
        "conv3_w": u(ks[4], (32, 32, 3, 3), 32 * 3 * 3),
        "conv3_b": u(ks[5], (32,), 32 * 3 * 3),
        "fc1_w": u(ks[6], (128, 2048), 2048),   # PyTorch Linear layout [out, in]
        "fc1_b": u(ks[7], (128,), 2048),
        "fc2_w": u(ks[8], (10, 128), 128),
        "fc2_b": u(ks[9], (10,), 128),
    }


def net_forward_ref(params, x_nchw):
    """Pure-JAX f32 reference (matches the PyTorch module)."""
    def conv(x, w, b, s):
        y = jax.lax.conv_general_dilated(
            x, w, (s, s), "VALID", dimension_numbers=("NCHW", "OIHW", "NCHW"))
        return y + b.reshape(1, -1, 1, 1)

    lrelu = lambda v: jnp.where(v > 0, v, 0.1 * v)
    x = lrelu(conv(x_nchw, params["conv1_w"], params["conv1_b"], 2))
    x = lrelu(conv(x, params["conv2_w"], params["conv2_b"], 1))
    x = lrelu(conv(x, params["conv3_w"], params["conv3_b"], 1))
    x = x.reshape(x.shape[0], -1)
    x = lrelu(x @ params["fc1_w"].T + params["fc1_b"])
    x = x @ params["fc2_w"].T + params["fc2_b"]
    return x


if __name__ == "__main__":
    key = jax.random.PRNGKey(0)
    k_param, k_x = jax.random.split(key)
    params = init_params(k_param)
    prep = prepare_params(params)
    # fc1 expects 2048 = 32*8*8 features, which pins the input to 28x28 (MNIST).
    x = jax.random.normal(k_x, (2, 1, 28, 28), jnp.float32)

    out = jax.block_until_ready(net_forward(prep, x))
    ref = jax.block_until_ready(net_forward_ref(params, x))

    assert out.shape == (2, 10), out.shape
    # bf16 MXU operands -> looser tolerance than the pure-f32 version (per review note).
    assert jnp.allclose(out, ref, atol=2e-2, rtol=2e-2), (
        "mismatch vs JAX reference; max |diff| = "
        f"{float(jnp.max(jnp.abs(out - ref))):.3e}")
    print("KERNEL_OK")
</pallas_src>

<mosaic_0001>
module attributes {stable_mosaic.version = 11 : i64} {
  func.func @_net_kernel(%arg0: i32, %arg1: memref<4x14x28xf32, #tpu.memory_space<vmem>>, %arg2: memref<5x28x384xbf16, #tpu.memory_space<vmem>>, %arg3: memref<3x384x320xbf16, #tpu.memory_space<vmem>>, %arg4: memref<3x320x256xbf16, #tpu.memory_space<vmem>>, %arg5: memref<8x256x128xbf16, #tpu.memory_space<vmem>>, %arg6: memref<128x128xbf16, #tpu.memory_space<vmem>>, %arg7: memref<1x384xf32, #tpu.memory_space<vmem>>, %arg8: memref<1x320xf32, #tpu.memory_space<vmem>>, %arg9: memref<1x256xf32, #tpu.memory_space<vmem>>, %arg10: memref<1x128xf32, #tpu.memory_space<vmem>>, %arg11: memref<1x128xf32, #tpu.memory_space<vmem>>, %arg12: memref<2x128xf32, #tpu.memory_space<vmem>>) attributes {dimension_semantics = [#tpu.dimension_semantics<arbitrary>], iteration_bounds = array<i64: 1>, scalar_prefetch = 0 : i64, scratch_operands = 0 : i64, tpu.core_type = #tpu.core_type<tc>, window_params = [{pipeline_mode = #tpu.pipeline_mode<synchronous>, transform_indices = @transform_0, window_bounds = array<i64: 4, 14, 28>}, {pipeline_mode = #tpu.pipeline_mode<synchronous>, transform_indices = @transform_1, window_bounds = array<i64: 5, 28, 384>}, {pipeline_mode = #tpu.pipeline_mode<synchronous>, transform_indices = @transform_2, window_bounds = array<i64: 3, 384, 320>}, {pipeline_mode = #tpu.pipeline_mode<synchronous>, transform_indices = @transform_3, window_bounds = array<i64: 3, 320, 256>}, {pipeline_mode = #tpu.pipeline_mode<synchronous>, transform_indices = @transform_4, window_bounds = array<i64: 8, 256, 128>}, {pipeline_mode = #tpu.pipeline_mode<synchronous>, transform_indices = @transform_5, window_bounds = array<i64: 128, 128>}, {pipeline_mode = #tpu.pipeline_mode<synchronous>, transform_indices = @transform_6, window_bounds = array<i64: 1, 384>}, {pipeline_mode = #tpu.pipeline_mode<synchronous>, transform_indices = @transform_7, window_bounds = array<i64: 1, 320>}, {pipeline_mode = #tpu.pipeline_mode<synchronous>, transform_indices = @transform_8, window_bounds = array<i64: 1, 256>}, {pipeline_mode = #tpu.pipeline_mode<synchronous>, transform_indices = @transform_9, window_bounds = array<i64: 1, 128>}, {pipeline_mode = #tpu.pipeline_mode<synchronous>, transform_indices = @transform_10, window_bounds = array<i64: 1, 128>}, {pipeline_mode = #tpu.pipeline_mode<synchronous>, transform_indices = @transform_11, window_bounds = array<i64: 2, 128>}]} {
    %c0 = arith.constant 0 : index
    %c0_0 = arith.constant 0 : index
    %0 = vector.load %arg7[%c0, %c0_0] : memref<1x384xf32, #tpu.memory_space<vmem>>, vector<1x384xf32>
    %c0_1 = arith.constant 0 : index
    %c0_2 = arith.constant 0 : index
    %1 = vector.load %arg8[%c0_1, %c0_2] : memref<1x320xf32, #tpu.memory_space<vmem>>, vector<1x320xf32>
    %c0_3 = arith.constant 0 : index
    %c0_4 = arith.constant 0 : index
    %2 = vector.load %arg9[%c0_3, %c0_4] : memref<1x256xf32, #tpu.memory_space<vmem>>, vector<1x256xf32>
    %c0_5 = arith.constant 0 : index
    %c0_6 = arith.constant 0 : index
    %3 = vector.load %arg10[%c0_5, %c0_6] : memref<1x128xf32, #tpu.memory_space<vmem>>, vector<1x128xf32>
    %c0_7 = arith.constant 0 : index
    %c0_8 = arith.constant 0 : index
    %4 = vector.load %arg11[%c0_7, %c0_8] : memref<1x128xf32, #tpu.memory_space<vmem>>, vector<1x128xf32>
    %cst = arith.constant 0.000000e+00 : f32
    %5 = vector.broadcast %cst : f32 to vector<12x384xf32>
    %c0_9 = arith.constant 0 : index
    %c0_10 = arith.constant 0 : index
    %c0_11 = arith.constant 0 : index
    %6 = vector.load %arg1[%c0_9, %c0_10, %c0_11] : memref<4x14x28xf32, #tpu.memory_space<vmem>>, vector<1x14x28xf32>
    %7 = vector.shape_cast %6 : vector<1x14x28xf32> to vector<14x28xf32>
    %8 = vector.extract_strided_slice %7 {offsets = [0, 0], sizes = [12, 28], strides = [1, 1]} : vector<14x28xf32> to vector<12x28xf32>
    %c0_12 = arith.constant 0 : index
    %c0_13 = arith.constant 0 : index
    %c0_14 = arith.constant 0 : index
    %9 = vector.load %arg2[%c0_12, %c0_13, %c0_14] : memref<5x28x384xbf16, #tpu.memory_space<vmem>>, vector<1x28x384xbf16>
    %10 = vector.shape_cast %9 : vector<1x28x384xbf16> to vector<28x384xbf16>
    %11 = arith.truncf %8 : vector<12x28xf32> to vector<12x28xbf16>
    %cst_15 = arith.constant dense<0.000000e+00> : vector<12x384xf32>
    %12 = tpu.matmul %11, %10, %cst_15 {dimension_numbers = #tpu.dot_dimension_numbers<[1], [0], [0], [1], [0, 0, 1, 1], [], []>} : vector<12x28xbf16>, vector<28x384xbf16>, vector<12x384xf32> -> vector<12x384xf32>
    %13 = arith.addf %5, %12 : vector<12x384xf32>
    %c1 = arith.constant 1 : index
    %c0_16 = arith.constant 0 : index
    %c0_17 = arith.constant 0 : index
    %14 = vector.load %arg1[%c1, %c0_16, %c0_17] : memref<4x14x28xf32, #tpu.memory_space<vmem>>, vector<1x14x28xf32>
    %15 = vector.shape_cast %14 : vector<1x14x28xf32> to vector<14x28xf32>
    %16 = vector.extract_strided_slice %15 {offsets = [0, 0], sizes = [12, 28], strides = [1, 1]} : vector<14x28xf32> to vector<12x28xf32>
    %c1_18 = arith.constant 1 : index
    %c0_19 = arith.constant 0 : index
    %c0_20 = arith.constant 0 : index
    %17 = vector.load %arg2[%c1_18, %c0_19, %c0_20] : memref<5x28x384xbf16, #tpu.memory_space<vmem>>, vector<1x28x384xbf16>
    %18 = vector.shape_cast %17 : vector<1x28x384xbf16> to vector<28x384xbf16>
    %19 = arith.truncf %16 : vector<12x28xf32> to vector<12x28xbf16>
    %cst_21 = arith.constant dense<0.000000e+00> : vector<12x384xf32>
    %20 = tpu.matmul %19, %18, %cst_21 {dimension_numbers = #tpu.dot_dimension_numbers<[1], [0], [0], [1], [0, 0, 1, 1], [], []>} : vector<12x28xbf16>, vector<28x384xbf16>, vector<12x384xf32> -> vector<12x384xf32>
    %21 = arith.addf %13, %20 : vector<12x384xf32>
    %c0_22 = arith.constant 0 : index
    %c0_23 = arith.constant 0 : index
    %c0_24 = arith.constant 0 : index
    %22 = vector.load %arg1[%c0_22, %c0_23, %c0_24] : memref<4x14x28xf32, #tpu.memory_space<vmem>>, vector<1x14x28xf32>
    %23 = vector.shape_cast %22 : vector<1x14x28xf32> to vector<14x28xf32>
    %24 = vector.extract_strided_slice %23 {offsets = [1, 0], sizes = [12, 28], strides = [1, 1]} : vector<14x28xf32> to vector<12x28xf32>
    %c2 = arith.constant 2 : index
    %c0_25 = arith.constant 0 : index
    %c0_26 = arith.constant 0 : index
    %25 = vector.load %arg2[%c2, %c0_25, %c0_26] : memref<5x28x384xbf16, #tpu.memory_space<vmem>>, vector<1x28x384xbf16>
    %26 = vector.shape_cast %25 : vector<1x28x384xbf16> to vector<28x384xbf16>
    %27 = arith.truncf %24 : vector<12x28xf32> to vector<12x28xbf16>
    %cst_27 = arith.constant dense<0.000000e+00> : vector<12x384xf32>
    %28 = tpu.matmul %27, %26, %cst_27 {dimension_numbers = #tpu.dot_dimension_numbers<[1], [0], [0], [1], [0, 0, 1, 1], [], []>} : vector<12x28xbf16>, vector<28x384xbf16>, vector<12x384xf32> -> vector<12x384xf32>
    %29 = arith.addf %21, %28 : vector<12x384xf32>
    %c1_28 = arith.constant 1 : index
    %c0_29 = arith.constant 0 : index
    %c0_30 = arith.constant 0 : index
    %30 = vector.load %arg1[%c1_28, %c0_29, %c0_30] : memref<4x14x28xf32, #tpu.memory_space<vmem>>, vector<1x14x28xf32>
    %31 = vector.shape_cast %30 : vector<1x14x28xf32> to vector<14x28xf32>
    %32 = vector.extract_strided_slice %31 {offsets = [1, 0], sizes = [12, 28], strides = [1, 1]} : vector<14x28xf32> to vector<12x28xf32>
    %c3 = arith.constant 3 : index
    %c0_31 = arith.constant 0 : index
    %c0_32 = arith.constant 0 : index
    %33 = vector.load %arg2[%c3, %c0_31, %c0_32] : memref<5x28x384xbf16, #tpu.memory_space<vmem>>, vector<1x28x384xbf16>
    %34 = vector.shape_cast %33 : vector<1x28x384xbf16> to vector<28x384xbf16>
    %35 = arith.truncf %32 : vector<12x28xf32> to vector<12x28xbf16>
    %cst_33 = arith.constant dense<0.000000e+00> : vector<12x384xf32>
    %36 = tpu.matmul %35, %34, %cst_33 {dimension_numbers = #tpu.dot_dimension_numbers<[1], [0], [0], [1], [0, 0, 1, 1], [], []>} : vector<12x28xbf16>, vector<28x384xbf16>, vector<12x384xf32> -> vector<12x384xf32>
    %37 = arith.addf %29, %36 : vector<12x384xf32>
    %c0_34 = arith.constant 0 : index
    %c0_35 = arith.constant 0 : index
    %c0_36 = arith.constant 0 : index
    %38 = vector.load %arg1[%c0_34, %c0_35, %c0_36] : memref<4x14x28xf32, #tpu.memory_space<vmem>>, vector<1x14x28xf32>
    %39 = vector.shape_cast %38 : vector<1x14x28xf32> to vector<14x28xf32>
    %40 = vector.extract_strided_slice %39 {offsets = [2, 0], sizes = [12, 28], strides = [1, 1]} : vector<14x28xf32> to vector<12x28xf32>
    %c4 = arith.constant 4 : index
    %c0_37 = arith.constant 0 : index
    %c0_38 = arith.constant 0 : index
    %41 = vector.load %arg2[%c4, %c0_37, %c0_38] : memref<5x28x384xbf16, #tpu.memory_space<vmem>>, vector<1x28x384xbf16>
    %42 = vector.shape_cast %41 : vector<1x28x384xbf16> to vector<28x384xbf16>
    %43 = arith.truncf %40 : vector<12x28xf32> to vector<12x28xbf16>
    %cst_39 = arith.constant dense<0.000000e+00> : vector<12x384xf32>
    %44 = tpu.matmul %43, %42, %cst_39 {dimension_numbers = #tpu.dot_dimension_numbers<[1], [0], [0], [1], [0, 0, 1, 1], [], []>} : vector<12x28xbf16>, vector<28x384xbf16>, vector<12x384xf32> -> vector<12x384xf32>
    %45 = arith.addf %37, %44 : vector<12x384xf32>
    %46 = vector.broadcast %0 : vector<1x384xf32> to vector<12x384xf32>
    %47 = arith.addf %45, %46 : vector<12x384xf32>
    %cst_40 = arith.constant 0.000000e+00 : f32
    %48 = vector.broadcast %cst_40 : f32 to vector<12x384xf32>
    %49 = arith.cmpf ogt, %47, %48 : vector<12x384xf32>
    %cst_41 = arith.constant 1.000000e-01 : f32
    %50 = vector.broadcast %cst_41 : f32 to vector<12x384xf32>
    %51 = arith.mulf %50, %47 : vector<12x384xf32>
    %52 = arith.select %49, %47, %51 : vector<12x384xi1>, vector<12x384xf32>
    %cst_42 = arith.constant 0.000000e+00 : f32
    %53 = vector.broadcast %cst_42 : f32 to vector<10x320xf32>
    %54 = vector.extract_strided_slice %52 {offsets = [0, 0], sizes = [10, 384], strides = [1, 1]} : vector<12x384xf32> to vector<10x384xf32>
    %c0_43 = arith.constant 0 : index
    %c0_44 = arith.constant 0 : index
    %c0_45 = arith.constant 0 : index
    %55 = vector.load %arg3[%c0_43, %c0_44, %c0_45] : memref<3x384x320xbf16, #tpu.memory_space<vmem>>, vector<1x384x320xbf16>
    %56 = vector.shape_cast %55 : vector<1x384x320xbf16> to vector<384x320xbf16>
    %57 = arith.truncf %54 : vector<10x384xf32> to vector<10x384xbf16>
    %cst_46 = arith.constant dense<0.000000e+00> : vector<10x320xf32>
    %58 = tpu.matmul %57, %56, %cst_46 {dimension_numbers = #tpu.dot_dimension_numbers<[1], [0], [0], [1], [0, 0, 1, 1], [], []>} : vector<10x384xbf16>, vector<384x320xbf16>, vector<10x320xf32> -> vector<10x320xf32>
    %59 = arith.addf %53, %58 : vector<10x320xf32>
    %60 = vector.extract_strided_slice %52 {offsets = [1, 0], sizes = [10, 384], strides = [1, 1]} : vector<12x384xf32> to vector<10x384xf32>
    %c1_47 = arith.constant 1 : index
    %c0_48 = arith.constant 0 : index
    %c0_49 = arith.constant 0 : index
    %61 = vector.load %arg3[%c1_47, %c0_48, %c0_49] : memref<3x384x320xbf16, #tpu.memory_space<vmem>>, vector<1x384x320xbf16>
    %62 = vector.shape_cast %61 : vector<1x384x320xbf16> to vector<384x320xbf16>
    %63 = arith.truncf %60 : vector<10x384xf32> to vector<10x384xbf16>
    %cst_50 = arith.constant dense<0.000000e+00> : vector<10x320xf32>
    %64 = tpu.matmul %63, %62, %cst_50 {dimension_numbers = #tpu.dot_dimension_numbers<[1], [0], [0], [1], [0, 0, 1, 1], [], []>} : vector<10x384xbf16>, vector<384x320xbf16>, vector<10x320xf32> -> vector<10x320xf32>
    %65 = arith.addf %59, %64 : vector<10x320xf32>
    %66 = vector.extract_strided_slice %52 {offsets = [2, 0], sizes = [10, 384], strides = [1, 1]} : vector<12x384xf32> to vector<10x384xf32>
    %c2_51 = arith.constant 2 : index
    %c0_52 = arith.constant 0 : index
    %c0_53 = arith.constant 0 : index
    %67 = vector.load %arg3[%c2_51, %c0_52, %c0_53] : memref<3x384x320xbf16, #tpu.memory_space<vmem>>, vector<1x384x320xbf16>
    %68 = vector.shape_cast %67 : vector<1x384x320xbf16> to vector<384x320xbf16>
    %69 = arith.truncf %66 : vector<10x384xf32> to vector<10x384xbf16>
    %cst_54 = arith.constant dense<0.000000e+00> : vector<10x320xf32>
    %70 = tpu.matmul %69, %68, %cst_54 {dimension_numbers = #tpu.dot_dimension_numbers<[1], [0], [0], [1], [0, 0, 1, 1], [], []>} : vector<10x384xbf16>, vector<384x320xbf16>, vector<10x320xf32> -> vector<10x320xf32>
    %71 = arith.addf %65, %70 : vector<10x320xf32>
    %72 = vector.broadcast %1 : vector<1x320xf32> to vector<10x320xf32>
    %73 = arith.addf %71, %72 : vector<10x320xf32>
    %cst_55 = arith.constant 0.000000e+00 : f32
    %74 = vector.broadcast %cst_55 : f32 to vector<10x320xf32>
    %75 = arith.cmpf ogt, %73, %74 : vector<10x320xf32>
    %cst_56 = arith.constant 1.000000e-01 : f32
    %76 = vector.broadcast %cst_56 : f32 to vector<10x320xf32>
    %77 = arith.mulf %76, %73 : vector<10x320xf32>
    %78 = arith.select %75, %73, %77 : vector<10x320xi1>, vector<10x320xf32>
    %cst_57 = arith.constant 0.000000e+00 : f32
    %79 = vector.broadcast %cst_57 : f32 to vector<8x256xf32>
    %80 = vector.extract_strided_slice %78 {offsets = [0, 0], sizes = [8, 320], strides = [1, 1]} : vector<10x320xf32> to vector<8x320xf32>
    %c0_58 = arith.constant 0 : index
    %c0_59 = arith.constant 0 : index
    %c0_60 = arith.constant 0 : index
    %81 = vector.load %arg4[%c0_58, %c0_59, %c0_60] : memref<3x320x256xbf16, #tpu.memory_space<vmem>>, vector<1x320x256xbf16>
    %82 = vector.shape_cast %81 : vector<1x320x256xbf16> to vector<320x256xbf16>
    %83 = arith.truncf %80 : vector<8x320xf32> to vector<8x320xbf16>
    %cst_61 = arith.constant dense<0.000000e+00> : vector<8x256xf32>
    %84 = tpu.matmul %83, %82, %cst_61 {dimension_numbers = #tpu.dot_dimension_numbers<[1], [0], [0], [1], [0, 0, 1, 1], [], []>} : vector<8x320xbf16>, vector<320x256xbf16>, vector<8x256xf32> -> vector<8x256xf32>
    %85 = arith.addf %79, %84 : vector<8x256xf32>
    %86 = vector.extract_strided_slice %78 {offsets = [1, 0], sizes = [8, 320], strides = [1, 1]} : vector<10x320xf32> to vector<8x320xf32>
    %c1_62 = arith.constant 1 : index
    %c0_63 = arith.constant 0 : index
    %c0_64 = arith.constant 0 : index
    %87 = vector.load %arg4[%c1_62, %c0_63, %c0_64] : memref<3x320x256xbf16, #tpu.memory_space<vmem>>, vector<1x320x256xbf16>
    %88 = vector.shape_cast %87 : vector<1x320x256xbf16> to vector<320x256xbf16>
    %89 = arith.truncf %86 : vector<8x320xf32> to vector<8x320xbf16>
    %cst_65 = arith.constant dense<0.000000e+00> : vector<8x256xf32>
    %90 = tpu.matmul %89, %88, %cst_65 {dimension_numbers = #tpu.dot_dimension_numbers<[1], [0], [0], [1], [0, 0, 1, 1], [], []>} : vector<8x320xbf16>, vector<320x256xbf16>, vector<8x256xf32> -> vector<8x256xf32>
    %91 = arith.addf %85, %90 : vector<8x256xf32>
    %92 = vector.extract_strided_slice %78 {offsets = [2, 0], sizes = [8, 320], strides = [1, 1]} : vector<10x320xf32> to vector<8x320xf32>
    %c2_66 = arith.constant 2 : index
    %c0_67 = arith.constant 0 : index
    %c0_68 = arith.constant 0 : index
    %93 = vector.load %arg4[%c2_66, %c0_67, %c0_68] : memref<3x320x256xbf16, #tpu.memory_space<vmem>>, vector<1x320x256xbf16>
    %94 = vector.shape_cast %93 : vector<1x320x256xbf16> to vector<320x256xbf16>
    %95 = arith.truncf %92 : vector<8x320xf32> to vector<8x320xbf16>
    %cst_69 = arith.constant dense<0.000000e+00> : vector<8x256xf32>
    %96 = tpu.matmul %95, %94, %cst_69 {dimension_numbers = #tpu.dot_dimension_numbers<[1], [0], [0], [1], [0, 0, 1, 1], [], []>} : vector<8x320xbf16>, vector<320x256xbf16>, vector<8x256xf32> -> vector<8x256xf32>
    %97 = arith.addf %91, %96 : vector<8x256xf32>
    %98 = vector.broadcast %2 : vector<1x256xf32> to vector<8x256xf32>
    %99 = arith.addf %97, %98 : vector<8x256xf32>
    %cst_70 = arith.constant 0.000000e+00 : f32
    %100 = vector.broadcast %cst_70 : f32 to vector<8x256xf32>
    %101 = arith.cmpf ogt, %99, %100 : vector<8x256xf32>
    %cst_71 = arith.constant 1.000000e-01 : f32
    %102 = vector.broadcast %cst_71 : f32 to vector<8x256xf32>
    %103 = arith.mulf %102, %99 : vector<8x256xf32>
    %104 = arith.select %101, %99, %103 : vector<8x256xi1>, vector<8x256xf32>
    %cst_72 = arith.constant 0.000000e+00 : f32
    %105 = vector.broadcast %cst_72 : f32 to vector<1x128xf32>
    %106 = vector.extract_strided_slice %104 {offsets = [0, 0], sizes = [1, 256], strides = [1, 1]} : vector<8x256xf32> to vector<1x256xf32>
    %c0_73 = arith.constant 0 : index
    %c0_74 = arith.constant 0 : index
    %c0_75 = arith.constant 0 : index
    %107 = vector.load %arg5[%c0_73, %c0_74, %c0_75] : memref<8x256x128xbf16, #tpu.memory_space<vmem>>, vector<1x256x128xbf16>
    %108 = vector.shape_cast %107 : vector<1x256x128xbf16> to vector<256x128xbf16>
    %109 = arith.truncf %106 : vector<1x256xf32> to vector<1x256xbf16>
    %cst_76 = arith.constant dense<0.000000e+00> : vector<1x128xf32>
    %110 = tpu.matmul %109, %108, %cst_76 {dimension_numbers = #tpu.dot_dimension_numbers<[1], [0], [0], [1], [0, 0, 1, 1], [], []>} : vector<1x256xbf16>, vector<256x128xbf16>, vector<1x128xf32> -> vector<1x128xf32>
    %111 = arith.addf %105, %110 : vector<1x128xf32>
    %112 = vector.extract_strided_slice %104 {offsets = [1, 0], sizes = [1, 256], strides = [1, 1]} : vector<8x256xf32> to vector<1x256xf32>
    %c1_77 = arith.constant 1 : index
    %c0_78 = arith.constant 0 : index
    %c0_79 = arith.constant 0 : index
    %113 = vector.load %arg5[%c1_77, %c0_78, %c0_79] : memref<8x256x128xbf16, #tpu.memory_space<vmem>>, vector<1x256x128xbf16>
    %114 = vector.shape_cast %113 : vector<1x256x128xbf16> to vector<256x128xbf16>
    %115 = arith.truncf %112 : vector<1x256xf32> to vector<1x256xbf16>
    %cst_80 = arith.constant dense<0.000000e+00> : vector<1x128xf32>
    %116 = tpu.matmul %115, %114, %cst_80 {dimension_numbers = #tpu.dot_dimension_numbers<[1], [0], [0], [1], [0, 0, 1, 1], [], []>} : vector<1x256xbf16>, vector<256x128xbf16>, vector<1x128xf32> -> vector<1x128xf32>
    %117 = arith.addf %111, %116 : vector<1x128xf32>
    %118 = vector.extract_strided_slice %104 {offsets = [2, 0], sizes = [1, 256], strides = [1, 1]} : vector<8x256xf32> to vector<1x256xf32>
    %c2_81 = arith.constant 2 : index
    %c0_82 = arith.constant 0 : index
    %c0_83 = arith.constant 0 : index
    %119 = vector.load %arg5[%c2_81, %c0_82, %c0_83] : memref<8x256x128xbf16, #tpu.memory_space<vmem>>, vector<1x256x128xbf16>
    %120 = vector.shape_cast %119 : vector<1x256x128xbf16> to vector<256x128xbf16>
    %121 = arith.truncf %118 : vector<1x256xf32> to vector<1x256xbf16>
    %cst_84 = arith.constant dense<0.000000e+00> : vector<1x128xf32>
    %122 = tpu.matmul %121, %120, %cst_84 {dimension_numbers = #tpu.dot_dimension_numbers<[1], [0], [0], [1], [0, 0, 1, 1], [], []>} : vector<1x256xbf16>, vector<256x128xbf16>, vector<1x128xf32> -> vector<1x128xf32>
    %123 = arith.addf %117, %122 : vector<1x128xf32>
    %124 = vector.extract_strided_slice %104 {offsets = [3, 0], sizes = [1, 256], strides = [1, 1]} : vector<8x256xf32> to vector<1x256xf32>
    %c3_85 = arith.constant 3 : index
    %c0_86 = arith.constant 0 : index
    %c0_87 = arith.constant 0 : index
    %125 = vector.load %arg5[%c3_85, %c0_86, %c0_87] : memref<8x256x128xbf16, #tpu.memory_space<vmem>>, vector<1x256x128xbf16>
    %126 = vector.shape_cast %125 : vector<1x256x128xbf16> to vector<256x128xbf16>
    %127 = arith.truncf %124 : vector<1x256xf32> to vector<1x256xbf16>
    %cst_88 = arith.constant dense<0.000000e+00> : vector<1x128xf32>
    %128 = tpu.matmul %127, %126, %cst_88 {dimension_numbers = #tpu.dot_dimension_numbers<[1], [0], [0], [1], [0, 0, 1, 1], [], []>} : vector<1x256xbf16>, vector<256x128xbf16>, vector<1x128xf32> -> vector<1x128xf32>
    %129 = arith.addf %123, %128 : vector<1x128xf32>
    %130 = vector.extract_strided_slice %104 {offsets = [4, 0], sizes = [1, 256], strides = [1, 1]} : vector<8x256xf32> to vector<1x256xf32>
    %c4_89 = arith.constant 4 : index
    %c0_90 = arith.constant 0 : index
    %c0_91 = arith.constant 0 : index
    %131 = vector.load %arg5[%c4_89, %c0_90, %c0_91] : memref<8x256x128xbf16, #tpu.memory_space<vmem>>, vector<1x256x128xbf16>
    %132 = vector.shape_cast %131 : vector<1x256x128xbf16> to vector<256x128xbf16>
    %133 = arith.truncf %130 : vector<1x256xf32> to vector<1x256xbf16>
    %cst_92 = arith.constant dense<0.000000e+00> : vector<1x128xf32>
    %134 = tpu.matmul %133, %132, %cst_92 {dimension_numbers = #tpu.dot_dimension_numbers<[1], [0], [0], [1], [0, 0, 1, 1], [], []>} : vector<1x256xbf16>, vector<256x128xbf16>, vector<1x128xf32> -> vector<1x128xf32>
    %135 = arith.addf %129, %134 : vector<1x128xf32>
    %136 = vector.extract_strided_slice %104 {offsets = [5, 0], sizes = [1, 256], strides = [1, 1]} : vector<8x256xf32> to vector<1x256xf32>
    %c5 = arith.constant 5 : index
    %c0_93 = arith.constant 0 : index
    %c0_94 = arith.constant 0 : index
    %137 = vector.load %arg5[%c5, %c0_93, %c0_94] : memref<8x256x128xbf16, #tpu.memory_space<vmem>>, vector<1x256x128xbf16>
    %138 = vector.shape_cast %137 : vector<1x256x128xbf16> to vector<256x128xbf16>
    %139 = arith.truncf %136 : vector<1x256xf32> to vector<1x256xbf16>
    %cst_95 = arith.constant dense<0.000000e+00> : vector<1x128xf32>
    %140 = tpu.matmul %139, %138, %cst_95 {dimension_numbers = #tpu.dot_dimension_numbers<[1], [0], [0], [1], [0, 0, 1, 1], [], []>} : vector<1x256xbf16>, vector<256x128xbf16>, vector<1x128xf32> -> vector<1x128xf32>
    %141 = arith.addf %135, %140 : vector<1x128xf32>
    %142 = vector.extract_strided_slice %104 {offsets = [6, 0], sizes = [1, 256], strides = [1, 1]} : vector<8x256xf32> to vector<1x256xf32>
    %c6 = arith.constant 6 : index
    %c0_96 = arith.constant 0 : index
    %c0_97 = arith.constant 0 : index
    %143 = vector.load %arg5[%c6, %c0_96, %c0_97] : memref<8x256x128xbf16, #tpu.memory_space<vmem>>, vector<1x256x128xbf16>
    %144 = vector.shape_cast %143 : vector<1x256x128xbf16> to vector<256x128xbf16>
    %145 = arith.truncf %142 : vector<1x256xf32> to vector<1x256xbf16>
    %cst_98 = arith.constant dense<0.000000e+00> : vector<1x128xf32>
    %146 = tpu.matmul %145, %144, %cst_98 {dimension_numbers = #tpu.dot_dimension_numbers<[1], [0], [0], [1], [0, 0, 1, 1], [], []>} : vector<1x256xbf16>, vector<256x128xbf16>, vector<1x128xf32> -> vector<1x128xf32>
    %147 = arith.addf %141, %146 : vector<1x128xf32>
    %148 = vector.extract_strided_slice %104 {offsets = [7, 0], sizes = [1, 256], strides = [1, 1]} : vector<8x256xf32> to vector<1x256xf32>
    %c7 = arith.constant 7 : index
    %c0_99 = arith.constant 0 : index
    %c0_100 = arith.constant 0 : index
    %149 = vector.load %arg5[%c7, %c0_99, %c0_100] : memref<8x256x128xbf16, #tpu.memory_space<vmem>>, vector<1x256x128xbf16>
    %150 = vector.shape_cast %149 : vector<1x256x128xbf16> to vector<256x128xbf16>
    %151 = arith.truncf %148 : vector<1x256xf32> to vector<1x256xbf16>
    %cst_101 = arith.constant dense<0.000000e+00> : vector<1x128xf32>
    %152 = tpu.matmul %151, %150, %cst_101 {dimension_numbers = #tpu.dot_dimension_numbers<[1], [0], [0], [1], [0, 0, 1, 1], [], []>} : vector<1x256xbf16>, vector<256x128xbf16>, vector<1x128xf32> -> vector<1x128xf32>
    %153 = arith.addf %147, %152 : vector<1x128xf32>
    %154 = arith.addf %153, %3 : vector<1x128xf32>
    %cst_102 = arith.constant 0.000000e+00 : f32
    %155 = vector.broadcast %cst_102 : f32 to vector<1x128xf32>
    %156 = arith.cmpf ogt, %154, %155 : vector<1x128xf32>
    %cst_103 = arith.constant 1.000000e-01 : f32
    %157 = vector.broadcast %cst_103 : f32 to vector<1x128xf32>
    %158 = arith.mulf %157, %154 : vector<1x128xf32>
    %159 = arith.select %156, %154, %158 : vector<1x128xi1>, vector<1x128xf32>
    %c0_104 = arith.constant 0 : index
    %c0_105 = arith.constant 0 : index
    %160 = vector.load %arg6[%c0_104, %c0_105] : memref<128x128xbf16, #tpu.memory_space<vmem>>, vector<128x128xbf16>
    %161 = arith.truncf %159 : vector<1x128xf32> to vector<1x128xbf16>
    %cst_106 = arith.constant dense<0.000000e+00> : vector<1x128xf32>
    %162 = tpu.matmul %161, %160, %cst_106 {dimension_numbers = #tpu.dot_dimension_numbers<[1], [0], [0], [1], [0, 0, 1, 1], [], []>} : vector<1x128xbf16>, vector<128x128xbf16>, vector<1x128xf32> -> vector<1x128xf32>
    %163 = arith.addf %162, %4 : vector<1x128xf32>
    %c0_107 = arith.constant 0 : index
    %c0_108 = arith.constant 0 : index
    %164 = vector.load %arg12[%c0_107, %c0_108] : memref<2x128xf32, #tpu.memory_space<vmem>>, vector<1x128xf32>
    tpu.vector_store %arg12[%c0_107, %c0_108], %163 {strides = array<i32>} : memref<2x128xf32, #tpu.memory_space<vmem>>, vector<1x128xf32>,
    %cst_109 = arith.constant 0.000000e+00 : f32
    %165 = vector.broadcast %cst_109 : f32 to vector<12x384xf32>
    %c2_110 = arith.constant 2 : index
    %c0_111 = arith.constant 0 : index
    %c0_112 = arith.constant 0 : index
    %166 = vector.load %arg1[%c2_110, %c0_111, %c0_112] : memref<4x14x28xf32, #tpu.memory_space<vmem>>, vector<1x14x28xf32>
    %167 = vector.shape_cast %166 : vector<1x14x28xf32> to vector<14x28xf32>
    %168 = vector.extract_strided_slice %167 {offsets = [0, 0], sizes = [12, 28], strides = [1, 1]} : vector<14x28xf32> to vector<12x28xf32>
    %c0_113 = arith.constant 0 : index
    %c0_114 = arith.constant 0 : index
    %c0_115 = arith.constant 0 : index
    %169 = vector.load %arg2[%c0_113, %c0_114, %c0_115] : memref<5x28x384xbf16, #tpu.memory_space<vmem>>, vector<1x28x384xbf16>
    %170 = vector.shape_cast %169 : vector<1x28x384xbf16> to vector<28x384xbf16>
    %171 = arith.truncf %168 : vector<12x28xf32> to vector<12x28xbf16>
    %cst_116 = arith.constant dense<0.000000e+00> : vector<12x384xf32>
    %172 = tpu.matmul %171, %170, %cst_116 {dimension_numbers = #tpu.dot_dimension_numbers<[1], [0], [0], [1], [0, 0, 1, 1], [], []>} : vector<12x28xbf16>, vector<28x384xbf16>, vector<12x384xf32> -> vector<12x384xf32>
    %173 = arith.addf %165, %172 : vector<12x384xf32>
    %c3_117 = arith.constant 3 : index
    %c0_118 = arith.constant 0 : index
    %c0_119 = arith.constant 0 : index
    %174 = vector.load %arg1[%c3_117, %c0_118, %c0_119] : memref<4x14x28xf32, #tpu.memory_space<vmem>>, vector<1x14x28xf32>
    %175 = vector.shape_cast %174 : vector<1x14x28xf32> to vector<14x28xf32>
    %176 = vector.extract_strided_slice %175 {offsets = [0, 0], sizes = [12, 28], strides = [1, 1]} : vector<14x28xf32> to vector<12x28xf32>
    %c1_120 = arith.constant 1 : index
    %c0_121 = arith.constant 0 : index
    %c0_122 = arith.constant 0 : index
    %177 = vector.load %arg2[%c1_120, %c0_121, %c0_122] : memref<5x28x384xbf16, #tpu.memory_space<vmem>>, vector<1x28x384xbf16>
    %178 = vector.shape_cast %177 : vector<1x28x384xbf16> to vector<28x384xbf16>
    %179 = arith.truncf %176 : vector<12x28xf32> to vector<12x28xbf16>
    %cst_123 = arith.constant dense<0.000000e+00> : vector<12x384xf32>
    %180 = tpu.matmul %179, %178, %cst_123 {dimension_numbers = #tpu.dot_dimension_numbers<[1], [0], [0], [1], [0, 0, 1, 1], [], []>} : vector<12x28xbf16>, vector<28x384xbf16>, vector<12x384xf32> -> vector<12x384xf32>
    %181 = arith.addf %173, %180 : vector<12x384xf32>
    %c2_124 = arith.constant 2 : index
    %c0_125 = arith.constant 0 : index
    %c0_126 = arith.constant 0 : index
    %182 = vector.load %arg1[%c2_124, %c0_125, %c0_126] : memref<4x14x28xf32, #tpu.memory_space<vmem>>, vector<1x14x28xf32>
    %183 = vector.shape_cast %182 : vector<1x14x28xf32> to vector<14x28xf32>
    %184 = vector.extract_strided_slice %183 {offsets = [1, 0], sizes = [12, 28], strides = [1, 1]} : vector<14x28xf32> to vector<12x28xf32>
    %c2_127 = arith.constant 2 : index
    %c0_128 = arith.constant 0 : index
    %c0_129 = arith.constant 0 : index
    %185 = vector.load %arg2[%c2_127, %c0_128, %c0_129] : memref<5x28x384xbf16, #tpu.memory_space<vmem>>, vector<1x28x384xbf16>
    %186 = vector.shape_cast %185 : vector<1x28x384xbf16> to vector<28x384xbf16>
    %187 = arith.truncf %184 : vector<12x28xf32> to vector<12x28xbf16>
    %cst_130 = arith.constant dense<0.000000e+00> : vector<12x384xf32>
    %188 = tpu.matmul %187, %186, %cst_130 {dimension_numbers = #tpu.dot_dimension_numbers<[1], [0], [0], [1], [0, 0, 1, 1], [], []>} : vector<12x28xbf16>, vector<28x384xbf16>, vector<12x384xf32> -> vector<12x384xf32>
    %189 = arith.addf %181, %188 : vector<12x384xf32>
    %c3_131 = arith.constant 3 : index
    %c0_132 = arith.constant 0 : index
    %c0_133 = arith.constant 0 : index
    %190 = vector.load %arg1[%c3_131, %c0_132, %c0_133] : memref<4x14x28xf32, #tpu.memory_space<vmem>>, vector<1x14x28xf32>
    %191 = vector.shape_cast %190 : vector<1x14x28xf32> to vector<14x28xf32>
    %192 = vector.extract_strided_slice %191 {offsets = [1, 0], sizes = [12, 28], strides = [1, 1]} : vector<14x28xf32> to vector<12x28xf32>
    %c3_134 = arith.constant 3 : index
    %c0_135 = arith.constant 0 : index
    %c0_136 = arith.constant 0 : index
    %193 = vector.load %arg2[%c3_134, %c0_135, %c0_136] : memref<5x28x384xbf16, #tpu.memory_space<vmem>>, vector<1x28x384xbf16>
    %194 = vector.shape_cast %193 : vector<1x28x384xbf16> to vector<28x384xbf16>
    %195 = arith.truncf %192 : vector<12x28xf32> to vector<12x28xbf16>
    %cst_137 = arith.constant dense<0.000000e+00> : vector<12x384xf32>
    %196 = tpu.matmul %195, %194, %cst_137 {dimension_numbers = #tpu.dot_dimension_numbers<[1], [0], [0], [1], [0, 0, 1, 1], [], []>} : vector<12x28xbf16>, vector<28x384xbf16>, vector<12x384xf32> -> vector<12x384xf32>
    %197 = arith.addf %189, %196 : vector<12x384xf32>
    %c2_138 = arith.constant 2 : index
    %c0_139 = arith.constant 0 : index
    %c0_140 = arith.constant 0 : index
    %198 = vector.load %arg1[%c2_138, %c0_139, %c0_140] : memref<4x14x28xf32, #tpu.memory_space<vmem>>, vector<1x14x28xf32>
    %199 = vector.shape_cast %198 : vector<1x14x28xf32> to vector<14x28xf32>
    %200 = vector.extract_strided_slice %199 {offsets = [2, 0], sizes = [12, 28], strides = [1, 1]} : vector<14x28xf32> to vector<12x28xf32>
    %c4_141 = arith.constant 4 : index
    %c0_142 = arith.constant 0 : index
    %c0_143 = arith.constant 0 : index
    %201 = vector.load %arg2[%c4_141, %c0_142, %c0_143] : memref<5x28x384xbf16, #tpu.memory_space<vmem>>, vector<1x28x384xbf16>
    %202 = vector.shape_cast %201 : vector<1x28x384xbf16> to vector<28x384xbf16>
    %203 = arith.truncf %200 : vector<12x28xf32> to vector<12x28xbf16>
    %cst_144 = arith.constant dense<0.000000e+00> : vector<12x384xf32>
    %204 = tpu.matmul %203, %202, %cst_144 {dimension_numbers = #tpu.dot_dimension_numbers<[1], [0], [0], [1], [0, 0, 1, 1], [], []>} : vector<12x28xbf16>, vector<28x384xbf16>, vector<12x384xf32> -> vector<12x384xf32>
    %205 = arith.addf %197, %204 : vector<12x384xf32>
    %206 = vector.broadcast %0 : vector<1x384xf32> to vector<12x384xf32>
    %207 = arith.addf %205, %206 : vector<12x384xf32>
    %cst_145 = arith.constant 0.000000e+00 : f32
    %208 = vector.broadcast %cst_145 : f32 to vector<12x384xf32>
    %209 = arith.cmpf ogt, %207, %208 : vector<12x384xf32>
    %cst_146 = arith.constant 1.000000e-01 : f32
    %210 = vector.broadcast %cst_146 : f32 to vector<12x384xf32>
    %211 = arith.mulf %210, %207 : vector<12x384xf32>
    %212 = arith.select %209, %207, %211 : vector<12x384xi1>, vector<12x384xf32>
    %cst_147 = arith.constant 0.000000e+00 : f32
    %213 = vector.broadcast %cst_147 : f32 to vector<10x320xf32>
    %214 = vector.extract_strided_slice %212 {offsets = [0, 0], sizes = [10, 384], strides = [1, 1]} : vector<12x384xf32> to vector<10x384xf32>
    %c0_148 = arith.constant 0 : index
    %c0_149 = arith.constant 0 : index
    %c0_150 = arith.constant 0 : index
    %215 = vector.load %arg3[%c0_148, %c0_149, %c0_150] : memref<3x384x320xbf16, #tpu.memory_space<vmem>>, vector<1x384x320xbf16>
    %216 = vector.shape_cast %215 : vector<1x384x320xbf16> to vector<384x320xbf16>
    %217 = arith.truncf %214 : vector<10x384xf32> to vector<10x384xbf16>
    %cst_151 = arith.constant dense<0.000000e+00> : vector<10x320xf32>
    %218 = tpu.matmul %217, %216, %cst_151 {dimension_numbers = #tpu.dot_dimension_numbers<[1], [0], [0], [1], [0, 0, 1, 1], [], []>} : vector<10x384xbf16>, vector<384x320xbf16>, vector<10x320xf32> -> vector<10x320xf32>
    %219 = arith.addf %213, %218 : vector<10x320xf32>
    %220 = vector.extract_strided_slice %212 {offsets = [1, 0], sizes = [10, 384], strides = [1, 1]} : vector<12x384xf32> to vector<10x384xf32>
    %c1_152 = arith.constant 1 : index
    %c0_153 = arith.constant 0 : index
    %c0_154 = arith.constant 0 : index
    %221 = vector.load %arg3[%c1_152, %c0_153, %c0_154] : memref<3x384x320xbf16, #tpu.memory_space<vmem>>, vector<1x384x320xbf16>
    %222 = vector.shape_cast %221 : vector<1x384x320xbf16> to vector<384x320xbf16>
    %223 = arith.truncf %220 : vector<10x384xf32> to vector<10x384xbf16>
    %cst_155 = arith.constant dense<0.000000e+00> : vector<10x320xf32>
    %224 = tpu.matmul %223, %222, %cst_155 {dimension_numbers = #tpu.dot_dimension_numbers<[1], [0], [0], [1], [0, 0, 1, 1], [], []>} : vector<10x384xbf16>, vector<384x320xbf16>, vector<10x320xf32> -> vector<10x320xf32>
    %225 = arith.addf %219, %224 : vector<10x320xf32>
    %226 = vector.extract_strided_slice %212 {offsets = [2, 0], sizes = [10, 384], strides = [1, 1]} : vector<12x384xf32> to vector<10x384xf32>
    %c2_156 = arith.constant 2 : index
    %c0_157 = arith.constant 0 : index
    %c0_158 = arith.constant 0 : index
    %227 = vector.load %arg3[%c2_156, %c0_157, %c0_158] : memref<3x384x320xbf16, #tpu.memory_space<vmem>>, vector<1x384x320xbf16>
    %228 = vector.shape_cast %227 : vector<1x384x320xbf16> to vector<384x320xbf16>
    %229 = arith.truncf %226 : vector<10x384xf32> to vector<10x384xbf16>
    %cst_159 = arith.constant dense<0.000000e+00> : vector<10x320xf32>
    %230 = tpu.matmul %229, %228, %cst_159 {dimension_numbers = #tpu.dot_dimension_numbers<[1], [0], [0], [1], [0, 0, 1, 1], [], []>} : vector<10x384xbf16>, vector<384x320xbf16>, vector<10x320xf32> -> vector<10x320xf32>
    %231 = arith.addf %225, %230 : vector<10x320xf32>
    %232 = vector.broadcast %1 : vector<1x320xf32> to vector<10x320xf32>
    %233 = arith.addf %231, %232 : vector<10x320xf32>
    %cst_160 = arith.constant 0.000000e+00 : f32
    %234 = vector.broadcast %cst_160 : f32 to vector<10x320xf32>
    %235 = arith.cmpf ogt, %233, %234 : vector<10x320xf32>
    %cst_161 = arith.constant 1.000000e-01 : f32
    %236 = vector.broadcast %cst_161 : f32 to vector<10x320xf32>
    %237 = arith.mulf %236, %233 : vector<10x320xf32>
    %238 = arith.select %235, %233, %237 : vector<10x320xi1>, vector<10x320xf32>
    %cst_162 = arith.constant 0.000000e+00 : f32
    %239 = vector.broadcast %cst_162 : f32 to vector<8x256xf32>
    %240 = vector.extract_strided_slice %238 {offsets = [0, 0], sizes = [8, 320], strides = [1, 1]} : vector<10x320xf32> to vector<8x320xf32>
    %c0_163 = arith.constant 0 : index
    %c0_164 = arith.constant 0 : index
    %c0_165 = arith.constant 0 : index
    %241 = vector.load %arg4[%c0_163, %c0_164, %c0_165] : memref<3x320x256xbf16, #tpu.memory_space<vmem>>, vector<1x320x256xbf16>
    %242 = vector.shape_cast %241 : vector<1x320x256xbf16> to vector<320x256xbf16>
    %243 = arith.truncf %240 : vector<8x320xf32> to vector<8x320xbf16>
    %cst_166 = arith.constant dense<0.000000e+00> : vector<8x256xf32>
    %244 = tpu.matmul %243, %242, %cst_166 {dimension_numbers = #tpu.dot_dimension_numbers<[1], [0], [0], [1], [0, 0, 1, 1], [], []>} : vector<8x320xbf16>, vector<320x256xbf16>, vector<8x256xf32> -> vector<8x256xf32>
    %245 = arith.addf %239, %244 : vector<8x256xf32>
    %246 = vector.extract_strided_slice %238 {offsets = [1, 0], sizes = [8, 320], strides = [1, 1]} : vector<10x320xf32> to vector<8x320xf32>
    %c1_167 = arith.constant 1 : index
    %c0_168 = arith.constant 0 : index
    %c0_169 = arith.constant 0 : index
    %247 = vector.load %arg4[%c1_167, %c0_168, %c0_169] : memref<3x320x256xbf16, #tpu.memory_space<vmem>>, vector<1x320x256xbf16>
    %248 = vector.shape_cast %247 : vector<1x320x256xbf16> to vector<320x256xbf16>
    %249 = arith.truncf %246 : vector<8x320xf32> to vector<8x320xbf16>
    %cst_170 = arith.constant dense<0.000000e+00> : vector<8x256xf32>
    %250 = tpu.matmul %249, %248, %cst_170 {dimension_numbers = #tpu.dot_dimension_numbers<[1], [0], [0], [1], [0, 0, 1, 1], [], []>} : vector<8x320xbf16>, vector<320x256xbf16>, vector<8x256xf32> -> vector<8x256xf32>
    %251 = arith.addf %245, %250 : vector<8x256xf32>
    %252 = vector.extract_strided_slice %238 {offsets = [2, 0], sizes = [8, 320], strides = [1, 1]} : vector<10x320xf32> to vector<8x320xf32>
    %c2_171 = arith.constant 2 : index
    %c0_172 = arith.constant 0 : index
    %c0_173 = arith.constant 0 : index
    %253 = vector.load %arg4[%c2_171, %c0_172, %c0_173] : memref<3x320x256xbf16, #tpu.memory_space<vmem>>, vector<1x320x256xbf16>
    %254 = vector.shape_cast %253 : vector<1x320x256xbf16> to vector<320x256xbf16>
    %255 = arith.truncf %252 : vector<8x320xf32> to vector<8x320xbf16>
    %cst_174 = arith.constant dense<0.000000e+00> : vector<8x256xf32>
    %256 = tpu.matmul %255, %254, %cst_174 {dimension_numbers = #tpu.dot_dimension_numbers<[1], [0], [0], [1], [0, 0, 1, 1], [], []>} : vector<8x320xbf16>, vector<320x256xbf16>, vector<8x256xf32> -> vector<8x256xf32>
    %257 = arith.addf %251, %256 : vector<8x256xf32>
    %258 = vector.broadcast %2 : vector<1x256xf32> to vector<8x256xf32>
    %259 = arith.addf %257, %258 : vector<8x256xf32>
    %cst_175 = arith.constant 0.000000e+00 : f32
    %260 = vector.broadcast %cst_175 : f32 to vector<8x256xf32>
    %261 = arith.cmpf ogt, %259, %260 : vector<8x256xf32>
    %cst_176 = arith.constant 1.000000e-01 : f32
    %262 = vector.broadcast %cst_176 : f32 to vector<8x256xf32>
    %263 = arith.mulf %262, %259 : vector<8x256xf32>
    %264 = arith.select %261, %259, %263 : vector<8x256xi1>, vector<8x256xf32>
    %cst_177 = arith.constant 0.000000e+00 : f32
    %265 = vector.broadcast %cst_177 : f32 to vector<1x128xf32>
    %266 = vector.extract_strided_slice %264 {offsets = [0, 0], sizes = [1, 256], strides = [1, 1]} : vector<8x256xf32> to vector<1x256xf32>
    %c0_178 = arith.constant 0 : index
    %c0_179 = arith.constant 0 : index
    %c0_180 = arith.constant 0 : index
    %267 = vector.load %arg5[%c0_178, %c0_179, %c0_180] : memref<8x256x128xbf16, #tpu.memory_space<vmem>>, vector<1x256x128xbf16>
    %268 = vector.shape_cast %267 : vector<1x256x128xbf16> to vector<256x128xbf16>
    %269 = arith.truncf %266 : vector<1x256xf32> to vector<1x256xbf16>
    %cst_181 = arith.constant dense<0.000000e+00> : vector<1x128xf32>
    %270 = tpu.matmul %269, %268, %cst_181 {dimension_numbers = #tpu.dot_dimension_numbers<[1], [0], [0], [1], [0, 0, 1, 1], [], []>} : vector<1x256xbf16>, vector<256x128xbf16>, vector<1x128xf32> -> vector<1x128xf32>
    %271 = arith.addf %265, %270 : vector<1x128xf32>
    %272 = vector.extract_strided_slice %264 {offsets = [1, 0], sizes = [1, 256], strides = [1, 1]} : vector<8x256xf32> to vector<1x256xf32>
    %c1_182 = arith.constant 1 : index
    %c0_183 = arith.constant 0 : index
    %c0_184 = arith.constant 0 : index
    %273 = vector.load %arg5[%c1_182, %c0_183, %c0_184] : memref<8x256x128xbf16, #tpu.memory_space<vmem>>, vector<1x256x128xbf16>
    %274 = vector.shape_cast %273 : vector<1x256x128xbf16> to vector<256x128xbf16>
    %275 = arith.truncf %272 : vector<1x256xf32> to vector<1x256xbf16>
    %cst_185 = arith.constant dense<0.000000e+00> : vector<1x128xf32>
    %276 = tpu.matmul %275, %274, %cst_185 {dimension_numbers = #tpu.dot_dimension_numbers<[1], [0], [0], [1], [0, 0, 1, 1], [], []>} : vector<1x256xbf16>, vector<256x128xbf16>, vector<1x128xf32> -> vector<1x128xf32>
    %277 = arith.addf %271, %276 : vector<1x128xf32>
    %278 = vector.extract_strided_slice %264 {offsets = [2, 0], sizes = [1, 256], strides = [1, 1]} : vector<8x256xf32> to vector<1x256xf32>
    %c2_186 = arith.constant 2 : index
    %c0_187 = arith.constant 0 : index
    %c0_188 = arith.constant 0 : index
    %279 = vector.load %arg5[%c2_186, %c0_187, %c0_188] : memref<8x256x128xbf16, #tpu.memory_space<vmem>>, vector<1x256x128xbf16>
    %280 = vector.shape_cast %279 : vector<1x256x128xbf16> to vector<256x128xbf16>
    %281 = arith.truncf %278 : vector<1x256xf32> to vector<1x256xbf16>
    %cst_189 = arith.constant dense<0.000000e+00> : vector<1x128xf32>
    %282 = tpu.matmul %281, %280, %cst_189 {dimension_numbers = #tpu.dot_dimension_numbers<[1], [0], [0], [1], [0, 0, 1, 1], [], []>} : vector<1x256xbf16>, vector<256x128xbf16>, vector<1x128xf32> -> vector<1x128xf32>
    %283 = arith.addf %277, %282 : vector<1x128xf32>
    %284 = vector.extract_strided_slice %264 {offsets = [3, 0], sizes = [1, 256], strides = [1, 1]} : vector<8x256xf32> to vector<1x256xf32>
    %c3_190 = arith.constant 3 : index
    %c0_191 = arith.constant 0 : index
    %c0_192 = arith.constant 0 : index
    %285 = vector.load %arg5[%c3_190, %c0_191, %c0_192] : memref<8x256x128xbf16, #tpu.memory_space<vmem>>, vector<1x256x128xbf16>
    %286 = vector.shape_cast %285 : vector<1x256x128xbf16> to vector<256x128xbf16>
    %287 = arith.truncf %284 : vector<1x256xf32> to vector<1x256xbf16>
    %cst_193 = arith.constant dense<0.000000e+00> : vector<1x128xf32>
    %288 = tpu.matmul %287, %286, %cst_193 {dimension_numbers = #tpu.dot_dimension_numbers<[1], [0], [0], [1], [0, 0, 1, 1], [], []>} : vector<1x256xbf16>, vector<256x128xbf16>, vector<1x128xf32> -> vector<1x128xf32>
    %289 = arith.addf %283, %288 : vector<1x128xf32>
    %290 = vector.extract_strided_slice %264 {offsets = [4, 0], sizes = [1, 256], strides = [1, 1]} : vector<8x256xf32> to vector<1x256xf32>
    %c4_194 = arith.constant 4 : index
    %c0_195 = arith.constant 0 : index
    %c0_196 = arith.constant 0 : index
    %291 = vector.load %arg5[%c4_194, %c0_195, %c0_196] : memref<8x256x128xbf16, #tpu.memory_space<vmem>>, vector<1x256x128xbf16>
    %292 = vector.shape_cast %291 : vector<1x256x128xbf16> to vector<256x128xbf16>
    %293 = arith.truncf %290 : vector<1x256xf32> to vector<1x256xbf16>
    %cst_197 = arith.constant dense<0.000000e+00> : vector<1x128xf32>
    %294 = tpu.matmul %293, %292, %cst_197 {dimension_numbers = #tpu.dot_dimension_numbers<[1], [0], [0], [1], [0, 0, 1, 1], [], []>} : vector<1x256xbf16>, vector<256x128xbf16>, vector<1x128xf32> -> vector<1x128xf32>
    %295 = arith.addf %289, %294 : vector<1x128xf32>
    %296 = vector.extract_strided_slice %264 {offsets = [5, 0], sizes = [1, 256], strides = [1, 1]} : vector<8x256xf32> to vector<1x256xf32>
    %c5_198 = arith.constant 5 : index
    %c0_199 = arith.constant 0 : index
    %c0_200 = arith.constant 0 : index
    %297 = vector.load %arg5[%c5_198, %c0_199, %c0_200] : memref<8x256x128xbf16, #tpu.memory_space<vmem>>, vector<1x256x128xbf16>
    %298 = vector.shape_cast %297 : vector<1x256x128xbf16> to vector<256x128xbf16>
    %299 = arith.truncf %296 : vector<1x256xf32> to vector<1x256xbf16>
    %cst_201 = arith.constant dense<0.000000e+00> : vector<1x128xf32>
    %300 = tpu.matmul %299, %298, %cst_201 {dimension_numbers = #tpu.dot_dimension_numbers<[1], [0], [0], [1], [0, 0, 1, 1], [], []>} : vector<1x256xbf16>, vector<256x128xbf16>, vector<1x128xf32> -> vector<1x128xf32>
    %301 = arith.addf %295, %300 : vector<1x128xf32>
    %302 = vector.extract_strided_slice %264 {offsets = [6, 0], sizes = [1, 256], strides = [1, 1]} : vector<8x256xf32> to vector<1x256xf32>
    %c6_202 = arith.constant 6 : index
    %c0_203 = arith.constant 0 : index
    %c0_204 = arith.constant 0 : index
    %303 = vector.load %arg5[%c6_202, %c0_203, %c0_204] : memref<8x256x128xbf16, #tpu.memory_space<vmem>>, vector<1x256x128xbf16>
    %304 = vector.shape_cast %303 : vector<1x256x128xbf16> to vector<256x128xbf16>
    %305 = arith.truncf %302 : vector<1x256xf32> to vector<1x256xbf16>
    %cst_205 = arith.constant dense<0.000000e+00> : vector<1x128xf32>
    %306 = tpu.matmul %305, %304, %cst_205 {dimension_numbers = #tpu.dot_dimension_numbers<[1], [0], [0], [1], [0, 0, 1, 1], [], []>} : vector<1x256xbf16>, vector<256x128xbf16>, vector<1x128xf32> -> vector<1x128xf32>
    %307 = arith.addf %301, %306 : vector<1x128xf32>
    %308 = vector.extract_strided_slice %264 {offsets = [7, 0], sizes = [1, 256], strides = [1, 1]} : vector<8x256xf32> to vector<1x256xf32>
    %c7_206 = arith.constant 7 : index
    %c0_207 = arith.constant 0 : index
    %c0_208 = arith.constant 0 : index
    %309 = vector.load %arg5[%c7_206, %c0_207, %c0_208] : memref<8x256x128xbf16, #tpu.memory_space<vmem>>, vector<1x256x128xbf16>
    %310 = vector.shape_cast %309 : vector<1x256x128xbf16> to vector<256x128xbf16>
    %311 = arith.truncf %308 : vector<1x256xf32> to vector<1x256xbf16>
    %cst_209 = arith.constant dense<0.000000e+00> : vector<1x128xf32>
    %312 = tpu.matmul %311, %310, %cst_209 {dimension_numbers = #tpu.dot_dimension_numbers<[1], [0], [0], [1], [0, 0, 1, 1], [], []>} : vector<1x256xbf16>, vector<256x128xbf16>, vector<1x128xf32> -> vector<1x128xf32>
    %313 = arith.addf %307, %312 : vector<1x128xf32>
    %314 = arith.addf %313, %3 : vector<1x128xf32>
    %cst_210 = arith.constant 0.000000e+00 : f32
    %315 = vector.broadcast %cst_210 : f32 to vector<1x128xf32>
    %316 = arith.cmpf ogt, %314, %315 : vector<1x128xf32>
    %cst_211 = arith.constant 1.000000e-01 : f32
    %317 = vector.broadcast %cst_211 : f32 to vector<1x128xf32>
    %318 = arith.mulf %317, %314 : vector<1x128xf32>
    %319 = arith.select %316, %314, %318 : vector<1x128xi1>, vector<1x128xf32>
    %c0_212 = arith.constant 0 : index
    %c0_213 = arith.constant 0 : index
    %320 = vector.load %arg6[%c0_212, %c0_213] : memref<128x128xbf16, #tpu.memory_space<vmem>>, vector<128x128xbf16>
    %321 = arith.truncf %319 : vector<1x128xf32> to vector<1x128xbf16>
    %cst_214 = arith.constant dense<0.000000e+00> : vector<1x128xf32>
    %322 = tpu.matmul %321, %320, %cst_214 {dimension_numbers = #tpu.dot_dimension_numbers<[1], [0], [0], [1], [0, 0, 1, 1], [], []>} : vector<1x128xbf16>, vector<128x128xbf16>, vector<1x128xf32> -> vector<1x128xf32>
    %323 = arith.addf %322, %4 : vector<1x128xf32>
    %c1_215 = arith.constant 1 : index
    %c0_216 = arith.constant 0 : index
    %324 = vector.load %arg12[%c1_215, %c0_216] : memref<2x128xf32, #tpu.memory_space<vmem>>, vector<1x128xf32>
    tpu.vector_store %arg12[%c1_215, %c0_216], %323 {strides = array<i32>} : memref<2x128xf32, #tpu.memory_space<vmem>>, vector<1x128xf32>,
    return
  }
  func.func @transform_0(%arg0: i32) -> (i32, i32, i32) {
    %c0_i32 = arith.constant 0 : i32
    %c0_i32_0 = arith.constant 0 : i32
    %c0_i32_1 = arith.constant 0 : i32
    %c0_i32_2 = arith.constant 0 : i32
    return %c0_i32, %c0_i32_0, %c0_i32_1 : i32, i32, i32
  }
  func.func @transform_1(%arg0: i32) -> (i32, i32, i32) {
    %c0_i32 = arith.constant 0 : i32
    %c0_i32_0 = arith.constant 0 : i32
    %c0_i32_1 = arith.constant 0 : i32
    %c0_i32_2 = arith.constant 0 : i32
    return %c0_i32, %c0_i32_0, %c0_i32_1 : i32, i32, i32
  }
  func.func @transform_2(%arg0: i32) -> (i32, i32, i32) {
    %c0_i32 = arith.constant 0 : i32
    %c0_i32_0 = arith.constant 0 : i32
    %c0_i32_1 = arith.constant 0 : i32
    %c0_i32_2 = arith.constant 0 : i32
    return %c0_i32, %c0_i32_0, %c0_i32_1 : i32, i32, i32
  }
  func.func @transform_3(%arg0: i32) -> (i32, i32, i32) {
    %c0_i32 = arith.constant 0 : i32
    %c0_i32_0 = arith.constant 0 : i32
    %c0_i32_1 = arith.constant 0 : i32
    %c0_i32_2 = arith.constant 0 : i32
    return %c0_i32, %c0_i32_0, %c0_i32_1 : i32, i32, i32
  }
  func.func @transform_4(%arg0: i32) -> (i32, i32, i32) {
    %c0_i32 = arith.constant 0 : i32
    %c0_i32_0 = arith.constant 0 : i32
    %c0_i32_1 = arith.constant 0 : i32
    %c0_i32_2 = arith.constant 0 : i32
    return %c0_i32, %c0_i32_0, %c0_i32_1 : i32, i32, i32
  }
  func.func @transform_5(%arg0: i32) -> (i32, i32) {
    %c0_i32 = arith.constant 0 : i32
    %c0_i32_0 = arith.constant 0 : i32
    %c0_i32_1 = arith.constant 0 : i32
    return %c0_i32, %c0_i32_0 : i32, i32
  }
  func.func @transform_6(%arg0: i32) -> (i32, i32) {
    %c0_i32 = arith.constant 0 : i32
    %c0_i32_0 = arith.constant 0 : i32
    %c0_i32_1 = arith.constant 0 : i32
    return %c0_i32, %c0_i32_0 : i32, i32
  }
  func.func @transform_7(%arg0: i32) -> (i32, i32) {
    %c0_i32 = arith.constant 0 : i32
    %c0_i32_0 = arith.constant 0 : i32
    %c0_i32_1 = arith.constant 0 : i32
    return %c0_i32, %c0_i32_0 : i32, i32
  }
  func.func @transform_8(%arg0: i32) -> (i32, i32) {
    %c0_i32 = arith.constant 0 : i32
    %c0_i32_0 = arith.constant 0 : i32
    %c0_i32_1 = arith.constant 0 : i32
    return %c0_i32, %c0_i32_0 : i32, i32
  }
  func.func @transform_9(%arg0: i32) -> (i32, i32) {
    %c0_i32 = arith.constant 0 : i32
    %c0_i32_0 = arith.constant 0 : i32
    %c0_i32_1 = arith.constant 0 : i32
    return %c0_i32, %c0_i32_0 : i32, i32
  }
  func.func @transform_10(%arg0: i32) -> (i32, i32) {
    %c0_i32 = arith.constant 0 : i32
    %c0_i32_0 = arith.constant 0 : i32
    %c0_i32_1 = arith.constant 0 : i32
    return %c0_i32, %c0_i32_0 : i32, i32
  }
  func.func @transform_11(%arg0: i32) -> (i32, i32) {
    %c0_i32 = arith.constant 0 : i32
    %c0_i32_0 = arith.constant 0 : i32
    %c0_i32_1 = arith.constant 0 : i32
    return %c0_i32, %c0_i32_0 : i32, i32
  }
}

</mosaic_0001>

<llo_original>
// kernel: net_forward.1
$region0: #{net_forward.1}
  #allocation0 [shape = 'u32[]', space=smem, size = 0x4, offset = 0x4, fixed_abs, tag = 'smem constant byte address 0x4 - core index']
  #allocation1 [shape = 'u32[72,128]{1,0:T(1,128)}', space=vmem, size = 0x9000, scoped, tag = 'internal scratch']
  %s0 = inlined_call_operand.vmem [shape: f32[4,14,28], index: 0, kind: input, shape index: {}]
  %s1 = inlined_call_operand.vmem [shape: bf16[5,28,384], index: 1, kind: input, shape index: {}]
  %s2 = inlined_call_operand.vmem [shape: bf16[3,384,320], index: 2, kind: input, shape index: {}]
  %s3 = inlined_call_operand.vmem [shape: bf16[3,320,256], index: 3, kind: input, shape index: {}]
  %s4 = inlined_call_operand.vmem [shape: bf16[8,256,128], index: 4, kind: input, shape index: {}]
  %s5 = inlined_call_operand.vmem [shape: bf16[128,128], index: 5, kind: input, shape index: {}]
  %s6 = inlined_call_operand.vmem [shape: f32[1,384], index: 6, kind: input, shape index: {}]
  %s7 = inlined_call_operand.vmem [shape: f32[1,320], index: 7, kind: input, shape index: {}]
  %s8 = inlined_call_operand.vmem [shape: f32[1,256], index: 8, kind: input, shape index: {}]
  %s9 = inlined_call_operand.vmem [shape: f32[1,128], index: 9, kind: input, shape index: {}]
  %s10 = inlined_call_operand.vmem [shape: f32[1,128], index: 10, kind: input, shape index: {}]
  %s11 = inlined_call_operand.hbm [shape: f32[2,128], index: 11, kind: output, shape index: {}]
  %s12 = sld [smem:[#allocation0]]
  $region54: #{net_forward.1} parent=0
    _
  %s14 = ssub.s32 1, %s12
  %s15 = scalar_select 0, %s14, %s12
  $region1: #{net_forward.1} parent=0
    #allocation2 [shape = 'u8[1024]{0}', space=vmem, size = 0x400, scoped, tag = 'output window, operand 0, single buffered']
    #allocation3 [shape = 's32[1]{0}', space=sflag, size = 0x4, scoped, tag = 'scoped memory for net_forward.1']
    %16 = vsyncpa [#allocation3], 0
    // Predicated region
    $region2: #{net_forward.1} parent=1 // pred_check
      _
    $region3: #{net_forward.1} parent=1 // pred_check_branch
      %18 = sbr.rel (0) target = $region5
    $region4: #{net_forward.1} parent=1 // pred_region
      _
    $region5: #{net_forward.1} parent=1 // pred_fallthru
      _
    // Predicated region
    $region6: #{net_forward.1} parent=1 // pred_check
      _
    $region7: #{net_forward.1} parent=1 // pred_check_branch
      %20 = sbr.rel (0) target = $region9
    $region8: #{net_forward.1} parent=1 // pred_region
      _
    $region9: #{net_forward.1} parent=1 // pred_fallthru
      _
    // Predicated region
    $region10: #{net_forward.1} parent=1 // pred_check
      _
    $region11: #{net_forward.1} parent=1 // pred_check_branch
      %22 = sbr.rel (0) target = $region13
    $region12: #{net_forward.1} parent=1 // pred_region
      _
    $region13: #{net_forward.1} parent=1 // pred_fallthru
      _
    // Predicated region
    $region14: #{net_forward.1} parent=1 // pred_check
      _
    $region15: #{net_forward.1} parent=1 // pred_check_branch
      %24 = sbr.rel (0) target = $region17
    $region16: #{net_forward.1} parent=1 // pred_region
      _
    $region17: #{net_forward.1} parent=1 // pred_fallthru
      _
    // Predicated region
    $region18: #{net_forward.1} parent=1 // pred_check
      _
    $region19: #{net_forward.1} parent=1 // pred_check_branch
      %26 = sbr.rel (0) target = $region21
    $region20: #{net_forward.1} parent=1 // pred_region
      _
    $region21: #{net_forward.1} parent=1 // pred_fallthru
      _
    // Predicated region
    $region22: #{net_forward.1} parent=1 // pred_check
      _
    $region23: #{net_forward.1} parent=1 // pred_check_branch
      %28 = sbr.rel (0) target = $region25
    $region24: #{net_forward.1} parent=1 // pred_region
      _
    $region25: #{net_forward.1} parent=1 // pred_fallthru
      _
    // Predicated region
    $region26: #{net_forward.1} parent=1 // pred_check
      _
    $region27: #{net_forward.1} parent=1 // pred_check_branch
      %30 = sbr.rel (0) target = $region29
    $region28: #{net_forward.1} parent=1 // pred_region
      _
    $region29: #{net_forward.1} parent=1 // pred_fallthru
      _
    // Predicated region
    $region30: #{net_forward.1} parent=1 // pred_check
      _
    $region31: #{net_forward.1} parent=1 // pred_check_branch
      %32 = sbr.rel (0) target = $region33
    $region32: #{net_forward.1} parent=1 // pred_region
      _
    $region33: #{net_forward.1} parent=1 // pred_fallthru
      _
    // Predicated region
    $region34: #{net_forward.1} parent=1 // pred_check
      _
    $region35: #{net_forward.1} parent=1 // pred_check_branch
      %34 = sbr.rel (0) target = $region37
    $region36: #{net_forward.1} parent=1 // pred_region
      _
    $region37: #{net_forward.1} parent=1 // pred_fallthru
      _
    // Predicated region
    $region38: #{net_forward.1} parent=1 // pred_check
      _
    $region39: #{net_forward.1} parent=1 // pred_check_branch
      %36 = sbr.rel (0) target = $region41
    $region40: #{net_forward.1} parent=1 // pred_region
      _
    $region41: #{net_forward.1} parent=1 // pred_fallthru
      _
    // Predicated region
    $region42: #{net_forward.1} parent=1 // pred_check
      _
    $region43: #{net_forward.1} parent=1 // pred_check_branch
      %38 = sbr.rel (0) target = $region45
    $region44: #{net_forward.1} parent=1 // pred_region
      _
    $region45: #{net_forward.1} parent=1 // pred_fallthru
      _
    %v40 = vld [vmem:[%s6] sm:$0x7]
    %v41 = vld [vmem:[%s7] sm:$0x7]
    %v42 = vld [vmem:[%s8] sm:$0x3]
    %v43 = vld [vmem:[%s9] sm:$0x1]
    %v44 = vld [vmem:[%s10] sm:$0x1]
    %v45 = vld [vmem:[%s0] sm:$0xff]
    %v46 = vld [vmem:[%s0 + $0x8] sm:$0x3f]
    %v47 = vld [vmem:[%s1] sm:$0xff]
    %v48 = vld [vmem:[%s1 + $0x8] sm:$0xf]
    %v49 = vld [vmem:[%s1 + $0xc] sm:$0xff]
    %v50 = vld [vmem:[%s1 + $0x14] sm:$0xf]
    %v51 = vld [vmem:[%s1 + $0x18] sm:$0xff]
    %v52 = vld [vmem:[%s1 + $0x20] sm:$0xf]
    %v53 = vld [vmem:[%s1 + $0x24] sm:$0x33]
    %v54 = vld [vmem:[%s1 + $0x2c] sm:$0x3]
    %v55 = vpack.c.bf16 %v46, %v45
    %s56 = scalar_lea.vmem %s0, 16
    %v57 = vld [vmem:[%s56] sm:$0xff]
    %v58 = vld [vmem:[%s56 + $0x8] sm:$0x3f]
    %s59 = scalar_lea.vmem %s1, 48
    %v60 = vld [vmem:[%s59] sm:$0xff]
    %v61 = vld [vmem:[%s59 + $0x8] sm:$0xf]
    %v62 = vld [vmem:[%s59 + $0xc] sm:$0xff]
    %v63 = vld [vmem:[%s59 + $0x14] sm:$0xf]
    %v64 = vld [vmem:[%s59 + $0x18] sm:$0xff]
    %v65 = vld [vmem:[%s59 + $0x20] sm:$0xf]
    %v66 = vld [vmem:[%s59 + $0x24] sm:$0x33]
    %v67 = vld [vmem:[%s59 + $0x2c] sm:$0x3]
    %v68 = vpack.c.bf16 %v58, %v57
    %v77 = vunpack.c.l.b16 %v60
    %v78 = vunpack.c.h.b16 %v60
    %v79 = vunpack.c.l.b16 %v61
    %v80 = vunpack.c.l.b16 %v62
    %v81 = vunpack.c.h.b16 %v62
    %v82 = vunpack.c.l.b16 %v63
    %v83 = vunpack.c.l.b16 %v64
    %v84 = vunpack.c.h.b16 %v64
    %v85 = vunpack.c.l.b16 %v65
    %v86 = vunpack.c.l.b16 %v66
    %v87 = vunpack.c.h.b16 %v66
    %v88 = vunpack.c.l.b16 %v67
    %v89 = vpack.c.b16 %v80, %v77
    %v90 = vpack.c.b16 %v81, %v78
    %v91 = vpack.c.b16 %v82, %v79
    %v92 = vpack.c.b16 %v86, %v83
    %v93 = vpack.c.b16 %v87, %v84
    %v94 = vpack.c.b16 %v88, %v85
    %vm98 = vcmask 228352
    %v100 = vsel %vm98, %v68, 0
    %vm102 = vcmask 1045504
    %v104 = vsel %vm102, %v92, 0
    %v107 = vsel %vm102, %v93, 0
    %v110 = vsel %vm102, %v94, 0
    %112 = vmatpush.bf16.msra.mxu0 0
    %113 = vmatpush.bf16.msra.mxu0 0
    %114 = vmatpush.bf16.msra.mxu0 0
    %115 = vmatpush.bf16.msra.mxu0 0
    %116 = vmatpush.bf16.msra.mxu0 0
    %117 = vmatpush.bf16.msra.mxu0 0
    %118 = vmatpush.bf16.msra.mxu0 %v104
    %119 = vmatpush.bf16.msra.mxu0 %v89
    %120 = vmatmul.bf16.gmra.mxu0 %v100
    %v121 = vpop.f32.mrf.mxu0
    %v122 = vadd.f32 0.0, %v121
    %v123 = vpop.f32.mrf.mxu0
    %v124 = vadd.f32 0.0, %v123
    %125 = vdwg.mxu0
    %126 = vmatpush.bf16.msra.mxu0 0
    %127 = vmatpush.bf16.msra.mxu0 0
    %128 = vmatpush.bf16.msra.mxu0 0
    %129 = vmatpush.bf16.msra.mxu0 0
    %130 = vmatpush.bf16.msra.mxu0 0
    %131 = vmatpush.bf16.msra.mxu0 0
    %132 = vmatpush.bf16.msra.mxu0 %v107
    %133 = vmatpush.bf16.msra.mxu0 %v90
    %134 = vmatmul.bf16.gmra.mxu0 %v100
    %v135 = vpop.f32.mrf.mxu0
    %v136 = vadd.f32 0.0, %v135
    %v137 = vpop.f32.mrf.mxu0
    %v138 = vadd.f32 0.0, %v137
    %139 = vdwg.mxu0
    %140 = vmatpush.bf16.msra.mxu0 0
    %141 = vmatpush.bf16.msra.mxu0 0
    %142 = vmatpush.bf16.msra.mxu0 0
    %143 = vmatpush.bf16.msra.mxu0 0
    %144 = vmatpush.bf16.msra.mxu0 0
    %145 = vmatpush.bf16.msra.mxu0 0
    %146 = vmatpush.bf16.msra.mxu0 %v110
    %147 = vmatpush.bf16.msra.mxu0 %v91
    %148 = vmatmul.bf16.gmra.mxu0 %v100
    %v149 = vpop.f32.mrf.mxu0
    %v150 = vadd.f32 0.0, %v149
    %v151 = vpop.f32.mrf.mxu0
    %v152 = vadd.f32 0.0, %v151
    %153 = vdwg.mxu0
    %v162 = vunpack.c.l.b16 %v47
    %v163 = vunpack.c.h.b16 %v47
    %v164 = vunpack.c.l.b16 %v48
    %v165 = vunpack.c.l.b16 %v49
    %v166 = vunpack.c.h.b16 %v49
    %v167 = vunpack.c.l.b16 %v50
    %v168 = vunpack.c.l.b16 %v51
    %v169 = vunpack.c.h.b16 %v51
    %v170 = vunpack.c.l.b16 %v52
    %v171 = vunpack.c.l.b16 %v53
    %v172 = vunpack.c.h.b16 %v53
    %v173 = vunpack.c.l.b16 %v54
    %v174 = vpack.c.b16 %v165, %v162
    %v175 = vpack.c.b16 %v166, %v163
    %v176 = vpack.c.b16 %v167, %v164
    %v177 = vpack.c.b16 %v171, %v168
    %v178 = vpack.c.b16 %v172, %v169
    %v179 = vpack.c.b16 %v173, %v170
    %v184 = vsel %vm98, %v55, 0
    %v187 = vsel %vm102, %v177, 0
    %v190 = vsel %vm102, %v178, 0
    %v193 = vsel %vm102, %v179, 0
    %195 = vmatpush.bf16.msra.mxu0 0
    %196 = vmatpush.bf16.msra.mxu0 0
    %197 = vmatpush.bf16.msra.mxu0 0
    %198 = vmatpush.bf16.msra.mxu0 0
    %199 = vmatpush.bf16.msra.mxu0 0
    %200 = vmatpush.bf16.msra.mxu0 0
    %201 = vmatpush.bf16.msra.mxu0 %v187
    %202 = vmatpush.bf16.msra.mxu0 %v174
    %203 = vmatmul.bf16.gmra.mxu0 %v184
    %v204 = vpop.f32.mrf.mxu0
    %v205 = vadd.f32 %v122, %v204
    %v206 = vpop.f32.mrf.mxu0
    %v207 = vadd.f32 %v124, %v206
    %208 = vdwg.mxu0
    %209 = vmatpush.bf16.msra.mxu0 0
    %210 = vmatpush.bf16.msra.mxu0 0
    %211 = vmatpush.bf16.msra.mxu0 0
    %212 = vmatpush.bf16.msra.mxu0 0
    %213 = vmatpush.bf16.msra.mxu0 0
    %214 = vmatpush.bf16.msra.mxu0 0
    %215 = vmatpush.bf16.msra.mxu0 %v190
    %216 = vmatpush.bf16.msra.mxu0 %v175
    %217 = vmatmul.bf16.gmra.mxu0 %v184
    %v218 = vpop.f32.mrf.mxu0
    %v219 = vadd.f32 %v136, %v218
    %v220 = vpop.f32.mrf.mxu0
    %v221 = vadd.f32 %v138, %v220
    %222 = vdwg.mxu0
    %223 = vmatpush.bf16.msra.mxu0 0
    %224 = vmatpush.bf16.msra.mxu0 0
    %225 = vmatpush.bf16.msra.mxu0 0
    %226 = vmatpush.bf16.msra.mxu0 0
    %227 = vmatpush.bf16.msra.mxu0 0
    %228 = vmatpush.bf16.msra.mxu0 0
    %229 = vmatpush.bf16.msra.mxu0 %v193
    %230 = vmatpush.bf16.msra.mxu0 %v176
    %231 = vmatmul.bf16.gmra.mxu0 %v184
    %v232 = vpop.f32.mrf.mxu0
    %v233 = vadd.f32 %v150, %v232
    %v234 = vpop.f32.mrf.mxu0
    %v235 = vadd.f32 %v152, %v234
    %236 = vdwg.mxu0
    %s237 = scalar_lea.vmem %s1, 96
    %v238 = vld [vmem:[%s237] sm:$0xff]
    %v239 = vld [vmem:[%s237 + $0x8] sm:$0xf]
    %v240 = vld [vmem:[%s237 + $0xc] sm:$0xff]
    %v241 = vld [vmem:[%s237 + $0x14] sm:$0xf]
    %v242 = vld [vmem:[%s237 + $0x18] sm:$0xff]
    %v243 = vld [vmem:[%s237 + $0x20] sm:$0xf]
    %v244 = vld [vmem:[%s237 + $0x24] sm:$0x33]
    %v245 = vld [vmem:[%s237 + $0x2c] sm:$0x3]
    %v246 = vshrl.u32 %v55, 16
    %v248 = vshll.u32 %v55, 16
    %v250 = vrot.slane %v248, 1
    %v251 = vor.u32 %v246, %v250
    %v260 = vunpack.c.l.b16 %v238
    %v261 = vunpack.c.h.b16 %v238
    %v262 = vunpack.c.l.b16 %v239
    %v263 = vunpack.c.l.b16 %v240
    %v264 = vunpack.c.h.b16 %v240
    %v265 = vunpack.c.l.b16 %v241
    %v266 = vunpack.c.l.b16 %v242
    %v267 = vunpack.c.h.b16 %v242
    %v268 = vunpack.c.l.b16 %v243
    %v269 = vunpack.c.l.b16 %v244
    %v270 = vunpack.c.h.b16 %v244
    %v271 = vunpack.c.l.b16 %v245
    %v272 = vpack.c.b16 %v263, %v260
    %v273 = vpack.c.b16 %v264, %v261
    %v274 = vpack.c.b16 %v265, %v262
    %v275 = vpack.c.b16 %v269, %v266
    %v276 = vpack.c.b16 %v270, %v267
    %v277 = vpack.c.b16 %v271, %v268
    %v282 = vsel %vm98, %v251, 0
    %v285 = vsel %vm102, %v275, 0
    %v288 = vsel %vm102, %v276, 0
    %v291 = vsel %vm102, %v277, 0
    %293 = vmatpush.bf16.msra.mxu0 0
    %294 = vmatpush.bf16.msra.mxu0 0
    %295 = vmatpush.bf16.msra.mxu0 0
    %296 = vmatpush.bf16.msra.mxu0 0
    %297 = vmatpush.bf16.msra.mxu0 0
    %298 = vmatpush.bf16.msra.mxu0 0
    %299 = vmatpush.bf16.msra.mxu0 %v285
    %300 = vmatpush.bf16.msra.mxu0 %v272
    %301 = vmatmul.bf16.gmra.mxu0 %v282
    %v302 = vpop.f32.mrf.mxu0
    %v303 = vadd.f32 0.0, %v302
    %v304 = vpop.f32.mrf.mxu0
    %v305 = vadd.f32 0.0, %v304
    %306 = vdwg.mxu0
    %307 = vmatpush.bf16.msra.mxu0 0
    %308 = vmatpush.bf16.msra.mxu0 0
    %309 = vmatpush.bf16.msra.mxu0 0
    %310 = vmatpush.bf16.msra.mxu0 0
    %311 = vmatpush.bf16.msra.mxu0 0
    %312 = vmatpush.bf16.msra.mxu0 0
    %313 = vmatpush.bf16.msra.mxu0 %v288
    %314 = vmatpush.bf16.msra.mxu0 %v273
    %315 = vmatmul.bf16.gmra.mxu0 %v282
    %v316 = vpop.f32.mrf.mxu0
    %v317 = vadd.f32 0.0, %v316
    %v318 = vpop.f32.mrf.mxu0
    %v319 = vadd.f32 0.0, %v318
    %320 = vdwg.mxu0
    %321 = vmatpush.bf16.msra.mxu0 0
    %322 = vmatpush.bf16.msra.mxu0 0
    %323 = vmatpush.bf16.msra.mxu0 0
    %324 = vmatpush.bf16.msra.mxu0 0
    %325 = vmatpush.bf16.msra.mxu0 0
    %326 = vmatpush.bf16.msra.mxu0 0
    %327 = vmatpush.bf16.msra.mxu0 %v291
    %328 = vmatpush.bf16.msra.mxu0 %v274
    %329 = vmatmul.bf16.gmra.mxu0 %v282
    %v330 = vpop.f32.mrf.mxu0
    %v331 = vadd.f32 0.0, %v330
    %v332 = vpop.f32.mrf.mxu0
    %v333 = vadd.f32 0.0, %v332
    %334 = vdwg.mxu0
    %v335 = vadd.f32 %v205, %v303
    %v336 = vadd.f32 %v219, %v317
    %v337 = vadd.f32 %v233, %v331
    %v338 = vadd.f32 %v207, %v305
    %v339 = vadd.f32 %v221, %v319
    %v340 = vadd.f32 %v235, %v333
    %s341 = scalar_lea.vmem %s1, 144
    %v342 = vld [vmem:[%s341] sm:$0xff]
    %v343 = vld [vmem:[%s341 + $0x8] sm:$0xf]
    %v344 = vld [vmem:[%s341 + $0xc] sm:$0xff]
    %v345 = vld [vmem:[%s341 + $0x14] sm:$0xf]
    %v346 = vld [vmem:[%s341 + $0x18] sm:$0xff]
    %v347 = vld [vmem:[%s341 + $0x20] sm:$0xf]
    %v348 = vld [vmem:[%s341 + $0x24] sm:$0x33]
    %v349 = vld [vmem:[%s341 + $0x2c] sm:$0x3]
    %v350 = vshrl.u32 %v68, 16
    %v352 = vshll.u32 %v68, 16
    %v354 = vrot.slane %v352, 1
    %v355 = vor.u32 %v350, %v354
    %v364 = vunpack.c.l.b16 %v342
    %v365 = vunpack.c.h.b16 %v342
    %v366 = vunpack.c.l.b16 %v343
    %v367 = vunpack.c.l.b16 %v344
    %v368 = vunpack.c.h.b16 %v344
    %v369 = vunpack.c.l.b16 %v345
    %v370 = vunpack.c.l.b16 %v346
    %v371 = vunpack.c.h.b16 %v346
    %v372 = vunpack.c.l.b16 %v347
    %v373 = vunpack.c.l.b16 %v348
    %v374 = vunpack.c.h.b16 %v348
    %v375 = vunpack.c.l.b16 %v349
    %v376 = vpack.c.b16 %v367, %v364
    %v377 = vpack.c.b16 %v368, %v365
    %v378 = vpack.c.b16 %v369, %v366
    %v379 = vpack.c.b16 %v373, %v370
    %v380 = vpack.c.b16 %v374, %v371
    %v381 = vpack.c.b16 %v375, %v372
    %v386 = vsel %vm98, %v355, 0
    %v389 = vsel %vm102, %v379, 0
    %v392 = vsel %vm102, %v380, 0
    %v395 = vsel %vm102, %v381, 0
    %397 = vmatpush.bf16.msra.mxu0 0
    %398 = vmatpush.bf16.msra.mxu0 0
    %399 = vmatpush.bf16.msra.mxu0 0
    %400 = vmatpush.bf16.msra.mxu0 0
    %401 = vmatpush.bf16.msra.mxu0 0
    %402 = vmatpush.bf16.msra.mxu0 0
    %403 = vmatpush.bf16.msra.mxu0 %v389
    %404 = vmatpush.bf16.msra.mxu0 %v376
    %405 = vmatmul.bf16.gmra.mxu0 %v386
    %v406 = vpop.f32.mrf.mxu0
    %v407 = vadd.f32 0.0, %v406
    %v408 = vpop.f32.mrf.mxu0
    %v409 = vadd.f32 0.0, %v408
    %410 = vdwg.mxu0
    %411 = vmatpush.bf16.msra.mxu0 0
    %412 = vmatpush.bf16.msra.mxu0 0
    %413 = vmatpush.bf16.msra.mxu0 0
    %414 = vmatpush.bf16.msra.mxu0 0
    %415 = vmatpush.bf16.msra.mxu0 0
    %416 = vmatpush.bf16.msra.mxu0 0
    %417 = vmatpush.bf16.msra.mxu0 %v392
    %418 = vmatpush.bf16.msra.mxu0 %v377
    %419 = vmatmul.bf16.gmra.mxu0 %v386
    %v420 = vpop.f32.mrf.mxu0
    %v421 = vadd.f32 0.0, %v420
    %v422 = vpop.f32.mrf.mxu0
    %v423 = vadd.f32 0.0, %v422
    %424 = vdwg.mxu0
    %425 = vmatpush.bf16.msra.mxu0 0
    %426 = vmatpush.bf16.msra.mxu0 0
    %427 = vmatpush.bf16.msra.mxu0 0
    %428 = vmatpush.bf16.msra.mxu0 0
    %429 = vmatpush.bf16.msra.mxu0 0
    %430 = vmatpush.bf16.msra.mxu0 0
    %431 = vmatpush.bf16.msra.mxu0 %v395
    %432 = vmatpush.bf16.msra.mxu0 %v378
    %433 = vmatmul.bf16.gmra.mxu0 %v386
    %v434 = vpop.f32.mrf.mxu0
    %v435 = vadd.f32 0.0, %v434
    %v436 = vpop.f32.mrf.mxu0
    %v437 = vadd.f32 0.0, %v436
    %438 = vdwg.mxu0
    %v439 = vadd.f32 %v335, %v407
    %v440 = vadd.f32 %v336, %v421
    %v441 = vadd.f32 %v337, %v435
    %v442 = vadd.f32 %v338, %v409
    %v443 = vadd.f32 %v339, %v423
    %v444 = vadd.f32 %v340, %v437
    %s445 = scalar_lea.vmem %s1, 192
    %v446 = vld [vmem:[%s445] sm:$0xff]
    %v447 = vld [vmem:[%s445 + $0x8] sm:$0xf]
    %v448 = vld [vmem:[%s445 + $0xc] sm:$0xff]
    %v449 = vld [vmem:[%s445 + $0x14] sm:$0xf]
    %v450 = vld [vmem:[%s445 + $0x18] sm:$0xff]
    %v451 = vld [vmem:[%s445 + $0x20] sm:$0xf]
    %v452 = vld [vmem:[%s445 + $0x24] sm:$0x33]
    %v453 = vld [vmem:[%s445 + $0x2c] sm:$0x3]
    %v455 = vrot.slane %v55, 1
    %v464 = vunpack.c.l.b16 %v446
    %v465 = vunpack.c.h.b16 %v446
    %v466 = vunpack.c.l.b16 %v447
    %v467 = vunpack.c.l.b16 %v448
    %v468 = vunpack.c.h.b16 %v448
    %v469 = vunpack.c.l.b16 %v449
    %v470 = vunpack.c.l.b16 %v450
    %v471 = vunpack.c.h.b16 %v450
    %v472 = vunpack.c.l.b16 %v451
    %v473 = vunpack.c.l.b16 %v452
    %v474 = vunpack.c.h.b16 %v452
    %v475 = vunpack.c.l.b16 %v453
    %v476 = vpack.c.b16 %v467, %v464
    %v477 = vpack.c.b16 %v468, %v465
    %v478 = vpack.c.b16 %v469, %v466
    %v479 = vpack.c.b16 %v473, %v470
    %v480 = vpack.c.b16 %v474, %v471
    %v481 = vpack.c.b16 %v475, %v472
    %v486 = vsel %vm98, %v455, 0
    %v489 = vsel %vm102, %v479, 0
    %v492 = vsel %vm102, %v480, 0
    %v495 = vsel %vm102, %v481, 0
    %497 = vmatpush.bf16.msra.mxu0 0
    %498 = vmatpush.bf16.msra.mxu0 0
    %499 = vmatpush.bf16.msra.mxu0 0
    %500 = vmatpush.bf16.msra.mxu0 0
    %501 = vmatpush.bf16.msra.mxu0 0
    %502 = vmatpush.bf16.msra.mxu0 0
    %503 = vmatpush.bf16.msra.mxu0 %v489
    %504 = vmatpush.bf16.msra.mxu0 %v476
    %505 = vmatmul.bf16.gmra.mxu0 %v486
    %v506 = vpop.f32.mrf.mxu0
    %v507 = vadd.f32 0.0, %v506
    %v508 = vpop.f32.mrf.mxu0
    %v509 = vadd.f32 0.0, %v508
    %510 = vdwg.mxu0
    %511 = vmatpush.bf16.msra.mxu0 0
    %512 = vmatpush.bf16.msra.mxu0 0
    %513 = vmatpush.bf16.msra.mxu0 0
    %514 = vmatpush.bf16.msra.mxu0 0
    %515 = vmatpush.bf16.msra.mxu0 0
    %516 = vmatpush.bf16.msra.mxu0 0
    %517 = vmatpush.bf16.msra.mxu0 %v492
    %518 = vmatpush.bf16.msra.mxu0 %v477
    %519 = vmatmul.bf16.gmra.mxu0 %v486
    %v520 = vpop.f32.mrf.mxu0
    %v521 = vadd.f32 0.0, %v520
    %v522 = vpop.f32.mrf.mxu0
    %v523 = vadd.f32 0.0, %v522
    %524 = vdwg.mxu0
    %525 = vmatpush.bf16.msra.mxu0 0
    %526 = vmatpush.bf16.msra.mxu0 0
    %527 = vmatpush.bf16.msra.mxu0 0
    %528 = vmatpush.bf16.msra.mxu0 0
    %529 = vmatpush.bf16.msra.mxu0 0
    %530 = vmatpush.bf16.msra.mxu0 0
    %531 = vmatpush.bf16.msra.mxu0 %v495
    %532 = vmatpush.bf16.msra.mxu0 %v478
    %533 = vmatmul.bf16.gmra.mxu0 %v486
    %v534 = vpop.f32.mrf.mxu0
    %v535 = vadd.f32 0.0, %v534
    %v536 = vpop.f32.mrf.mxu0
    %v537 = vadd.f32 0.0, %v536
    %538 = vdwg.mxu0
    %v539 = vadd.f32 %v439, %v507
    %v540 = vadd.f32 %v440, %v521
    %v541 = vadd.f32 %v441, %v535
    %v542 = vadd.f32 %v442, %v509
    %v543 = vadd.f32 %v443, %v523
    %v544 = vadd.f32 %v444, %v537
    %v546 = vperm.slane %v40, 0
    %v547 = vperm.slane %v40, 1
    %v548 = vperm.slane %v40, 2
    %v552 = vadd.f32 %v539, %v546
    %v553 = vadd.f32 %v540, %v547
    %v554 = vadd.f32 %v541, %v548
    %v555 = vadd.f32 %v542, %v546
    %v556 = vadd.f32 %v543, %v547
    %v557 = vadd.f32 %v544, %v548
    %vm558 = vcmp.gt.f32.partialorder %v552, 0.0
    %vm559 = vcmp.gt.f32.partialorder %v553, 0.0
    %vm560 = vcmp.gt.f32.partialorder %v554, 0.0
    %vm561 = vcmp.gt.f32.partialorder %v555, 0.0
    %vm562 = vcmp.gt.f32.partialorder %v556, 0.0
    %vm563 = vcmp.gt.f32.partialorder %v557, 0.0
    %v564 = vmul.f32 %v552, 0.1
    %v565 = vmul.f32 %v553, 0.1
    %v566 = vmul.f32 %v554, 0.1
    %v567 = vmul.f32 %v555, 0.1
    %v568 = vmul.f32 %v556, 0.1
    %v569 = vmul.f32 %v557, 0.1
    %v570 = vsel %vm558, %v552, %v564
    %v571 = vsel %vm559, %v553, %v565
    %v572 = vsel %vm560, %v554, %v566
    %v573 = vsel %vm561, %v555, %v567
    %v574 = vsel %vm562, %v556, %v568
    %v575 = vsel %vm563, %v557, %v569
    %v576 = vld [vmem:[%s2] sm:$0xff]
    %v577 = vld [vmem:[%s2 + $0x8] sm:$0xf]
    %v578 = vld [vmem:[%s2 + $0xc] sm:$0xff]
    %v579 = vld [vmem:[%s2 + $0x14] sm:$0xf]
    %v580 = vld [vmem:[%s2 + $0x18] sm:$0xff]
    %v581 = vld [vmem:[%s2 + $0x20] sm:$0xf]
    %v582 = vld [vmem:[%s2 + $0x24] sm:$0xff]
    %v583 = vld [vmem:[%s2 + $0x2c] sm:$0xf]
    %v584 = vld [vmem:[%s2 + $0x30] sm:$0xff]
    %v585 = vld [vmem:[%s2 + $0x38] sm:$0xf]
    %v586 = vld [vmem:[%s2 + $0x3c] sm:$0xff]
    %v587 = vld [vmem:[%s2 + $0x44] sm:$0xf]
    %v588 = vld [vmem:[%s2 + $0x48] sm:$0xff]
    %v589 = vld [vmem:[%s2 + $0x50] sm:$0xf]
    %v590 = vld [vmem:[%s2 + $0x54] sm:$0xff]
    %v591 = vld [vmem:[%s2 + $0x5c] sm:$0xf]
    %v592 = vld [vmem:[%s2 + $0x60] sm:$0xff]
    %v593 = vld [vmem:[%s2 + $0x68] sm:$0xf]
    %v594 = vld [vmem:[%s2 + $0x6c] sm:$0xff]
    %v595 = vld [vmem:[%s2 + $0x74] sm:$0xf]
    %v596 = vld [vmem:[%s2 + $0x78] sm:$0xff]
    %v597 = vld [vmem:[%s2 + $0x80] sm:$0xf]
    %v598 = vld [vmem:[%s2 + $0x84] sm:$0xff]
    %v599 = vld [vmem:[%s2 + $0x8c] sm:$0xf]
    %v600 = vld [vmem:[%s2 + $0x90] sm:$0xff]
    %v601 = vld [vmem:[%s2 + $0x98] sm:$0xf]
    %v602 = vld [vmem:[%s2 + $0x9c] sm:$0xff]
    %v603 = vld [vmem:[%s2 + $0xa4] sm:$0xf]
    %v604 = vld [vmem:[%s2 + $0xa8] sm:$0xff]
    %v605 = vld [vmem:[%s2 + $0xb0] sm:$0xf]
    %v606 = vld [vmem:[%s2 + $0xb4] sm:$0xff]
    %v607 = vld [vmem:[%s2 + $0xbc] sm:$0xf]
    %v608 = vld [vmem:[%s2 + $0xc0] sm:$0xff]
    %v609 = vld [vmem:[%s2 + $0xc8] sm:$0xf]
    %v610 = vld [vmem:[%s2 + $0xcc] sm:$0xff]
    %v611 = vld [vmem:[%s2 + $0xd4] sm:$0xf]
    %v612 = vld [vmem:[%s2 + $0xd8] sm:$0xff]
    %v613 = vld [vmem:[%s2 + $0xe0] sm:$0xf]
    %v614 = vld [vmem:[%s2 + $0xe4] sm:$0xff]
    %v615 = vld [vmem:[%s2 + $0xec] sm:$0xf]
    %v616 = vld [vmem:[%s2 + $0xf0] sm:$0xff]
    %v617 = vld [vmem:[%s2 + $0xf8] sm:$0xf]
    %v618 = vld [vmem:[%s2 + $0xfc] sm:$0xff]
    %v619 = vld [vmem:[%s2 + $0x104] sm:$0xf]
    %v620 = vld [vmem:[%s2 + $0x108] sm:$0xff]
    %v621 = vld [vmem:[%s2 + $0x110] sm:$0xf]
    %v622 = vld [vmem:[%s2 + $0x114] sm:$0xff]
    %v623 = vld [vmem:[%s2 + $0x11c] sm:$0xf]
    %v624 = vld [vmem:[%s2 + $0x120] sm:$0xff]
    %v625 = vld [vmem:[%s2 + $0x128] sm:$0xf]
    %v626 = vld [vmem:[%s2 + $0x12c] sm:$0xff]
    %v627 = vld [vmem:[%s2 + $0x134] sm:$0xf]
    %v628 = vld [vmem:[%s2 + $0x138] sm:$0xff]
    %v629 = vld [vmem:[%s2 + $0x140] sm:$0xf]
    %v630 = vld [vmem:[%s2 + $0x144] sm:$0xff]
    %v631 = vld [vmem:[%s2 + $0x14c] sm:$0xf]
    %v632 = vld [vmem:[%s2 + $0x150] sm:$0xff]
    %v633 = vld [vmem:[%s2 + $0x158] sm:$0xf]
    %v634 = vld [vmem:[%s2 + $0x15c] sm:$0xff]
    %v635 = vld [vmem:[%s2 + $0x164] sm:$0xf]
    %v636 = vld [vmem:[%s2 + $0x168] sm:$0xff]
    %v637 = vld [vmem:[%s2 + $0x170] sm:$0xf]
    %v638 = vld [vmem:[%s2 + $0x174] sm:$0xff]
    %v639 = vld [vmem:[%s2 + $0x17c] sm:$0xf]
    %v640 = vld [vmem:[%s2 + $0x180] sm:$0xff]
    %v641 = vld [vmem:[%s2 + $0x188] sm:$0xf]
    %v642 = vld [vmem:[%s2 + $0x18c] sm:$0xff]
    %v643 = vld [vmem:[%s2 + $0x194] sm:$0xf]
    %v644 = vld [vmem:[%s2 + $0x198] sm:$0xff]
    %v645 = vld [vmem:[%s2 + $0x1a0] sm:$0xf]
    %v646 = vld [vmem:[%s2 + $0x1a4] sm:$0xff]
    %v647 = vld [vmem:[%s2 + $0x1ac] sm:$0xf]
    %v648 = vld [vmem:[%s2 + $0x1b0] sm:$0xff]
    %v649 = vld [vmem:[%s2 + $0x1b8] sm:$0xf]
    %v650 = vld [vmem:[%s2 + $0x1bc] sm:$0xff]
    %v651 = vld [vmem:[%s2 + $0x1c4] sm:$0xf]
    %v652 = vld [vmem:[%s2 + $0x1c8] sm:$0xff]
    %v653 = vld [vmem:[%s2 + $0x1d0] sm:$0xf]
    %v654 = vld [vmem:[%s2 + $0x1d4] sm:$0xff]
    %v655 = vld [vmem:[%s2 + $0x1dc] sm:$0xf]
    %v656 = vld [vmem:[%s2 + $0x1e0] sm:$0xff]
    %v657 = vld [vmem:[%s2 + $0x1e8] sm:$0xf]
    %v658 = vld [vmem:[%s2 + $0x1ec] sm:$0xff]
    %v659 = vld [vmem:[%s2 + $0x1f4] sm:$0xf]
    %v660 = vld [vmem:[%s2 + $0x1f8] sm:$0xff]
    %v661 = vld [vmem:[%s2 + $0x200] sm:$0xf]
    %v662 = vld [vmem:[%s2 + $0x204] sm:$0xff]
    %v663 = vld [vmem:[%s2 + $0x20c] sm:$0xf]
    %v664 = vld [vmem:[%s2 + $0x210] sm:$0xff]
    %v665 = vld [vmem:[%s2 + $0x218] sm:$0xf]
    %v666 = vld [vmem:[%s2 + $0x21c] sm:$0xff]
    %v667 = vld [vmem:[%s2 + $0x224] sm:$0xf]
    %v668 = vld [vmem:[%s2 + $0x228] sm:$0xff]
    %v669 = vld [vmem:[%s2 + $0x230] sm:$0xf]
    %v670 = vld [vmem:[%s2 + $0x234] sm:$0xff]
    %v671 = vld [vmem:[%s2 + $0x23c] sm:$0xf]
    %v672 = vpack.c.bf16 %v573, %v570
    %v673 = vpack.c.bf16 %v574, %v571
    %v674 = vpack.c.bf16 %v575, %v572
    %s675 = scalar_lea.vmem %s2, 576
    %v676 = vld [vmem:[%s675] sm:$0xff]
    %v677 = vld [vmem:[%s675 + $0x8] sm:$0xf]
    %v678 = vld [vmem:[%s675 + $0xc] sm:$0xff]
    %v679 = vld [vmem:[%s675 + $0x14] sm:$0xf]
    %v680 = vld [vmem:[%s675 + $0x18] sm:$0xff]
    %v681 = vld [vmem:[%s675 + $0x20] sm:$0xf]
    %v682 = vld [vmem:[%s675 + $0x24] sm:$0xff]
    %v683 = vld [vmem:[%s675 + $0x2c] sm:$0xf]
    %v684 = vld [vmem:[%s675 + $0x30] sm:$0xff]
    %v685 = vld [vmem:[%s675 + $0x38] sm:$0xf]
    %v686 = vld [vmem:[%s675 + $0x3c] sm:$0xff]
    %v687 = vld [vmem:[%s675 + $0x44] sm:$0xf]
    %v688 = vld [vmem:[%s675 + $0x48] sm:$0xff]
    %v689 = vld [vmem:[%s675 + $0x50] sm:$0xf]
    %v690 = vld [vmem:[%s675 + $0x54] sm:$0xff]
    %v691 = vld [vmem:[%s675 + $0x5c] sm:$0xf]
    %v692 = vld [vmem:[%s675 + $0x60] sm:$0xff]
    %v693 = vld [vmem:[%s675 + $0x68] sm:$0xf]
    %v694 = vld [vmem:[%s675 + $0x6c] sm:$0xff]
    %v695 = vld [vmem:[%s675 + $0x74] sm:$0xf]
    %v696 = vld [vmem:[%s675 + $0x78] sm:$0xff]
    %v697 = vld [vmem:[%s675 + $0x80] sm:$0xf]
    %v698 = vld [vmem:[%s675 + $0x84] sm:$0xff]
    %v699 = vld [vmem:[%s675 + $0x8c] sm:$0xf]
    %v700 = vld [vmem:[%s675 + $0x90] sm:$0xff]
    %v701 = vld [vmem:[%s675 + $0x98] sm:$0xf]
    %v702 = vld [vmem:[%s675 + $0x9c] sm:$0xff]
    %v703 = vld [vmem:[%s675 + $0xa4] sm:$0xf]
    %v704 = vld [vmem:[%s675 + $0xa8] sm:$0xff]
    %v705 = vld [vmem:[%s675 + $0xb0] sm:$0xf]
    %v706 = vld [vmem:[%s675 + $0xb4] sm:$0xff]
    %v707 = vld [vmem:[%s675 + $0xbc] sm:$0xf]
    %v708 = vld [vmem:[%s675 + $0xc0] sm:$0xff]
    %v709 = vld [vmem:[%s675 + $0xc8] sm:$0xf]
    %v710 = vld [vmem:[%s675 + $0xcc] sm:$0xff]
    %v711 = vld [vmem:[%s675 + $0xd4] sm:$0xf]
    %v712 = vld [vmem:[%s675 + $0xd8] sm:$0xff]
    %v713 = vld [vmem:[%s675 + $0xe0] sm:$0xf]
    %v714 = vld [vmem:[%s675 + $0xe4] sm:$0xff]
    %v715 = vld [vmem:[%s675 + $0xec] sm:$0xf]
    %v716 = vld [vmem:[%s675 + $0xf0] sm:$0xff]
    %v717 = vld [vmem:[%s675 + $0xf8] sm:$0xf]
    %v718 = vld [vmem:[%s675 + $0xfc] sm:$0xff]
    %v719 = vld [vmem:[%s675 + $0x104] sm:$0xf]
    %v720 = vld [vmem:[%s675 + $0x108] sm:$0xff]
    %v721 = vld [vmem:[%s675 + $0x110] sm:$0xf]
    %v722 = vld [vmem:[%s675 + $0x114] sm:$0xff]
    %v723 = vld [vmem:[%s675 + $0x11c] sm:$0xf]
    %v724 = vld [vmem:[%s675 + $0x120] sm:$0xff]
    %v725 = vld [vmem:[%s675 + $0x128] sm:$0xf]
    %v726 = vld [vmem:[%s675 + $0x12c] sm:$0xff]
    %v727 = vld [vmem:[%s675 + $0x134] sm:$0xf]
    %v728 = vld [vmem:[%s675 + $0x138] sm:$0xff]
    %v729 = vld [vmem:[%s675 + $0x140] sm:$0xf]
    %v730 = vld [vmem:[%s675 + $0x144] sm:$0xff]
    %v731 = vld [vmem:[%s675 + $0x14c] sm:$0xf]
    %v732 = vld [vmem:[%s675 + $0x150] sm:$0xff]
    %v733 = vld [vmem:[%s675 + $0x158] sm:$0xf]
    %v734 = vld [vmem:[%s675 + $0x15c] sm:$0xff]
    %v735 = vld [vmem:[%s675 + $0x164] sm:$0xf]
    %v736 = vld [vmem:[%s675 + $0x168] sm:$0xff]
    %v737 = vld [vmem:[%s675 + $0x170] sm:$0xf]
    %v738 = vld [vmem:[%s675 + $0x174] sm:$0xff]
    %v739 = vld [vmem:[%s675 + $0x17c] sm:$0xf]
    %v740 = vld [vmem:[%s675 + $0x180] sm:$0xff]
    %v741 = vld [vmem:[%s675 + $0x188] sm:$0xf]
    %v742 = vld [vmem:[%s675 + $0x18c] sm:$0xff]
    %v743 = vld [vmem:[%s675 + $0x194] sm:$0xf]
    %v744 = vld [vmem:[%s675 + $0x198] sm:$0xff]
    %v745 = vld [vmem:[%s675 + $0x1a0] sm:$0xf]
    %v746 = vld [vmem:[%s675 + $0x1a4] sm:$0xff]
    %v747 = vld [vmem:[%s675 + $0x1ac] sm:$0xf]
    %v748 = vld [vmem:[%s675 + $0x1b0] sm:$0xff]
    %v749 = vld [vmem:[%s675 + $0x1b8] sm:$0xf]
    %v750 = vld [vmem:[%s675 + $0x1bc] sm:$0xff]
    %v751 = vld [vmem:[%s675 + $0x1c4] sm:$0xf]
    %v752 = vld [vmem:[%s675 + $0x1c8] sm:$0xff]
    %v753 = vld [vmem:[%s675 + $0x1d0] sm:$0xf]
    %v754 = vld [vmem:[%s675 + $0x1d4] sm:$0xff]
    %v755 = vld [vmem:[%s675 + $0x1dc] sm:$0xf]
    %v756 = vld [vmem:[%s675 + $0x1e0] sm:$0xff]
    %v757 = vld [vmem:[%s675 + $0x1e8] sm:$0xf]
    %v758 = vld [vmem:[%s675 + $0x1ec] sm:$0xff]
    %v759 = vld [vmem:[%s675 + $0x1f4] sm:$0xf]
    %v760 = vld [vmem:[%s675 + $0x1f8] sm:$0xff]
    %v761 = vld [vmem:[%s675 + $0x200] sm:$0xf]
    %v762 = vld [vmem:[%s675 + $0x204] sm:$0xff]
    %v763 = vld [vmem:[%s675 + $0x20c] sm:$0xf]
    %v764 = vld [vmem:[%s675 + $0x210] sm:$0xff]
    %v765 = vld [vmem:[%s675 + $0x218] sm:$0xf]
    %v766 = vld [vmem:[%s675 + $0x21c] sm:$0xff]
    %v767 = vld [vmem:[%s675 + $0x224] sm:$0xf]
    %v768 = vld [vmem:[%s675 + $0x228] sm:$0xff]
    %v769 = vld [vmem:[%s675 + $0x230] sm:$0xf]
    %v770 = vld [vmem:[%s675 + $0x234] sm:$0xff]
    %v771 = vld [vmem:[%s675 + $0x23c] sm:$0xf]
    %v773 = vshrl.u32 %v672, 16
    %v775 = vshll.u32 %v672, 16
    %v777 = vrot.slane %v775, 1
    %v778 = vor.u32 %v773, %v777
    %v780 = vshrl.u32 %v673, 16
    %v782 = vshll.u32 %v673, 16
    %v784 = vrot.slane %v782, 1
    %v785 = vor.u32 %v780, %v784
    %v787 = vshrl.u32 %v674, 16
    %v789 = vshll.u32 %v674, 16
    %v791 = vrot.slane %v789, 1
    %v792 = vor.u32 %v787, %v791
    %v892 = vunpack.c.l.b16 %v676
    %v893 = vunpack.c.h.b16 %v676
    %v894 = vunpack.c.l.b16 %v677
    %v895 = vunpack.c.l.b16 %v678
    %v896 = vunpack.c.h.b16 %v678
    %v897 = vunpack.c.l.b16 %v679
    %v898 = vunpack.c.l.b16 %v680
    %v899 = vunpack.c.h.b16 %v680
    %v900 = vunpack.c.l.b16 %v681
    %v901 = vunpack.c.l.b16 %v682
    %v902 = vunpack.c.h.b16 %v682
    %v903 = vunpack.c.l.b16 %v683
    %v904 = vunpack.c.l.b16 %v684
    %v905 = vunpack.c.h.b16 %v684
    %v906 = vunpack.c.l.b16 %v685
    %v907 = vunpack.c.l.b16 %v686
    %v908 = vunpack.c.h.b16 %v686
    %v909 = vunpack.c.l.b16 %v687
    %v910 = vunpack.c.l.b16 %v688
    %v911 = vunpack.c.h.b16 %v688
    %v912 = vunpack.c.l.b16 %v689
    %v913 = vunpack.c.l.b16 %v690
    %v914 = vunpack.c.h.b16 %v690
    %v915 = vunpack.c.l.b16 %v691
    %v916 = vunpack.c.l.b16 %v692
    %v917 = vunpack.c.h.b16 %v692
    %v918 = vunpack.c.l.b16 %v693
    %v919 = vunpack.c.l.b16 %v694
    %v920 = vunpack.c.h.b16 %v694
    %v921 = vunpack.c.l.b16 %v695
    %v922 = vunpack.c.l.b16 %v696
    %v923 = vunpack.c.h.b16 %v696
    %v924 = vunpack.c.l.b16 %v697
    %v925 = vunpack.c.l.b16 %v698
    %v926 = vunpack.c.h.b16 %v698
    %v927 = vunpack.c.l.b16 %v699
    %v928 = vunpack.c.l.b16 %v700
    %v929 = vunpack.c.h.b16 %v700
    %v930 = vunpack.c.l.b16 %v701
    %v931 = vunpack.c.l.b16 %v702
    %v932 = vunpack.c.h.b16 %v702
    %v933 = vunpack.c.l.b16 %v703
    %v934 = vunpack.c.l.b16 %v704
    %v935 = vunpack.c.h.b16 %v704
    %v936 = vunpack.c.l.b16 %v705
    %v937 = vunpack.c.l.b16 %v706
    %v938 = vunpack.c.h.b16 %v706
    %v939 = vunpack.c.l.b16 %v707
    %v940 = vunpack.c.l.b16 %v708
    %v941 = vunpack.c.h.b16 %v708
    %v942 = vunpack.c.l.b16 %v709
    %v943 = vunpack.c.l.b16 %v710
    %v944 = vunpack.c.h.b16 %v710
    %v945 = vunpack.c.l.b16 %v711
    %v946 = vunpack.c.l.b16 %v712
    %v947 = vunpack.c.h.b16 %v712
    %v948 = vunpack.c.l.b16 %v713
    %v949 = vunpack.c.l.b16 %v714
    %v950 = vunpack.c.h.b16 %v714
    %v951 = vunpack.c.l.b16 %v715
    %v952 = vunpack.c.l.b16 %v716
    %v953 = vunpack.c.h.b16 %v716
    %v954 = vunpack.c.l.b16 %v717
    %v955 = vunpack.c.l.b16 %v718
    %v956 = vunpack.c.h.b16 %v718
    %v957 = vunpack.c.l.b16 %v719
    %v958 = vunpack.c.l.b16 %v720
    %v959 = vunpack.c.h.b16 %v720
    %v960 = vunpack.c.l.b16 %v721
    %v961 = vunpack.c.l.b16 %v722
    %v962 = vunpack.c.h.b16 %v722
    %v963 = vunpack.c.l.b16 %v723
    %v964 = vunpack.c.l.b16 %v724
    %v965 = vunpack.c.h.b16 %v724
    %v966 = vunpack.c.l.b16 %v725
    %v967 = vunpack.c.l.b16 %v726
    %v968 = vunpack.c.h.b16 %v726
    %v969 = vunpack.c.l.b16 %v727
    %v970 = vunpack.c.l.b16 %v728
    %v971 = vunpack.c.h.b16 %v728
    %v972 = vunpack.c.l.b16 %v729
    %v973 = vunpack.c.l.b16 %v730
    %v974 = vunpack.c.h.b16 %v730
    %v975 = vunpack.c.l.b16 %v731
    %v976 = vunpack.c.l.b16 %v732
    %v977 = vunpack.c.h.b16 %v732
    %v978 = vunpack.c.l.b16 %v733
    %v979 = vunpack.c.l.b16 %v734
    %v980 = vunpack.c.h.b16 %v734
    %v981 = vunpack.c.l.b16 %v735
    %v982 = vunpack.c.l.b16 %v736
    %v983 = vunpack.c.h.b16 %v736
    %v984 = vunpack.c.l.b16 %v737
    %v985 = vunpack.c.l.b16 %v738
    %v986 = vunpack.c.h.b16 %v738
    %v987 = vunpack.c.l.b16 %v739
    %v988 = vunpack.c.l.b16 %v740
    %v989 = vunpack.c.h.b16 %v740
    %v990 = vunpack.c.l.b16 %v741
    %v991 = vunpack.c.l.b16 %v742
    %v992 = vunpack.c.h.b16 %v742
    %v993 = vunpack.c.l.b16 %v743
    %v994 = vunpack.c.l.b16 %v744
    %v995 = vunpack.c.h.b16 %v744
    %v996 = vunpack.c.l.b16 %v745
    %v997 = vunpack.c.l.b16 %v746
    %v998 = vunpack.c.h.b16 %v746
    %v999 = vunpack.c.l.b16 %v747
    %v1000 = vunpack.c.l.b16 %v748
    %v1001 = vunpack.c.h.b16 %v748
    %v1002 = vunpack.c.l.b16 %v749
    %v1003 = vunpack.c.l.b16 %v750
    %v1004 = vunpack.c.h.b16 %v750
    %v1005 = vunpack.c.l.b16 %v751
    %v1006 = vunpack.c.l.b16 %v752
    %v1007 = vunpack.c.h.b16 %v752
    %v1008 = vunpack.c.l.b16 %v753
    %v1009 = vunpack.c.l.b16 %v754
    %v1010 = vunpack.c.h.b16 %v754
    %v1011 = vunpack.c.l.b16 %v755
    %v1012 = vunpack.c.l.b16 %v756
    %v1013 = vunpack.c.h.b16 %v756
    %v1014 = vunpack.c.l.b16 %v757
    %v1015 = vunpack.c.l.b16 %v758
    %v1016 = vunpack.c.h.b16 %v758
    %v1017 = vunpack.c.l.b16 %v759
    %v1018 = vunpack.c.l.b16 %v760
    %v1019 = vunpack.c.h.b16 %v760
    %v1020 = vunpack.c.l.b16 %v761
    %v1021 = vunpack.c.l.b16 %v762
    %v1022 = vunpack.c.h.b16 %v762
    %v1023 = vunpack.c.l.b16 %v763
    %v1024 = vunpack.c.l.b16 %v764
    %v1025 = vunpack.c.h.b16 %v764
    %v1026 = vunpack.c.l.b16 %v765
    %v1027 = vunpack.c.l.b16 %v766
    %v1028 = vunpack.c.h.b16 %v766
    %v1029 = vunpack.c.l.b16 %v767
    %v1030 = vunpack.c.l.b16 %v768
    %v1031 = vunpack.c.h.b16 %v768
    %v1032 = vunpack.c.l.b16 %v769
    %v1033 = vunpack.c.l.b16 %v770
    %v1034 = vunpack.c.h.b16 %v770
    %v1035 = vunpack.c.l.b16 %v771
    %v1036 = vpack.c.b16 %v895, %v892
    %v1037 = vpack.c.b16 %v896, %v893
    %v1038 = vpack.c.b16 %v897, %v894
    %v1039 = vpack.c.b16 %v901, %v898
    %v1040 = vpack.c.b16 %v902, %v899
    %v1041 = vpack.c.b16 %v903, %v900
    %v1042 = vpack.c.b16 %v907, %v904
    %v1043 = vpack.c.b16 %v908, %v905
    %v1044 = vpack.c.b16 %v909, %v906
    %v1045 = vpack.c.b16 %v913, %v910
    %v1046 = vpack.c.b16 %v914, %v911
    %v1047 = vpack.c.b16 %v915, %v912
    %v1048 = vpack.c.b16 %v919, %v916
    %v1049 = vpack.c.b16 %v920, %v917
    %v1050 = vpack.c.b16 %v921, %v918
    %v1051 = vpack.c.b16 %v925, %v922
    %v1052 = vpack.c.b16 %v926, %v923
    %v1053 = vpack.c.b16 %v927, %v924
    %v1054 = vpack.c.b16 %v931, %v928
    %v1055 = vpack.c.b16 %v932, %v929
    %v1056 = vpack.c.b16 %v933, %v930
    %v1057 = vpack.c.b16 %v937, %v934
    %v1058 = vpack.c.b16 %v938, %v935
    %v1059 = vpack.c.b16 %v939, %v936
    %v1060 = vpack.c.b16 %v943, %v940
    %v1061 = vpack.c.b16 %v944, %v941
    %v1062 = vpack.c.b16 %v945, %v942
    %v1063 = vpack.c.b16 %v949, %v946
    %v1064 = vpack.c.b16 %v950, %v947
    %v1065 = vpack.c.b16 %v951, %v948
    %v1066 = vpack.c.b16 %v955, %v952
    %v1067 = vpack.c.b16 %v956, %v953
    %v1068 = vpack.c.b16 %v957, %v954
    %v1069 = vpack.c.b16 %v961, %v958
    %v1070 = vpack.c.b16 %v962, %v959
    %v1071 = vpack.c.b16 %v963, %v960
    %v1072 = vpack.c.b16 %v967, %v964
    %v1073 = vpack.c.b16 %v968, %v965
    %v1074 = vpack.c.b16 %v969, %v966
    %v1075 = vpack.c.b16 %v973, %v970
    %v1076 = vpack.c.b16 %v974, %v971
    %v1077 = vpack.c.b16 %v975, %v972
    %v1078 = vpack.c.b16 %v979, %v976
    %v1079 = vpack.c.b16 %v980, %v977
    %v1080 = vpack.c.b16 %v981, %v978
    %v1081 = vpack.c.b16 %v985, %v982
    %v1082 = vpack.c.b16 %v986, %v983
    %v1083 = vpack.c.b16 %v987, %v984
    %v1084 = vpack.c.b16 %v991, %v988
    %v1085 = vpack.c.b16 %v992, %v989
    %v1086 = vpack.c.b16 %v993, %v990
    %v1087 = vpack.c.b16 %v997, %v994
    %v1088 = vpack.c.b16 %v998, %v995
    %v1089 = vpack.c.b16 %v999, %v996
    %v1090 = vpack.c.b16 %v1003, %v1000
    %v1091 = vpack.c.b16 %v1004, %v1001
    %v1092 = vpack.c.b16 %v1005, %v1002
    %v1093 = vpack.c.b16 %v1009, %v1006
    %v1094 = vpack.c.b16 %v1010, %v1007
    %v1095 = vpack.c.b16 %v1011, %v1008
    %v1096 = vpack.c.b16 %v1015, %v1012
    %v1097 = vpack.c.b16 %v1016, %v1013
    %v1098 = vpack.c.b16 %v1017, %v1014
    %v1099 = vpack.c.b16 %v1021, %v1018
    %v1100 = vpack.c.b16 %v1022, %v1019
    %v1101 = vpack.c.b16 %v1023, %v1020
    %v1102 = vpack.c.b16 %v1027, %v1024
    %v1103 = vpack.c.b16 %v1028, %v1025
    %v1104 = vpack.c.b16 %v1029, %v1026
    %v1105 = vpack.c.b16 %v1033, %v1030
    %v1106 = vpack.c.b16 %v1034, %v1031
    %v1107 = vpack.c.b16 %v1035, %v1032
    %1180 = vmatpush.bf16.msra.mxu0 %v1057
    %1181 = vmatpush.bf16.msra.mxu0 %v1054
    %1182 = vmatpush.bf16.msra.mxu0 %v1051
    %1183 = vmatpush.bf16.msra.mxu0 %v1048
    %1184 = vmatpush.bf16.msra.mxu0 %v1045
    %1185 = vmatpush.bf16.msra.mxu0 %v1042
    %1186 = vmatpush.bf16.msra.mxu0 %v1039
    %1187 = vmatpush.bf16.msra.mxu0 %v1036
    %1188 = vmatmul.bf16.gmra.mxu0 %v778
    %v1189 = vpop.f32.mrf.mxu0
    %v1190 = vadd.f32 0.0, %v1189
    %v1191 = vpop.f32.mrf.mxu0
    %v1192 = vadd.f32 0.0, %v1191
    %1193 = vdwg.mxu0
    %1194 = vmatpush.bf16.msra.mxu0 %v1081
    %1195 = vmatpush.bf16.msra.mxu0 %v1078
    %1196 = vmatpush.bf16.msra.mxu0 %v1075
    %1197 = vmatpush.bf16.msra.mxu0 %v1072
    %1198 = vmatpush.bf16.msra.mxu0 %v1069
    %1199 = vmatpush.bf16.msra.mxu0 %v1066
    %1200 = vmatpush.bf16.msra.mxu0 %v1063
    %1201 = vmatpush.bf16.msra.mxu0 %v1060
    %1202 = vmatmul.bf16.gmra.mxu0 %v785
    %v1203 = vpop.f32.mrf.mxu0
    %v1204 = vadd.f32 %v1190, %v1203
    %v1205 = vpop.f32.mrf.mxu0
    %v1206 = vadd.f32 %v1192, %v1205
    %1207 = vdwg.mxu0
    %1208 = vmatpush.bf16.msra.mxu0 %v1105
    %1209 = vmatpush.bf16.msra.mxu0 %v1102
    %1210 = vmatpush.bf16.msra.mxu0 %v1099
    %1211 = vmatpush.bf16.msra.mxu0 %v1096
    %1212 = vmatpush.bf16.msra.mxu0 %v1093
    %1213 = vmatpush.bf16.msra.mxu0 %v1090
    %1214 = vmatpush.bf16.msra.mxu0 %v1087
    %1215 = vmatpush.bf16.msra.mxu0 %v1084
    %1216 = vmatmul.bf16.gmra.mxu0 %v792
    %v1217 = vpop.f32.mrf.mxu0
    %v1218 = vadd.f32 %v1204, %v1217
    %v1219 = vpop.f32.mrf.mxu0
    %v1220 = vadd.f32 %v1206, %v1219
    %1221 = vdwg.mxu0
    %1222 = vmatpush.bf16.msra.mxu0 %v1058
    %1223 = vmatpush.bf16.msra.mxu0 %v1055
    %1224 = vmatpush.bf16.msra.mxu0 %v1052
    %1225 = vmatpush.bf16.msra.mxu0 %v1049
    %1226 = vmatpush.bf16.msra.mxu0 %v1046
    %1227 = vmatpush.bf16.msra.mxu0 %v1043
    %1228 = vmatpush.bf16.msra.mxu0 %v1040
    %1229 = vmatpush.bf16.msra.mxu0 %v1037
    %1230 = vmatmul.bf16.gmra.mxu0 %v778
    %v1231 = vpop.f32.mrf.mxu0
    %v1232 = vadd.f32 0.0, %v1231
    %v1233 = vpop.f32.mrf.mxu0
    %v1234 = vadd.f32 0.0, %v1233
    %1235 = vdwg.mxu0
    %1236 = vmatpush.bf16.msra.mxu0 %v1082
    %1237 = vmatpush.bf16.msra.mxu0 %v1079
    %1238 = vmatpush.bf16.msra.mxu0 %v1076
    %1239 = vmatpush.bf16.msra.mxu0 %v1073
    %1240 = vmatpush.bf16.msra.mxu0 %v1070
    %1241 = vmatpush.bf16.msra.mxu0 %v1067
    %1242 = vmatpush.bf16.msra.mxu0 %v1064
    %1243 = vmatpush.bf16.msra.mxu0 %v1061
    %1244 = vmatmul.bf16.gmra.mxu0 %v785
    %v1245 = vpop.f32.mrf.mxu0
    %v1246 = vadd.f32 %v1232, %v1245
    %v1247 = vpop.f32.mrf.mxu0
    %v1248 = vadd.f32 %v1234, %v1247
    %1249 = vdwg.mxu0
    %1250 = vmatpush.bf16.msra.mxu0 %v1106
    %1251 = vmatpush.bf16.msra.mxu0 %v1103
    %1252 = vmatpush.bf16.msra.mxu0 %v1100
    %1253 = vmatpush.bf16.msra.mxu0 %v1097
    %1254 = vmatpush.bf16.msra.mxu0 %v1094
    %1255 = vmatpush.bf16.msra.mxu0 %v1091
    %1256 = vmatpush.bf16.msra.mxu0 %v1088
    %1257 = vmatpush.bf16.msra.mxu0 %v1085
    %1258 = vmatmul.bf16.gmra.mxu0 %v792
    %v1259 = vpop.f32.mrf.mxu0
    %v1260 = vadd.f32 %v1246, %v1259
    %v1261 = vpop.f32.mrf.mxu0
    %v1262 = vadd.f32 %v1248, %v1261
    %1263 = vdwg.mxu0
    %1264 = vmatpush.bf16.msra.mxu0 %v1059
    %1265 = vmatpush.bf16.msra.mxu0 %v1056
    %1266 = vmatpush.bf16.msra.mxu0 %v1053
    %1267 = vmatpush.bf16.msra.mxu0 %v1050
    %1268 = vmatpush.bf16.msra.mxu0 %v1047
    %1269 = vmatpush.bf16.msra.mxu0 %v1044
    %1270 = vmatpush.bf16.msra.mxu0 %v1041
    %1271 = vmatpush.bf16.msra.mxu0 %v1038
    %1272 = vmatmul.bf16.gmra.mxu0 %v778
    %v1273 = vpop.f32.mrf.mxu0
    %v1274 = vadd.f32 0.0, %v1273
    %v1275 = vpop.f32.mrf.mxu0
    %v1276 = vadd.f32 0.0, %v1275
    %1277 = vdwg.mxu0
    %1278 = vmatpush.bf16.msra.mxu0 %v1083
    %1279 = vmatpush.bf16.msra.mxu0 %v1080
    %1280 = vmatpush.bf16.msra.mxu0 %v1077
    %1281 = vmatpush.bf16.msra.mxu0 %v1074
    %1282 = vmatpush.bf16.msra.mxu0 %v1071
    %1283 = vmatpush.bf16.msra.mxu0 %v1068
    %1284 = vmatpush.bf16.msra.mxu0 %v1065
    %1285 = vmatpush.bf16.msra.mxu0 %v1062
    %1286 = vmatmul.bf16.gmra.mxu0 %v785
    %v1287 = vpop.f32.mrf.mxu0
    %v1288 = vadd.f32 %v1274, %v1287
    %v1289 = vpop.f32.mrf.mxu0
    %v1290 = vadd.f32 %v1276, %v1289
    %1291 = vdwg.mxu0
    %1292 = vmatpush.bf16.msra.mxu0 %v1107
    %1293 = vmatpush.bf16.msra.mxu0 %v1104
    %1294 = vmatpush.bf16.msra.mxu0 %v1101
    %1295 = vmatpush.bf16.msra.mxu0 %v1098
    %1296 = vmatpush.bf16.msra.mxu0 %v1095
    %1297 = vmatpush.bf16.msra.mxu0 %v1092
    %1298 = vmatpush.bf16.msra.mxu0 %v1089
    %1299 = vmatpush.bf16.msra.mxu0 %v1086
    %1300 = vmatmul.bf16.gmra.mxu0 %v792
    %v1301 = vpop.f32.mrf.mxu0
    %v1302 = vadd.f32 %v1288, %v1301
    %v1303 = vpop.f32.mrf.mxu0
    %v1304 = vadd.f32 %v1290, %v1303
    %1305 = vdwg.mxu0
    %v1402 = vunpack.c.l.b16 %v576
    %v1403 = vunpack.c.h.b16 %v576
    %v1404 = vunpack.c.l.b16 %v577
    %v1405 = vunpack.c.l.b16 %v578
    %v1406 = vunpack.c.h.b16 %v578
    %v1407 = vunpack.c.l.b16 %v579
    %v1408 = vunpack.c.l.b16 %v580
    %v1409 = vunpack.c.h.b16 %v580
    %v1410 = vunpack.c.l.b16 %v581
    %v1411 = vunpack.c.l.b16 %v582
    %v1412 = vunpack.c.h.b16 %v582
    %v1413 = vunpack.c.l.b16 %v583
    %v1414 = vunpack.c.l.b16 %v584
    %v1415 = vunpack.c.h.b16 %v584
    %v1416 = vunpack.c.l.b16 %v585
    %v1417 = vunpack.c.l.b16 %v586
    %v1418 = vunpack.c.h.b16 %v586
    %v1419 = vunpack.c.l.b16 %v587
    %v1420 = vunpack.c.l.b16 %v588
    %v1421 = vunpack.c.h.b16 %v588
    %v1422 = vunpack.c.l.b16 %v589
    %v1423 = vunpack.c.l.b16 %v590
    %v1424 = vunpack.c.h.b16 %v590
    %v1425 = vunpack.c.l.b16 %v591
    %v1426 = vunpack.c.l.b16 %v592
    %v1427 = vunpack.c.h.b16 %v592
    %v1428 = vunpack.c.l.b16 %v593
    %v1429 = vunpack.c.l.b16 %v594
    %v1430 = vunpack.c.h.b16 %v594
    %v1431 = vunpack.c.l.b16 %v595
    %v1432 = vunpack.c.l.b16 %v596
    %v1433 = vunpack.c.h.b16 %v596
    %v1434 = vunpack.c.l.b16 %v597
    %v1435 = vunpack.c.l.b16 %v598
    %v1436 = vunpack.c.h.b16 %v598
    %v1437 = vunpack.c.l.b16 %v599
    %v1438 = vunpack.c.l.b16 %v600
    %v1439 = vunpack.c.h.b16 %v600
    %v1440 = vunpack.c.l.b16 %v601
    %v1441 = vunpack.c.l.b16 %v602
    %v1442 = vunpack.c.h.b16 %v602
    %v1443 = vunpack.c.l.b16 %v603
    %v1444 = vunpack.c.l.b16 %v604
    %v1445 = vunpack.c.h.b16 %v604
    %v1446 = vunpack.c.l.b16 %v605
    %v1447 = vunpack.c.l.b16 %v606
    %v1448 = vunpack.c.h.b16 %v606
    %v1449 = vunpack.c.l.b16 %v607
    %v1450 = vunpack.c.l.b16 %v608
    %v1451 = vunpack.c.h.b16 %v608
    %v1452 = vunpack.c.l.b16 %v609
    %v1453 = vunpack.c.l.b16 %v610
    %v1454 = vunpack.c.h.b16 %v610
    %v1455 = vunpack.c.l.b16 %v611
    %v1456 = vunpack.c.l.b16 %v612
    %v1457 = vunpack.c.h.b16 %v612
    %v1458 = vunpack.c.l.b16 %v613
    %v1459 = vunpack.c.l.b16 %v614
    %v1460 = vunpack.c.h.b16 %v614
    %v1461 = vunpack.c.l.b16 %v615
    %v1462 = vunpack.c.l.b16 %v616
    %v1463 = vunpack.c.h.b16 %v616
    %v1464 = vunpack.c.l.b16 %v617
    %v1465 = vunpack.c.l.b16 %v618
    %v1466 = vunpack.c.h.b16 %v618
    %v1467 = vunpack.c.l.b16 %v619
    %v1468 = vunpack.c.l.b16 %v620
    %v1469 = vunpack.c.h.b16 %v620
    %v1470 = vunpack.c.l.b16 %v621
    %v1471 = vunpack.c.l.b16 %v622
    %v1472 = vunpack.c.h.b16 %v622
    %v1473 = vunpack.c.l.b16 %v623
    %v1474 = vunpack.c.l.b16 %v624
    %v1475 = vunpack.c.h.b16 %v624
    %v1476 = vunpack.c.l.b16 %v625
    %v1477 = vunpack.c.l.b16 %v626
    %v1478 = vunpack.c.h.b16 %v626
    %v1479 = vunpack.c.l.b16 %v627
    %v1480 = vunpack.c.l.b16 %v628
    %v1481 = vunpack.c.h.b16 %v628
    %v1482 = vunpack.c.l.b16 %v629
    %v1483 = vunpack.c.l.b16 %v630
    %v1484 = vunpack.c.h.b16 %v630
    %v1485 = vunpack.c.l.b16 %v631
    %v1486 = vunpack.c.l.b16 %v632
    %v1487 = vunpack.c.h.b16 %v632
    %v1488 = vunpack.c.l.b16 %v633
    %v1489 = vunpack.c.l.b16 %v634
    %v1490 = vunpack.c.h.b16 %v634
    %v1491 = vunpack.c.l.b16 %v635
    %v1492 = vunpack.c.l.b16 %v636
    %v1493 = vunpack.c.h.b16 %v636
    %v1494 = vunpack.c.l.b16 %v637
    %v1495 = vunpack.c.l.b16 %v638
    %v1496 = vunpack.c.h.b16 %v638
    %v1497 = vunpack.c.l.b16 %v639
    %v1498 = vunpack.c.l.b16 %v640
    %v1499 = vunpack.c.h.b16 %v640
    %v1500 = vunpack.c.l.b16 %v641
    %v1501 = vunpack.c.l.b16 %v642
    %v1502 = vunpack.c.h.b16 %v642
    %v1503 = vunpack.c.l.b16 %v643
    %v1504 = vunpack.c.l.b16 %v644
    %v1505 = vunpack.c.h.b16 %v644
    %v1506 = vunpack.c.l.b16 %v645
    %v1507 = vunpack.c.l.b16 %v646
    %v1508 = vunpack.c.h.b16 %v646
    %v1509 = vunpack.c.l.b16 %v647
    %v1510 = vunpack.c.l.b16 %v648
    %v1511 = vunpack.c.h.b16 %v648
    %v1512 = vunpack.c.l.b16 %v649
    %v1513 = vunpack.c.l.b16 %v650
    %v1514 = vunpack.c.h.b16 %v650
    %v1515 = vunpack.c.l.b16 %v651
    %v1516 = vunpack.c.l.b16 %v652
    %v1517 = vunpack.c.h.b16 %v652
    %v1518 = vunpack.c.l.b16 %v653
    %v1519 = vunpack.c.l.b16 %v654
    %v1520 = vunpack.c.h.b16 %v654
    %v1521 = vunpack.c.l.b16 %v655
    %v1522 = vunpack.c.l.b16 %v656
    %v1523 = vunpack.c.h.b16 %v656
    %v1524 = vunpack.c.l.b16 %v657
    %v1525 = vunpack.c.l.b16 %v658
    %v1526 = vunpack.c.h.b16 %v658
    %v1527 = vunpack.c.l.b16 %v659
    %v1528 = vunpack.c.l.b16 %v660
    %v1529 = vunpack.c.h.b16 %v660
    %v1530 = vunpack.c.l.b16 %v661
    %v1531 = vunpack.c.l.b16 %v662
    %v1532 = vunpack.c.h.b16 %v662
    %v1533 = vunpack.c.l.b16 %v663
    %v1534 = vunpack.c.l.b16 %v664
    %v1535 = vunpack.c.h.b16 %v664
    %v1536 = vunpack.c.l.b16 %v665
    %v1537 = vunpack.c.l.b16 %v666
    %v1538 = vunpack.c.h.b16 %v666
    %v1539 = vunpack.c.l.b16 %v667
    %v1540 = vunpack.c.l.b16 %v668
    %v1541 = vunpack.c.h.b16 %v668
    %v1542 = vunpack.c.l.b16 %v669
    %v1543 = vunpack.c.l.b16 %v670
    %v1544 = vunpack.c.h.b16 %v670
    %v1545 = vunpack.c.l.b16 %v671
    %v1546 = vpack.c.b16 %v1405, %v1402
    %v1547 = vpack.c.b16 %v1406, %v1403
    %v1548 = vpack.c.b16 %v1407, %v1404
    %v1549 = vpack.c.b16 %v1411, %v1408
    %v1550 = vpack.c.b16 %v1412, %v1409
    %v1551 = vpack.c.b16 %v1413, %v1410
    %v1552 = vpack.c.b16 %v1417, %v1414
    %v1553 = vpack.c.b16 %v1418, %v1415
    %v1554 = vpack.c.b16 %v1419, %v1416
    %v1555 = vpack.c.b16 %v1423, %v1420
    %v1556 = vpack.c.b16 %v1424, %v1421
    %v1557 = vpack.c.b16 %v1425, %v1422
    %v1558 = vpack.c.b16 %v1429, %v1426
    %v1559 = vpack.c.b16 %v1430, %v1427
    %v1560 = vpack.c.b16 %v1431, %v1428
    %v1561 = vpack.c.b16 %v1435, %v1432
    %v1562 = vpack.c.b16 %v1436, %v1433
    %v1563 = vpack.c.b16 %v1437, %v1434
    %v1564 = vpack.c.b16 %v1441, %v1438
    %v1565 = vpack.c.b16 %v1442, %v1439
    %v1566 = vpack.c.b16 %v1443, %v1440
    %v1567 = vpack.c.b16 %v1447, %v1444
    %v1568 = vpack.c.b16 %v1448, %v1445
    %v1569 = vpack.c.b16 %v1449, %v1446
    %v1570 = vpack.c.b16 %v1453, %v1450
    %v1571 = vpack.c.b16 %v1454, %v1451
    %v1572 = vpack.c.b16 %v1455, %v1452
    %v1573 = vpack.c.b16 %v1459, %v1456
    %v1574 = vpack.c.b16 %v1460, %v1457
    %v1575 = vpack.c.b16 %v1461, %v1458
    %v1576 = vpack.c.b16 %v1465, %v1462
    %v1577 = vpack.c.b16 %v1466, %v1463
    %v1578 = vpack.c.b16 %v1467, %v1464
    %v1579 = vpack.c.b16 %v1471, %v1468
    %v1580 = vpack.c.b16 %v1472, %v1469
    %v1581 = vpack.c.b16 %v1473, %v1470
    %v1582 = vpack.c.b16 %v1477, %v1474
    %v1583 = vpack.c.b16 %v1478, %v1475
    %v1584 = vpack.c.b16 %v1479, %v1476
    %v1585 = vpack.c.b16 %v1483, %v1480
    %v1586 = vpack.c.b16 %v1484, %v1481
    %v1587 = vpack.c.b16 %v1485, %v1482
    %v1588 = vpack.c.b16 %v1489, %v1486
    %v1589 = vpack.c.b16 %v1490, %v1487
    %v1590 = vpack.c.b16 %v1491, %v1488
    %v1591 = vpack.c.b16 %v1495, %v1492
    %v1592 = vpack.c.b16 %v1496, %v1493
    %v1593 = vpack.c.b16 %v1497, %v1494
    %v1594 = vpack.c.b16 %v1501, %v1498
    %v1595 = vpack.c.b16 %v1502, %v1499
    %v1596 = vpack.c.b16 %v1503, %v1500
    %v1597 = vpack.c.b16 %v1507, %v1504
    %v1598 = vpack.c.b16 %v1508, %v1505
    %v1599 = vpack.c.b16 %v1509, %v1506
    %v1600 = vpack.c.b16 %v1513, %v1510
    %v1601 = vpack.c.b16 %v1514, %v1511
    %v1602 = vpack.c.b16 %v1515, %v1512
    %v1603 = vpack.c.b16 %v1519, %v1516
    %v1604 = vpack.c.b16 %v1520, %v1517
    %v1605 = vpack.c.b16 %v1521, %v1518
    %v1606 = vpack.c.b16 %v1525, %v1522
    %v1607 = vpack.c.b16 %v1526, %v1523
    %v1608 = vpack.c.b16 %v1527, %v1524
    %v1609 = vpack.c.b16 %v1531, %v1528
    %v1610 = vpack.c.b16 %v1532, %v1529
    %v1611 = vpack.c.b16 %v1533, %v1530
    %v1612 = vpack.c.b16 %v1537, %v1534
    %v1613 = vpack.c.b16 %v1538, %v1535
    %v1614 = vpack.c.b16 %v1539, %v1536
    %v1615 = vpack.c.b16 %v1543, %v1540
    %v1616 = vpack.c.b16 %v1544, %v1541
    %v1617 = vpack.c.b16 %v1545, %v1542
    %1690 = vmatpush.bf16.msra.mxu0 %v1567
    %1691 = vmatpush.bf16.msra.mxu0 %v1564
    %1692 = vmatpush.bf16.msra.mxu0 %v1561
    %1693 = vmatpush.bf16.msra.mxu0 %v1558
    %1694 = vmatpush.bf16.msra.mxu0 %v1555
    %1695 = vmatpush.bf16.msra.mxu0 %v1552
    %1696 = vmatpush.bf16.msra.mxu0 %v1549
    %1697 = vmatpush.bf16.msra.mxu0 %v1546
    %1698 = vmatmul.bf16.gmra.mxu0 %v672
    %v1699 = vpop.f32.mrf.mxu0
    %v1700 = vadd.f32 %v1218, %v1699
    %v1701 = vpop.f32.mrf.mxu0
    %v1702 = vadd.f32 %v1220, %v1701
    %1703 = vdwg.mxu0
    %1704 = vmatpush.bf16.msra.mxu0 %v1591
    %1705 = vmatpush.bf16.msra.mxu0 %v1588
    %1706 = vmatpush.bf16.msra.mxu0 %v1585
    %1707 = vmatpush.bf16.msra.mxu0 %v1582
    %1708 = vmatpush.bf16.msra.mxu0 %v1579
    %1709 = vmatpush.bf16.msra.mxu0 %v1576
    %1710 = vmatpush.bf16.msra.mxu0 %v1573
    %1711 = vmatpush.bf16.msra.mxu0 %v1570
    %1712 = vmatmul.bf16.gmra.mxu0 %v673
    %v1713 = vpop.f32.mrf.mxu0
    %v1714 = vadd.f32 %v1700, %v1713
    %v1715 = vpop.f32.mrf.mxu0
    %v1716 = vadd.f32 %v1702, %v1715
    %1717 = vdwg.mxu0
    %1718 = vmatpush.bf16.msra.mxu0 %v1615
    %1719 = vmatpush.bf16.msra.mxu0 %v1612
    %1720 = vmatpush.bf16.msra.mxu0 %v1609
    %1721 = vmatpush.bf16.msra.mxu0 %v1606
    %1722 = vmatpush.bf16.msra.mxu0 %v1603
    %1723 = vmatpush.bf16.msra.mxu0 %v1600
    %1724 = vmatpush.bf16.msra.mxu0 %v1597
    %1725 = vmatpush.bf16.msra.mxu0 %v1594
    %1726 = vmatmul.bf16.gmra.mxu0 %v674
    %v1727 = vpop.f32.mrf.mxu0
    %v1728 = vadd.f32 %v1714, %v1727
    %v1729 = vpop.f32.mrf.mxu0
    %v1730 = vadd.f32 %v1716, %v1729
    %1731 = vdwg.mxu0
    %1732 = vmatpush.bf16.msra.mxu0 %v1568
    %1733 = vmatpush.bf16.msra.mxu0 %v1565
    %1734 = vmatpush.bf16.msra.mxu0 %v1562
    %1735 = vmatpush.bf16.msra.mxu0 %v1559
    %1736 = vmatpush.bf16.msra.mxu0 %v1556
    %1737 = vmatpush.bf16.msra.mxu0 %v1553
    %1738 = vmatpush.bf16.msra.mxu0 %v1550
    %1739 = vmatpush.bf16.msra.mxu0 %v1547
    %1740 = vmatmul.bf16.gmra.mxu0 %v672
    %v1741 = vpop.f32.mrf.mxu0
    %v1742 = vadd.f32 %v1260, %v1741
    %v1743 = vpop.f32.mrf.mxu0
    %v1744 = vadd.f32 %v1262, %v1743
    %1745 = vdwg.mxu0
    %1746 = vmatpush.bf16.msra.mxu0 %v1592
    %1747 = vmatpush.bf16.msra.mxu0 %v1589
    %1748 = vmatpush.bf16.msra.mxu0 %v1586
    %1749 = vmatpush.bf16.msra.mxu0 %v1583
    %1750 = vmatpush.bf16.msra.mxu0 %v1580
    %1751 = vmatpush.bf16.msra.mxu0 %v1577
    %1752 = vmatpush.bf16.msra.mxu0 %v1574
    %1753 = vmatpush.bf16.msra.mxu0 %v1571
    %1754 = vmatmul.bf16.gmra.mxu0 %v673
    %v1755 = vpop.f32.mrf.mxu0
    %v1756 = vadd.f32 %v1742, %v1755
    %v1757 = vpop.f32.mrf.mxu0
    %v1758 = vadd.f32 %v1744, %v1757
    %1759 = vdwg.mxu0
    %1760 = vmatpush.bf16.msra.mxu0 %v1616
    %1761 = vmatpush.bf16.msra.mxu0 %v1613
    %1762 = vmatpush.bf16.msra.mxu0 %v1610
    %1763 = vmatpush.bf16.msra.mxu0 %v1607
    %1764 = vmatpush.bf16.msra.mxu0 %v1604
    %1765 = vmatpush.bf16.msra.mxu0 %v1601
    %1766 = vmatpush.bf16.msra.mxu0 %v1598
    %1767 = vmatpush.bf16.msra.mxu0 %v1595
    %1768 = vmatmul.bf16.gmra.mxu0 %v674
    %v1769 = vpop.f32.mrf.mxu0
    %v1770 = vadd.f32 %v1756, %v1769
    %v1771 = vpop.f32.mrf.mxu0
    %v1772 = vadd.f32 %v1758, %v1771
    %1773 = vdwg.mxu0
    %1774 = vmatpush.bf16.msra.mxu0 %v1569
    %1775 = vmatpush.bf16.msra.mxu0 %v1566
    %1776 = vmatpush.bf16.msra.mxu0 %v1563
    %1777 = vmatpush.bf16.msra.mxu0 %v1560
    %1778 = vmatpush.bf16.msra.mxu0 %v1557
    %1779 = vmatpush.bf16.msra.mxu0 %v1554
    %1780 = vmatpush.bf16.msra.mxu0 %v1551
    %1781 = vmatpush.bf16.msra.mxu0 %v1548
    %1782 = vmatmul.bf16.gmra.mxu0 %v672
    %v1783 = vpop.f32.mrf.mxu0
    %v1784 = vadd.f32 %v1302, %v1783
    %v1785 = vpop.f32.mrf.mxu0
    %v1786 = vadd.f32 %v1304, %v1785
    %1787 = vdwg.mxu0
    %1788 = vmatpush.bf16.msra.mxu0 %v1593
    %1789 = vmatpush.bf16.msra.mxu0 %v1590
    %1790 = vmatpush.bf16.msra.mxu0 %v1587
    %1791 = vmatpush.bf16.msra.mxu0 %v1584
    %1792 = vmatpush.bf16.msra.mxu0 %v1581
    %1793 = vmatpush.bf16.msra.mxu0 %v1578
    %1794 = vmatpush.bf16.msra.mxu0 %v1575
    %1795 = vmatpush.bf16.msra.mxu0 %v1572
    %1796 = vmatmul.bf16.gmra.mxu0 %v673
    %v1797 = vpop.f32.mrf.mxu0
    %v1798 = vadd.f32 %v1784, %v1797
    %v1799 = vpop.f32.mrf.mxu0
    %v1800 = vadd.f32 %v1786, %v1799
    %1801 = vdwg.mxu0
    %1802 = vmatpush.bf16.msra.mxu0 %v1617
    %1803 = vmatpush.bf16.msra.mxu0 %v1614
    %1804 = vmatpush.bf16.msra.mxu0 %v1611
    %1805 = vmatpush.bf16.msra.mxu0 %v1608
    %1806 = vmatpush.bf16.msra.mxu0 %v1605
    %1807 = vmatpush.bf16.msra.mxu0 %v1602
    %1808 = vmatpush.bf16.msra.mxu0 %v1599
    %1809 = vmatpush.bf16.msra.mxu0 %v1596
    %1810 = vmatmul.bf16.gmra.mxu0 %v674
    %v1811 = vpop.f32.mrf.mxu0
    %v1812 = vadd.f32 %v1798, %v1811
    %v1813 = vpop.f32.mrf.mxu0
    %v1814 = vadd.f32 %v1800, %v1813
    %1815 = vdwg.mxu0
    %s1816 = scalar_lea.vmem %s2, 1152
    %v1817 = vld [vmem:[%s1816] sm:$0xff]
    %v1818 = vld [vmem:[%s1816 + $0x8] sm:$0xf]
    %v1819 = vld [vmem:[%s1816 + $0xc] sm:$0xff]
    %v1820 = vld [vmem:[%s1816 + $0x14] sm:$0xf]
    %v1821 = vld [vmem:[%s1816 + $0x18] sm:$0xff]
    %v1822 = vld [vmem:[%s1816 + $0x20] sm:$0xf]
    %v1823 = vld [vmem:[%s1816 + $0x24] sm:$0xff]
    %v1824 = vld [vmem:[%s1816 + $0x2c] sm:$0xf]
    %v1825 = vld [vmem:[%s1816 + $0x30] sm:$0xff]
    %v1826 = vld [vmem:[%s1816 + $0x38] sm:$0xf]
    %v1827 = vld [vmem:[%s1816 + $0x3c] sm:$0xff]
    %v1828 = vld [vmem:[%s1816 + $0x44] sm:$0xf]
    %v1829 = vld [vmem:[%s1816 + $0x48] sm:$0xff]
    %v1830 = vld [vmem:[%s1816 + $0x50] sm:$0xf]
    %v1831 = vld [vmem:[%s1816 + $0x54] sm:$0xff]
    %v1832 = vld [vmem:[%s1816 + $0x5c] sm:$0xf]
    %v1833 = vld [vmem:[%s1816 + $0x60] sm:$0xff]
    %v1834 = vld [vmem:[%s1816 + $0x68] sm:$0xf]
    %v1835 = vld [vmem:[%s1816 + $0x6c] sm:$0xff]
    %v1836 = vld [vmem:[%s1816 + $0x74] sm:$0xf]
    %v1837 = vld [vmem:[%s1816 + $0x78] sm:$0xff]
    %v1838 = vld [vmem:[%s1816 + $0x80] sm:$0xf]
    %v1839 = vld [vmem:[%s1816 + $0x84] sm:$0xff]
    %v1840 = vld [vmem:[%s1816 + $0x8c] sm:$0xf]
    %v1841 = vld [vmem:[%s1816 + $0x90] sm:$0xff]
    %v1842 = vld [vmem:[%s1816 + $0x98] sm:$0xf]
    %v1843 = vld [vmem:[%s1816 + $0x9c] sm:$0xff]
    %v1844 = vld [vmem:[%s1816 + $0xa4] sm:$0xf]
    %v1845 = vld [vmem:[%s1816 + $0xa8] sm:$0xff]
    %v1846 = vld [vmem:[%s1816 + $0xb0] sm:$0xf]
    %v1847 = vld [vmem:[%s1816 + $0xb4] sm:$0xff]
    %v1848 = vld [vmem:[%s1816 + $0xbc] sm:$0xf]
    %v1849 = vld [vmem:[%s1816 + $0xc0] sm:$0xff]
    %v1850 = vld [vmem:[%s1816 + $0xc8] sm:$0xf]
    %v1851 = vld [vmem:[%s1816 + $0xcc] sm:$0xff]
    %v1852 = vld [vmem:[%s1816 + $0xd4] sm:$0xf]
    %v1853 = vld [vmem:[%s1816 + $0xd8] sm:$0xff]
    %v1854 = vld [vmem:[%s1816 + $0xe0] sm:$0xf]
    %v1855 = vld [vmem:[%s1816 + $0xe4] sm:$0xff]
    %v1856 = vld [vmem:[%s1816 + $0xec] sm:$0xf]
    %v1857 = vld [vmem:[%s1816 + $0xf0] sm:$0xff]
    %v1858 = vld [vmem:[%s1816 + $0xf8] sm:$0xf]
    %v1859 = vld [vmem:[%s1816 + $0xfc] sm:$0xff]
    %v1860 = vld [vmem:[%s1816 + $0x104] sm:$0xf]
    %v1861 = vld [vmem:[%s1816 + $0x108] sm:$0xff]
    %v1862 = vld [vmem:[%s1816 + $0x110] sm:$0xf]
    %v1863 = vld [vmem:[%s1816 + $0x114] sm:$0xff]
    %v1864 = vld [vmem:[%s1816 + $0x11c] sm:$0xf]
    %v1865 = vld [vmem:[%s1816 + $0x120] sm:$0xff]
    %v1866 = vld [vmem:[%s1816 + $0x128] sm:$0xf]
    %v1867 = vld [vmem:[%s1816 + $0x12c] sm:$0xff]
    %v1868 = vld [vmem:[%s1816 + $0x134] sm:$0xf]
    %v1869 = vld [vmem:[%s1816 + $0x138] sm:$0xff]
    %v1870 = vld [vmem:[%s1816 + $0x140] sm:$0xf]
    %v1871 = vld [vmem:[%s1816 + $0x144] sm:$0xff]
    %v1872 = vld [vmem:[%s1816 + $0x14c] sm:$0xf]
    %v1873 = vld [vmem:[%s1816 + $0x150] sm:$0xff]
    %v1874 = vld [vmem:[%s1816 + $0x158] sm:$0xf]
    %v1875 = vld [vmem:[%s1816 + $0x15c] sm:$0xff]
    %v1876 = vld [vmem:[%s1816 + $0x164] sm:$0xf]
    %v1877 = vld [vmem:[%s1816 + $0x168] sm:$0xff]
    %v1878 = vld [vmem:[%s1816 + $0x170] sm:$0xf]
    %v1879 = vld [vmem:[%s1816 + $0x174] sm:$0xff]
    %v1880 = vld [vmem:[%s1816 + $0x17c] sm:$0xf]
    %v1881 = vld [vmem:[%s1816 + $0x180] sm:$0xff]
    %v1882 = vld [vmem:[%s1816 + $0x188] sm:$0xf]
    %v1883 = vld [vmem:[%s1816 + $0x18c] sm:$0xff]
    %v1884 = vld [vmem:[%s1816 + $0x194] sm:$0xf]
    %v1885 = vld [vmem:[%s1816 + $0x198] sm:$0xff]
    %v1886 = vld [vmem:[%s1816 + $0x1a0] sm:$0xf]
    %v1887 = vld [vmem:[%s1816 + $0x1a4] sm:$0xff]
    %v1888 = vld [vmem:[%s1816 + $0x1ac] sm:$0xf]
    %v1889 = vld [vmem:[%s1816 + $0x1b0] sm:$0xff]
    %v1890 = vld [vmem:[%s1816 + $0x1b8] sm:$0xf]
    %v1891 = vld [vmem:[%s1816 + $0x1bc] sm:$0xff]
    %v1892 = vld [vmem:[%s1816 + $0x1c4] sm:$0xf]
    %v1893 = vld [vmem:[%s1816 + $0x1c8] sm:$0xff]
    %v1894 = vld [vmem:[%s1816 + $0x1d0] sm:$0xf]
    %v1895 = vld [vmem:[%s1816 + $0x1d4] sm:$0xff]
    %v1896 = vld [vmem:[%s1816 + $0x1dc] sm:$0xf]
    %v1897 = vld [vmem:[%s1816 + $0x1e0] sm:$0xff]
    %v1898 = vld [vmem:[%s1816 + $0x1e8] sm:$0xf]
    %v1899 = vld [vmem:[%s1816 + $0x1ec] sm:$0xff]
    %v1900 = vld [vmem:[%s1816 + $0x1f4] sm:$0xf]
    %v1901 = vld [vmem:[%s1816 + $0x1f8] sm:$0xff]
    %v1902 = vld [vmem:[%s1816 + $0x200] sm:$0xf]
    %v1903 = vld [vmem:[%s1816 + $0x204] sm:$0xff]
    %v1904 = vld [vmem:[%s1816 + $0x20c] sm:$0xf]
    %v1905 = vld [vmem:[%s1816 + $0x210] sm:$0xff]
    %v1906 = vld [vmem:[%s1816 + $0x218] sm:$0xf]
    %v1907 = vld [vmem:[%s1816 + $0x21c] sm:$0xff]
    %v1908 = vld [vmem:[%s1816 + $0x224] sm:$0xf]
    %v1909 = vld [vmem:[%s1816 + $0x228] sm:$0xff]
    %v1910 = vld [vmem:[%s1816 + $0x230] sm:$0xf]
    %v1911 = vld [vmem:[%s1816 + $0x234] sm:$0xff]
    %v1912 = vld [vmem:[%s1816 + $0x23c] sm:$0xf]
    %v1916 = vrot.slane %v672, 1
    %v1917 = vrot.slane %v673, 1
    %v1918 = vrot.slane %v674, 1
    %v2018 = vunpack.c.l.b16 %v1817
    %v2019 = vunpack.c.h.b16 %v1817
    %v2020 = vunpack.c.l.b16 %v1818
    %v2021 = vunpack.c.l.b16 %v1819
    %v2022 = vunpack.c.h.b16 %v1819
    %v2023 = vunpack.c.l.b16 %v1820
    %v2024 = vunpack.c.l.b16 %v1821
    %v2025 = vunpack.c.h.b16 %v1821
    %v2026 = vunpack.c.l.b16 %v1822
    %v2027 = vunpack.c.l.b16 %v1823
    %v2028 = vunpack.c.h.b16 %v1823
    %v2029 = vunpack.c.l.b16 %v1824
    %v2030 = vunpack.c.l.b16 %v1825
    %v2031 = vunpack.c.h.b16 %v1825
    %v2032 = vunpack.c.l.b16 %v1826
    %v2033 = vunpack.c.l.b16 %v1827
    %v2034 = vunpack.c.h.b16 %v1827
    %v2035 = vunpack.c.l.b16 %v1828
    %v2036 = vunpack.c.l.b16 %v1829
    %v2037 = vunpack.c.h.b16 %v1829
    %v2038 = vunpack.c.l.b16 %v1830
    %v2039 = vunpack.c.l.b16 %v1831
    %v2040 = vunpack.c.h.b16 %v1831
    %v2041 = vunpack.c.l.b16 %v1832
    %v2042 = vunpack.c.l.b16 %v1833
    %v2043 = vunpack.c.h.b16 %v1833
    %v2044 = vunpack.c.l.b16 %v1834
    %v2045 = vunpack.c.l.b16 %v1835
    %v2046 = vunpack.c.h.b16 %v1835
    %v2047 = vunpack.c.l.b16 %v1836
    %v2048 = vunpack.c.l.b16 %v1837
    %v2049 = vunpack.c.h.b16 %v1837
    %v2050 = vunpack.c.l.b16 %v1838
    %v2051 = vunpack.c.l.b16 %v1839
    %v2052 = vunpack.c.h.b16 %v1839
    %v2053 = vunpack.c.l.b16 %v1840
    %v2054 = vunpack.c.l.b16 %v1841
    %v2055 = vunpack.c.h.b16 %v1841
    %v2056 = vunpack.c.l.b16 %v1842
    %v2057 = vunpack.c.l.b16 %v1843
    %v2058 = vunpack.c.h.b16 %v1843
    %v2059 = vunpack.c.l.b16 %v1844
    %v2060 = vunpack.c.l.b16 %v1845
    %v2061 = vunpack.c.h.b16 %v1845
    %v2062 = vunpack.c.l.b16 %v1846
    %v2063 = vunpack.c.l.b16 %v1847
    %v2064 = vunpack.c.h.b16 %v1847
    %v2065 = vunpack.c.l.b16 %v1848
    %v2066 = vunpack.c.l.b16 %v1849
    %v2067 = vunpack.c.h.b16 %v1849
    %v2068 = vunpack.c.l.b16 %v1850
    %v2069 = vunpack.c.l.b16 %v1851
    %v2070 = vunpack.c.h.b16 %v1851
    %v2071 = vunpack.c.l.b16 %v1852
    %v2072 = vunpack.c.l.b16 %v1853
    %v2073 = vunpack.c.h.b16 %v1853
    %v2074 = vunpack.c.l.b16 %v1854
    %v2075 = vunpack.c.l.b16 %v1855
    %v2076 = vunpack.c.h.b16 %v1855
    %v2077 = vunpack.c.l.b16 %v1856
    %v2078 = vunpack.c.l.b16 %v1857
    %v2079 = vunpack.c.h.b16 %v1857
    %v2080 = vunpack.c.l.b16 %v1858
    %v2081 = vunpack.c.l.b16 %v1859
    %v2082 = vunpack.c.h.b16 %v1859
    %v2083 = vunpack.c.l.b16 %v1860
    %v2084 = vunpack.c.l.b16 %v1861
    %v2085 = vunpack.c.h.b16 %v1861
    %v2086 = vunpack.c.l.b16 %v1862
    %v2087 = vunpack.c.l.b16 %v1863
    %v2088 = vunpack.c.h.b16 %v1863
    %v2089 = vunpack.c.l.b16 %v1864
    %v2090 = vunpack.c.l.b16 %v1865
    %v2091 = vunpack.c.h.b16 %v1865
    %v2092 = vunpack.c.l.b16 %v1866
    %v2093 = vunpack.c.l.b16 %v1867
    %v2094 = vunpack.c.h.b16 %v1867
    %v2095 = vunpack.c.l.b16 %v1868
    %v2096 = vunpack.c.l.b16 %v1869
    %v2097 = vunpack.c.h.b16 %v1869
    %v2098 = vunpack.c.l.b16 %v1870
    %v2099 = vunpack.c.l.b16 %v1871
    %v2100 = vunpack.c.h.b16 %v1871
    %v2101 = vunpack.c.l.b16 %v1872
    %v2102 = vunpack.c.l.b16 %v1873
    %v2103 = vunpack.c.h.b16 %v1873
    %v2104 = vunpack.c.l.b16 %v1874
    %v2105 = vunpack.c.l.b16 %v1875
    %v2106 = vunpack.c.h.b16 %v1875
    %v2107 = vunpack.c.l.b16 %v1876
    %v2108 = vunpack.c.l.b16 %v1877
    %v2109 = vunpack.c.h.b16 %v1877
    %v2110 = vunpack.c.l.b16 %v1878
    %v2111 = vunpack.c.l.b16 %v1879
    %v2112 = vunpack.c.h.b16 %v1879
    %v2113 = vunpack.c.l.b16 %v1880
    %v2114 = vunpack.c.l.b16 %v1881
    %v2115 = vunpack.c.h.b16 %v1881
    %v2116 = vunpack.c.l.b16 %v1882
    %v2117 = vunpack.c.l.b16 %v1883
    %v2118 = vunpack.c.h.b16 %v1883
    %v2119 = vunpack.c.l.b16 %v1884
    %v2120 = vunpack.c.l.b16 %v1885
    %v2121 = vunpack.c.h.b16 %v1885
    %v2122 = vunpack.c.l.b16 %v1886
    %v2123 = vunpack.c.l.b16 %v1887
    %v2124 = vunpack.c.h.b16 %v1887
    %v2125 = vunpack.c.l.b16 %v1888
    %v2126 = vunpack.c.l.b16 %v1889
    %v2127 = vunpack.c.h.b16 %v1889
    %v2128 = vunpack.c.l.b16 %v1890
    %v2129 = vunpack.c.l.b16 %v1891
    %v2130 = vunpack.c.h.b16 %v1891
    %v2131 = vunpack.c.l.b16 %v1892
    %v2132 = vunpack.c.l.b16 %v1893
    %v2133 = vunpack.c.h.b16 %v1893
    %v2134 = vunpack.c.l.b16 %v1894
    %v2135 = vunpack.c.l.b16 %v1895
    %v2136 = vunpack.c.h.b16 %v1895
    %v2137 = vunpack.c.l.b16 %v1896
    %v2138 = vunpack.c.l.b16 %v1897
    %v2139 = vunpack.c.h.b16 %v1897
    %v2140 = vunpack.c.l.b16 %v1898
    %v2141 = vunpack.c.l.b16 %v1899
    %v2142 = vunpack.c.h.b16 %v1899
    %v2143 = vunpack.c.l.b16 %v1900
    %v2144 = vunpack.c.l.b16 %v1901
    %v2145 = vunpack.c.h.b16 %v1901
    %v2146 = vunpack.c.l.b16 %v1902
    %v2147 = vunpack.c.l.b16 %v1903
    %v2148 = vunpack.c.h.b16 %v1903
    %v2149 = vunpack.c.l.b16 %v1904
    %v2150 = vunpack.c.l.b16 %v1905
    %v2151 = vunpack.c.h.b16 %v1905
    %v2152 = vunpack.c.l.b16 %v1906
    %v2153 = vunpack.c.l.b16 %v1907
    %v2154 = vunpack.c.h.b16 %v1907
    %v2155 = vunpack.c.l.b16 %v1908
    %v2156 = vunpack.c.l.b16 %v1909
    %v2157 = vunpack.c.h.b16 %v1909
    %v2158 = vunpack.c.l.b16 %v1910
    %v2159 = vunpack.c.l.b16 %v1911
    %v2160 = vunpack.c.h.b16 %v1911
    %v2161 = vunpack.c.l.b16 %v1912
    %v2162 = vpack.c.b16 %v2021, %v2018
    %v2163 = vpack.c.b16 %v2022, %v2019
    %v2164 = vpack.c.b16 %v2023, %v2020
    %v2165 = vpack.c.b16 %v2027, %v2024
    %v2166 = vpack.c.b16 %v2028, %v2025
    %v2167 = vpack.c.b16 %v2029, %v2026
    %v2168 = vpack.c.b16 %v2033, %v2030
    %v2169 = vpack.c.b16 %v2034, %v2031
    %v2170 = vpack.c.b16 %v2035, %v2032
    %v2171 = vpack.c.b16 %v2039, %v2036
    %v2172 = vpack.c.b16 %v2040, %v2037
    %v2173 = vpack.c.b16 %v2041, %v2038
    %v2174 = vpack.c.b16 %v2045, %v2042
    %v2175 = vpack.c.b16 %v2046, %v2043
    %v2176 = vpack.c.b16 %v2047, %v2044
    %v2177 = vpack.c.b16 %v2051, %v2048
    %v2178 = vpack.c.b16 %v2052, %v2049
    %v2179 = vpack.c.b16 %v2053, %v2050
    %v2180 = vpack.c.b16 %v2057, %v2054
    %v2181 = vpack.c.b16 %v2058, %v2055
    %v2182 = vpack.c.b16 %v2059, %v2056
    %v2183 = vpack.c.b16 %v2063, %v2060
    %v2184 = vpack.c.b16 %v2064, %v2061
    %v2185 = vpack.c.b16 %v2065, %v2062
    %v2186 = vpack.c.b16 %v2069, %v2066
    %v2187 = vpack.c.b16 %v2070, %v2067
    %v2188 = vpack.c.b16 %v2071, %v2068
    %v2189 = vpack.c.b16 %v2075, %v2072
    %v2190 = vpack.c.b16 %v2076, %v2073
    %v2191 = vpack.c.b16 %v2077, %v2074
    %v2192 = vpack.c.b16 %v2081, %v2078
    %v2193 = vpack.c.b16 %v2082, %v2079
    %v2194 = vpack.c.b16 %v2083, %v2080
    %v2195 = vpack.c.b16 %v2087, %v2084
    %v2196 = vpack.c.b16 %v2088, %v2085
    %v2197 = vpack.c.b16 %v2089, %v2086
    %v2198 = vpack.c.b16 %v2093, %v2090
    %v2199 = vpack.c.b16 %v2094, %v2091
    %v2200 = vpack.c.b16 %v2095, %v2092
    %v2201 = vpack.c.b16 %v2099, %v2096
    %v2202 = vpack.c.b16 %v2100, %v2097
    %v2203 = vpack.c.b16 %v2101, %v2098
    %v2204 = vpack.c.b16 %v2105, %v2102
    %v2205 = vpack.c.b16 %v2106, %v2103
    %v2206 = vpack.c.b16 %v2107, %v2104
    %v2207 = vpack.c.b16 %v2111, %v2108
    %v2208 = vpack.c.b16 %v2112, %v2109
    %v2209 = vpack.c.b16 %v2113, %v2110
    %v2210 = vpack.c.b16 %v2117, %v2114
    %v2211 = vpack.c.b16 %v2118, %v2115
    %v2212 = vpack.c.b16 %v2119, %v2116
    %v2213 = vpack.c.b16 %v2123, %v2120
    %v2214 = vpack.c.b16 %v2124, %v2121
    %v2215 = vpack.c.b16 %v2125, %v2122
    %v2216 = vpack.c.b16 %v2129, %v2126
    %v2217 = vpack.c.b16 %v2130, %v2127
    %v2218 = vpack.c.b16 %v2131, %v2128
    %v2219 = vpack.c.b16 %v2135, %v2132
    %v2220 = vpack.c.b16 %v2136, %v2133
    %v2221 = vpack.c.b16 %v2137, %v2134
    %v2222 = vpack.c.b16 %v2141, %v2138
    %v2223 = vpack.c.b16 %v2142, %v2139
    %v2224 = vpack.c.b16 %v2143, %v2140
    %v2225 = vpack.c.b16 %v2147, %v2144
    %v2226 = vpack.c.b16 %v2148, %v2145
    %v2227 = vpack.c.b16 %v2149, %v2146
    %v2228 = vpack.c.b16 %v2153, %v2150
    %v2229 = vpack.c.b16 %v2154, %v2151
    %v2230 = vpack.c.b16 %v2155, %v2152
    %v2231 = vpack.c.b16 %v2159, %v2156
    %v2232 = vpack.c.b16 %v2160, %v2157
    %v2233 = vpack.c.b16 %v2161, %v2158
    %2306 = vmatpush.bf16.msra.mxu0 %v2183
    %2307 = vmatpush.bf16.msra.mxu0 %v2180
    %2308 = vmatpush.bf16.msra.mxu0 %v2177
    %2309 = vmatpush.bf16.msra.mxu0 %v2174
    %2310 = vmatpush.bf16.msra.mxu0 %v2171
    %2311 = vmatpush.bf16.msra.mxu0 %v2168
    %2312 = vmatpush.bf16.msra.mxu0 %v2165
    %2313 = vmatpush.bf16.msra.mxu0 %v2162
    %2314 = vmatmul.bf16.gmra.mxu0 %v1916
    %v2315 = vpop.f32.mrf.mxu0
    %v2316 = vadd.f32 0.0, %v2315
    %v2317 = vpop.f32.mrf.mxu0
    %v2318 = vadd.f32 0.0, %v2317
    %2319 = vdwg.mxu0
    %2320 = vmatpush.bf16.msra.mxu0 %v2207
    %2321 = vmatpush.bf16.msra.mxu0 %v2204
    %2322 = vmatpush.bf16.msra.mxu0 %v2201
    %2323 = vmatpush.bf16.msra.mxu0 %v2198
    %2324 = vmatpush.bf16.msra.mxu0 %v2195
    %2325 = vmatpush.bf16.msra.mxu0 %v2192
    %2326 = vmatpush.bf16.msra.mxu0 %v2189
    %2327 = vmatpush.bf16.msra.mxu0 %v2186
    %2328 = vmatmul.bf16.gmra.mxu0 %v1917
    %v2329 = vpop.f32.mrf.mxu0
    %v2330 = vadd.f32 %v2316, %v2329
    %v2331 = vpop.f32.mrf.mxu0
    %v2332 = vadd.f32 %v2318, %v2331
    %2333 = vdwg.mxu0
    %2334 = vmatpush.bf16.msra.mxu0 %v2231
    %2335 = vmatpush.bf16.msra.mxu0 %v2228
    %2336 = vmatpush.bf16.msra.mxu0 %v2225
    %2337 = vmatpush.bf16.msra.mxu0 %v2222
    %2338 = vmatpush.bf16.msra.mxu0 %v2219
    %2339 = vmatpush.bf16.msra.mxu0 %v2216
    %2340 = vmatpush.bf16.msra.mxu0 %v2213
    %2341 = vmatpush.bf16.msra.mxu0 %v2210
    %2342 = vmatmul.bf16.gmra.mxu0 %v1918
    %v2343 = vpop.f32.mrf.mxu0
    %v2344 = vadd.f32 %v2330, %v2343
    %v2345 = vpop.f32.mrf.mxu0
    %v2346 = vadd.f32 %v2332, %v2345
    %2347 = vdwg.mxu0
    %2348 = vmatpush.bf16.msra.mxu0 %v2184
    %2349 = vmatpush.bf16.msra.mxu0 %v2181
    %2350 = vmatpush.bf16.msra.mxu0 %v2178
    %2351 = vmatpush.bf16.msra.mxu0 %v2175
    %2352 = vmatpush.bf16.msra.mxu0 %v2172
    %2353 = vmatpush.bf16.msra.mxu0 %v2169
    %2354 = vmatpush.bf16.msra.mxu0 %v2166
    %2355 = vmatpush.bf16.msra.mxu0 %v2163
    %2356 = vmatmul.bf16.gmra.mxu0 %v1916
    %v2357 = vpop.f32.mrf.mxu0
    %v2358 = vadd.f32 0.0, %v2357
    %v2359 = vpop.f32.mrf.mxu0
    %v2360 = vadd.f32 0.0, %v2359
    %2361 = vdwg.mxu0
    %2362 = vmatpush.bf16.msra.mxu0 %v2208
    %2363 = vmatpush.bf16.msra.mxu0 %v2205
    %2364 = vmatpush.bf16.msra.mxu0 %v2202
    %2365 = vmatpush.bf16.msra.mxu0 %v2199
    %2366 = vmatpush.bf16.msra.mxu0 %v2196
    %2367 = vmatpush.bf16.msra.mxu0 %v2193
    %2368 = vmatpush.bf16.msra.mxu0 %v2190
    %2369 = vmatpush.bf16.msra.mxu0 %v2187
    %2370 = vmatmul.bf16.gmra.mxu0 %v1917
    %v2371 = vpop.f32.mrf.mxu0
    %v2372 = vadd.f32 %v2358, %v2371
    %v2373 = vpop.f32.mrf.mxu0
    %v2374 = vadd.f32 %v2360, %v2373
    %2375 = vdwg.mxu0
    %2376 = vmatpush.bf16.msra.mxu0 %v2232
    %2377 = vmatpush.bf16.msra.mxu0 %v2229
    %2378 = vmatpush.bf16.msra.mxu0 %v2226
    %2379 = vmatpush.bf16.msra.mxu0 %v2223
    %2380 = vmatpush.bf16.msra.mxu0 %v2220
    %2381 = vmatpush.bf16.msra.mxu0 %v2217
    %2382 = vmatpush.bf16.msra.mxu0 %v2214
    %2383 = vmatpush.bf16.msra.mxu0 %v2211
    %2384 = vmatmul.bf16.gmra.mxu0 %v1918
    %v2385 = vpop.f32.mrf.mxu0
    %v2386 = vadd.f32 %v2372, %v2385
    %v2387 = vpop.f32.mrf.mxu0
    %v2388 = vadd.f32 %v2374, %v2387
    %2389 = vdwg.mxu0
    %2390 = vmatpush.bf16.msra.mxu0 %v2185
    %2391 = vmatpush.bf16.msra.mxu0 %v2182
    %2392 = vmatpush.bf16.msra.mxu0 %v2179
    %2393 = vmatpush.bf16.msra.mxu0 %v2176
    %2394 = vmatpush.bf16.msra.mxu0 %v2173
    %2395 = vmatpush.bf16.msra.mxu0 %v2170
    %2396 = vmatpush.bf16.msra.mxu0 %v2167
    %2397 = vmatpush.bf16.msra.mxu0 %v2164
    %2398 = vmatmul.bf16.gmra.mxu0 %v1916
    %v2399 = vpop.f32.mrf.mxu0
    %v2400 = vadd.f32 0.0, %v2399
    %v2401 = vpop.f32.mrf.mxu0
    %v2402 = vadd.f32 0.0, %v2401
    %2403 = vdwg.mxu0
    %2404 = vmatpush.bf16.msra.mxu0 %v2209
    %2405 = vmatpush.bf16.msra.mxu0 %v2206
    %2406 = vmatpush.bf16.msra.mxu0 %v2203
    %2407 = vmatpush.bf16.msra.mxu0 %v2200
    %2408 = vmatpush.bf16.msra.mxu0 %v2197
    %2409 = vmatpush.bf16.msra.mxu0 %v2194
    %2410 = vmatpush.bf16.msra.mxu0 %v2191
    %2411 = vmatpush.bf16.msra.mxu0 %v2188
    %2412 = vmatmul.bf16.gmra.mxu0 %v1917
    %v2413 = vpop.f32.mrf.mxu0
    %v2414 = vadd.f32 %v2400, %v2413
    %v2415 = vpop.f32.mrf.mxu0
    %v2416 = vadd.f32 %v2402, %v2415
    %2417 = vdwg.mxu0
    %2418 = vmatpush.bf16.msra.mxu0 %v2233
    %2419 = vmatpush.bf16.msra.mxu0 %v2230
    %2420 = vmatpush.bf16.msra.mxu0 %v2227
    %2421 = vmatpush.bf16.msra.mxu0 %v2224
    %2422 = vmatpush.bf16.msra.mxu0 %v2221
    %2423 = vmatpush.bf16.msra.mxu0 %v2218
    %2424 = vmatpush.bf16.msra.mxu0 %v2215
    %2425 = vmatpush.bf16.msra.mxu0 %v2212
    %2426 = vmatmul.bf16.gmra.mxu0 %v1918
    %v2427 = vpop.f32.mrf.mxu0
    %v2428 = vadd.f32 %v2414, %v2427
    %v2429 = vpop.f32.mrf.mxu0
    %v2430 = vadd.f32 %v2416, %v2429
    %2431 = vdwg.mxu0
    %v2432 = vadd.f32 %v1728, %v2344
    %v2433 = vadd.f32 %v1770, %v2386
    %v2434 = vadd.f32 %v1812, %v2428
    %v2435 = vadd.f32 %v1730, %v2346
    %v2436 = vadd.f32 %v1772, %v2388
    %v2437 = vadd.f32 %v1814, %v2430
    %v2439 = vperm.slane %v41, 0
    %v2440 = vperm.slane %v41, 1
    %v2441 = vperm.slane %v41, 2
    %v2445 = vadd.f32 %v2432, %v2439
    %v2446 = vadd.f32 %v2433, %v2440
    %v2447 = vadd.f32 %v2434, %v2441
    %v2448 = vadd.f32 %v2435, %v2439
    %v2449 = vadd.f32 %v2436, %v2440
    %v2450 = vadd.f32 %v2437, %v2441
    %vm2451 = vcmp.gt.f32.partialorder %v2445, 0.0
    %vm2452 = vcmp.gt.f32.partialorder %v2446, 0.0
    %vm2453 = vcmp.gt.f32.partialorder %v2447, 0.0
    %vm2454 = vcmp.gt.f32.partialorder %v2448, 0.0
    %vm2455 = vcmp.gt.f32.partialorder %v2449, 0.0
    %vm2456 = vcmp.gt.f32.partialorder %v2450, 0.0
    %v2457 = vmul.f32 %v2445, 0.1
    %v2458 = vmul.f32 %v2446, 0.1
    %v2459 = vmul.f32 %v2447, 0.1
    %v2460 = vmul.f32 %v2448, 0.1
    %v2461 = vmul.f32 %v2449, 0.1
    %v2462 = vmul.f32 %v2450, 0.1
    %v2463 = vsel %vm2451, %v2445, %v2457
    %v2464 = vsel %vm2452, %v2446, %v2458
    %v2465 = vsel %vm2453, %v2447, %v2459
    %v2466 = vsel %vm2454, %v2448, %v2460
    %v2467 = vsel %vm2455, %v2449, %v2461
    %v2468 = vsel %vm2456, %v2450, %v2462
    %v2469 = vld [vmem:[%s3] sm:$0xff]
    %v2470 = vld [vmem:[%s3 + $0x8] sm:$0xff]
    %v2471 = vld [vmem:[%s3 + $0x10] sm:$0xff]
    %v2472 = vld [vmem:[%s3 + $0x18] sm:$0xff]
    %v2473 = vld [vmem:[%s3 + $0x20] sm:$0xff]
    %v2474 = vld [vmem:[%s3 + $0x28] sm:$0xff]
    %v2475 = vld [vmem:[%s3 + $0x30] sm:$0xff]
    %v2476 = vld [vmem:[%s3 + $0x38] sm:$0xff]
    %v2477 = vld [vmem:[%s3 + $0x40] sm:$0xff]
    %v2478 = vld [vmem:[%s3 + $0x48] sm:$0xff]
    %v2479 = vld [vmem:[%s3 + $0x50] sm:$0xff]
    %v2480 = vld [vmem:[%s3 + $0x58] sm:$0xff]
    %v2481 = vld [vmem:[%s3 + $0x60] sm:$0xff]
    %v2482 = vld [vmem:[%s3 + $0x68] sm:$0xff]
    %v2483 = vld [vmem:[%s3 + $0x70] sm:$0xff]
    %v2484 = vld [vmem:[%s3 + $0x78] sm:$0xff]
    %v2485 = vld [vmem:[%s3 + $0x80] sm:$0xff]
    %v2486 = vld [vmem:[%s3 + $0x88] sm:$0xff]
    %v2487 = vld [vmem:[%s3 + $0x90] sm:$0xff]
    %v2488 = vld [vmem:[%s3 + $0x98] sm:$0xff]
    %v2489 = vld [vmem:[%s3 + $0xa0] sm:$0xff]
    %v2490 = vld [vmem:[%s3 + $0xa8] sm:$0xff]
    %v2491 = vld [vmem:[%s3 + $0xb0] sm:$0xff]
    %v2492 = vld [vmem:[%s3 + $0xb8] sm:$0xff]
    %v2493 = vld [vmem:[%s3 + $0xc0] sm:$0xff]
    %v2494 = vld [vmem:[%s3 + $0xc8] sm:$0xff]
    %v2495 = vld [vmem:[%s3 + $0xd0] sm:$0xff]
    %v2496 = vld [vmem:[%s3 + $0xd8] sm:$0xff]
    %v2497 = vld [vmem:[%s3 + $0xe0] sm:$0xff]
    %v2498 = vld [vmem:[%s3 + $0xe8] sm:$0xff]
    %v2499 = vld [vmem:[%s3 + $0xf0] sm:$0xff]
    %v2500 = vld [vmem:[%s3 + $0xf8] sm:$0xff]
    %v2501 = vld [vmem:[%s3 + $0x100] sm:$0xff]
    %v2502 = vld [vmem:[%s3 + $0x108] sm:$0xff]
    %v2503 = vld [vmem:[%s3 + $0x110] sm:$0xff]
    %v2504 = vld [vmem:[%s3 + $0x118] sm:$0xff]
    %v2505 = vld [vmem:[%s3 + $0x120] sm:$0xff]
    %v2506 = vld [vmem:[%s3 + $0x128] sm:$0xff]
    %v2507 = vld [vmem:[%s3 + $0x130] sm:$0xff]
    %v2508 = vld [vmem:[%s3 + $0x138] sm:$0xff]
    %v2509 = vpack.c.bf16 %v2463, %v2463
    %v2510 = vpack.c.bf16 %v2464, %v2464
    %v2511 = vpack.c.bf16 %v2465, %v2465
    %s2512 = scalar_lea.vmem %s3, 320
    %v2513 = vld [vmem:[%s2512] sm:$0xff]
    %v2514 = vld [vmem:[%s2512 + $0x8] sm:$0xff]
    %v2515 = vld [vmem:[%s2512 + $0x10] sm:$0xff]
    %v2516 = vld [vmem:[%s2512 + $0x18] sm:$0xff]
    %v2517 = vld [vmem:[%s2512 + $0x20] sm:$0xff]
    %v2518 = vld [vmem:[%s2512 + $0x28] sm:$0xff]
    %v2519 = vld [vmem:[%s2512 + $0x30] sm:$0xff]
    %v2520 = vld [vmem:[%s2512 + $0x38] sm:$0xff]
    %v2521 = vld [vmem:[%s2512 + $0x40] sm:$0xff]
    %v2522 = vld [vmem:[%s2512 + $0x48] sm:$0xff]
    %v2523 = vld [vmem:[%s2512 + $0x50] sm:$0xff]
    %v2524 = vld [vmem:[%s2512 + $0x58] sm:$0xff]
    %v2525 = vld [vmem:[%s2512 + $0x60] sm:$0xff]
    %v2526 = vld [vmem:[%s2512 + $0x68] sm:$0xff]
    %v2527 = vld [vmem:[%s2512 + $0x70] sm:$0xff]
    %v2528 = vld [vmem:[%s2512 + $0x78] sm:$0xff]
    %v2529 = vld [vmem:[%s2512 + $0x80] sm:$0xff]
    %v2530 = vld [vmem:[%s2512 + $0x88] sm:$0xff]
    %v2531 = vld [vmem:[%s2512 + $0x90] sm:$0xff]
    %v2532 = vld [vmem:[%s2512 + $0x98] sm:$0xff]
    %v2533 = vld [vmem:[%s2512 + $0xa0] sm:$0xff]
    %v2534 = vld [vmem:[%s2512 + $0xa8] sm:$0xff]
    %v2535 = vld [vmem:[%s2512 + $0xb0] sm:$0xff]
    %v2536 = vld [vmem:[%s2512 + $0xb8] sm:$0xff]
    %v2537 = vld [vmem:[%s2512 + $0xc0] sm:$0xff]
    %v2538 = vld [vmem:[%s2512 + $0xc8] sm:$0xff]
    %v2539 = vld [vmem:[%s2512 + $0xd0] sm:$0xff]
    %v2540 = vld [vmem:[%s2512 + $0xd8] sm:$0xff]
    %v2541 = vld [vmem:[%s2512 + $0xe0] sm:$0xff]
    %v2542 = vld [vmem:[%s2512 + $0xe8] sm:$0xff]
    %v2543 = vld [vmem:[%s2512 + $0xf0] sm:$0xff]
    %v2544 = vld [vmem:[%s2512 + $0xf8] sm:$0xff]
    %v2545 = vld [vmem:[%s2512 + $0x100] sm:$0xff]
    %v2546 = vld [vmem:[%s2512 + $0x108] sm:$0xff]
    %v2547 = vld [vmem:[%s2512 + $0x110] sm:$0xff]
    %v2548 = vld [vmem:[%s2512 + $0x118] sm:$0xff]
    %v2549 = vld [vmem:[%s2512 + $0x120] sm:$0xff]
    %v2550 = vld [vmem:[%s2512 + $0x128] sm:$0xff]
    %v2551 = vld [vmem:[%s2512 + $0x130] sm:$0xff]
    %v2552 = vld [vmem:[%s2512 + $0x138] sm:$0xff]
    %v2553 = vpack.c.bf16 %v2466, %v2463
    %v2554 = vpack.c.bf16 %v2467, %v2464
    %v2555 = vpack.c.bf16 %v2468, %v2465
    %v2557 = vshrl.u32 %v2553, 16
    %v2559 = vshll.u32 %v2553, 16
    %v2561 = vrot.slane %v2559, 1
    %v2562 = vor.u32 %v2557, %v2561
    %v2564 = vshrl.u32 %v2554, 16
    %v2566 = vshll.u32 %v2554, 16
    %v2568 = vrot.slane %v2566, 1
    %v2569 = vor.u32 %v2564, %v2568
    %v2571 = vshrl.u32 %v2555, 16
    %v2573 = vshll.u32 %v2555, 16
    %v2575 = vrot.slane %v2573, 1
    %v2576 = vor.u32 %v2571, %v2575
    %v2619 = vunpack.c.l.b16 %v2513
    %v2620 = vunpack.c.h.b16 %v2513
    %v2621 = vunpack.c.l.b16 %v2514
    %v2622 = vunpack.c.h.b16 %v2514
    %v2623 = vunpack.c.l.b16 %v2515
    %v2624 = vunpack.c.h.b16 %v2515
    %v2625 = vunpack.c.l.b16 %v2516
    %v2626 = vunpack.c.h.b16 %v2516
    %v2627 = vunpack.c.l.b16 %v2517
    %v2628 = vunpack.c.h.b16 %v2517
    %v2629 = vunpack.c.l.b16 %v2518
    %v2630 = vunpack.c.h.b16 %v2518
    %v2631 = vunpack.c.l.b16 %v2519
    %v2632 = vunpack.c.h.b16 %v2519
    %v2633 = vunpack.c.l.b16 %v2520
    %v2634 = vunpack.c.h.b16 %v2520
    %v2635 = vunpack.c.l.b16 %v2521
    %v2636 = vunpack.c.h.b16 %v2521
    %v2637 = vunpack.c.l.b16 %v2522
    %v2638 = vunpack.c.h.b16 %v2522
    %v2639 = vunpack.c.l.b16 %v2523
    %v2640 = vunpack.c.h.b16 %v2523
    %v2641 = vunpack.c.l.b16 %v2524
    %v2642 = vunpack.c.h.b16 %v2524
    %v2643 = vunpack.c.l.b16 %v2525
    %v2644 = vunpack.c.h.b16 %v2525
    %v2645 = vunpack.c.l.b16 %v2526
    %v2646 = vunpack.c.h.b16 %v2526
    %v2647 = vunpack.c.l.b16 %v2527
    %v2648 = vunpack.c.h.b16 %v2527
    %v2649 = vunpack.c.l.b16 %v2528
    %v2650 = vunpack.c.h.b16 %v2528
    %v2651 = vunpack.c.l.b16 %v2529
    %v2652 = vunpack.c.h.b16 %v2529
    %v2653 = vunpack.c.l.b16 %v2530
    %v2654 = vunpack.c.h.b16 %v2530
    %v2655 = vunpack.c.l.b16 %v2531
    %v2656 = vunpack.c.h.b16 %v2531
    %v2657 = vunpack.c.l.b16 %v2532
    %v2658 = vunpack.c.h.b16 %v2532
    %v2659 = vunpack.c.l.b16 %v2533
    %v2660 = vunpack.c.h.b16 %v2533
    %v2661 = vunpack.c.l.b16 %v2534
    %v2662 = vunpack.c.h.b16 %v2534
    %v2663 = vunpack.c.l.b16 %v2535
    %v2664 = vunpack.c.h.b16 %v2535
    %v2665 = vunpack.c.l.b16 %v2536
    %v2666 = vunpack.c.h.b16 %v2536
    %v2667 = vunpack.c.l.b16 %v2537
    %v2668 = vunpack.c.h.b16 %v2537
    %v2669 = vunpack.c.l.b16 %v2538
    %v2670 = vunpack.c.h.b16 %v2538
    %v2671 = vunpack.c.l.b16 %v2539
    %v2672 = vunpack.c.h.b16 %v2539
    %v2673 = vunpack.c.l.b16 %v2540
    %v2674 = vunpack.c.h.b16 %v2540
    %v2675 = vunpack.c.l.b16 %v2541
    %v2676 = vunpack.c.h.b16 %v2541
    %v2677 = vunpack.c.l.b16 %v2542
    %v2678 = vunpack.c.h.b16 %v2542
    %v2679 = vunpack.c.l.b16 %v2543
    %v2680 = vunpack.c.h.b16 %v2543
    %v2681 = vunpack.c.l.b16 %v2544
    %v2682 = vunpack.c.h.b16 %v2544
    %v2683 = vunpack.c.l.b16 %v2545
    %v2684 = vunpack.c.h.b16 %v2545
    %v2685 = vunpack.c.l.b16 %v2546
    %v2686 = vunpack.c.h.b16 %v2546
    %v2687 = vunpack.c.l.b16 %v2547
    %v2688 = vunpack.c.h.b16 %v2547
    %v2689 = vunpack.c.l.b16 %v2548
    %v2690 = vunpack.c.h.b16 %v2548
    %v2691 = vunpack.c.l.b16 %v2549
    %v2692 = vunpack.c.h.b16 %v2549
    %v2693 = vunpack.c.l.b16 %v2550
    %v2694 = vunpack.c.h.b16 %v2550
    %v2695 = vunpack.c.l.b16 %v2551
    %v2696 = vunpack.c.h.b16 %v2551
    %v2697 = vunpack.c.l.b16 %v2552
    %v2698 = vunpack.c.h.b16 %v2552
    %v2699 = vpack.c.b16 %v2621, %v2619
    %v2700 = vpack.c.b16 %v2622, %v2620
    %v2701 = vpack.c.b16 %v2625, %v2623
    %v2702 = vpack.c.b16 %v2626, %v2624
    %v2703 = vpack.c.b16 %v2629, %v2627
    %v2704 = vpack.c.b16 %v2630, %v2628
    %v2705 = vpack.c.b16 %v2633, %v2631
    %v2706 = vpack.c.b16 %v2634, %v2632
    %v2707 = vpack.c.b16 %v2637, %v2635
    %v2708 = vpack.c.b16 %v2638, %v2636
    %v2709 = vpack.c.b16 %v2641, %v2639
    %v2710 = vpack.c.b16 %v2642, %v2640
    %v2711 = vpack.c.b16 %v2645, %v2643
    %v2712 = vpack.c.b16 %v2646, %v2644
    %v2713 = vpack.c.b16 %v2649, %v2647
    %v2714 = vpack.c.b16 %v2650, %v2648
    %v2715 = vpack.c.b16 %v2653, %v2651
    %v2716 = vpack.c.b16 %v2654, %v2652
    %v2717 = vpack.c.b16 %v2657, %v2655
    %v2718 = vpack.c.b16 %v2658, %v2656
    %v2719 = vpack.c.b16 %v2661, %v2659
    %v2720 = vpack.c.b16 %v2662, %v2660
    %v2721 = vpack.c.b16 %v2665, %v2663
    %v2722 = vpack.c.b16 %v2666, %v2664
    %v2723 = vpack.c.b16 %v2669, %v2667
    %v2724 = vpack.c.b16 %v2670, %v2668
    %v2725 = vpack.c.b16 %v2673, %v2671
    %v2726 = vpack.c.b16 %v2674, %v2672
    %v2727 = vpack.c.b16 %v2677, %v2675
    %v2728 = vpack.c.b16 %v2678, %v2676
    %v2729 = vpack.c.b16 %v2681, %v2679
    %v2730 = vpack.c.b16 %v2682, %v2680
    %v2731 = vpack.c.b16 %v2685, %v2683
    %v2732 = vpack.c.b16 %v2686, %v2684
    %v2733 = vpack.c.b16 %v2689, %v2687
    %v2734 = vpack.c.b16 %v2690, %v2688
    %v2735 = vpack.c.b16 %v2693, %v2691
    %v2736 = vpack.c.b16 %v2694, %v2692
    %v2737 = vpack.c.b16 %v2697, %v2695
    %v2738 = vpack.c.b16 %v2698, %v2696
    %vm2779 = vcmask 523264
    %v2781 = vsel %vm2779, %v2576, 0
    %2783 = vmatpush.bf16.msra.mxu0 %v2713
    %2784 = vmatpush.bf16.msra.mxu0 %v2711
    %2785 = vmatpush.bf16.msra.mxu0 %v2709
    %2786 = vmatpush.bf16.msra.mxu0 %v2707
    %2787 = vmatpush.bf16.msra.mxu0 %v2705
    %2788 = vmatpush.bf16.msra.mxu0 %v2703
    %2789 = vmatpush.bf16.msra.mxu0 %v2701
    %2790 = vmatpush.bf16.msra.mxu0 %v2699
    %2791 = vmatmul.bf16.gmra.mxu0 %v2562
    %v2792 = vpop.f32.mrf.mxu0
    %v2793 = vadd.f32 0.0, %v2792
    %v2794 = vpop.f32.mrf.mxu0
    %2795 = vdwg.mxu0
    %2796 = vmatpush.bf16.msra.mxu0 %v2729
    %2797 = vmatpush.bf16.msra.mxu0 %v2727
    %2798 = vmatpush.bf16.msra.mxu0 %v2725
    %2799 = vmatpush.bf16.msra.mxu0 %v2723
    %2800 = vmatpush.bf16.msra.mxu0 %v2721
    %2801 = vmatpush.bf16.msra.mxu0 %v2719
    %2802 = vmatpush.bf16.msra.mxu0 %v2717
    %2803 = vmatpush.bf16.msra.mxu0 %v2715
    %2804 = vmatmul.bf16.gmra.mxu0 %v2569
    %v2805 = vpop.f32.mrf.mxu0
    %v2806 = vadd.f32 %v2793, %v2805
    %v2807 = vpop.f32.mrf.mxu0
    %2808 = vdwg.mxu0
    %2809 = vmatpush.bf16.msra.mxu0 0
    %2810 = vmatpush.bf16.msra.mxu0 0
    %2811 = vmatpush.bf16.msra.mxu0 0
    %2812 = vmatpush.bf16.msra.mxu0 0
    %2813 = vmatpush.bf16.msra.mxu0 %v2737
    %2814 = vmatpush.bf16.msra.mxu0 %v2735
    %2815 = vmatpush.bf16.msra.mxu0 %v2733
    %2816 = vmatpush.bf16.msra.mxu0 %v2731
    %2817 = vmatmul.bf16.gmra.mxu0 %v2781
    %v2818 = vpop.f32.mrf.mxu0
    %v2819 = vadd.f32 %v2806, %v2818
    %v2820 = vpop.f32.mrf.mxu0
    %2821 = vdwg.mxu0
    %2822 = vmatpush.bf16.msra.mxu0 %v2714
    %2823 = vmatpush.bf16.msra.mxu0 %v2712
    %2824 = vmatpush.bf16.msra.mxu0 %v2710
    %2825 = vmatpush.bf16.msra.mxu0 %v2708
    %2826 = vmatpush.bf16.msra.mxu0 %v2706
    %2827 = vmatpush.bf16.msra.mxu0 %v2704
    %2828 = vmatpush.bf16.msra.mxu0 %v2702
    %2829 = vmatpush.bf16.msra.mxu0 %v2700
    %2830 = vmatmul.bf16.gmra.mxu0 %v2562
    %v2831 = vpop.f32.mrf.mxu0
    %v2832 = vadd.f32 0.0, %v2831
    %v2833 = vpop.f32.mrf.mxu0
    %2834 = vdwg.mxu0
    %2835 = vmatpush.bf16.msra.mxu0 %v2730
    %2836 = vmatpush.bf16.msra.mxu0 %v2728
    %2837 = vmatpush.bf16.msra.mxu0 %v2726
    %2838 = vmatpush.bf16.msra.mxu0 %v2724
    %2839 = vmatpush.bf16.msra.mxu0 %v2722
    %2840 = vmatpush.bf16.msra.mxu0 %v2720
    %2841 = vmatpush.bf16.msra.mxu0 %v2718
    %2842 = vmatpush.bf16.msra.mxu0 %v2716
    %2843 = vmatmul.bf16.gmra.mxu0 %v2569
    %v2844 = vpop.f32.mrf.mxu0
    %v2845 = vadd.f32 %v2832, %v2844
    %v2846 = vpop.f32.mrf.mxu0
    %2847 = vdwg.mxu0
    %2848 = vmatpush.bf16.msra.mxu0 0
    %2849 = vmatpush.bf16.msra.mxu0 0
    %2850 = vmatpush.bf16.msra.mxu0 0
    %2851 = vmatpush.bf16.msra.mxu0 0
    %2852 = vmatpush.bf16.msra.mxu0 %v2738
    %2853 = vmatpush.bf16.msra.mxu0 %v2736
    %2854 = vmatpush.bf16.msra.mxu0 %v2734
    %2855 = vmatpush.bf16.msra.mxu0 %v2732
    %2856 = vmatmul.bf16.gmra.mxu0 %v2781
    %v2857 = vpop.f32.mrf.mxu0
    %v2858 = vadd.f32 %v2845, %v2857
    %v2859 = vpop.f32.mrf.mxu0
    %2860 = vdwg.mxu0
    %v2901 = vunpack.c.l.b16 %v2469
    %v2902 = vunpack.c.h.b16 %v2469
    %v2903 = vunpack.c.l.b16 %v2470
    %v2904 = vunpack.c.h.b16 %v2470
    %v2905 = vunpack.c.l.b16 %v2471
    %v2906 = vunpack.c.h.b16 %v2471
    %v2907 = vunpack.c.l.b16 %v2472
    %v2908 = vunpack.c.h.b16 %v2472
    %v2909 = vunpack.c.l.b16 %v2473
    %v2910 = vunpack.c.h.b16 %v2473
    %v2911 = vunpack.c.l.b16 %v2474
    %v2912 = vunpack.c.h.b16 %v2474
    %v2913 = vunpack.c.l.b16 %v2475
    %v2914 = vunpack.c.h.b16 %v2475
    %v2915 = vunpack.c.l.b16 %v2476
    %v2916 = vunpack.c.h.b16 %v2476
    %v2917 = vunpack.c.l.b16 %v2477
    %v2918 = vunpack.c.h.b16 %v2477
    %v2919 = vunpack.c.l.b16 %v2478
    %v2920 = vunpack.c.h.b16 %v2478
    %v2921 = vunpack.c.l.b16 %v2479
    %v2922 = vunpack.c.h.b16 %v2479
    %v2923 = vunpack.c.l.b16 %v2480
    %v2924 = vunpack.c.h.b16 %v2480
    %v2925 = vunpack.c.l.b16 %v2481
    %v2926 = vunpack.c.h.b16 %v2481
    %v2927 = vunpack.c.l.b16 %v2482
    %v2928 = vunpack.c.h.b16 %v2482
    %v2929 = vunpack.c.l.b16 %v2483
    %v2930 = vunpack.c.h.b16 %v2483
    %v2931 = vunpack.c.l.b16 %v2484
    %v2932 = vunpack.c.h.b16 %v2484
    %v2933 = vunpack.c.l.b16 %v2485
    %v2934 = vunpack.c.h.b16 %v2485
    %v2935 = vunpack.c.l.b16 %v2486
    %v2936 = vunpack.c.h.b16 %v2486
    %v2937 = vunpack.c.l.b16 %v2487
    %v2938 = vunpack.c.h.b16 %v2487
    %v2939 = vunpack.c.l.b16 %v2488
    %v2940 = vunpack.c.h.b16 %v2488
    %v2941 = vunpack.c.l.b16 %v2489
    %v2942 = vunpack.c.h.b16 %v2489
    %v2943 = vunpack.c.l.b16 %v2490
    %v2944 = vunpack.c.h.b16 %v2490
    %v2945 = vunpack.c.l.b16 %v2491
    %v2946 = vunpack.c.h.b16 %v2491
    %v2947 = vunpack.c.l.b16 %v2492
    %v2948 = vunpack.c.h.b16 %v2492
    %v2949 = vunpack.c.l.b16 %v2493
    %v2950 = vunpack.c.h.b16 %v2493
    %v2951 = vunpack.c.l.b16 %v2494
    %v2952 = vunpack.c.h.b16 %v2494
    %v2953 = vunpack.c.l.b16 %v2495
    %v2954 = vunpack.c.h.b16 %v2495
    %v2955 = vunpack.c.l.b16 %v2496
    %v2956 = vunpack.c.h.b16 %v2496
    %v2957 = vunpack.c.l.b16 %v2497
    %v2958 = vunpack.c.h.b16 %v2497
    %v2959 = vunpack.c.l.b16 %v2498
    %v2960 = vunpack.c.h.b16 %v2498
    %v2961 = vunpack.c.l.b16 %v2499
    %v2962 = vunpack.c.h.b16 %v2499
    %v2963 = vunpack.c.l.b16 %v2500
    %v2964 = vunpack.c.h.b16 %v2500
    %v2965 = vunpack.c.l.b16 %v2501
    %v2966 = vunpack.c.h.b16 %v2501
    %v2967 = vunpack.c.l.b16 %v2502
    %v2968 = vunpack.c.h.b16 %v2502
    %v2969 = vunpack.c.l.b16 %v2503
    %v2970 = vunpack.c.h.b16 %v2503
    %v2971 = vunpack.c.l.b16 %v2504
    %v2972 = vunpack.c.h.b16 %v2504
    %v2973 = vunpack.c.l.b16 %v2505
    %v2974 = vunpack.c.h.b16 %v2505
    %v2975 = vunpack.c.l.b16 %v2506
    %v2976 = vunpack.c.h.b16 %v2506
    %v2977 = vunpack.c.l.b16 %v2507
    %v2978 = vunpack.c.h.b16 %v2507
    %v2979 = vunpack.c.l.b16 %v2508
    %v2980 = vunpack.c.h.b16 %v2508
    %v2981 = vpack.c.b16 %v2903, %v2901
    %v2982 = vpack.c.b16 %v2904, %v2902
    %v2983 = vpack.c.b16 %v2907, %v2905
    %v2984 = vpack.c.b16 %v2908, %v2906
    %v2985 = vpack.c.b16 %v2911, %v2909
    %v2986 = vpack.c.b16 %v2912, %v2910
    %v2987 = vpack.c.b16 %v2915, %v2913
    %v2988 = vpack.c.b16 %v2916, %v2914
    %v2989 = vpack.c.b16 %v2919, %v2917
    %v2990 = vpack.c.b16 %v2920, %v2918
    %v2991 = vpack.c.b16 %v2923, %v2921
    %v2992 = vpack.c.b16 %v2924, %v2922
    %v2993 = vpack.c.b16 %v2927, %v2925
    %v2994 = vpack.c.b16 %v2928, %v2926
    %v2995 = vpack.c.b16 %v2931, %v2929
    %v2996 = vpack.c.b16 %v2932, %v2930
    %v2997 = vpack.c.b16 %v2935, %v2933
    %v2998 = vpack.c.b16 %v2936, %v2934
    %v2999 = vpack.c.b16 %v2939, %v2937
    %v3000 = vpack.c.b16 %v2940, %v2938
    %v3001 = vpack.c.b16 %v2943, %v2941
    %v3002 = vpack.c.b16 %v2944, %v2942
    %v3003 = vpack.c.b16 %v2947, %v2945
    %v3004 = vpack.c.b16 %v2948, %v2946
    %v3005 = vpack.c.b16 %v2951, %v2949
    %v3006 = vpack.c.b16 %v2952, %v2950
    %v3007 = vpack.c.b16 %v2955, %v2953
    %v3008 = vpack.c.b16 %v2956, %v2954
    %v3009 = vpack.c.b16 %v2959, %v2957
    %v3010 = vpack.c.b16 %v2960, %v2958
    %v3011 = vpack.c.b16 %v2963, %v2961
    %v3012 = vpack.c.b16 %v2964, %v2962
    %v3013 = vpack.c.b16 %v2967, %v2965
    %v3014 = vpack.c.b16 %v2968, %v2966
    %v3015 = vpack.c.b16 %v2971, %v2969
    %v3016 = vpack.c.b16 %v2972, %v2970
    %v3017 = vpack.c.b16 %v2975, %v2973
    %v3018 = vpack.c.b16 %v2976, %v2974
    %v3019 = vpack.c.b16 %v2979, %v2977
    %v3020 = vpack.c.b16 %v2980, %v2978
    %v3062 = vsel %vm2779, %v2511, 0
    %3064 = vmatpush.bf16.msra.mxu0 %v2995
    %3065 = vmatpush.bf16.msra.mxu0 %v2993
    %3066 = vmatpush.bf16.msra.mxu0 %v2991
    %3067 = vmatpush.bf16.msra.mxu0 %v2989
    %3068 = vmatpush.bf16.msra.mxu0 %v2987
    %3069 = vmatpush.bf16.msra.mxu0 %v2985
    %3070 = vmatpush.bf16.msra.mxu0 %v2983
    %3071 = vmatpush.bf16.msra.mxu0 %v2981
    %3072 = vmatmul.bf16.gmra.mxu0 %v2509
    %v3073 = vpop.f32.mrf.mxu0
    %v3074 = vadd.f32 %v2819, %v3073
    %v3075 = vpop.f32.mrf.mxu0
    %3076 = vdwg.mxu0
    %3077 = vmatpush.bf16.msra.mxu0 %v3011
    %3078 = vmatpush.bf16.msra.mxu0 %v3009
    %3079 = vmatpush.bf16.msra.mxu0 %v3007
    %3080 = vmatpush.bf16.msra.mxu0 %v3005
    %3081 = vmatpush.bf16.msra.mxu0 %v3003
    %3082 = vmatpush.bf16.msra.mxu0 %v3001
    %3083 = vmatpush.bf16.msra.mxu0 %v2999
    %3084 = vmatpush.bf16.msra.mxu0 %v2997
    %3085 = vmatmul.bf16.gmra.mxu0 %v2510
    %v3086 = vpop.f32.mrf.mxu0
    %v3087 = vadd.f32 %v3074, %v3086
    %v3088 = vpop.f32.mrf.mxu0
    %3089 = vdwg.mxu0
    %3090 = vmatpush.bf16.msra.mxu0 0
    %3091 = vmatpush.bf16.msra.mxu0 0
    %3092 = vmatpush.bf16.msra.mxu0 0
    %3093 = vmatpush.bf16.msra.mxu0 0
    %3094 = vmatpush.bf16.msra.mxu0 %v3019
    %3095 = vmatpush.bf16.msra.mxu0 %v3017
    %3096 = vmatpush.bf16.msra.mxu0 %v3015
    %3097 = vmatpush.bf16.msra.mxu0 %v3013
    %3098 = vmatmul.bf16.gmra.mxu0 %v3062
    %v3099 = vpop.f32.mrf.mxu0
    %v3100 = vadd.f32 %v3087, %v3099
    %v3101 = vpop.f32.mrf.mxu0
    %3102 = vdwg.mxu0
    %3103 = vmatpush.bf16.msra.mxu0 %v2996
    %3104 = vmatpush.bf16.msra.mxu0 %v2994
    %3105 = vmatpush.bf16.msra.mxu0 %v2992
    %3106 = vmatpush.bf16.msra.mxu0 %v2990
    %3107 = vmatpush.bf16.msra.mxu0 %v2988
    %3108 = vmatpush.bf16.msra.mxu0 %v2986
    %3109 = vmatpush.bf16.msra.mxu0 %v2984
    %3110 = vmatpush.bf16.msra.mxu0 %v2982
    %3111 = vmatmul.bf16.gmra.mxu0 %v2509
    %v3112 = vpop.f32.mrf.mxu0
    %v3113 = vadd.f32 %v2858, %v3112
    %v3114 = vpop.f32.mrf.mxu0
    %3115 = vdwg.mxu0
    %3116 = vmatpush.bf16.msra.mxu0 %v3012
    %3117 = vmatpush.bf16.msra.mxu0 %v3010
    %3118 = vmatpush.bf16.msra.mxu0 %v3008
    %3119 = vmatpush.bf16.msra.mxu0 %v3006
    %3120 = vmatpush.bf16.msra.mxu0 %v3004
    %3121 = vmatpush.bf16.msra.mxu0 %v3002
    %3122 = vmatpush.bf16.msra.mxu0 %v3000
    %3123 = vmatpush.bf16.msra.mxu0 %v2998
    %3124 = vmatmul.bf16.gmra.mxu0 %v2510
    %v3125 = vpop.f32.mrf.mxu0
    %v3126 = vadd.f32 %v3113, %v3125
    %v3127 = vpop.f32.mrf.mxu0
    %3128 = vdwg.mxu0
    %3129 = vmatpush.bf16.msra.mxu0 0
    %3130 = vmatpush.bf16.msra.mxu0 0
    %3131 = vmatpush.bf16.msra.mxu0 0
    %3132 = vmatpush.bf16.msra.mxu0 0
    %3133 = vmatpush.bf16.msra.mxu0 %v3020
    %3134 = vmatpush.bf16.msra.mxu0 %v3018
    %3135 = vmatpush.bf16.msra.mxu0 %v3016
    %3136 = vmatpush.bf16.msra.mxu0 %v3014
    %3137 = vmatmul.bf16.gmra.mxu0 %v3062
    %v3138 = vpop.f32.mrf.mxu0
    %v3139 = vadd.f32 %v3126, %v3138
    %v3140 = vpop.f32.mrf.mxu0
    %3141 = vdwg.mxu0
    %s3142 = scalar_lea.vmem %s3, 640
    %v3143 = vld [vmem:[%s3142] sm:$0xff]
    %v3144 = vld [vmem:[%s3142 + $0x8] sm:$0xff]
    %v3145 = vld [vmem:[%s3142 + $0x10] sm:$0xff]
    %v3146 = vld [vmem:[%s3142 + $0x18] sm:$0xff]
    %v3147 = vld [vmem:[%s3142 + $0x20] sm:$0xff]
    %v3148 = vld [vmem:[%s3142 + $0x28] sm:$0xff]
    %v3149 = vld [vmem:[%s3142 + $0x30] sm:$0xff]
    %v3150 = vld [vmem:[%s3142 + $0x38] sm:$0xff]
    %v3151 = vld [vmem:[%s3142 + $0x40] sm:$0xff]
    %v3152 = vld [vmem:[%s3142 + $0x48] sm:$0xff]
    %v3153 = vld [vmem:[%s3142 + $0x50] sm:$0xff]
    %v3154 = vld [vmem:[%s3142 + $0x58] sm:$0xff]
    %v3155 = vld [vmem:[%s3142 + $0x60] sm:$0xff]
    %v3156 = vld [vmem:[%s3142 + $0x68] sm:$0xff]
    %v3157 = vld [vmem:[%s3142 + $0x70] sm:$0xff]
    %v3158 = vld [vmem:[%s3142 + $0x78] sm:$0xff]
    %v3159 = vld [vmem:[%s3142 + $0x80] sm:$0xff]
    %v3160 = vld [vmem:[%s3142 + $0x88] sm:$0xff]
    %v3161 = vld [vmem:[%s3142 + $0x90] sm:$0xff]
    %v3162 = vld [vmem:[%s3142 + $0x98] sm:$0xff]
    %v3163 = vld [vmem:[%s3142 + $0xa0] sm:$0xff]
    %v3164 = vld [vmem:[%s3142 + $0xa8] sm:$0xff]
    %v3165 = vld [vmem:[%s3142 + $0xb0] sm:$0xff]
    %v3166 = vld [vmem:[%s3142 + $0xb8] sm:$0xff]
    %v3167 = vld [vmem:[%s3142 + $0xc0] sm:$0xff]
    %v3168 = vld [vmem:[%s3142 + $0xc8] sm:$0xff]
    %v3169 = vld [vmem:[%s3142 + $0xd0] sm:$0xff]
    %v3170 = vld [vmem:[%s3142 + $0xd8] sm:$0xff]
    %v3171 = vld [vmem:[%s3142 + $0xe0] sm:$0xff]
    %v3172 = vld [vmem:[%s3142 + $0xe8] sm:$0xff]
    %v3173 = vld [vmem:[%s3142 + $0xf0] sm:$0xff]
    %v3174 = vld [vmem:[%s3142 + $0xf8] sm:$0xff]
    %v3175 = vld [vmem:[%s3142 + $0x100] sm:$0xff]
    %v3176 = vld [vmem:[%s3142 + $0x108] sm:$0xff]
    %v3177 = vld [vmem:[%s3142 + $0x110] sm:$0xff]
    %v3178 = vld [vmem:[%s3142 + $0x118] sm:$0xff]
    %v3179 = vld [vmem:[%s3142 + $0x120] sm:$0xff]
    %v3180 = vld [vmem:[%s3142 + $0x128] sm:$0xff]
    %v3181 = vld [vmem:[%s3142 + $0x130] sm:$0xff]
    %v3182 = vld [vmem:[%s3142 + $0x138] sm:$0xff]
    %v3186 = vrot.slane %v2553, 1
    %v3187 = vrot.slane %v2554, 1
    %v3188 = vrot.slane %v2555, 1
    %v3231 = vunpack.c.l.b16 %v3143
    %v3232 = vunpack.c.h.b16 %v3143
    %v3233 = vunpack.c.l.b16 %v3144
    %v3234 = vunpack.c.h.b16 %v3144
    %v3235 = vunpack.c.l.b16 %v3145
    %v3236 = vunpack.c.h.b16 %v3145
    %v3237 = vunpack.c.l.b16 %v3146
    %v3238 = vunpack.c.h.b16 %v3146
    %v3239 = vunpack.c.l.b16 %v3147
    %v3240 = vunpack.c.h.b16 %v3147
    %v3241 = vunpack.c.l.b16 %v3148
    %v3242 = vunpack.c.h.b16 %v3148
    %v3243 = vunpack.c.l.b16 %v3149
    %v3244 = vunpack.c.h.b16 %v3149
    %v3245 = vunpack.c.l.b16 %v3150
    %v3246 = vunpack.c.h.b16 %v3150
    %v3247 = vunpack.c.l.b16 %v3151
    %v3248 = vunpack.c.h.b16 %v3151
    %v3249 = vunpack.c.l.b16 %v3152
    %v3250 = vunpack.c.h.b16 %v3152
    %v3251 = vunpack.c.l.b16 %v3153
    %v3252 = vunpack.c.h.b16 %v3153
    %v3253 = vunpack.c.l.b16 %v3154
    %v3254 = vunpack.c.h.b16 %v3154
    %v3255 = vunpack.c.l.b16 %v3155
    %v3256 = vunpack.c.h.b16 %v3155
    %v3257 = vunpack.c.l.b16 %v3156
    %v3258 = vunpack.c.h.b16 %v3156
    %v3259 = vunpack.c.l.b16 %v3157
    %v3260 = vunpack.c.h.b16 %v3157
    %v3261 = vunpack.c.l.b16 %v3158
    %v3262 = vunpack.c.h.b16 %v3158
    %v3263 = vunpack.c.l.b16 %v3159
    %v3264 = vunpack.c.h.b16 %v3159
    %v3265 = vunpack.c.l.b16 %v3160
    %v3266 = vunpack.c.h.b16 %v3160
    %v3267 = vunpack.c.l.b16 %v3161
    %v3268 = vunpack.c.h.b16 %v3161
    %v3269 = vunpack.c.l.b16 %v3162
    %v3270 = vunpack.c.h.b16 %v3162
    %v3271 = vunpack.c.l.b16 %v3163
    %v3272 = vunpack.c.h.b16 %v3163
    %v3273 = vunpack.c.l.b16 %v3164
    %v3274 = vunpack.c.h.b16 %v3164
    %v3275 = vunpack.c.l.b16 %v3165
    %v3276 = vunpack.c.h.b16 %v3165
    %v3277 = vunpack.c.l.b16 %v3166
    %v3278 = vunpack.c.h.b16 %v3166
    %v3279 = vunpack.c.l.b16 %v3167
    %v3280 = vunpack.c.h.b16 %v3167
    %v3281 = vunpack.c.l.b16 %v3168
    %v3282 = vunpack.c.h.b16 %v3168
    %v3283 = vunpack.c.l.b16 %v3169
    %v3284 = vunpack.c.h.b16 %v3169
    %v3285 = vunpack.c.l.b16 %v3170
    %v3286 = vunpack.c.h.b16 %v3170
    %v3287 = vunpack.c.l.b16 %v3171
    %v3288 = vunpack.c.h.b16 %v3171
    %v3289 = vunpack.c.l.b16 %v3172
    %v3290 = vunpack.c.h.b16 %v3172
    %v3291 = vunpack.c.l.b16 %v3173
    %v3292 = vunpack.c.h.b16 %v3173
    %v3293 = vunpack.c.l.b16 %v3174
    %v3294 = vunpack.c.h.b16 %v3174
    %v3295 = vunpack.c.l.b16 %v3175
    %v3296 = vunpack.c.h.b16 %v3175
    %v3297 = vunpack.c.l.b16 %v3176
    %v3298 = vunpack.c.h.b16 %v3176
    %v3299 = vunpack.c.l.b16 %v3177
    %v3300 = vunpack.c.h.b16 %v3177
    %v3301 = vunpack.c.l.b16 %v3178
    %v3302 = vunpack.c.h.b16 %v3178
    %v3303 = vunpack.c.l.b16 %v3179
    %v3304 = vunpack.c.h.b16 %v3179
    %v3305 = vunpack.c.l.b16 %v3180
    %v3306 = vunpack.c.h.b16 %v3180
    %v3307 = vunpack.c.l.b16 %v3181
    %v3308 = vunpack.c.h.b16 %v3181
    %v3309 = vunpack.c.l.b16 %v3182
    %v3310 = vunpack.c.h.b16 %v3182
    %v3311 = vpack.c.b16 %v3233, %v3231
    %v3312 = vpack.c.b16 %v3234, %v3232
    %v3313 = vpack.c.b16 %v3237, %v3235
    %v3314 = vpack.c.b16 %v3238, %v3236
    %v3315 = vpack.c.b16 %v3241, %v3239
    %v3316 = vpack.c.b16 %v3242, %v3240
    %v3317 = vpack.c.b16 %v3245, %v3243
    %v3318 = vpack.c.b16 %v3246, %v3244
    %v3319 = vpack.c.b16 %v3249, %v3247
    %v3320 = vpack.c.b16 %v3250, %v3248
    %v3321 = vpack.c.b16 %v3253, %v3251
    %v3322 = vpack.c.b16 %v3254, %v3252
    %v3323 = vpack.c.b16 %v3257, %v3255
    %v3324 = vpack.c.b16 %v3258, %v3256
    %v3325 = vpack.c.b16 %v3261, %v3259
    %v3326 = vpack.c.b16 %v3262, %v3260
    %v3327 = vpack.c.b16 %v3265, %v3263
    %v3328 = vpack.c.b16 %v3266, %v3264
    %v3329 = vpack.c.b16 %v3269, %v3267
    %v3330 = vpack.c.b16 %v3270, %v3268
    %v3331 = vpack.c.b16 %v3273, %v3271
    %v3332 = vpack.c.b16 %v3274, %v3272
    %v3333 = vpack.c.b16 %v3277, %v3275
    %v3334 = vpack.c.b16 %v3278, %v3276
    %v3335 = vpack.c.b16 %v3281, %v3279
    %v3336 = vpack.c.b16 %v3282, %v3280
    %v3337 = vpack.c.b16 %v3285, %v3283
    %v3338 = vpack.c.b16 %v3286, %v3284
    %v3339 = vpack.c.b16 %v3289, %v3287
    %v3340 = vpack.c.b16 %v3290, %v3288
    %v3341 = vpack.c.b16 %v3293, %v3291
    %v3342 = vpack.c.b16 %v3294, %v3292
    %v3343 = vpack.c.b16 %v3297, %v3295
    %v3344 = vpack.c.b16 %v3298, %v3296
    %v3345 = vpack.c.b16 %v3301, %v3299
    %v3346 = vpack.c.b16 %v3302, %v3300
    %v3347 = vpack.c.b16 %v3305, %v3303
    %v3348 = vpack.c.b16 %v3306, %v3304
    %v3349 = vpack.c.b16 %v3309, %v3307
    %v3350 = vpack.c.b16 %v3310, %v3308
    %v3392 = vsel %vm2779, %v3188, 0
    %3394 = vmatpush.bf16.msra.mxu0 %v3325
    %3395 = vmatpush.bf16.msra.mxu0 %v3323
    %3396 = vmatpush.bf16.msra.mxu0 %v3321
    %3397 = vmatpush.bf16.msra.mxu0 %v3319
    %3398 = vmatpush.bf16.msra.mxu0 %v3317
    %3399 = vmatpush.bf16.msra.mxu0 %v3315
    %3400 = vmatpush.bf16.msra.mxu0 %v3313
    %3401 = vmatpush.bf16.msra.mxu0 %v3311
    %3402 = vmatmul.bf16.gmra.mxu0 %v3186
    %v3403 = vpop.f32.mrf.mxu0
    %v3404 = vadd.f32 0.0, %v3403
    %v3405 = vpop.f32.mrf.mxu0
    %3406 = vdwg.mxu0
    %3407 = vmatpush.bf16.msra.mxu0 %v3341
    %3408 = vmatpush.bf16.msra.mxu0 %v3339
    %3409 = vmatpush.bf16.msra.mxu0 %v3337
    %3410 = vmatpush.bf16.msra.mxu0 %v3335
    %3411 = vmatpush.bf16.msra.mxu0 %v3333
    %3412 = vmatpush.bf16.msra.mxu0 %v3331
    %3413 = vmatpush.bf16.msra.mxu0 %v3329
    %3414 = vmatpush.bf16.msra.mxu0 %v3327
    %3415 = vmatmul.bf16.gmra.mxu0 %v3187
    %v3416 = vpop.f32.mrf.mxu0
    %v3417 = vadd.f32 %v3404, %v3416
    %v3418 = vpop.f32.mrf.mxu0
    %3419 = vdwg.mxu0
    %3420 = vmatpush.bf16.msra.mxu0 0
    %3421 = vmatpush.bf16.msra.mxu0 0
    %3422 = vmatpush.bf16.msra.mxu0 0
    %3423 = vmatpush.bf16.msra.mxu0 0
    %3424 = vmatpush.bf16.msra.mxu0 %v3349
    %3425 = vmatpush.bf16.msra.mxu0 %v3347
    %3426 = vmatpush.bf16.msra.mxu0 %v3345
    %3427 = vmatpush.bf16.msra.mxu0 %v3343
    %3428 = vmatmul.bf16.gmra.mxu0 %v3392
    %v3429 = vpop.f32.mrf.mxu0
    %v3430 = vadd.f32 %v3417, %v3429
    %v3431 = vpop.f32.mrf.mxu0
    %3432 = vdwg.mxu0
    %3433 = vmatpush.bf16.msra.mxu0 %v3326
    %3434 = vmatpush.bf16.msra.mxu0 %v3324
    %3435 = vmatpush.bf16.msra.mxu0 %v3322
    %3436 = vmatpush.bf16.msra.mxu0 %v3320
    %3437 = vmatpush.bf16.msra.mxu0 %v3318
    %3438 = vmatpush.bf16.msra.mxu0 %v3316
    %3439 = vmatpush.bf16.msra.mxu0 %v3314
    %3440 = vmatpush.bf16.msra.mxu0 %v3312
    %3441 = vmatmul.bf16.gmra.mxu0 %v3186
    %v3442 = vpop.f32.mrf.mxu0
    %v3443 = vadd.f32 0.0, %v3442
    %v3444 = vpop.f32.mrf.mxu0
    %3445 = vdwg.mxu0
    %3446 = vmatpush.bf16.msra.mxu0 %v3342
    %3447 = vmatpush.bf16.msra.mxu0 %v3340
    %3448 = vmatpush.bf16.msra.mxu0 %v3338
    %3449 = vmatpush.bf16.msra.mxu0 %v3336
    %3450 = vmatpush.bf16.msra.mxu0 %v3334
    %3451 = vmatpush.bf16.msra.mxu0 %v3332
    %3452 = vmatpush.bf16.msra.mxu0 %v3330
    %3453 = vmatpush.bf16.msra.mxu0 %v3328
    %3454 = vmatmul.bf16.gmra.mxu0 %v3187
    %v3455 = vpop.f32.mrf.mxu0
    %v3456 = vadd.f32 %v3443, %v3455
    %v3457 = vpop.f32.mrf.mxu0
    %3458 = vdwg.mxu0
    %3459 = vmatpush.bf16.msra.mxu0 0
    %3460 = vmatpush.bf16.msra.mxu0 0
    %3461 = vmatpush.bf16.msra.mxu0 0
    %3462 = vmatpush.bf16.msra.mxu0 0
    %3463 = vmatpush.bf16.msra.mxu0 %v3350
    %3464 = vmatpush.bf16.msra.mxu0 %v3348
    %3465 = vmatpush.bf16.msra.mxu0 %v3346
    %3466 = vmatpush.bf16.msra.mxu0 %v3344
    %3467 = vmatmul.bf16.gmra.mxu0 %v3392
    %v3468 = vpop.f32.mrf.mxu0
    %v3469 = vadd.f32 %v3456, %v3468
    %v3470 = vpop.f32.mrf.mxu0
    %3471 = vdwg.mxu0
    %v3472 = vadd.f32 %v3100, %v3430
    %v3473 = vadd.f32 %v3139, %v3469
    %v3475 = vperm.slane %v42, 0
    %v3476 = vperm.slane %v42, 1
    %v3479 = vadd.f32 %v3472, %v3475
    %v3480 = vadd.f32 %v3473, %v3476
    %vm3481 = vcmp.gt.f32.partialorder %v3479, 0.0
    %vm3482 = vcmp.gt.f32.partialorder %v3480, 0.0
    %v3483 = vmul.f32 %v3479, 0.1
    %v3484 = vmul.f32 %v3480, 0.1
    %v3485 = vsel %vm3481, %v3479, %v3483
    %v3486 = vsel %vm3482, %v3480, %v3484
    %v3487 = vld [vmem:[%s4] sm:$0xf]
    %v3488 = vld [vmem:[%s4 + $0x4] sm:$0xf]
    %v3489 = vld [vmem:[%s4 + $0x8] sm:$0xf]
    %v3490 = vld [vmem:[%s4 + $0xc] sm:$0xf]
    %v3491 = vld [vmem:[%s4 + $0x10] sm:$0xf]
    %v3492 = vld [vmem:[%s4 + $0x14] sm:$0xf]
    %v3493 = vld [vmem:[%s4 + $0x18] sm:$0xf]
    %v3494 = vld [vmem:[%s4 + $0x1c] sm:$0xf]
    %v3495 = vld [vmem:[%s4 + $0x20] sm:$0xf]
    %v3496 = vld [vmem:[%s4 + $0x24] sm:$0xf]
    %v3497 = vld [vmem:[%s4 + $0x28] sm:$0xf]
    %v3498 = vld [vmem:[%s4 + $0x2c] sm:$0xf]
    %v3499 = vld [vmem:[%s4 + $0x30] sm:$0xf]
    %v3500 = vld [vmem:[%s4 + $0x34] sm:$0xf]
    %v3501 = vld [vmem:[%s4 + $0x38] sm:$0xf]
    %v3502 = vld [vmem:[%s4 + $0x3c] sm:$0xf]
    %v3503 = vld [vmem:[%s4 + $0x40] sm:$0xf]
    %v3504 = vld [vmem:[%s4 + $0x44] sm:$0xf]
    %v3505 = vld [vmem:[%s4 + $0x48] sm:$0xf]
    %v3506 = vld [vmem:[%s4 + $0x4c] sm:$0xf]
    %v3507 = vld [vmem:[%s4 + $0x50] sm:$0xf]
    %v3508 = vld [vmem:[%s4 + $0x54] sm:$0xf]
    %v3509 = vld [vmem:[%s4 + $0x58] sm:$0xf]
    %v3510 = vld [vmem:[%s4 + $0x5c] sm:$0xf]
    %v3511 = vld [vmem:[%s4 + $0x60] sm:$0xf]
    %v3512 = vld [vmem:[%s4 + $0x64] sm:$0xf]
    %v3513 = vld [vmem:[%s4 + $0x68] sm:$0xf]
    %v3514 = vld [vmem:[%s4 + $0x6c] sm:$0xf]
    %v3515 = vld [vmem:[%s4 + $0x70] sm:$0xf]
    %v3516 = vld [vmem:[%s4 + $0x74] sm:$0xf]
    %v3517 = vld [vmem:[%s4 + $0x78] sm:$0xf]
    %v3518 = vld [vmem:[%s4 + $0x7c] sm:$0xf]
    %v3519 = vpack.c.bf16 %v3485, %v3485
    %v3520 = vpack.c.bf16 %v3486, %v3486
    %s3521 = scalar_lea.vmem %s4, 128
    %v3522 = vld [vmem:[%s3521] sm:$0xf]
    %v3523 = vld [vmem:[%s3521 + $0x4] sm:$0xf]
    %v3524 = vld [vmem:[%s3521 + $0x8] sm:$0xf]
    %v3525 = vld [vmem:[%s3521 + $0xc] sm:$0xf]
    %v3526 = vld [vmem:[%s3521 + $0x10] sm:$0xf]
    %v3527 = vld [vmem:[%s3521 + $0x14] sm:$0xf]
    %v3528 = vld [vmem:[%s3521 + $0x18] sm:$0xf]
    %v3529 = vld [vmem:[%s3521 + $0x1c] sm:$0xf]
    %v3530 = vld [vmem:[%s3521 + $0x20] sm:$0xf]
    %v3531 = vld [vmem:[%s3521 + $0x24] sm:$0xf]
    %v3532 = vld [vmem:[%s3521 + $0x28] sm:$0xf]
    %v3533 = vld [vmem:[%s3521 + $0x2c] sm:$0xf]
    %v3534 = vld [vmem:[%s3521 + $0x30] sm:$0xf]
    %v3535 = vld [vmem:[%s3521 + $0x34] sm:$0xf]
    %v3536 = vld [vmem:[%s3521 + $0x38] sm:$0xf]
    %v3537 = vld [vmem:[%s3521 + $0x3c] sm:$0xf]
    %v3538 = vld [vmem:[%s3521 + $0x40] sm:$0xf]
    %v3539 = vld [vmem:[%s3521 + $0x44] sm:$0xf]
    %v3540 = vld [vmem:[%s3521 + $0x48] sm:$0xf]
    %v3541 = vld [vmem:[%s3521 + $0x4c] sm:$0xf]
    %v3542 = vld [vmem:[%s3521 + $0x50] sm:$0xf]
    %v3543 = vld [vmem:[%s3521 + $0x54] sm:$0xf]
    %v3544 = vld [vmem:[%s3521 + $0x58] sm:$0xf]
    %v3545 = vld [vmem:[%s3521 + $0x5c] sm:$0xf]
    %v3546 = vld [vmem:[%s3521 + $0x60] sm:$0xf]
    %v3547 = vld [vmem:[%s3521 + $0x64] sm:$0xf]
    %v3548 = vld [vmem:[%s3521 + $0x68] sm:$0xf]
    %v3549 = vld [vmem:[%s3521 + $0x6c] sm:$0xf]
    %v3550 = vld [vmem:[%s3521 + $0x70] sm:$0xf]
    %v3551 = vld [vmem:[%s3521 + $0x74] sm:$0xf]
    %v3552 = vld [vmem:[%s3521 + $0x78] sm:$0xf]
    %v3553 = vld [vmem:[%s3521 + $0x7c] sm:$0xf]
    %v3555 = vshrl.u32 %v3519, 16
    %v3558 = vshrl.u32 %v3520, 16
    %v3594 = vunpack.c.l.b16 %v3522
    %v3595 = vunpack.c.l.b16 %v3523
    %v3596 = vunpack.c.l.b16 %v3524
    %v3597 = vunpack.c.l.b16 %v3525
    %v3598 = vunpack.c.l.b16 %v3526
    %v3599 = vunpack.c.l.b16 %v3527
    %v3600 = vunpack.c.l.b16 %v3528
    %v3601 = vunpack.c.l.b16 %v3529
    %v3602 = vunpack.c.l.b16 %v3530
    %v3603 = vunpack.c.l.b16 %v3531
    %v3604 = vunpack.c.l.b16 %v3532
    %v3605 = vunpack.c.l.b16 %v3533
    %v3606 = vunpack.c.l.b16 %v3534
    %v3607 = vunpack.c.l.b16 %v3535
    %v3608 = vunpack.c.l.b16 %v3536
    %v3609 = vunpack.c.l.b16 %v3537
    %v3610 = vunpack.c.l.b16 %v3538
    %v3611 = vunpack.c.l.b16 %v3539
    %v3612 = vunpack.c.l.b16 %v3540
    %v3613 = vunpack.c.l.b16 %v3541
    %v3614 = vunpack.c.l.b16 %v3542
    %v3615 = vunpack.c.l.b16 %v3543
    %v3616 = vunpack.c.l.b16 %v3544
    %v3617 = vunpack.c.l.b16 %v3545
    %v3618 = vunpack.c.l.b16 %v3546
    %v3619 = vunpack.c.l.b16 %v3547
    %v3620 = vunpack.c.l.b16 %v3548
    %v3621 = vunpack.c.l.b16 %v3549
    %v3622 = vunpack.c.l.b16 %v3550
    %v3623 = vunpack.c.l.b16 %v3551
    %v3624 = vunpack.c.l.b16 %v3552
    %v3625 = vunpack.c.l.b16 %v3553
    %v3626 = vpack.c.b16 %v3595, %v3594
    %v3627 = vpack.c.b16 %v3597, %v3596
    %v3628 = vpack.c.b16 %v3599, %v3598
    %v3629 = vpack.c.b16 %v3601, %v3600
    %v3630 = vpack.c.b16 %v3603, %v3602
    %v3631 = vpack.c.b16 %v3605, %v3604
    %v3632 = vpack.c.b16 %v3607, %v3606
    %v3633 = vpack.c.b16 %v3609, %v3608
    %v3634 = vpack.c.b16 %v3611, %v3610
    %v3635 = vpack.c.b16 %v3613, %v3612
    %v3636 = vpack.c.b16 %v3615, %v3614
    %v3637 = vpack.c.b16 %v3617, %v3616
    %v3638 = vpack.c.b16 %v3619, %v3618
    %v3639 = vpack.c.b16 %v3621, %v3620
    %v3640 = vpack.c.b16 %v3623, %v3622
    %v3641 = vpack.c.b16 %v3625, %v3624
    %3658 = vmatpush.bf16.msra.mxu0 %v3633
    %3659 = vmatpush.bf16.msra.mxu0 %v3632
    %3660 = vmatpush.bf16.msra.mxu0 %v3631
    %3661 = vmatpush.bf16.msra.mxu0 %v3630
    %3662 = vmatpush.bf16.msra.mxu0 %v3629
    %3663 = vmatpush.bf16.msra.mxu0 %v3628
    %3664 = vmatpush.bf16.msra.mxu0 %v3627
    %3665 = vmatpush.bf16.msra.mxu0 %v3626
    %3666 = vmatmul.bf16.gmra.mxu0 %v3555
    %v3667 = vpop.f32.mrf.mxu0
    %v3668 = vadd.f32 0.0, %v3667
    %v3669 = vpop.f32.mrf.mxu0
    %3670 = vdwg.mxu0
    %3671 = vmatpush.bf16.msra.mxu0 %v3641
    %3672 = vmatpush.bf16.msra.mxu0 %v3640
    %3673 = vmatpush.bf16.msra.mxu0 %v3639
    %3674 = vmatpush.bf16.msra.mxu0 %v3638
    %3675 = vmatpush.bf16.msra.mxu0 %v3637
    %3676 = vmatpush.bf16.msra.mxu0 %v3636
    %3677 = vmatpush.bf16.msra.mxu0 %v3635
    %3678 = vmatpush.bf16.msra.mxu0 %v3634
    %3679 = vmatmul.bf16.gmra.mxu0 %v3558
    %v3680 = vpop.f32.mrf.mxu0
    %v3681 = vadd.f32 %v3668, %v3680
    %v3682 = vpop.f32.mrf.mxu0
    %3683 = vdwg.mxu0
    %v3716 = vunpack.c.l.b16 %v3487
    %v3717 = vunpack.c.l.b16 %v3488
    %v3718 = vunpack.c.l.b16 %v3489
    %v3719 = vunpack.c.l.b16 %v3490
    %v3720 = vunpack.c.l.b16 %v3491
    %v3721 = vunpack.c.l.b16 %v3492
    %v3722 = vunpack.c.l.b16 %v3493
    %v3723 = vunpack.c.l.b16 %v3494
    %v3724 = vunpack.c.l.b16 %v3495
    %v3725 = vunpack.c.l.b16 %v3496
    %v3726 = vunpack.c.l.b16 %v3497
    %v3727 = vunpack.c.l.b16 %v3498
    %v3728 = vunpack.c.l.b16 %v3499
    %v3729 = vunpack.c.l.b16 %v3500
    %v3730 = vunpack.c.l.b16 %v3501
    %v3731 = vunpack.c.l.b16 %v3502
    %v3732 = vunpack.c.l.b16 %v3503
    %v3733 = vunpack.c.l.b16 %v3504
    %v3734 = vunpack.c.l.b16 %v3505
    %v3735 = vunpack.c.l.b16 %v3506
    %v3736 = vunpack.c.l.b16 %v3507
    %v3737 = vunpack.c.l.b16 %v3508
    %v3738 = vunpack.c.l.b16 %v3509
    %v3739 = vunpack.c.l.b16 %v3510
    %v3740 = vunpack.c.l.b16 %v3511
    %v3741 = vunpack.c.l.b16 %v3512
    %v3742 = vunpack.c.l.b16 %v3513
    %v3743 = vunpack.c.l.b16 %v3514
    %v3744 = vunpack.c.l.b16 %v3515
    %v3745 = vunpack.c.l.b16 %v3516
    %v3746 = vunpack.c.l.b16 %v3517
    %v3747 = vunpack.c.l.b16 %v3518
    %v3748 = vpack.c.b16 %v3717, %v3716
    %v3749 = vpack.c.b16 %v3719, %v3718
    %v3750 = vpack.c.b16 %v3721, %v3720
    %v3751 = vpack.c.b16 %v3723, %v3722
    %v3752 = vpack.c.b16 %v3725, %v3724
    %v3753 = vpack.c.b16 %v3727, %v3726
    %v3754 = vpack.c.b16 %v3729, %v3728
    %v3755 = vpack.c.b16 %v3731, %v3730
    %v3756 = vpack.c.b16 %v3733, %v3732
    %v3757 = vpack.c.b16 %v3735, %v3734
    %v3758 = vpack.c.b16 %v3737, %v3736
    %v3759 = vpack.c.b16 %v3739, %v3738
    %v3760 = vpack.c.b16 %v3741, %v3740
    %v3761 = vpack.c.b16 %v3743, %v3742
    %v3762 = vpack.c.b16 %v3745, %v3744
    %v3763 = vpack.c.b16 %v3747, %v3746
    %3780 = vmatpush.bf16.msra.mxu0 %v3755
    %3781 = vmatpush.bf16.msra.mxu0 %v3754
    %3782 = vmatpush.bf16.msra.mxu0 %v3753
    %3783 = vmatpush.bf16.msra.mxu0 %v3752
    %3784 = vmatpush.bf16.msra.mxu0 %v3751
    %3785 = vmatpush.bf16.msra.mxu0 %v3750
    %3786 = vmatpush.bf16.msra.mxu0 %v3749
    %3787 = vmatpush.bf16.msra.mxu0 %v3748
    %3788 = vmatmul.bf16.gmra.mxu0 %v3519
    %v3789 = vpop.f32.mrf.mxu0
    %v3790 = vadd.f32 %v3681, %v3789
    %v3791 = vpop.f32.mrf.mxu0
    %3792 = vdwg.mxu0
    %3793 = vmatpush.bf16.msra.mxu0 %v3763
    %3794 = vmatpush.bf16.msra.mxu0 %v3762
    %3795 = vmatpush.bf16.msra.mxu0 %v3761
    %3796 = vmatpush.bf16.msra.mxu0 %v3760
    %3797 = vmatpush.bf16.msra.mxu0 %v3759
    %3798 = vmatpush.bf16.msra.mxu0 %v3758
    %3799 = vmatpush.bf16.msra.mxu0 %v3757
    %3800 = vmatpush.bf16.msra.mxu0 %v3756
    %3801 = vmatmul.bf16.gmra.mxu0 %v3520
    %v3802 = vpop.f32.mrf.mxu0
    %v3803 = vadd.f32 %v3790, %v3802
    %v3804 = vpop.f32.mrf.mxu0
    %3805 = vdwg.mxu0
    %s3806 = scalar_lea.vmem %s4, 256
    %v3807 = vld [vmem:[%s3806] sm:$0xf]
    %v3808 = vld [vmem:[%s3806 + $0x4] sm:$0xf]
    %v3809 = vld [vmem:[%s3806 + $0x8] sm:$0xf]
    %v3810 = vld [vmem:[%s3806 + $0xc] sm:$0xf]
    %v3811 = vld [vmem:[%s3806 + $0x10] sm:$0xf]
    %v3812 = vld [vmem:[%s3806 + $0x14] sm:$0xf]
    %v3813 = vld [vmem:[%s3806 + $0x18] sm:$0xf]
    %v3814 = vld [vmem:[%s3806 + $0x1c] sm:$0xf]
    %v3815 = vld [vmem:[%s3806 + $0x20] sm:$0xf]
    %v3816 = vld [vmem:[%s3806 + $0x24] sm:$0xf]
    %v3817 = vld [vmem:[%s3806 + $0x28] sm:$0xf]
    %v3818 = vld [vmem:[%s3806 + $0x2c] sm:$0xf]
    %v3819 = vld [vmem:[%s3806 + $0x30] sm:$0xf]
    %v3820 = vld [vmem:[%s3806 + $0x34] sm:$0xf]
    %v3821 = vld [vmem:[%s3806 + $0x38] sm:$0xf]
    %v3822 = vld [vmem:[%s3806 + $0x3c] sm:$0xf]
    %v3823 = vld [vmem:[%s3806 + $0x40] sm:$0xf]
    %v3824 = vld [vmem:[%s3806 + $0x44] sm:$0xf]
    %v3825 = vld [vmem:[%s3806 + $0x48] sm:$0xf]
    %v3826 = vld [vmem:[%s3806 + $0x4c] sm:$0xf]
    %v3827 = vld [vmem:[%s3806 + $0x50] sm:$0xf]
    %v3828 = vld [vmem:[%s3806 + $0x54] sm:$0xf]
    %v3829 = vld [vmem:[%s3806 + $0x58] sm:$0xf]
    %v3830 = vld [vmem:[%s3806 + $0x5c] sm:$0xf]
    %v3831 = vld [vmem:[%s3806 + $0x60] sm:$0xf]
    %v3832 = vld [vmem:[%s3806 + $0x64] sm:$0xf]
    %v3833 = vld [vmem:[%s3806 + $0x68] sm:$0xf]
    %v3834 = vld [vmem:[%s3806 + $0x6c] sm:$0xf]
    %v3835 = vld [vmem:[%s3806 + $0x70] sm:$0xf]
    %v3836 = vld [vmem:[%s3806 + $0x74] sm:$0xf]
    %v3837 = vld [vmem:[%s3806 + $0x78] sm:$0xf]
    %v3838 = vld [vmem:[%s3806 + $0x7c] sm:$0xf]
    %v3841 = vrot.slane %v3519, 1
    %v3842 = vrot.slane %v3520, 1
    %v3877 = vunpack.c.l.b16 %v3807
    %v3878 = vunpack.c.l.b16 %v3808
    %v3879 = vunpack.c.l.b16 %v3809
    %v3880 = vunpack.c.l.b16 %v3810
    %v3881 = vunpack.c.l.b16 %v3811
    %v3882 = vunpack.c.l.b16 %v3812
    %v3883 = vunpack.c.l.b16 %v3813
    %v3884 = vunpack.c.l.b16 %v3814
    %v3885 = vunpack.c.l.b16 %v3815
    %v3886 = vunpack.c.l.b16 %v3816
    %v3887 = vunpack.c.l.b16 %v3817
    %v3888 = vunpack.c.l.b16 %v3818
    %v3889 = vunpack.c.l.b16 %v3819
    %v3890 = vunpack.c.l.b16 %v3820
    %v3891 = vunpack.c.l.b16 %v3821
    %v3892 = vunpack.c.l.b16 %v3822
    %v3893 = vunpack.c.l.b16 %v3823
    %v3894 = vunpack.c.l.b16 %v3824
    %v3895 = vunpack.c.l.b16 %v3825
    %v3896 = vunpack.c.l.b16 %v3826
    %v3897 = vunpack.c.l.b16 %v3827
    %v3898 = vunpack.c.l.b16 %v3828
    %v3899 = vunpack.c.l.b16 %v3829
    %v3900 = vunpack.c.l.b16 %v3830
    %v3901 = vunpack.c.l.b16 %v3831
    %v3902 = vunpack.c.l.b16 %v3832
    %v3903 = vunpack.c.l.b16 %v3833
    %v3904 = vunpack.c.l.b16 %v3834
    %v3905 = vunpack.c.l.b16 %v3835
    %v3906 = vunpack.c.l.b16 %v3836
    %v3907 = vunpack.c.l.b16 %v3837
    %v3908 = vunpack.c.l.b16 %v3838
    %v3909 = vpack.c.b16 %v3878, %v3877
    %v3910 = vpack.c.b16 %v3880, %v3879
    %v3911 = vpack.c.b16 %v3882, %v3881
    %v3912 = vpack.c.b16 %v3884, %v3883
    %v3913 = vpack.c.b16 %v3886, %v3885
    %v3914 = vpack.c.b16 %v3888, %v3887
    %v3915 = vpack.c.b16 %v3890, %v3889
    %v3916 = vpack.c.b16 %v3892, %v3891
    %v3917 = vpack.c.b16 %v3894, %v3893
    %v3918 = vpack.c.b16 %v3896, %v3895
    %v3919 = vpack.c.b16 %v3898, %v3897
    %v3920 = vpack.c.b16 %v3900, %v3899
    %v3921 = vpack.c.b16 %v3902, %v3901
    %v3922 = vpack.c.b16 %v3904, %v3903
    %v3923 = vpack.c.b16 %v3906, %v3905
    %v3924 = vpack.c.b16 %v3908, %v3907
    %3941 = vmatpush.bf16.msra.mxu0 %v3916
    %3942 = vmatpush.bf16.msra.mxu0 %v3915
    %3943 = vmatpush.bf16.msra.mxu0 %v3914
    %3944 = vmatpush.bf16.msra.mxu0 %v3913
    %3945 = vmatpush.bf16.msra.mxu0 %v3912
    %3946 = vmatpush.bf16.msra.mxu0 %v3911
    %3947 = vmatpush.bf16.msra.mxu0 %v3910
    %3948 = vmatpush.bf16.msra.mxu0 %v3909
    %3949 = vmatmul.bf16.gmra.mxu0 %v3841
    %v3950 = vpop.f32.mrf.mxu0
    %v3951 = vadd.f32 0.0, %v3950
    %v3952 = vpop.f32.mrf.mxu0
    %3953 = vdwg.mxu0
    %3954 = vmatpush.bf16.msra.mxu0 %v3924
    %3955 = vmatpush.bf16.msra.mxu0 %v3923
    %3956 = vmatpush.bf16.msra.mxu0 %v3922
    %3957 = vmatpush.bf16.msra.mxu0 %v3921
    %3958 = vmatpush.bf16.msra.mxu0 %v3920
    %3959 = vmatpush.bf16.msra.mxu0 %v3919
    %3960 = vmatpush.bf16.msra.mxu0 %v3918
    %3961 = vmatpush.bf16.msra.mxu0 %v3917
    %3962 = vmatmul.bf16.gmra.mxu0 %v3842
    %v3963 = vpop.f32.mrf.mxu0
    %v3964 = vadd.f32 %v3951, %v3963
    %v3965 = vpop.f32.mrf.mxu0
    %3966 = vdwg.mxu0
    %v3967 = vadd.f32 %v3803, %v3964
    %s3968 = scalar_lea.vmem %s4, 384
    %v3969 = vld [vmem:[%s3968] sm:$0xf]
    %v3970 = vld [vmem:[%s3968 + $0x4] sm:$0xf]
    %v3971 = vld [vmem:[%s3968 + $0x8] sm:$0xf]
    %v3972 = vld [vmem:[%s3968 + $0xc] sm:$0xf]
    %v3973 = vld [vmem:[%s3968 + $0x10] sm:$0xf]
    %v3974 = vld [vmem:[%s3968 + $0x14] sm:$0xf]
    %v3975 = vld [vmem:[%s3968 + $0x18] sm:$0xf]
    %v3976 = vld [vmem:[%s3968 + $0x1c] sm:$0xf]
    %v3977 = vld [vmem:[%s3968 + $0x20] sm:$0xf]
    %v3978 = vld [vmem:[%s3968 + $0x24] sm:$0xf]
    %v3979 = vld [vmem:[%s3968 + $0x28] sm:$0xf]
    %v3980 = vld [vmem:[%s3968 + $0x2c] sm:$0xf]
    %v3981 = vld [vmem:[%s3968 + $0x30] sm:$0xf]
    %v3982 = vld [vmem:[%s3968 + $0x34] sm:$0xf]
    %v3983 = vld [vmem:[%s3968 + $0x38] sm:$0xf]
    %v3984 = vld [vmem:[%s3968 + $0x3c] sm:$0xf]
    %v3985 = vld [vmem:[%s3968 + $0x40] sm:$0xf]
    %v3986 = vld [vmem:[%s3968 + $0x44] sm:$0xf]
    %v3987 = vld [vmem:[%s3968 + $0x48] sm:$0xf]
    %v3988 = vld [vmem:[%s3968 + $0x4c] sm:$0xf]
    %v3989 = vld [vmem:[%s3968 + $0x50] sm:$0xf]
    %v3990 = vld [vmem:[%s3968 + $0x54] sm:$0xf]
    %v3991 = vld [vmem:[%s3968 + $0x58] sm:$0xf]
    %v3992 = vld [vmem:[%s3968 + $0x5c] sm:$0xf]
    %v3993 = vld [vmem:[%s3968 + $0x60] sm:$0xf]
    %v3994 = vld [vmem:[%s3968 + $0x64] sm:$0xf]
    %v3995 = vld [vmem:[%s3968 + $0x68] sm:$0xf]
    %v3996 = vld [vmem:[%s3968 + $0x6c] sm:$0xf]
    %v3997 = vld [vmem:[%s3968 + $0x70] sm:$0xf]
    %v3998 = vld [vmem:[%s3968 + $0x74] sm:$0xf]
    %v3999 = vld [vmem:[%s3968 + $0x78] sm:$0xf]
    %v4000 = vld [vmem:[%s3968 + $0x7c] sm:$0xf]
    %v4001 = vrot.slane %v3555, 1
    %v4002 = vrot.slane %v3558, 1
    %v4037 = vunpack.c.l.b16 %v3969
    %v4038 = vunpack.c.l.b16 %v3970
    %v4039 = vunpack.c.l.b16 %v3971
    %v4040 = vunpack.c.l.b16 %v3972
    %v4041 = vunpack.c.l.b16 %v3973
    %v4042 = vunpack.c.l.b16 %v3974
    %v4043 = vunpack.c.l.b16 %v3975
    %v4044 = vunpack.c.l.b16 %v3976
    %v4045 = vunpack.c.l.b16 %v3977
    %v4046 = vunpack.c.l.b16 %v3978
    %v4047 = vunpack.c.l.b16 %v3979
    %v4048 = vunpack.c.l.b16 %v3980
    %v4049 = vunpack.c.l.b16 %v3981
    %v4050 = vunpack.c.l.b16 %v3982
    %v4051 = vunpack.c.l.b16 %v3983
    %v4052 = vunpack.c.l.b16 %v3984
    %v4053 = vunpack.c.l.b16 %v3985
    %v4054 = vunpack.c.l.b16 %v3986
    %v4055 = vunpack.c.l.b16 %v3987
    %v4056 = vunpack.c.l.b16 %v3988
    %v4057 = vunpack.c.l.b16 %v3989
    %v4058 = vunpack.c.l.b16 %v3990
    %v4059 = vunpack.c.l.b16 %v3991
    %v4060 = vunpack.c.l.b16 %v3992
    %v4061 = vunpack.c.l.b16 %v3993
    %v4062 = vunpack.c.l.b16 %v3994
    %v4063 = vunpack.c.l.b16 %v3995
    %v4064 = vunpack.c.l.b16 %v3996
    %v4065 = vunpack.c.l.b16 %v3997
    %v4066 = vunpack.c.l.b16 %v3998
    %v4067 = vunpack.c.l.b16 %v3999
    %v4068 = vunpack.c.l.b16 %v4000
    %v4069 = vpack.c.b16 %v4038, %v4037
    %v4070 = vpack.c.b16 %v4040, %v4039
    %v4071 = vpack.c.b16 %v4042, %v4041
    %v4072 = vpack.c.b16 %v4044, %v4043
    %v4073 = vpack.c.b16 %v4046, %v4045
    %v4074 = vpack.c.b16 %v4048, %v4047
    %v4075 = vpack.c.b16 %v4050, %v4049
    %v4076 = vpack.c.b16 %v4052, %v4051
    %v4077 = vpack.c.b16 %v4054, %v4053
    %v4078 = vpack.c.b16 %v4056, %v4055
    %v4079 = vpack.c.b16 %v4058, %v4057
    %v4080 = vpack.c.b16 %v4060, %v4059
    %v4081 = vpack.c.b16 %v4062, %v4061
    %v4082 = vpack.c.b16 %v4064, %v4063
    %v4083 = vpack.c.b16 %v4066, %v4065
    %v4084 = vpack.c.b16 %v4068, %v4067
    %4101 = vmatpush.bf16.msra.mxu0 %v4076
    %4102 = vmatpush.bf16.msra.mxu0 %v4075
    %4103 = vmatpush.bf16.msra.mxu0 %v4074
    %4104 = vmatpush.bf16.msra.mxu0 %v4073
    %4105 = vmatpush.bf16.msra.mxu0 %v4072
    %4106 = vmatpush.bf16.msra.mxu0 %v4071
    %4107 = vmatpush.bf16.msra.mxu0 %v4070
    %4108 = vmatpush.bf16.msra.mxu0 %v4069
    %4109 = vmatmul.bf16.gmra.mxu0 %v4001
    %v4110 = vpop.f32.mrf.mxu0
    %v4111 = vadd.f32 0.0, %v4110
    %v4112 = vpop.f32.mrf.mxu0
    %4113 = vdwg.mxu0
    %4114 = vmatpush.bf16.msra.mxu0 %v4084
    %4115 = vmatpush.bf16.msra.mxu0 %v4083
    %4116 = vmatpush.bf16.msra.mxu0 %v4082
    %4117 = vmatpush.bf16.msra.mxu0 %v4081
    %4118 = vmatpush.bf16.msra.mxu0 %v4080
    %4119 = vmatpush.bf16.msra.mxu0 %v4079
    %4120 = vmatpush.bf16.msra.mxu0 %v4078
    %4121 = vmatpush.bf16.msra.mxu0 %v4077
    %4122 = vmatmul.bf16.gmra.mxu0 %v4002
    %v4123 = vpop.f32.mrf.mxu0
    %v4124 = vadd.f32 %v4111, %v4123
    %v4125 = vpop.f32.mrf.mxu0
    %4126 = vdwg.mxu0
    %v4127 = vadd.f32 %v3967, %v4124
    %s4128 = scalar_lea.vmem %s4, 512
    %v4129 = vld [vmem:[%s4128] sm:$0xf]
    %v4130 = vld [vmem:[%s4128 + $0x4] sm:$0xf]
    %v4131 = vld [vmem:[%s4128 + $0x8] sm:$0xf]
    %v4132 = vld [vmem:[%s4128 + $0xc] sm:$0xf]
    %v4133 = vld [vmem:[%s4128 + $0x10] sm:$0xf]
    %v4134 = vld [vmem:[%s4128 + $0x14] sm:$0xf]
    %v4135 = vld [vmem:[%s4128 + $0x18] sm:$0xf]
    %v4136 = vld [vmem:[%s4128 + $0x1c] sm:$0xf]
    %v4137 = vld [vmem:[%s4128 + $0x20] sm:$0xf]
    %v4138 = vld [vmem:[%s4128 + $0x24] sm:$0xf]
    %v4139 = vld [vmem:[%s4128 + $0x28] sm:$0xf]
    %v4140 = vld [vmem:[%s4128 + $0x2c] sm:$0xf]
    %v4141 = vld [vmem:[%s4128 + $0x30] sm:$0xf]
    %v4142 = vld [vmem:[%s4128 + $0x34] sm:$0xf]
    %v4143 = vld [vmem:[%s4128 + $0x38] sm:$0xf]
    %v4144 = vld [vmem:[%s4128 + $0x3c] sm:$0xf]
    %v4145 = vld [vmem:[%s4128 + $0x40] sm:$0xf]
    %v4146 = vld [vmem:[%s4128 + $0x44] sm:$0xf]
    %v4147 = vld [vmem:[%s4128 + $0x48] sm:$0xf]
    %v4148 = vld [vmem:[%s4128 + $0x4c] sm:$0xf]
    %v4149 = vld [vmem:[%s4128 + $0x50] sm:$0xf]
    %v4150 = vld [vmem:[%s4128 + $0x54] sm:$0xf]
    %v4151 = vld [vmem:[%s4128 + $0x58] sm:$0xf]
    %v4152 = vld [vmem:[%s4128 + $0x5c] sm:$0xf]
    %v4153 = vld [vmem:[%s4128 + $0x60] sm:$0xf]
    %v4154 = vld [vmem:[%s4128 + $0x64] sm:$0xf]
    %v4155 = vld [vmem:[%s4128 + $0x68] sm:$0xf]
    %v4156 = vld [vmem:[%s4128 + $0x6c] sm:$0xf]
    %v4157 = vld [vmem:[%s4128 + $0x70] sm:$0xf]
    %v4158 = vld [vmem:[%s4128 + $0x74] sm:$0xf]
    %v4159 = vld [vmem:[%s4128 + $0x78] sm:$0xf]
    %v4160 = vld [vmem:[%s4128 + $0x7c] sm:$0xf]
    %v4161 = vrot.slane %v3519, 2
    %v4162 = vrot.slane %v3520, 2
    %v4197 = vunpack.c.l.b16 %v4129
    %v4198 = vunpack.c.l.b16 %v4130
    %v4199 = vunpack.c.l.b16 %v4131
    %v4200 = vunpack.c.l.b16 %v4132
    %v4201 = vunpack.c.l.b16 %v4133
    %v4202 = vunpack.c.l.b16 %v4134
    %v4203 = vunpack.c.l.b16 %v4135
    %v4204 = vunpack.c.l.b16 %v4136
    %v4205 = vunpack.c.l.b16 %v4137
    %v4206 = vunpack.c.l.b16 %v4138
    %v4207 = vunpack.c.l.b16 %v4139
    %v4208 = vunpack.c.l.b16 %v4140
    %v4209 = vunpack.c.l.b16 %v4141
    %v4210 = vunpack.c.l.b16 %v4142
    %v4211 = vunpack.c.l.b16 %v4143
    %v4212 = vunpack.c.l.b16 %v4144
    %v4213 = vunpack.c.l.b16 %v4145
    %v4214 = vunpack.c.l.b16 %v4146
    %v4215 = vunpack.c.l.b16 %v4147
    %v4216 = vunpack.c.l.b16 %v4148
    %v4217 = vunpack.c.l.b16 %v4149
    %v4218 = vunpack.c.l.b16 %v4150
    %v4219 = vunpack.c.l.b16 %v4151
    %v4220 = vunpack.c.l.b16 %v4152
    %v4221 = vunpack.c.l.b16 %v4153
    %v4222 = vunpack.c.l.b16 %v4154
    %v4223 = vunpack.c.l.b16 %v4155
    %v4224 = vunpack.c.l.b16 %v4156
    %v4225 = vunpack.c.l.b16 %v4157
    %v4226 = vunpack.c.l.b16 %v4158
    %v4227 = vunpack.c.l.b16 %v4159
    %v4228 = vunpack.c.l.b16 %v4160
    %v4229 = vpack.c.b16 %v4198, %v4197
    %v4230 = vpack.c.b16 %v4200, %v4199
    %v4231 = vpack.c.b16 %v4202, %v4201
    %v4232 = vpack.c.b16 %v4204, %v4203
    %v4233 = vpack.c.b16 %v4206, %v4205
    %v4234 = vpack.c.b16 %v4208, %v4207
    %v4235 = vpack.c.b16 %v4210, %v4209
    %v4236 = vpack.c.b16 %v4212, %v4211
    %v4237 = vpack.c.b16 %v4214, %v4213
    %v4238 = vpack.c.b16 %v4216, %v4215
    %v4239 = vpack.c.b16 %v4218, %v4217
    %v4240 = vpack.c.b16 %v4220, %v4219
    %v4241 = vpack.c.b16 %v4222, %v4221
    %v4242 = vpack.c.b16 %v4224, %v4223
    %v4243 = vpack.c.b16 %v4226, %v4225
    %v4244 = vpack.c.b16 %v4228, %v4227
    %4261 = vmatpush.bf16.msra.mxu0 %v4236
    %4262 = vmatpush.bf16.msra.mxu0 %v4235
    %4263 = vmatpush.bf16.msra.mxu0 %v4234
    %4264 = vmatpush.bf16.msra.mxu0 %v4233
    %4265 = vmatpush.bf16.msra.mxu0 %v4232
    %4266 = vmatpush.bf16.msra.mxu0 %v4231
    %4267 = vmatpush.bf16.msra.mxu0 %v4230
    %4268 = vmatpush.bf16.msra.mxu0 %v4229
    %4269 = vmatmul.bf16.gmra.mxu0 %v4161
    %v4270 = vpop.f32.mrf.mxu0
    %v4271 = vadd.f32 0.0, %v4270
    %v4272 = vpop.f32.mrf.mxu0
    %4273 = vdwg.mxu0
    %4274 = vmatpush.bf16.msra.mxu0 %v4244
    %4275 = vmatpush.bf16.msra.mxu0 %v4243
    %4276 = vmatpush.bf16.msra.mxu0 %v4242
    %4277 = vmatpush.bf16.msra.mxu0 %v4241
    %4278 = vmatpush.bf16.msra.mxu0 %v4240
    %4279 = vmatpush.bf16.msra.mxu0 %v4239
    %4280 = vmatpush.bf16.msra.mxu0 %v4238
    %4281 = vmatpush.bf16.msra.mxu0 %v4237
    %4282 = vmatmul.bf16.gmra.mxu0 %v4162
    %v4283 = vpop.f32.mrf.mxu0
    %v4284 = vadd.f32 %v4271, %v4283
    %v4285 = vpop.f32.mrf.mxu0
    %4286 = vdwg.mxu0
    %v4287 = vadd.f32 %v4127, %v4284
    %s4288 = scalar_lea.vmem %s4, 640
    %v4289 = vld [vmem:[%s4288] sm:$0xf]
    %v4290 = vld [vmem:[%s4288 + $0x4] sm:$0xf]
    %v4291 = vld [vmem:[%s4288 + $0x8] sm:$0xf]
    %v4292 = vld [vmem:[%s4288 + $0xc] sm:$0xf]
    %v4293 = vld [vmem:[%s4288 + $0x10] sm:$0xf]
    %v4294 = vld [vmem:[%s4288 + $0x14] sm:$0xf]
    %v4295 = vld [vmem:[%s4288 + $0x18] sm:$0xf]
    %v4296 = vld [vmem:[%s4288 + $0x1c] sm:$0xf]
    %v4297 = vld [vmem:[%s4288 + $0x20] sm:$0xf]
    %v4298 = vld [vmem:[%s4288 + $0x24] sm:$0xf]
    %v4299 = vld [vmem:[%s4288 + $0x28] sm:$0xf]
    %v4300 = vld [vmem:[%s4288 + $0x2c] sm:$0xf]
    %v4301 = vld [vmem:[%s4288 + $0x30] sm:$0xf]
    %v4302 = vld [vmem:[%s4288 + $0x34] sm:$0xf]
    %v4303 = vld [vmem:[%s4288 + $0x38] sm:$0xf]
    %v4304 = vld [vmem:[%s4288 + $0x3c] sm:$0xf]
    %v4305 = vld [vmem:[%s4288 + $0x40] sm:$0xf]
    %v4306 = vld [vmem:[%s4288 + $0x44] sm:$0xf]
    %v4307 = vld [vmem:[%s4288 + $0x48] sm:$0xf]
    %v4308 = vld [vmem:[%s4288 + $0x4c] sm:$0xf]
    %v4309 = vld [vmem:[%s4288 + $0x50] sm:$0xf]
    %v4310 = vld [vmem:[%s4288 + $0x54] sm:$0xf]
    %v4311 = vld [vmem:[%s4288 + $0x58] sm:$0xf]
    %v4312 = vld [vmem:[%s4288 + $0x5c] sm:$0xf]
    %v4313 = vld [vmem:[%s4288 + $0x60] sm:$0xf]
    %v4314 = vld [vmem:[%s4288 + $0x64] sm:$0xf]
    %v4315 = vld [vmem:[%s4288 + $0x68] sm:$0xf]
    %v4316 = vld [vmem:[%s4288 + $0x6c] sm:$0xf]
    %v4317 = vld [vmem:[%s4288 + $0x70] sm:$0xf]
    %v4318 = vld [vmem:[%s4288 + $0x74] sm:$0xf]
    %v4319 = vld [vmem:[%s4288 + $0x78] sm:$0xf]
    %v4320 = vld [vmem:[%s4288 + $0x7c] sm:$0xf]
    %v4321 = vrot.slane %v3555, 2
    %v4322 = vrot.slane %v3558, 2
    %v4357 = vunpack.c.l.b16 %v4289
    %v4358 = vunpack.c.l.b16 %v4290
    %v4359 = vunpack.c.l.b16 %v4291
    %v4360 = vunpack.c.l.b16 %v4292
    %v4361 = vunpack.c.l.b16 %v4293
    %v4362 = vunpack.c.l.b16 %v4294
    %v4363 = vunpack.c.l.b16 %v4295
    %v4364 = vunpack.c.l.b16 %v4296
    %v4365 = vunpack.c.l.b16 %v4297
    %v4366 = vunpack.c.l.b16 %v4298
    %v4367 = vunpack.c.l.b16 %v4299
    %v4368 = vunpack.c.l.b16 %v4300
    %v4369 = vunpack.c.l.b16 %v4301
    %v4370 = vunpack.c.l.b16 %v4302
    %v4371 = vunpack.c.l.b16 %v4303
    %v4372 = vunpack.c.l.b16 %v4304
    %v4373 = vunpack.c.l.b16 %v4305
    %v4374 = vunpack.c.l.b16 %v4306
    %v4375 = vunpack.c.l.b16 %v4307
    %v4376 = vunpack.c.l.b16 %v4308
    %v4377 = vunpack.c.l.b16 %v4309
    %v4378 = vunpack.c.l.b16 %v4310
    %v4379 = vunpack.c.l.b16 %v4311
    %v4380 = vunpack.c.l.b16 %v4312
    %v4381 = vunpack.c.l.b16 %v4313
    %v4382 = vunpack.c.l.b16 %v4314
    %v4383 = vunpack.c.l.b16 %v4315
    %v4384 = vunpack.c.l.b16 %v4316
    %v4385 = vunpack.c.l.b16 %v4317
    %v4386 = vunpack.c.l.b16 %v4318
    %v4387 = vunpack.c.l.b16 %v4319
    %v4388 = vunpack.c.l.b16 %v4320
    %v4389 = vpack.c.b16 %v4358, %v4357
    %v4390 = vpack.c.b16 %v4360, %v4359
    %v4391 = vpack.c.b16 %v4362, %v4361
    %v4392 = vpack.c.b16 %v4364, %v4363
    %v4393 = vpack.c.b16 %v4366, %v4365
    %v4394 = vpack.c.b16 %v4368, %v4367
    %v4395 = vpack.c.b16 %v4370, %v4369
    %v4396 = vpack.c.b16 %v4372, %v4371
    %v4397 = vpack.c.b16 %v4374, %v4373
    %v4398 = vpack.c.b16 %v4376, %v4375
    %v4399 = vpack.c.b16 %v4378, %v4377
    %v4400 = vpack.c.b16 %v4380, %v4379
    %v4401 = vpack.c.b16 %v4382, %v4381
    %v4402 = vpack.c.b16 %v4384, %v4383
    %v4403 = vpack.c.b16 %v4386, %v4385
    %v4404 = vpack.c.b16 %v4388, %v4387
    %4421 = vmatpush.bf16.msra.mxu0 %v4396
    %4422 = vmatpush.bf16.msra.mxu0 %v4395
    %4423 = vmatpush.bf16.msra.mxu0 %v4394
    %4424 = vmatpush.bf16.msra.mxu0 %v4393
    %4425 = vmatpush.bf16.msra.mxu0 %v4392
    %4426 = vmatpush.bf16.msra.mxu0 %v4391
    %4427 = vmatpush.bf16.msra.mxu0 %v4390
    %4428 = vmatpush.bf16.msra.mxu0 %v4389
    %4429 = vmatmul.bf16.gmra.mxu0 %v4321
    %v4430 = vpop.f32.mrf.mxu0
    %v4431 = vadd.f32 0.0, %v4430
    %v4432 = vpop.f32.mrf.mxu0
    %4433 = vdwg.mxu0
    %4434 = vmatpush.bf16.msra.mxu0 %v4404
    %4435 = vmatpush.bf16.msra.mxu0 %v4403
    %4436 = vmatpush.bf16.msra.mxu0 %v4402
    %4437 = vmatpush.bf16.msra.mxu0 %v4401
    %4438 = vmatpush.bf16.msra.mxu0 %v4400
    %4439 = vmatpush.bf16.msra.mxu0 %v4399
    %4440 = vmatpush.bf16.msra.mxu0 %v4398
    %4441 = vmatpush.bf16.msra.mxu0 %v4397
    %4442 = vmatmul.bf16.gmra.mxu0 %v4322
    %v4443 = vpop.f32.mrf.mxu0
    %v4444 = vadd.f32 %v4431, %v4443
    %v4445 = vpop.f32.mrf.mxu0
    %4446 = vdwg.mxu0
    %v4447 = vadd.f32 %v4287, %v4444
    %s4448 = scalar_lea.vmem %s4, 768
    %v4449 = vld [vmem:[%s4448] sm:$0xf]
    %v4450 = vld [vmem:[%s4448 + $0x4] sm:$0xf]
    %v4451 = vld [vmem:[%s4448 + $0x8] sm:$0xf]
    %v4452 = vld [vmem:[%s4448 + $0xc] sm:$0xf]
    %v4453 = vld [vmem:[%s4448 + $0x10] sm:$0xf]
    %v4454 = vld [vmem:[%s4448 + $0x14] sm:$0xf]
    %v4455 = vld [vmem:[%s4448 + $0x18] sm:$0xf]
    %v4456 = vld [vmem:[%s4448 + $0x1c] sm:$0xf]
    %v4457 = vld [vmem:[%s4448 + $0x20] sm:$0xf]
    %v4458 = vld [vmem:[%s4448 + $0x24] sm:$0xf]
    %v4459 = vld [vmem:[%s4448 + $0x28] sm:$0xf]
    %v4460 = vld [vmem:[%s4448 + $0x2c] sm:$0xf]
    %v4461 = vld [vmem:[%s4448 + $0x30] sm:$0xf]
    %v4462 = vld [vmem:[%s4448 + $0x34] sm:$0xf]
    %v4463 = vld [vmem:[%s4448 + $0x38] sm:$0xf]
    %v4464 = vld [vmem:[%s4448 + $0x3c] sm:$0xf]
    %v4465 = vld [vmem:[%s4448 + $0x40] sm:$0xf]
    %v4466 = vld [vmem:[%s4448 + $0x44] sm:$0xf]
    %v4467 = vld [vmem:[%s4448 + $0x48] sm:$0xf]
    %v4468 = vld [vmem:[%s4448 + $0x4c] sm:$0xf]
    %v4469 = vld [vmem:[%s4448 + $0x50] sm:$0xf]
    %v4470 = vld [vmem:[%s4448 + $0x54] sm:$0xf]
    %v4471 = vld [vmem:[%s4448 + $0x58] sm:$0xf]
    %v4472 = vld [vmem:[%s4448 + $0x5c] sm:$0xf]
    %v4473 = vld [vmem:[%s4448 + $0x60] sm:$0xf]
    %v4474 = vld [vmem:[%s4448 + $0x64] sm:$0xf]
    %v4475 = vld [vmem:[%s4448 + $0x68] sm:$0xf]
    %v4476 = vld [vmem:[%s4448 + $0x6c] sm:$0xf]
    %v4477 = vld [vmem:[%s4448 + $0x70] sm:$0xf]
    %v4478 = vld [vmem:[%s4448 + $0x74] sm:$0xf]
    %v4479 = vld [vmem:[%s4448 + $0x78] sm:$0xf]
    %v4480 = vld [vmem:[%s4448 + $0x7c] sm:$0xf]
    %v4481 = vrot.slane %v3519, 3
    %v4482 = vrot.slane %v3520, 3
    %v4517 = vunpack.c.l.b16 %v4449
    %v4518 = vunpack.c.l.b16 %v4450
    %v4519 = vunpack.c.l.b16 %v4451
    %v4520 = vunpack.c.l.b16 %v4452
    %v4521 = vunpack.c.l.b16 %v4453
    %v4522 = vunpack.c.l.b16 %v4454
    %v4523 = vunpack.c.l.b16 %v4455
    %v4524 = vunpack.c.l.b16 %v4456
    %v4525 = vunpack.c.l.b16 %v4457
    %v4526 = vunpack.c.l.b16 %v4458
    %v4527 = vunpack.c.l.b16 %v4459
    %v4528 = vunpack.c.l.b16 %v4460
    %v4529 = vunpack.c.l.b16 %v4461
    %v4530 = vunpack.c.l.b16 %v4462
    %v4531 = vunpack.c.l.b16 %v4463
    %v4532 = vunpack.c.l.b16 %v4464
    %v4533 = vunpack.c.l.b16 %v4465
    %v4534 = vunpack.c.l.b16 %v4466
    %v4535 = vunpack.c.l.b16 %v4467
    %v4536 = vunpack.c.l.b16 %v4468
    %v4537 = vunpack.c.l.b16 %v4469
    %v4538 = vunpack.c.l.b16 %v4470
    %v4539 = vunpack.c.l.b16 %v4471
    %v4540 = vunpack.c.l.b16 %v4472
    %v4541 = vunpack.c.l.b16 %v4473
    %v4542 = vunpack.c.l.b16 %v4474
    %v4543 = vunpack.c.l.b16 %v4475
    %v4544 = vunpack.c.l.b16 %v4476
    %v4545 = vunpack.c.l.b16 %v4477
    %v4546 = vunpack.c.l.b16 %v4478
    %v4547 = vunpack.c.l.b16 %v4479
    %v4548 = vunpack.c.l.b16 %v4480
    %v4549 = vpack.c.b16 %v4518, %v4517
    %v4550 = vpack.c.b16 %v4520, %v4519
    %v4551 = vpack.c.b16 %v4522, %v4521
    %v4552 = vpack.c.b16 %v4524, %v4523
    %v4553 = vpack.c.b16 %v4526, %v4525
    %v4554 = vpack.c.b16 %v4528, %v4527
    %v4555 = vpack.c.b16 %v4530, %v4529
    %v4556 = vpack.c.b16 %v4532, %v4531
    %v4557 = vpack.c.b16 %v4534, %v4533
    %v4558 = vpack.c.b16 %v4536, %v4535
    %v4559 = vpack.c.b16 %v4538, %v4537
    %v4560 = vpack.c.b16 %v4540, %v4539
    %v4561 = vpack.c.b16 %v4542, %v4541
    %v4562 = vpack.c.b16 %v4544, %v4543
    %v4563 = vpack.c.b16 %v4546, %v4545
    %v4564 = vpack.c.b16 %v4548, %v4547
    %4581 = vmatpush.bf16.msra.mxu0 %v4556
    %4582 = vmatpush.bf16.msra.mxu0 %v4555
    %4583 = vmatpush.bf16.msra.mxu0 %v4554
    %4584 = vmatpush.bf16.msra.mxu0 %v4553
    %4585 = vmatpush.bf16.msra.mxu0 %v4552
    %4586 = vmatpush.bf16.msra.mxu0 %v4551
    %4587 = vmatpush.bf16.msra.mxu0 %v4550
    %4588 = vmatpush.bf16.msra.mxu0 %v4549
    %4589 = vmatmul.bf16.gmra.mxu0 %v4481
    %v4590 = vpop.f32.mrf.mxu0
    %v4591 = vadd.f32 0.0, %v4590
    %v4592 = vpop.f32.mrf.mxu0
    %4593 = vdwg.mxu0
    %4594 = vmatpush.bf16.msra.mxu0 %v4564
    %4595 = vmatpush.bf16.msra.mxu0 %v4563
    %4596 = vmatpush.bf16.msra.mxu0 %v4562
    %4597 = vmatpush.bf16.msra.mxu0 %v4561
    %4598 = vmatpush.bf16.msra.mxu0 %v4560
    %4599 = vmatpush.bf16.msra.mxu0 %v4559
    %4600 = vmatpush.bf16.msra.mxu0 %v4558
    %4601 = vmatpush.bf16.msra.mxu0 %v4557
    %4602 = vmatmul.bf16.gmra.mxu0 %v4482
    %v4603 = vpop.f32.mrf.mxu0
    %v4604 = vadd.f32 %v4591, %v4603
    %v4605 = vpop.f32.mrf.mxu0
    %4606 = vdwg.mxu0
    %v4607 = vadd.f32 %v4447, %v4604
    %s4608 = scalar_lea.vmem %s4, 896
    %v4609 = vld [vmem:[%s4608] sm:$0xf]
    %v4610 = vld [vmem:[%s4608 + $0x4] sm:$0xf]
    %v4611 = vld [vmem:[%s4608 + $0x8] sm:$0xf]
    %v4612 = vld [vmem:[%s4608 + $0xc] sm:$0xf]
    %v4613 = vld [vmem:[%s4608 + $0x10] sm:$0xf]
    %v4614 = vld [vmem:[%s4608 + $0x14] sm:$0xf]
    %v4615 = vld [vmem:[%s4608 + $0x18] sm:$0xf]
    %v4616 = vld [vmem:[%s4608 + $0x1c] sm:$0xf]
    %v4617 = vld [vmem:[%s4608 + $0x20] sm:$0xf]
    %v4618 = vld [vmem:[%s4608 + $0x24] sm:$0xf]
    %v4619 = vld [vmem:[%s4608 + $0x28] sm:$0xf]
    %v4620 = vld [vmem:[%s4608 + $0x2c] sm:$0xf]
    %v4621 = vld [vmem:[%s4608 + $0x30] sm:$0xf]
    %v4622 = vld [vmem:[%s4608 + $0x34] sm:$0xf]
    %v4623 = vld [vmem:[%s4608 + $0x38] sm:$0xf]
    %v4624 = vld [vmem:[%s4608 + $0x3c] sm:$0xf]
    %v4625 = vld [vmem:[%s4608 + $0x40] sm:$0xf]
    %v4626 = vld [vmem:[%s4608 + $0x44] sm:$0xf]
    %v4627 = vld [vmem:[%s4608 + $0x48] sm:$0xf]
    %v4628 = vld [vmem:[%s4608 + $0x4c] sm:$0xf]
    %v4629 = vld [vmem:[%s4608 + $0x50] sm:$0xf]
    %v4630 = vld [vmem:[%s4608 + $0x54] sm:$0xf]
    %v4631 = vld [vmem:[%s4608 + $0x58] sm:$0xf]
    %v4632 = vld [vmem:[%s4608 + $0x5c] sm:$0xf]
    %v4633 = vld [vmem:[%s4608 + $0x60] sm:$0xf]
    %v4634 = vld [vmem:[%s4608 + $0x64] sm:$0xf]
    %v4635 = vld [vmem:[%s4608 + $0x68] sm:$0xf]
    %v4636 = vld [vmem:[%s4608 + $0x6c] sm:$0xf]
    %v4637 = vld [vmem:[%s4608 + $0x70] sm:$0xf]
    %v4638 = vld [vmem:[%s4608 + $0x74] sm:$0xf]
    %v4639 = vld [vmem:[%s4608 + $0x78] sm:$0xf]
    %v4640 = vld [vmem:[%s4608 + $0x7c] sm:$0xf]
    %v4641 = vrot.slane %v3555, 3
    %v4642 = vrot.slane %v3558, 3
    %v4677 = vunpack.c.l.b16 %v4609
    %v4678 = vunpack.c.l.b16 %v4610
    %v4679 = vunpack.c.l.b16 %v4611
    %v4680 = vunpack.c.l.b16 %v4612
    %v4681 = vunpack.c.l.b16 %v4613
    %v4682 = vunpack.c.l.b16 %v4614
    %v4683 = vunpack.c.l.b16 %v4615
    %v4684 = vunpack.c.l.b16 %v4616
    %v4685 = vunpack.c.l.b16 %v4617
    %v4686 = vunpack.c.l.b16 %v4618
    %v4687 = vunpack.c.l.b16 %v4619
    %v4688 = vunpack.c.l.b16 %v4620
    %v4689 = vunpack.c.l.b16 %v4621
    %v4690 = vunpack.c.l.b16 %v4622
    %v4691 = vunpack.c.l.b16 %v4623
    %v4692 = vunpack.c.l.b16 %v4624
    %v4693 = vunpack.c.l.b16 %v4625
    %v4694 = vunpack.c.l.b16 %v4626
    %v4695 = vunpack.c.l.b16 %v4627
    %v4696 = vunpack.c.l.b16 %v4628
    %v4697 = vunpack.c.l.b16 %v4629
    %v4698 = vunpack.c.l.b16 %v4630
    %v4699 = vunpack.c.l.b16 %v4631
    %v4700 = vunpack.c.l.b16 %v4632
    %v4701 = vunpack.c.l.b16 %v4633
    %v4702 = vunpack.c.l.b16 %v4634
    %v4703 = vunpack.c.l.b16 %v4635
    %v4704 = vunpack.c.l.b16 %v4636
    %v4705 = vunpack.c.l.b16 %v4637
    %v4706 = vunpack.c.l.b16 %v4638
    %v4707 = vunpack.c.l.b16 %v4639
    %v4708 = vunpack.c.l.b16 %v4640
    %v4709 = vpack.c.b16 %v4678, %v4677
    %v4710 = vpack.c.b16 %v4680, %v4679
    %v4711 = vpack.c.b16 %v4682, %v4681
    %v4712 = vpack.c.b16 %v4684, %v4683
    %v4713 = vpack.c.b16 %v4686, %v4685
    %v4714 = vpack.c.b16 %v4688, %v4687
    %v4715 = vpack.c.b16 %v4690, %v4689
    %v4716 = vpack.c.b16 %v4692, %v4691
    %v4717 = vpack.c.b16 %v4694, %v4693
    %v4718 = vpack.c.b16 %v4696, %v4695
    %v4719 = vpack.c.b16 %v4698, %v4697
    %v4720 = vpack.c.b16 %v4700, %v4699
    %v4721 = vpack.c.b16 %v4702, %v4701
    %v4722 = vpack.c.b16 %v4704, %v4703
    %v4723 = vpack.c.b16 %v4706, %v4705
    %v4724 = vpack.c.b16 %v4708, %v4707
    %4741 = vmatpush.bf16.msra.mxu0 %v4716
    %4742 = vmatpush.bf16.msra.mxu0 %v4715
    %4743 = vmatpush.bf16.msra.mxu0 %v4714
    %4744 = vmatpush.bf16.msra.mxu0 %v4713
    %4745 = vmatpush.bf16.msra.mxu0 %v4712
    %4746 = vmatpush.bf16.msra.mxu0 %v4711
    %4747 = vmatpush.bf16.msra.mxu0 %v4710
    %4748 = vmatpush.bf16.msra.mxu0 %v4709
    %4749 = vmatmul.bf16.gmra.mxu0 %v4641
    %v4750 = vpop.f32.mrf.mxu0
    %v4751 = vadd.f32 0.0, %v4750
    %v4752 = vpop.f32.mrf.mxu0
    %4753 = vdwg.mxu0
    %4754 = vmatpush.bf16.msra.mxu0 %v4724
    %4755 = vmatpush.bf16.msra.mxu0 %v4723
    %4756 = vmatpush.bf16.msra.mxu0 %v4722
    %4757 = vmatpush.bf16.msra.mxu0 %v4721
    %4758 = vmatpush.bf16.msra.mxu0 %v4720
    %4759 = vmatpush.bf16.msra.mxu0 %v4719
    %4760 = vmatpush.bf16.msra.mxu0 %v4718
    %4761 = vmatpush.bf16.msra.mxu0 %v4717
    %4762 = vmatmul.bf16.gmra.mxu0 %v4642
    %v4763 = vpop.f32.mrf.mxu0
    %v4764 = vadd.f32 %v4751, %v4763
    %v4765 = vpop.f32.mrf.mxu0
    %4766 = vdwg.mxu0
    %v4767 = vadd.f32 %v4607, %v4764
    %v4768 = vadd.f32 %v4767, %v43
    %vm4769 = vcmp.gt.f32.partialorder %v4768, 0.0
    %v4770 = vmul.f32 %v4768, 0.1
    %v4771 = vsel %vm4769, %v4768, %v4770
    %v4772 = vld [vmem:[%s5] sm:$0xf]
    %v4773 = vld [vmem:[%s5 + $0x4] sm:$0xf]
    %v4774 = vld [vmem:[%s5 + $0x8] sm:$0xf]
    %v4775 = vld [vmem:[%s5 + $0xc] sm:$0xf]
    %v4776 = vld [vmem:[%s5 + $0x10] sm:$0xf]
    %v4777 = vld [vmem:[%s5 + $0x14] sm:$0xf]
    %v4778 = vld [vmem:[%s5 + $0x18] sm:$0xf]
    %v4779 = vld [vmem:[%s5 + $0x1c] sm:$0xf]
    %v4780 = vld [vmem:[%s5 + $0x20] sm:$0xf]
    %v4781 = vld [vmem:[%s5 + $0x24] sm:$0xf]
    %v4782 = vld [vmem:[%s5 + $0x28] sm:$0xf]
    %v4783 = vld [vmem:[%s5 + $0x2c] sm:$0xf]
    %v4784 = vld [vmem:[%s5 + $0x30] sm:$0xf]
    %v4785 = vld [vmem:[%s5 + $0x34] sm:$0xf]
    %v4786 = vld [vmem:[%s5 + $0x38] sm:$0xf]
    %v4787 = vld [vmem:[%s5 + $0x3c] sm:$0xf]
    %v4788 = vpack.c.bf16 %v4771, %v4771
    %v4805 = vunpack.c.l.b16 %v4772
    %v4806 = vunpack.c.l.b16 %v4773
    %v4807 = vunpack.c.l.b16 %v4774
    %v4808 = vunpack.c.l.b16 %v4775
    %v4809 = vunpack.c.l.b16 %v4776
    %v4810 = vunpack.c.l.b16 %v4777
    %v4811 = vunpack.c.l.b16 %v4778
    %v4812 = vunpack.c.l.b16 %v4779
    %v4813 = vunpack.c.l.b16 %v4780
    %v4814 = vunpack.c.l.b16 %v4781
    %v4815 = vunpack.c.l.b16 %v4782
    %v4816 = vunpack.c.l.b16 %v4783
    %v4817 = vunpack.c.l.b16 %v4784
    %v4818 = vunpack.c.l.b16 %v4785
    %v4819 = vunpack.c.l.b16 %v4786
    %v4820 = vunpack.c.l.b16 %v4787
    %v4821 = vpack.c.b16 %v4806, %v4805
    %v4822 = vpack.c.b16 %v4808, %v4807
    %v4823 = vpack.c.b16 %v4810, %v4809
    %v4824 = vpack.c.b16 %v4812, %v4811
    %v4825 = vpack.c.b16 %v4814, %v4813
    %v4826 = vpack.c.b16 %v4816, %v4815
    %v4827 = vpack.c.b16 %v4818, %v4817
    %v4828 = vpack.c.b16 %v4820, %v4819
    %4837 = vmatpush.bf16.msra.mxu0 %v4828
    %4838 = vmatpush.bf16.msra.mxu0 %v4827
    %4839 = vmatpush.bf16.msra.mxu0 %v4826
    %4840 = vmatpush.bf16.msra.mxu0 %v4825
    %4841 = vmatpush.bf16.msra.mxu0 %v4824
    %4842 = vmatpush.bf16.msra.mxu0 %v4823
    %4843 = vmatpush.bf16.msra.mxu0 %v4822
    %4844 = vmatpush.bf16.msra.mxu0 %v4821
    %4845 = vmatmul.bf16.gmra.mxu0 %v4788
    %v4846 = vpop.f32.mrf.mxu0
    %v4847 = vadd.f32 %v44, %v4846
    %v4848 = vpop.f32.mrf.mxu0
    %4849 = vdwg.mxu0
    %4850 = vst [vmem:[#allocation2] sm:$0x1] %v4847
    %s4851 = scalar_lea.vmem %s0, 32
    %v4852 = vld [vmem:[%s4851] sm:$0xff]
    %v4853 = vld [vmem:[%s4851 + $0x8] sm:$0x3f]
    %v4854 = vld [vmem:[%s1] sm:$0xff]
    %v4855 = vld [vmem:[%s1 + $0x8] sm:$0xf]
    %v4856 = vld [vmem:[%s1 + $0xc] sm:$0xff]
    %v4857 = vld [vmem:[%s1 + $0x14] sm:$0xf]
    %v4858 = vld [vmem:[%s1 + $0x18] sm:$0xff]
    %v4859 = vld [vmem:[%s1 + $0x20] sm:$0xf]
    %v4860 = vld [vmem:[%s1 + $0x24] sm:$0x33]
    %v4861 = vld [vmem:[%s1 + $0x2c] sm:$0x3]
    %v4862 = vpack.c.bf16 %v4853, %v4852
    %s4863 = scalar_lea.vmem %s0, 48
    %v4864 = vld [vmem:[%s4863] sm:$0xff]
    %v4865 = vld [vmem:[%s4863 + $0x8] sm:$0x3f]
    %v4866 = vld [vmem:[%s59] sm:$0xff]
    %v4867 = vld [vmem:[%s59 + $0x8] sm:$0xf]
    %v4868 = vld [vmem:[%s59 + $0xc] sm:$0xff]
    %v4869 = vld [vmem:[%s59 + $0x14] sm:$0xf]
    %v4870 = vld [vmem:[%s59 + $0x18] sm:$0xff]
    %v4871 = vld [vmem:[%s59 + $0x20] sm:$0xf]
    %v4872 = vld [vmem:[%s59 + $0x24] sm:$0x33]
    %v4873 = vld [vmem:[%s59 + $0x2c] sm:$0x3]
    %v4874 = vpack.c.bf16 %v4865, %v4864
    %v4883 = vunpack.c.l.b16 %v4866
    %v4884 = vunpack.c.h.b16 %v4866
    %v4885 = vunpack.c.l.b16 %v4867
    %v4886 = vunpack.c.l.b16 %v4868
    %v4887 = vunpack.c.h.b16 %v4868
    %v4888 = vunpack.c.l.b16 %v4869
    %v4889 = vunpack.c.l.b16 %v4870
    %v4890 = vunpack.c.h.b16 %v4870
    %v4891 = vunpack.c.l.b16 %v4871
    %v4892 = vunpack.c.l.b16 %v4872
    %v4893 = vunpack.c.h.b16 %v4872
    %v4894 = vunpack.c.l.b16 %v4873
    %v4895 = vpack.c.b16 %v4886, %v4883
    %v4896 = vpack.c.b16 %v4887, %v4884
    %v4897 = vpack.c.b16 %v4888, %v4885
    %v4898 = vpack.c.b16 %v4892, %v4889
    %v4899 = vpack.c.b16 %v4893, %v4890
    %v4900 = vpack.c.b16 %v4894, %v4891
    %v4905 = vsel %vm98, %v4874, 0
    %v4908 = vsel %vm102, %v4898, 0
    %v4911 = vsel %vm102, %v4899, 0
    %v4914 = vsel %vm102, %v4900, 0
    %4916 = vmatpush.bf16.msra.mxu0 0
    %4917 = vmatpush.bf16.msra.mxu0 0
    %4918 = vmatpush.bf16.msra.mxu0 0
    %4919 = vmatpush.bf16.msra.mxu0 0
    %4920 = vmatpush.bf16.msra.mxu0 0
    %4921 = vmatpush.bf16.msra.mxu0 0
    %4922 = vmatpush.bf16.msra.mxu0 %v4908
    %4923 = vmatpush.bf16.msra.mxu0 %v4895
    %4924 = vmatmul.bf16.gmra.mxu0 %v4905
    %v4925 = vpop.f32.mrf.mxu0
    %v4926 = vadd.f32 0.0, %v4925
    %v4927 = vpop.f32.mrf.mxu0
    %v4928 = vadd.f32 0.0, %v4927
    %4929 = vdwg.mxu0
    %4930 = vmatpush.bf16.msra.mxu0 0
    %4931 = vmatpush.bf16.msra.mxu0 0
    %4932 = vmatpush.bf16.msra.mxu0 0
    %4933 = vmatpush.bf16.msra.mxu0 0
    %4934 = vmatpush.bf16.msra.mxu0 0
    %4935 = vmatpush.bf16.msra.mxu0 0
    %4936 = vmatpush.bf16.msra.mxu0 %v4911
    %4937 = vmatpush.bf16.msra.mxu0 %v4896
    %4938 = vmatmul.bf16.gmra.mxu0 %v4905
    %v4939 = vpop.f32.mrf.mxu0
    %v4940 = vadd.f32 0.0, %v4939
    %v4941 = vpop.f32.mrf.mxu0
    %v4942 = vadd.f32 0.0, %v4941
    %4943 = vdwg.mxu0
    %4944 = vmatpush.bf16.msra.mxu0 0
    %4945 = vmatpush.bf16.msra.mxu0 0
    %4946 = vmatpush.bf16.msra.mxu0 0
    %4947 = vmatpush.bf16.msra.mxu0 0
    %4948 = vmatpush.bf16.msra.mxu0 0
    %4949 = vmatpush.bf16.msra.mxu0 0
    %4950 = vmatpush.bf16.msra.mxu0 %v4914
    %4951 = vmatpush.bf16.msra.mxu0 %v4897
    %4952 = vmatmul.bf16.gmra.mxu0 %v4905
    %v4953 = vpop.f32.mrf.mxu0
    %v4954 = vadd.f32 0.0, %v4953
    %v4955 = vpop.f32.mrf.mxu0
    %v4956 = vadd.f32 0.0, %v4955
    %4957 = vdwg.mxu0
    %v4966 = vunpack.c.l.b16 %v4854
    %v4967 = vunpack.c.h.b16 %v4854
    %v4968 = vunpack.c.l.b16 %v4855
    %v4969 = vunpack.c.l.b16 %v4856
    %v4970 = vunpack.c.h.b16 %v4856
    %v4971 = vunpack.c.l.b16 %v4857
    %v4972 = vunpack.c.l.b16 %v4858
    %v4973 = vunpack.c.h.b16 %v4858
    %v4974 = vunpack.c.l.b16 %v4859
    %v4975 = vunpack.c.l.b16 %v4860
    %v4976 = vunpack.c.h.b16 %v4860
    %v4977 = vunpack.c.l.b16 %v4861
    %v4978 = vpack.c.b16 %v4969, %v4966
    %v4979 = vpack.c.b16 %v4970, %v4967
    %v4980 = vpack.c.b16 %v4971, %v4968
    %v4981 = vpack.c.b16 %v4975, %v4972
    %v4982 = vpack.c.b16 %v4976, %v4973
    %v4983 = vpack.c.b16 %v4977, %v4974
    %v4988 = vsel %vm98, %v4862, 0
    %v4991 = vsel %vm102, %v4981, 0
    %v4994 = vsel %vm102, %v4982, 0
    %v4997 = vsel %vm102, %v4983, 0
    %4999 = vmatpush.bf16.msra.mxu0 0
    %5000 = vmatpush.bf16.msra.mxu0 0
    %5001 = vmatpush.bf16.msra.mxu0 0
    %5002 = vmatpush.bf16.msra.mxu0 0
    %5003 = vmatpush.bf16.msra.mxu0 0
    %5004 = vmatpush.bf16.msra.mxu0 0
    %5005 = vmatpush.bf16.msra.mxu0 %v4991
    %5006 = vmatpush.bf16.msra.mxu0 %v4978
    %5007 = vmatmul.bf16.gmra.mxu0 %v4988
    %v5008 = vpop.f32.mrf.mxu0
    %v5009 = vadd.f32 %v4926, %v5008
    %v5010 = vpop.f32.mrf.mxu0
    %v5011 = vadd.f32 %v4928, %v5010
    %5012 = vdwg.mxu0
    %5013 = vmatpush.bf16.msra.mxu0 0
    %5014 = vmatpush.bf16.msra.mxu0 0
    %5015 = vmatpush.bf16.msra.mxu0 0
    %5016 = vmatpush.bf16.msra.mxu0 0
    %5017 = vmatpush.bf16.msra.mxu0 0
    %5018 = vmatpush.bf16.msra.mxu0 0
    %5019 = vmatpush.bf16.msra.mxu0 %v4994
    %5020 = vmatpush.bf16.msra.mxu0 %v4979
    %5021 = vmatmul.bf16.gmra.mxu0 %v4988
    %v5022 = vpop.f32.mrf.mxu0
    %v5023 = vadd.f32 %v4940, %v5022
    %v5024 = vpop.f32.mrf.mxu0
    %v5025 = vadd.f32 %v4942, %v5024
    %5026 = vdwg.mxu0
    %5027 = vmatpush.bf16.msra.mxu0 0
    %5028 = vmatpush.bf16.msra.mxu0 0
    %5029 = vmatpush.bf16.msra.mxu0 0
    %5030 = vmatpush.bf16.msra.mxu0 0
    %5031 = vmatpush.bf16.msra.mxu0 0
    %5032 = vmatpush.bf16.msra.mxu0 0
    %5033 = vmatpush.bf16.msra.mxu0 %v4997
    %5034 = vmatpush.bf16.msra.mxu0 %v4980
    %5035 = vmatmul.bf16.gmra.mxu0 %v4988
    %v5036 = vpop.f32.mrf.mxu0
    %v5037 = vadd.f32 %v4954, %v5036
    %v5038 = vpop.f32.mrf.mxu0
    %v5039 = vadd.f32 %v4956, %v5038
    %5040 = vdwg.mxu0
    %v5041 = vld [vmem:[%s237] sm:$0xff]
    %v5042 = vld [vmem:[%s237 + $0x8] sm:$0xf]
    %v5043 = vld [vmem:[%s237 + $0xc] sm:$0xff]
    %v5044 = vld [vmem:[%s237 + $0x14] sm:$0xf]
    %v5045 = vld [vmem:[%s237 + $0x18] sm:$0xff]
    %v5046 = vld [vmem:[%s237 + $0x20] sm:$0xf]
    %v5047 = vld [vmem:[%s237 + $0x24] sm:$0x33]
    %v5048 = vld [vmem:[%s237 + $0x2c] sm:$0x3]
    %v5049 = vshrl.u32 %v4862, 16
    %v5051 = vshll.u32 %v4862, 16
    %v5053 = vrot.slane %v5051, 1
    %v5054 = vor.u32 %v5049, %v5053
    %v5063 = vunpack.c.l.b16 %v5041
    %v5064 = vunpack.c.h.b16 %v5041
    %v5065 = vunpack.c.l.b16 %v5042
    %v5066 = vunpack.c.l.b16 %v5043
    %v5067 = vunpack.c.h.b16 %v5043
    %v5068 = vunpack.c.l.b16 %v5044
    %v5069 = vunpack.c.l.b16 %v5045
    %v5070 = vunpack.c.h.b16 %v5045
    %v5071 = vunpack.c.l.b16 %v5046
    %v5072 = vunpack.c.l.b16 %v5047
    %v5073 = vunpack.c.h.b16 %v5047
    %v5074 = vunpack.c.l.b16 %v5048
    %v5075 = vpack.c.b16 %v5066, %v5063
    %v5076 = vpack.c.b16 %v5067, %v5064
    %v5077 = vpack.c.b16 %v5068, %v5065
    %v5078 = vpack.c.b16 %v5072, %v5069
    %v5079 = vpack.c.b16 %v5073, %v5070
    %v5080 = vpack.c.b16 %v5074, %v5071
    %v5085 = vsel %vm98, %v5054, 0
    %v5088 = vsel %vm102, %v5078, 0
    %v5091 = vsel %vm102, %v5079, 0
    %v5094 = vsel %vm102, %v5080, 0
    %5096 = vmatpush.bf16.msra.mxu0 0
    %5097 = vmatpush.bf16.msra.mxu0 0
    %5098 = vmatpush.bf16.msra.mxu0 0
    %5099 = vmatpush.bf16.msra.mxu0 0
    %5100 = vmatpush.bf16.msra.mxu0 0
    %5101 = vmatpush.bf16.msra.mxu0 0
    %5102 = vmatpush.bf16.msra.mxu0 %v5088
    %5103 = vmatpush.bf16.msra.mxu0 %v5075
    %5104 = vmatmul.bf16.gmra.mxu0 %v5085
    %v5105 = vpop.f32.mrf.mxu0
    %v5106 = vadd.f32 0.0, %v5105
    %v5107 = vpop.f32.mrf.mxu0
    %v5108 = vadd.f32 0.0, %v5107
    %5109 = vdwg.mxu0
    %5110 = vmatpush.bf16.msra.mxu0 0
    %5111 = vmatpush.bf16.msra.mxu0 0
    %5112 = vmatpush.bf16.msra.mxu0 0
    %5113 = vmatpush.bf16.msra.mxu0 0
    %5114 = vmatpush.bf16.msra.mxu0 0
    %5115 = vmatpush.bf16.msra.mxu0 0
    %5116 = vmatpush.bf16.msra.mxu0 %v5091
    %5117 = vmatpush.bf16.msra.mxu0 %v5076
    %5118 = vmatmul.bf16.gmra.mxu0 %v5085
    %v5119 = vpop.f32.mrf.mxu0
    %v5120 = vadd.f32 0.0, %v5119
    %v5121 = vpop.f32.mrf.mxu0
    %v5122 = vadd.f32 0.0, %v5121
    %5123 = vdwg.mxu0
    %5124 = vmatpush.bf16.msra.mxu0 0
    %5125 = vmatpush.bf16.msra.mxu0 0
    %5126 = vmatpush.bf16.msra.mxu0 0
    %5127 = vmatpush.bf16.msra.mxu0 0
    %5128 = vmatpush.bf16.msra.mxu0 0
    %5129 = vmatpush.bf16.msra.mxu0 0
    %5130 = vmatpush.bf16.msra.mxu0 %v5094
    %5131 = vmatpush.bf16.msra.mxu0 %v5077
    %5132 = vmatmul.bf16.gmra.mxu0 %v5085
    %v5133 = vpop.f32.mrf.mxu0
    %v5134 = vadd.f32 0.0, %v5133
    %v5135 = vpop.f32.mrf.mxu0
    %v5136 = vadd.f32 0.0, %v5135
    %5137 = vdwg.mxu0
    %v5138 = vadd.f32 %v5009, %v5106
    %v5139 = vadd.f32 %v5023, %v5120
    %v5140 = vadd.f32 %v5037, %v5134
    %v5141 = vadd.f32 %v5011, %v5108
    %v5142 = vadd.f32 %v5025, %v5122
    %v5143 = vadd.f32 %v5039, %v5136
    %v5144 = vld [vmem:[%s341] sm:$0xff]
    %v5145 = vld [vmem:[%s341 + $0x8] sm:$0xf]
    %v5146 = vld [vmem:[%s341 + $0xc] sm:$0xff]
    %v5147 = vld [vmem:[%s341 + $0x14] sm:$0xf]
    %v5148 = vld [vmem:[%s341 + $0x18] sm:$0xff]
    %v5149 = vld [vmem:[%s341 + $0x20] sm:$0xf]
    %v5150 = vld [vmem:[%s341 + $0x24] sm:$0x33]
    %v5151 = vld [vmem:[%s341 + $0x2c] sm:$0x3]
    %v5152 = vshrl.u32 %v4874, 16
    %v5154 = vshll.u32 %v4874, 16
    %v5156 = vrot.slane %v5154, 1
    %v5157 = vor.u32 %v5152, %v5156
    %v5166 = vunpack.c.l.b16 %v5144
    %v5167 = vunpack.c.h.b16 %v5144
    %v5168 = vunpack.c.l.b16 %v5145
    %v5169 = vunpack.c.l.b16 %v5146
    %v5170 = vunpack.c.h.b16 %v5146
    %v5171 = vunpack.c.l.b16 %v5147
    %v5172 = vunpack.c.l.b16 %v5148
    %v5173 = vunpack.c.h.b16 %v5148
    %v5174 = vunpack.c.l.b16 %v5149
    %v5175 = vunpack.c.l.b16 %v5150
    %v5176 = vunpack.c.h.b16 %v5150
    %v5177 = vunpack.c.l.b16 %v5151
    %v5178 = vpack.c.b16 %v5169, %v5166
    %v5179 = vpack.c.b16 %v5170, %v5167
    %v5180 = vpack.c.b16 %v5171, %v5168
    %v5181 = vpack.c.b16 %v5175, %v5172
    %v5182 = vpack.c.b16 %v5176, %v5173
    %v5183 = vpack.c.b16 %v5177, %v5174
    %v5188 = vsel %vm98, %v5157, 0
    %v5191 = vsel %vm102, %v5181, 0
    %v5194 = vsel %vm102, %v5182, 0
    %v5197 = vsel %vm102, %v5183, 0
    %5199 = vmatpush.bf16.msra.mxu0 0
    %5200 = vmatpush.bf16.msra.mxu0 0
    %5201 = vmatpush.bf16.msra.mxu0 0
    %5202 = vmatpush.bf16.msra.mxu0 0
    %5203 = vmatpush.bf16.msra.mxu0 0
    %5204 = vmatpush.bf16.msra.mxu0 0
    %5205 = vmatpush.bf16.msra.mxu0 %v5191
    %5206 = vmatpush.bf16.msra.mxu0 %v5178
    %5207 = vmatmul.bf16.gmra.mxu0 %v5188
    %v5208 = vpop.f32.mrf.mxu0
    %v5209 = vadd.f32 0.0, %v5208
    %v5210 = vpop.f32.mrf.mxu0
    %v5211 = vadd.f32 0.0, %v5210
    %5212 = vdwg.mxu0
    %5213 = vmatpush.bf16.msra.mxu0 0
    %5214 = vmatpush.bf16.msra.mxu0 0
    %5215 = vmatpush.bf16.msra.mxu0 0
    %5216 = vmatpush.bf16.msra.mxu0 0
    %5217 = vmatpush.bf16.msra.mxu0 0
    %5218 = vmatpush.bf16.msra.mxu0 0
    %5219 = vmatpush.bf16.msra.mxu0 %v5194
    %5220 = vmatpush.bf16.msra.mxu0 %v5179
    %5221 = vmatmul.bf16.gmra.mxu0 %v5188
    %v5222 = vpop.f32.mrf.mxu0
    %v5223 = vadd.f32 0.0, %v5222
    %v5224 = vpop.f32.mrf.mxu0
    %v5225 = vadd.f32 0.0, %v5224
    %5226 = vdwg.mxu0
    %5227 = vmatpush.bf16.msra.mxu0 0
    %5228 = vmatpush.bf16.msra.mxu0 0
    %5229 = vmatpush.bf16.msra.mxu0 0
    %5230 = vmatpush.bf16.msra.mxu0 0
    %5231 = vmatpush.bf16.msra.mxu0 0
    %5232 = vmatpush.bf16.msra.mxu0 0
    %5233 = vmatpush.bf16.msra.mxu0 %v5197
    %5234 = vmatpush.bf16.msra.mxu0 %v5180
    %5235 = vmatmul.bf16.gmra.mxu0 %v5188
    %v5236 = vpop.f32.mrf.mxu0
    %v5237 = vadd.f32 0.0, %v5236
    %v5238 = vpop.f32.mrf.mxu0
    %v5239 = vadd.f32 0.0, %v5238
    %5240 = vdwg.mxu0
    %v5241 = vadd.f32 %v5138, %v5209
    %v5242 = vadd.f32 %v5139, %v5223
    %v5243 = vadd.f32 %v5140, %v5237
    %v5244 = vadd.f32 %v5141, %v5211
    %v5245 = vadd.f32 %v5142, %v5225
    %v5246 = vadd.f32 %v5143, %v5239
    %v5247 = vld [vmem:[%s445] sm:$0xff]
    %v5248 = vld [vmem:[%s445 + $0x8] sm:$0xf]
    %v5249 = vld [vmem:[%s445 + $0xc] sm:$0xff]
    %v5250 = vld [vmem:[%s445 + $0x14] sm:$0xf]
    %v5251 = vld [vmem:[%s445 + $0x18] sm:$0xff]
    %v5252 = vld [vmem:[%s445 + $0x20] sm:$0xf]
    %v5253 = vld [vmem:[%s445 + $0x24] sm:$0x33]
    %v5254 = vld [vmem:[%s445 + $0x2c] sm:$0x3]
    %v5256 = vrot.slane %v4862, 1
    %v5265 = vunpack.c.l.b16 %v5247
    %v5266 = vunpack.c.h.b16 %v5247
    %v5267 = vunpack.c.l.b16 %v5248
    %v5268 = vunpack.c.l.b16 %v5249
    %v5269 = vunpack.c.h.b16 %v5249
    %v5270 = vunpack.c.l.b16 %v5250
    %v5271 = vunpack.c.l.b16 %v5251
    %v5272 = vunpack.c.h.b16 %v5251
    %v5273 = vunpack.c.l.b16 %v5252
    %v5274 = vunpack.c.l.b16 %v5253
    %v5275 = vunpack.c.h.b16 %v5253
    %v5276 = vunpack.c.l.b16 %v5254
    %v5277 = vpack.c.b16 %v5268, %v5265
    %v5278 = vpack.c.b16 %v5269, %v5266
    %v5279 = vpack.c.b16 %v5270, %v5267
    %v5280 = vpack.c.b16 %v5274, %v5271
    %v5281 = vpack.c.b16 %v5275, %v5272
    %v5282 = vpack.c.b16 %v5276, %v5273
    %v5287 = vsel %vm98, %v5256, 0
    %v5290 = vsel %vm102, %v5280, 0
    %v5293 = vsel %vm102, %v5281, 0
    %v5296 = vsel %vm102, %v5282, 0
    %5298 = vmatpush.bf16.msra.mxu0 0
    %5299 = vmatpush.bf16.msra.mxu0 0
    %5300 = vmatpush.bf16.msra.mxu0 0
    %5301 = vmatpush.bf16.msra.mxu0 0
    %5302 = vmatpush.bf16.msra.mxu0 0
    %5303 = vmatpush.bf16.msra.mxu0 0
    %5304 = vmatpush.bf16.msra.mxu0 %v5290
    %5305 = vmatpush.bf16.msra.mxu0 %v5277
    %5306 = vmatmul.bf16.gmra.mxu0 %v5287
    %v5307 = vpop.f32.mrf.mxu0
    %v5308 = vadd.f32 0.0, %v5307
    %v5309 = vpop.f32.mrf.mxu0
    %v5310 = vadd.f32 0.0, %v5309
    %5311 = vdwg.mxu0
    %5312 = vmatpush.bf16.msra.mxu0 0
    %5313 = vmatpush.bf16.msra.mxu0 0
    %5314 = vmatpush.bf16.msra.mxu0 0
    %5315 = vmatpush.bf16.msra.mxu0 0
    %5316 = vmatpush.bf16.msra.mxu0 0
    %5317 = vmatpush.bf16.msra.mxu0 0
    %5318 = vmatpush.bf16.msra.mxu0 %v5293
    %5319 = vmatpush.bf16.msra.mxu0 %v5278
    %5320 = vmatmul.bf16.gmra.mxu0 %v5287
    %v5321 = vpop.f32.mrf.mxu0
    %v5322 = vadd.f32 0.0, %v5321
    %v5323 = vpop.f32.mrf.mxu0
    %v5324 = vadd.f32 0.0, %v5323
    %5325 = vdwg.mxu0
    %5326 = vmatpush.bf16.msra.mxu0 0
    %5327 = vmatpush.bf16.msra.mxu0 0
    %5328 = vmatpush.bf16.msra.mxu0 0
    %5329 = vmatpush.bf16.msra.mxu0 0
    %5330 = vmatpush.bf16.msra.mxu0 0
    %5331 = vmatpush.bf16.msra.mxu0 0
    %5332 = vmatpush.bf16.msra.mxu0 %v5296
    %5333 = vmatpush.bf16.msra.mxu0 %v5279
    %5334 = vmatmul.bf16.gmra.mxu0 %v5287
    %v5335 = vpop.f32.mrf.mxu0
    %v5336 = vadd.f32 0.0, %v5335
    %v5337 = vpop.f32.mrf.mxu0
    %v5338 = vadd.f32 0.0, %v5337
    %5339 = vdwg.mxu0
    %v5340 = vadd.f32 %v5241, %v5308
    %v5341 = vadd.f32 %v5242, %v5322
    %v5342 = vadd.f32 %v5243, %v5336
    %v5343 = vadd.f32 %v5244, %v5310
    %v5344 = vadd.f32 %v5245, %v5324
    %v5345 = vadd.f32 %v5246, %v5338
    %v5346 = vadd.f32 %v5340, %v546
    %v5347 = vadd.f32 %v5341, %v547
    %v5348 = vadd.f32 %v5342, %v548
    %v5349 = vadd.f32 %v5343, %v546
    %v5350 = vadd.f32 %v5344, %v547
    %v5351 = vadd.f32 %v5345, %v548
    %vm5352 = vcmp.gt.f32.partialorder %v5346, 0.0
    %vm5353 = vcmp.gt.f32.partialorder %v5347, 0.0
    %vm5354 = vcmp.gt.f32.partialorder %v5348, 0.0
    %vm5355 = vcmp.gt.f32.partialorder %v5349, 0.0
    %vm5356 = vcmp.gt.f32.partialorder %v5350, 0.0
    %vm5357 = vcmp.gt.f32.partialorder %v5351, 0.0
    %v5358 = vmul.f32 %v5346, 0.1
    %v5359 = vmul.f32 %v5347, 0.1
    %v5360 = vmul.f32 %v5348, 0.1
    %v5361 = vmul.f32 %v5349, 0.1
    %v5362 = vmul.f32 %v5350, 0.1
    %v5363 = vmul.f32 %v5351, 0.1
    %v5364 = vsel %vm5352, %v5346, %v5358
    %v5365 = vsel %vm5353, %v5347, %v5359
    %v5366 = vsel %vm5354, %v5348, %v5360
    %v5367 = vsel %vm5355, %v5349, %v5361
    %v5368 = vsel %vm5356, %v5350, %v5362
    %v5369 = vsel %vm5357, %v5351, %v5363
    %v5370 = vld [vmem:[%s2] sm:$0xff]
    %v5371 = vld [vmem:[%s2 + $0x8] sm:$0xf]
    %v5372 = vld [vmem:[%s2 + $0xc] sm:$0xff]
    %v5373 = vld [vmem:[%s2 + $0x14] sm:$0xf]
    %v5374 = vld [vmem:[%s2 + $0x18] sm:$0xff]
    %v5375 = vld [vmem:[%s2 + $0x20] sm:$0xf]
    %v5376 = vld [vmem:[%s2 + $0x24] sm:$0xff]
    %v5377 = vld [vmem:[%s2 + $0x2c] sm:$0xf]
    %v5378 = vld [vmem:[%s2 + $0x30] sm:$0xff]
    %v5379 = vld [vmem:[%s2 + $0x38] sm:$0xf]
    %v5380 = vld [vmem:[%s2 + $0x3c] sm:$0xff]
    %v5381 = vld [vmem:[%s2 + $0x44] sm:$0xf]
    %v5382 = vld [vmem:[%s2 + $0x48] sm:$0xff]
    %v5383 = vld [vmem:[%s2 + $0x50] sm:$0xf]
    %v5384 = vld [vmem:[%s2 + $0x54] sm:$0xff]
    %v5385 = vld [vmem:[%s2 + $0x5c] sm:$0xf]
    %v5386 = vld [vmem:[%s2 + $0x60] sm:$0xff]
    %v5387 = vld [vmem:[%s2 + $0x68] sm:$0xf]
    %v5388 = vld [vmem:[%s2 + $0x6c] sm:$0xff]
    %v5389 = vld [vmem:[%s2 + $0x74] sm:$0xf]
    %v5390 = vld [vmem:[%s2 + $0x78] sm:$0xff]
    %v5391 = vld [vmem:[%s2 + $0x80] sm:$0xf]
    %v5392 = vld [vmem:[%s2 + $0x84] sm:$0xff]
    %v5393 = vld [vmem:[%s2 + $0x8c] sm:$0xf]
    %v5394 = vld [vmem:[%s2 + $0x90] sm:$0xff]
    %v5395 = vld [vmem:[%s2 + $0x98] sm:$0xf]
    %v5396 = vld [vmem:[%s2 + $0x9c] sm:$0xff]
    %v5397 = vld [vmem:[%s2 + $0xa4] sm:$0xf]
    %v5398 = vld [vmem:[%s2 + $0xa8] sm:$0xff]
    %v5399 = vld [vmem:[%s2 + $0xb0] sm:$0xf]
    %v5400 = vld [vmem:[%s2 + $0xb4] sm:$0xff]
    %v5401 = vld [vmem:[%s2 + $0xbc] sm:$0xf]
    %v5402 = vld [vmem:[%s2 + $0xc0] sm:$0xff]
    %v5403 = vld [vmem:[%s2 + $0xc8] sm:$0xf]
    %v5404 = vld [vmem:[%s2 + $0xcc] sm:$0xff]
    %v5405 = vld [vmem:[%s2 + $0xd4] sm:$0xf]
    %v5406 = vld [vmem:[%s2 + $0xd8] sm:$0xff]
    %v5407 = vld [vmem:[%s2 + $0xe0] sm:$0xf]
    %v5408 = vld [vmem:[%s2 + $0xe4] sm:$0xff]
    %v5409 = vld [vmem:[%s2 + $0xec] sm:$0xf]
    %v5410 = vld [vmem:[%s2 + $0xf0] sm:$0xff]
    %v5411 = vld [vmem:[%s2 + $0xf8] sm:$0xf]
    %v5412 = vld [vmem:[%s2 + $0xfc] sm:$0xff]
    %v5413 = vld [vmem:[%s2 + $0x104] sm:$0xf]
    %v5414 = vld [vmem:[%s2 + $0x108] sm:$0xff]
    %v5415 = vld [vmem:[%s2 + $0x110] sm:$0xf]
    %v5416 = vld [vmem:[%s2 + $0x114] sm:$0xff]
    %v5417 = vld [vmem:[%s2 + $0x11c] sm:$0xf]
    %v5418 = vld [vmem:[%s2 + $0x120] sm:$0xff]
    %v5419 = vld [vmem:[%s2 + $0x128] sm:$0xf]
    %v5420 = vld [vmem:[%s2 + $0x12c] sm:$0xff]
    %v5421 = vld [vmem:[%s2 + $0x134] sm:$0xf]
    %v5422 = vld [vmem:[%s2 + $0x138] sm:$0xff]
    %v5423 = vld [vmem:[%s2 + $0x140] sm:$0xf]
    %v5424 = vld [vmem:[%s2 + $0x144] sm:$0xff]
    %v5425 = vld [vmem:[%s2 + $0x14c] sm:$0xf]
    %v5426 = vld [vmem:[%s2 + $0x150] sm:$0xff]
    %v5427 = vld [vmem:[%s2 + $0x158] sm:$0xf]
    %v5428 = vld [vmem:[%s2 + $0x15c] sm:$0xff]
    %v5429 = vld [vmem:[%s2 + $0x164] sm:$0xf]
    %v5430 = vld [vmem:[%s2 + $0x168] sm:$0xff]
    %v5431 = vld [vmem:[%s2 + $0x170] sm:$0xf]
    %v5432 = vld [vmem:[%s2 + $0x174] sm:$0xff]
    %v5433 = vld [vmem:[%s2 + $0x17c] sm:$0xf]
    %v5434 = vld [vmem:[%s2 + $0x180] sm:$0xff]
    %v5435 = vld [vmem:[%s2 + $0x188] sm:$0xf]
    %v5436 = vld [vmem:[%s2 + $0x18c] sm:$0xff]
    %v5437 = vld [vmem:[%s2 + $0x194] sm:$0xf]
    %v5438 = vld [vmem:[%s2 + $0x198] sm:$0xff]
    %v5439 = vld [vmem:[%s2 + $0x1a0] sm:$0xf]
    %v5440 = vld [vmem:[%s2 + $0x1a4] sm:$0xff]
    %v5441 = vld [vmem:[%s2 + $0x1ac] sm:$0xf]
    %v5442 = vld [vmem:[%s2 + $0x1b0] sm:$0xff]
    %v5443 = vld [vmem:[%s2 + $0x1b8] sm:$0xf]
    %v5444 = vld [vmem:[%s2 + $0x1bc] sm:$0xff]
    %v5445 = vld [vmem:[%s2 + $0x1c4] sm:$0xf]
    %v5446 = vld [vmem:[%s2 + $0x1c8] sm:$0xff]
    %v5447 = vld [vmem:[%s2 + $0x1d0] sm:$0xf]
    %v5448 = vld [vmem:[%s2 + $0x1d4] sm:$0xff]
    %v5449 = vld [vmem:[%s2 + $0x1dc] sm:$0xf]
    %v5450 = vld [vmem:[%s2 + $0x1e0] sm:$0xff]
    %v5451 = vld [vmem:[%s2 + $0x1e8] sm:$0xf]
    %v5452 = vld [vmem:[%s2 + $0x1ec] sm:$0xff]
    %v5453 = vld [vmem:[%s2 + $0x1f4] sm:$0xf]
    %v5454 = vld [vmem:[%s2 + $0x1f8] sm:$0xff]
    %v5455 = vld [vmem:[%s2 + $0x200] sm:$0xf]
    %v5456 = vld [vmem:[%s2 + $0x204] sm:$0xff]
    %v5457 = vld [vmem:[%s2 + $0x20c] sm:$0xf]
    %v5458 = vld [vmem:[%s2 + $0x210] sm:$0xff]
    %v5459 = vld [vmem:[%s2 + $0x218] sm:$0xf]
    %v5460 = vld [vmem:[%s2 + $0x21c] sm:$0xff]
    %v5461 = vld [vmem:[%s2 + $0x224] sm:$0xf]
    %v5462 = vld [vmem:[%s2 + $0x228] sm:$0xff]
    %v5463 = vld [vmem:[%s2 + $0x230] sm:$0xf]
    %v5464 = vld [vmem:[%s2 + $0x234] sm:$0xff]
    %v5465 = vld [vmem:[%s2 + $0x23c] sm:$0xf]
    %v5466 = vpack.c.bf16 %v5367, %v5364
    %v5467 = vpack.c.bf16 %v5368, %v5365
    %v5468 = vpack.c.bf16 %v5369, %v5366
    %v5469 = vld [vmem:[%s675] sm:$0xff]
    %v5470 = vld [vmem:[%s675 + $0x8] sm:$0xf]
    %v5471 = vld [vmem:[%s675 + $0xc] sm:$0xff]
    %v5472 = vld [vmem:[%s675 + $0x14] sm:$0xf]
    %v5473 = vld [vmem:[%s675 + $0x18] sm:$0xff]
    %v5474 = vld [vmem:[%s675 + $0x20] sm:$0xf]
    %v5475 = vld [vmem:[%s675 + $0x24] sm:$0xff]
    %v5476 = vld [vmem:[%s675 + $0x2c] sm:$0xf]
    %v5477 = vld [vmem:[%s675 + $0x30] sm:$0xff]
    %v5478 = vld [vmem:[%s675 + $0x38] sm:$0xf]
    %v5479 = vld [vmem:[%s675 + $0x3c] sm:$0xff]
    %v5480 = vld [vmem:[%s675 + $0x44] sm:$0xf]
    %v5481 = vld [vmem:[%s675 + $0x48] sm:$0xff]
    %v5482 = vld [vmem:[%s675 + $0x50] sm:$0xf]
    %v5483 = vld [vmem:[%s675 + $0x54] sm:$0xff]
    %v5484 = vld [vmem:[%s675 + $0x5c] sm:$0xf]
    %v5485 = vld [vmem:[%s675 + $0x60] sm:$0xff]
    %v5486 = vld [vmem:[%s675 + $0x68] sm:$0xf]
    %v5487 = vld [vmem:[%s675 + $0x6c] sm:$0xff]
    %v5488 = vld [vmem:[%s675 + $0x74] sm:$0xf]
    %v5489 = vld [vmem:[%s675 + $0x78] sm:$0xff]
    %v5490 = vld [vmem:[%s675 + $0x80] sm:$0xf]
    %v5491 = vld [vmem:[%s675 + $0x84] sm:$0xff]
    %v5492 = vld [vmem:[%s675 + $0x8c] sm:$0xf]
    %v5493 = vld [vmem:[%s675 + $0x90] sm:$0xff]
    %v5494 = vld [vmem:[%s675 + $0x98] sm:$0xf]
    %v5495 = vld [vmem:[%s675 + $0x9c] sm:$0xff]
    %v5496 = vld [vmem:[%s675 + $0xa4] sm:$0xf]
    %v5497 = vld [vmem:[%s675 + $0xa8] sm:$0xff]
    %v5498 = vld [vmem:[%s675 + $0xb0] sm:$0xf]
    %v5499 = vld [vmem:[%s675 + $0xb4] sm:$0xff]
    %v5500 = vld [vmem:[%s675 + $0xbc] sm:$0xf]
    %v5501 = vld [vmem:[%s675 + $0xc0] sm:$0xff]
    %v5502 = vld [vmem:[%s675 + $0xc8] sm:$0xf]
    %v5503 = vld [vmem:[%s675 + $0xcc] sm:$0xff]
    %v5504 = vld [vmem:[%s675 + $0xd4] sm:$0xf]
    %v5505 = vld [vmem:[%s675 + $0xd8] sm:$0xff]
    %v5506 = vld [vmem:[%s675 + $0xe0] sm:$0xf]
    %v5507 = vld [vmem:[%s675 + $0xe4] sm:$0xff]
    %v5508 = vld [vmem:[%s675 + $0xec] sm:$0xf]
    %v5509 = vld [vmem:[%s675 + $0xf0] sm:$0xff]
    %v5510 = vld [vmem:[%s675 + $0xf8] sm:$0xf]
    %v5511 = vld [vmem:[%s675 + $0xfc] sm:$0xff]
    %v5512 = vld [vmem:[%s675 + $0x104] sm:$0xf]
    %v5513 = vld [vmem:[%s675 + $0x108] sm:$0xff]
    %v5514 = vld [vmem:[%s675 + $0x110] sm:$0xf]
    %v5515 = vld [vmem:[%s675 + $0x114] sm:$0xff]
    %v5516 = vld [vmem:[%s675 + $0x11c] sm:$0xf]
    %v5517 = vld [vmem:[%s675 + $0x120] sm:$0xff]
    %v5518 = vld [vmem:[%s675 + $0x128] sm:$0xf]
    %v5519 = vld [vmem:[%s675 + $0x12c] sm:$0xff]
    %v5520 = vld [vmem:[%s675 + $0x134] sm:$0xf]
    %v5521 = vld [vmem:[%s675 + $0x138] sm:$0xff]
    %v5522 = vld [vmem:[%s675 + $0x140] sm:$0xf]
    %v5523 = vld [vmem:[%s675 + $0x144] sm:$0xff]
    %v5524 = vld [vmem:[%s675 + $0x14c] sm:$0xf]
    %v5525 = vld [vmem:[%s675 + $0x150] sm:$0xff]
    %v5526 = vld [vmem:[%s675 + $0x158] sm:$0xf]
    %v5527 = vld [vmem:[%s675 + $0x15c] sm:$0xff]
    %v5528 = vld [vmem:[%s675 + $0x164] sm:$0xf]
    %v5529 = vld [vmem:[%s675 + $0x168] sm:$0xff]
    %v5530 = vld [vmem:[%s675 + $0x170] sm:$0xf]
    %v5531 = vld [vmem:[%s675 + $0x174] sm:$0xff]
    %v5532 = vld [vmem:[%s675 + $0x17c] sm:$0xf]
    %v5533 = vld [vmem:[%s675 + $0x180] sm:$0xff]
    %v5534 = vld [vmem:[%s675 + $0x188] sm:$0xf]
    %v5535 = vld [vmem:[%s675 + $0x18c] sm:$0xff]
    %v5536 = vld [vmem:[%s675 + $0x194] sm:$0xf]
    %v5537 = vld [vmem:[%s675 + $0x198] sm:$0xff]
    %v5538 = vld [vmem:[%s675 + $0x1a0] sm:$0xf]
    %v5539 = vld [vmem:[%s675 + $0x1a4] sm:$0xff]
    %v5540 = vld [vmem:[%s675 + $0x1ac] sm:$0xf]
    %v5541 = vld [vmem:[%s675 + $0x1b0] sm:$0xff]
    %v5542 = vld [vmem:[%s675 + $0x1b8] sm:$0xf]
    %v5543 = vld [vmem:[%s675 + $0x1bc] sm:$0xff]
    %v5544 = vld [vmem:[%s675 + $0x1c4] sm:$0xf]
    %v5545 = vld [vmem:[%s675 + $0x1c8] sm:$0xff]
    %v5546 = vld [vmem:[%s675 + $0x1d0] sm:$0xf]
    %v5547 = vld [vmem:[%s675 + $0x1d4] sm:$0xff]
    %v5548 = vld [vmem:[%s675 + $0x1dc] sm:$0xf]
    %v5549 = vld [vmem:[%s675 + $0x1e0] sm:$0xff]
    %v5550 = vld [vmem:[%s675 + $0x1e8] sm:$0xf]
    %v5551 = vld [vmem:[%s675 + $0x1ec] sm:$0xff]
    %v5552 = vld [vmem:[%s675 + $0x1f4] sm:$0xf]
    %v5553 = vld [vmem:[%s675 + $0x1f8] sm:$0xff]
    %v5554 = vld [vmem:[%s675 + $0x200] sm:$0xf]
    %v5555 = vld [vmem:[%s675 + $0x204] sm:$0xff]
    %v5556 = vld [vmem:[%s675 + $0x20c] sm:$0xf]
    %v5557 = vld [vmem:[%s675 + $0x210] sm:$0xff]
    %v5558 = vld [vmem:[%s675 + $0x218] sm:$0xf]
    %v5559 = vld [vmem:[%s675 + $0x21c] sm:$0xff]
    %v5560 = vld [vmem:[%s675 + $0x224] sm:$0xf]
    %v5561 = vld [vmem:[%s675 + $0x228] sm:$0xff]
    %v5562 = vld [vmem:[%s675 + $0x230] sm:$0xf]
    %v5563 = vld [vmem:[%s675 + $0x234] sm:$0xff]
    %v5564 = vld [vmem:[%s675 + $0x23c] sm:$0xf]
    %v5566 = vshrl.u32 %v5466, 16
    %v5568 = vshll.u32 %v5466, 16
    %v5570 = vrot.slane %v5568, 1
    %v5571 = vor.u32 %v5566, %v5570
    %v5573 = vshrl.u32 %v5467, 16
    %v5575 = vshll.u32 %v5467, 16
    %v5577 = vrot.slane %v5575, 1
    %v5578 = vor.u32 %v5573, %v5577
    %v5580 = vshrl.u32 %v5468, 16
    %v5582 = vshll.u32 %v5468, 16
    %v5584 = vrot.slane %v5582, 1
    %v5585 = vor.u32 %v5580, %v5584
    %v5685 = vunpack.c.l.b16 %v5469
    %v5686 = vunpack.c.h.b16 %v5469
    %v5687 = vunpack.c.l.b16 %v5470
    %v5688 = vunpack.c.l.b16 %v5471
    %v5689 = vunpack.c.h.b16 %v5471
    %v5690 = vunpack.c.l.b16 %v5472
    %v5691 = vunpack.c.l.b16 %v5473
    %v5692 = vunpack.c.h.b16 %v5473
    %v5693 = vunpack.c.l.b16 %v5474
    %v5694 = vunpack.c.l.b16 %v5475
    %v5695 = vunpack.c.h.b16 %v5475
    %v5696 = vunpack.c.l.b16 %v5476
    %v5697 = vunpack.c.l.b16 %v5477
    %v5698 = vunpack.c.h.b16 %v5477
    %v5699 = vunpack.c.l.b16 %v5478
    %v5700 = vunpack.c.l.b16 %v5479
    %v5701 = vunpack.c.h.b16 %v5479
    %v5702 = vunpack.c.l.b16 %v5480
    %v5703 = vunpack.c.l.b16 %v5481
    %v5704 = vunpack.c.h.b16 %v5481
    %v5705 = vunpack.c.l.b16 %v5482
    %v5706 = vunpack.c.l.b16 %v5483
    %v5707 = vunpack.c.h.b16 %v5483
    %v5708 = vunpack.c.l.b16 %v5484
    %v5709 = vunpack.c.l.b16 %v5485
    %v5710 = vunpack.c.h.b16 %v5485
    %v5711 = vunpack.c.l.b16 %v5486
    %v5712 = vunpack.c.l.b16 %v5487
    %v5713 = vunpack.c.h.b16 %v5487
    %v5714 = vunpack.c.l.b16 %v5488
    %v5715 = vunpack.c.l.b16 %v5489
    %v5716 = vunpack.c.h.b16 %v5489
    %v5717 = vunpack.c.l.b16 %v5490
    %v5718 = vunpack.c.l.b16 %v5491
    %v5719 = vunpack.c.h.b16 %v5491
    %v5720 = vunpack.c.l.b16 %v5492
    %v5721 = vunpack.c.l.b16 %v5493
    %v5722 = vunpack.c.h.b16 %v5493
    %v5723 = vunpack.c.l.b16 %v5494
    %v5724 = vunpack.c.l.b16 %v5495
    %v5725 = vunpack.c.h.b16 %v5495
    %v5726 = vunpack.c.l.b16 %v5496
    %v5727 = vunpack.c.l.b16 %v5497
    %v5728 = vunpack.c.h.b16 %v5497
    %v5729 = vunpack.c.l.b16 %v5498
    %v5730 = vunpack.c.l.b16 %v5499
    %v5731 = vunpack.c.h.b16 %v5499
    %v5732 = vunpack.c.l.b16 %v5500
    %v5733 = vunpack.c.l.b16 %v5501
    %v5734 = vunpack.c.h.b16 %v5501
    %v5735 = vunpack.c.l.b16 %v5502
    %v5736 = vunpack.c.l.b16 %v5503
    %v5737 = vunpack.c.h.b16 %v5503
    %v5738 = vunpack.c.l.b16 %v5504
    %v5739 = vunpack.c.l.b16 %v5505
    %v5740 = vunpack.c.h.b16 %v5505
    %v5741 = vunpack.c.l.b16 %v5506
    %v5742 = vunpack.c.l.b16 %v5507
    %v5743 = vunpack.c.h.b16 %v5507
    %v5744 = vunpack.c.l.b16 %v5508
    %v5745 = vunpack.c.l.b16 %v5509
    %v5746 = vunpack.c.h.b16 %v5509
    %v5747 = vunpack.c.l.b16 %v5510
    %v5748 = vunpack.c.l.b16 %v5511
    %v5749 = vunpack.c.h.b16 %v5511
    %v5750 = vunpack.c.l.b16 %v5512
    %v5751 = vunpack.c.l.b16 %v5513
    %v5752 = vunpack.c.h.b16 %v5513
    %v5753 = vunpack.c.l.b16 %v5514
    %v5754 = vunpack.c.l.b16 %v5515
    %v5755 = vunpack.c.h.b16 %v5515
    %v5756 = vunpack.c.l.b16 %v5516
    %v5757 = vunpack.c.l.b16 %v5517
    %v5758 = vunpack.c.h.b16 %v5517
    %v5759 = vunpack.c.l.b16 %v5518
    %v5760 = vunpack.c.l.b16 %v5519
    %v5761 = vunpack.c.h.b16 %v5519
    %v5762 = vunpack.c.l.b16 %v5520
    %v5763 = vunpack.c.l.b16 %v5521
    %v5764 = vunpack.c.h.b16 %v5521
    %v5765 = vunpack.c.l.b16 %v5522
    %v5766 = vunpack.c.l.b16 %v5523
    %v5767 = vunpack.c.h.b16 %v5523
    %v5768 = vunpack.c.l.b16 %v5524
    %v5769 = vunpack.c.l.b16 %v5525
    %v5770 = vunpack.c.h.b16 %v5525
    %v5771 = vunpack.c.l.b16 %v5526
    %v5772 = vunpack.c.l.b16 %v5527
    %v5773 = vunpack.c.h.b16 %v5527
    %v5774 = vunpack.c.l.b16 %v5528
    %v5775 = vunpack.c.l.b16 %v5529
    %v5776 = vunpack.c.h.b16 %v5529
    %v5777 = vunpack.c.l.b16 %v5530
    %v5778 = vunpack.c.l.b16 %v5531
    %v5779 = vunpack.c.h.b16 %v5531
    %v5780 = vunpack.c.l.b16 %v5532
    %v5781 = vunpack.c.l.b16 %v5533
    %v5782 = vunpack.c.h.b16 %v5533
    %v5783 = vunpack.c.l.b16 %v5534
    %v5784 = vunpack.c.l.b16 %v5535
    %v5785 = vunpack.c.h.b16 %v5535
    %v5786 = vunpack.c.l.b16 %v5536
    %v5787 = vunpack.c.l.b16 %v5537
    %v5788 = vunpack.c.h.b16 %v5537
    %v5789 = vunpack.c.l.b16 %v5538
    %v5790 = vunpack.c.l.b16 %v5539
    %v5791 = vunpack.c.h.b16 %v5539
    %v5792 = vunpack.c.l.b16 %v5540
    %v5793 = vunpack.c.l.b16 %v5541
    %v5794 = vunpack.c.h.b16 %v5541
    %v5795 = vunpack.c.l.b16 %v5542
    %v5796 = vunpack.c.l.b16 %v5543
    %v5797 = vunpack.c.h.b16 %v5543
    %v5798 = vunpack.c.l.b16 %v5544
    %v5799 = vunpack.c.l.b16 %v5545
    %v5800 = vunpack.c.h.b16 %v5545
    %v5801 = vunpack.c.l.b16 %v5546
    %v5802 = vunpack.c.l.b16 %v5547
    %v5803 = vunpack.c.h.b16 %v5547
    %v5804 = vunpack.c.l.b16 %v5548
    %v5805 = vunpack.c.l.b16 %v5549
    %v5806 = vunpack.c.h.b16 %v5549
    %v5807 = vunpack.c.l.b16 %v5550
    %v5808 = vunpack.c.l.b16 %v5551
    %v5809 = vunpack.c.h.b16 %v5551
    %v5810 = vunpack.c.l.b16 %v5552
    %v5811 = vunpack.c.l.b16 %v5553
    %v5812 = vunpack.c.h.b16 %v5553
    %v5813 = vunpack.c.l.b16 %v5554
    %v5814 = vunpack.c.l.b16 %v5555
    %v5815 = vunpack.c.h.b16 %v5555
    %v5816 = vunpack.c.l.b16 %v5556
    %v5817 = vunpack.c.l.b16 %v5557
    %v5818 = vunpack.c.h.b16 %v5557
    %v5819 = vunpack.c.l.b16 %v5558
    %v5820 = vunpack.c.l.b16 %v5559
    %v5821 = vunpack.c.h.b16 %v5559
    %v5822 = vunpack.c.l.b16 %v5560
    %v5823 = vunpack.c.l.b16 %v5561
    %v5824 = vunpack.c.h.b16 %v5561
    %v5825 = vunpack.c.l.b16 %v5562
    %v5826 = vunpack.c.l.b16 %v5563
    %v5827 = vunpack.c.h.b16 %v5563
    %v5828 = vunpack.c.l.b16 %v5564
    %v5829 = vpack.c.b16 %v5688, %v5685
    %v5830 = vpack.c.b16 %v5689, %v5686
    %v5831 = vpack.c.b16 %v5690, %v5687
    %v5832 = vpack.c.b16 %v5694, %v5691
    %v5833 = vpack.c.b16 %v5695, %v5692
    %v5834 = vpack.c.b16 %v5696, %v5693
    %v5835 = vpack.c.b16 %v5700, %v5697
    %v5836 = vpack.c.b16 %v5701, %v5698
    %v5837 = vpack.c.b16 %v5702, %v5699
    %v5838 = vpack.c.b16 %v5706, %v5703
    %v5839 = vpack.c.b16 %v5707, %v5704
    %v5840 = vpack.c.b16 %v5708, %v5705
    %v5841 = vpack.c.b16 %v5712, %v5709
    %v5842 = vpack.c.b16 %v5713, %v5710
    %v5843 = vpack.c.b16 %v5714, %v5711
    %v5844 = vpack.c.b16 %v5718, %v5715
    %v5845 = vpack.c.b16 %v5719, %v5716
    %v5846 = vpack.c.b16 %v5720, %v5717
    %v5847 = vpack.c.b16 %v5724, %v5721
    %v5848 = vpack.c.b16 %v5725, %v5722
    %v5849 = vpack.c.b16 %v5726, %v5723
    %v5850 = vpack.c.b16 %v5730, %v5727
    %v5851 = vpack.c.b16 %v5731, %v5728
    %v5852 = vpack.c.b16 %v5732, %v5729
    %v5853 = vpack.c.b16 %v5736, %v5733
    %v5854 = vpack.c.b16 %v5737, %v5734
    %v5855 = vpack.c.b16 %v5738, %v5735
    %v5856 = vpack.c.b16 %v5742, %v5739
    %v5857 = vpack.c.b16 %v5743, %v5740
    %v5858 = vpack.c.b16 %v5744, %v5741
    %v5859 = vpack.c.b16 %v5748, %v5745
    %v5860 = vpack.c.b16 %v5749, %v5746
    %v5861 = vpack.c.b16 %v5750, %v5747
    %v5862 = vpack.c.b16 %v5754, %v5751
    %v5863 = vpack.c.b16 %v5755, %v5752
    %v5864 = vpack.c.b16 %v5756, %v5753
    %v5865 = vpack.c.b16 %v5760, %v5757
    %v5866 = vpack.c.b16 %v5761, %v5758
    %v5867 = vpack.c.b16 %v5762, %v5759
    %v5868 = vpack.c.b16 %v5766, %v5763
    %v5869 = vpack.c.b16 %v5767, %v5764
    %v5870 = vpack.c.b16 %v5768, %v5765
    %v5871 = vpack.c.b16 %v5772, %v5769
    %v5872 = vpack.c.b16 %v5773, %v5770
    %v5873 = vpack.c.b16 %v5774, %v5771
    %v5874 = vpack.c.b16 %v5778, %v5775
    %v5875 = vpack.c.b16 %v5779, %v5776
    %v5876 = vpack.c.b16 %v5780, %v5777
    %v5877 = vpack.c.b16 %v5784, %v5781
    %v5878 = vpack.c.b16 %v5785, %v5782
    %v5879 = vpack.c.b16 %v5786, %v5783
    %v5880 = vpack.c.b16 %v5790, %v5787
    %v5881 = vpack.c.b16 %v5791, %v5788
    %v5882 = vpack.c.b16 %v5792, %v5789
    %v5883 = vpack.c.b16 %v5796, %v5793
    %v5884 = vpack.c.b16 %v5797, %v5794
    %v5885 = vpack.c.b16 %v5798, %v5795
    %v5886 = vpack.c.b16 %v5802, %v5799
    %v5887 = vpack.c.b16 %v5803, %v5800
    %v5888 = vpack.c.b16 %v5804, %v5801
    %v5889 = vpack.c.b16 %v5808, %v5805
    %v5890 = vpack.c.b16 %v5809, %v5806
    %v5891 = vpack.c.b16 %v5810, %v5807
    %v5892 = vpack.c.b16 %v5814, %v5811
    %v5893 = vpack.c.b16 %v5815, %v5812
    %v5894 = vpack.c.b16 %v5816, %v5813
    %v5895 = vpack.c.b16 %v5820, %v5817
    %v5896 = vpack.c.b16 %v5821, %v5818
    %v5897 = vpack.c.b16 %v5822, %v5819
    %v5898 = vpack.c.b16 %v5826, %v5823
    %v5899 = vpack.c.b16 %v5827, %v5824
    %v5900 = vpack.c.b16 %v5828, %v5825
    %5973 = vmatpush.bf16.msra.mxu0 %v5850
    %5974 = vmatpush.bf16.msra.mxu0 %v5847
    %5975 = vmatpush.bf16.msra.mxu0 %v5844
    %5976 = vmatpush.bf16.msra.mxu0 %v5841
    %5977 = vmatpush.bf16.msra.mxu0 %v5838
    %5978 = vmatpush.bf16.msra.mxu0 %v5835
    %5979 = vmatpush.bf16.msra.mxu0 %v5832
    %5980 = vmatpush.bf16.msra.mxu0 %v5829
    %5981 = vmatmul.bf16.gmra.mxu0 %v5571
    %v5982 = vpop.f32.mrf.mxu0
    %v5983 = vadd.f32 0.0, %v5982
    %v5984 = vpop.f32.mrf.mxu0
    %v5985 = vadd.f32 0.0, %v5984
    %5986 = vdwg.mxu0
    %5987 = vmatpush.bf16.msra.mxu0 %v5874
    %5988 = vmatpush.bf16.msra.mxu0 %v5871
    %5989 = vmatpush.bf16.msra.mxu0 %v5868
    %5990 = vmatpush.bf16.msra.mxu0 %v5865
    %5991 = vmatpush.bf16.msra.mxu0 %v5862
    %5992 = vmatpush.bf16.msra.mxu0 %v5859
    %5993 = vmatpush.bf16.msra.mxu0 %v5856
    %5994 = vmatpush.bf16.msra.mxu0 %v5853
    %5995 = vmatmul.bf16.gmra.mxu0 %v5578
    %v5996 = vpop.f32.mrf.mxu0
    %v5997 = vadd.f32 %v5983, %v5996
    %v5998 = vpop.f32.mrf.mxu0
    %v5999 = vadd.f32 %v5985, %v5998
    %6000 = vdwg.mxu0
    %6001 = vmatpush.bf16.msra.mxu0 %v5898
    %6002 = vmatpush.bf16.msra.mxu0 %v5895
    %6003 = vmatpush.bf16.msra.mxu0 %v5892
    %6004 = vmatpush.bf16.msra.mxu0 %v5889
    %6005 = vmatpush.bf16.msra.mxu0 %v5886
    %6006 = vmatpush.bf16.msra.mxu0 %v5883
    %6007 = vmatpush.bf16.msra.mxu0 %v5880
    %6008 = vmatpush.bf16.msra.mxu0 %v5877
    %6009 = vmatmul.bf16.gmra.mxu0 %v5585
    %v6010 = vpop.f32.mrf.mxu0
    %v6011 = vadd.f32 %v5997, %v6010
    %v6012 = vpop.f32.mrf.mxu0
    %v6013 = vadd.f32 %v5999, %v6012
    %6014 = vdwg.mxu0
    %6015 = vmatpush.bf16.msra.mxu0 %v5851
    %6016 = vmatpush.bf16.msra.mxu0 %v5848
    %6017 = vmatpush.bf16.msra.mxu0 %v5845
    %6018 = vmatpush.bf16.msra.mxu0 %v5842
    %6019 = vmatpush.bf16.msra.mxu0 %v5839
    %6020 = vmatpush.bf16.msra.mxu0 %v5836
    %6021 = vmatpush.bf16.msra.mxu0 %v5833
    %6022 = vmatpush.bf16.msra.mxu0 %v5830
    %6023 = vmatmul.bf16.gmra.mxu0 %v5571
    %v6024 = vpop.f32.mrf.mxu0
    %v6025 = vadd.f32 0.0, %v6024
    %v6026 = vpop.f32.mrf.mxu0
    %v6027 = vadd.f32 0.0, %v6026
    %6028 = vdwg.mxu0
    %6029 = vmatpush.bf16.msra.mxu0 %v5875
    %6030 = vmatpush.bf16.msra.mxu0 %v5872
    %6031 = vmatpush.bf16.msra.mxu0 %v5869
    %6032 = vmatpush.bf16.msra.mxu0 %v5866
    %6033 = vmatpush.bf16.msra.mxu0 %v5863
    %6034 = vmatpush.bf16.msra.mxu0 %v5860
    %6035 = vmatpush.bf16.msra.mxu0 %v5857
    %6036 = vmatpush.bf16.msra.mxu0 %v5854
    %6037 = vmatmul.bf16.gmra.mxu0 %v5578
    %v6038 = vpop.f32.mrf.mxu0
    %v6039 = vadd.f32 %v6025, %v6038
    %v6040 = vpop.f32.mrf.mxu0
    %v6041 = vadd.f32 %v6027, %v6040
    %6042 = vdwg.mxu0
    %6043 = vmatpush.bf16.msra.mxu0 %v5899
    %6044 = vmatpush.bf16.msra.mxu0 %v5896
    %6045 = vmatpush.bf16.msra.mxu0 %v5893
    %6046 = vmatpush.bf16.msra.mxu0 %v5890
    %6047 = vmatpush.bf16.msra.mxu0 %v5887
    %6048 = vmatpush.bf16.msra.mxu0 %v5884
    %6049 = vmatpush.bf16.msra.mxu0 %v5881
    %6050 = vmatpush.bf16.msra.mxu0 %v5878
    %6051 = vmatmul.bf16.gmra.mxu0 %v5585
    %v6052 = vpop.f32.mrf.mxu0
    %v6053 = vadd.f32 %v6039, %v6052
    %v6054 = vpop.f32.mrf.mxu0
    %v6055 = vadd.f32 %v6041, %v6054
    %6056 = vdwg.mxu0
    %6057 = vmatpush.bf16.msra.mxu0 %v5852
    %6058 = vmatpush.bf16.msra.mxu0 %v5849
    %6059 = vmatpush.bf16.msra.mxu0 %v5846
    %6060 = vmatpush.bf16.msra.mxu0 %v5843
    %6061 = vmatpush.bf16.msra.mxu0 %v5840
    %6062 = vmatpush.bf16.msra.mxu0 %v5837
    %6063 = vmatpush.bf16.msra.mxu0 %v5834
    %6064 = vmatpush.bf16.msra.mxu0 %v5831
    %6065 = vmatmul.bf16.gmra.mxu0 %v5571
    %v6066 = vpop.f32.mrf.mxu0
    %v6067 = vadd.f32 0.0, %v6066
    %v6068 = vpop.f32.mrf.mxu0
    %v6069 = vadd.f32 0.0, %v6068
    %6070 = vdwg.mxu0
    %6071 = vmatpush.bf16.msra.mxu0 %v5876
    %6072 = vmatpush.bf16.msra.mxu0 %v5873
    %6073 = vmatpush.bf16.msra.mxu0 %v5870
    %6074 = vmatpush.bf16.msra.mxu0 %v5867
    %6075 = vmatpush.bf16.msra.mxu0 %v5864
    %6076 = vmatpush.bf16.msra.mxu0 %v5861
    %6077 = vmatpush.bf16.msra.mxu0 %v5858
    %6078 = vmatpush.bf16.msra.mxu0 %v5855
    %6079 = vmatmul.bf16.gmra.mxu0 %v5578
    %v6080 = vpop.f32.mrf.mxu0
    %v6081 = vadd.f32 %v6067, %v6080
    %v6082 = vpop.f32.mrf.mxu0
    %v6083 = vadd.f32 %v6069, %v6082
    %6084 = vdwg.mxu0
    %6085 = vmatpush.bf16.msra.mxu0 %v5900
    %6086 = vmatpush.bf16.msra.mxu0 %v5897
    %6087 = vmatpush.bf16.msra.mxu0 %v5894
    %6088 = vmatpush.bf16.msra.mxu0 %v5891
    %6089 = vmatpush.bf16.msra.mxu0 %v5888
    %6090 = vmatpush.bf16.msra.mxu0 %v5885
    %6091 = vmatpush.bf16.msra.mxu0 %v5882
    %6092 = vmatpush.bf16.msra.mxu0 %v5879
    %6093 = vmatmul.bf16.gmra.mxu0 %v5585
    %v6094 = vpop.f32.mrf.mxu0
    %v6095 = vadd.f32 %v6081, %v6094
    %v6096 = vpop.f32.mrf.mxu0
    %v6097 = vadd.f32 %v6083, %v6096
    %6098 = vdwg.mxu0
    %v6195 = vunpack.c.l.b16 %v5370
    %v6196 = vunpack.c.h.b16 %v5370
    %v6197 = vunpack.c.l.b16 %v5371
    %v6198 = vunpack.c.l.b16 %v5372
    %v6199 = vunpack.c.h.b16 %v5372
    %v6200 = vunpack.c.l.b16 %v5373
    %v6201 = vunpack.c.l.b16 %v5374
    %v6202 = vunpack.c.h.b16 %v5374
    %v6203 = vunpack.c.l.b16 %v5375
    %v6204 = vunpack.c.l.b16 %v5376
    %v6205 = vunpack.c.h.b16 %v5376
    %v6206 = vunpack.c.l.b16 %v5377
    %v6207 = vunpack.c.l.b16 %v5378
    %v6208 = vunpack.c.h.b16 %v5378
    %v6209 = vunpack.c.l.b16 %v5379
    %v6210 = vunpack.c.l.b16 %v5380
    %v6211 = vunpack.c.h.b16 %v5380
    %v6212 = vunpack.c.l.b16 %v5381
    %v6213 = vunpack.c.l.b16 %v5382
    %v6214 = vunpack.c.h.b16 %v5382
    %v6215 = vunpack.c.l.b16 %v5383
    %v6216 = vunpack.c.l.b16 %v5384
    %v6217 = vunpack.c.h.b16 %v5384
    %v6218 = vunpack.c.l.b16 %v5385
    %v6219 = vunpack.c.l.b16 %v5386
    %v6220 = vunpack.c.h.b16 %v5386
    %v6221 = vunpack.c.l.b16 %v5387
    %v6222 = vunpack.c.l.b16 %v5388
    %v6223 = vunpack.c.h.b16 %v5388
    %v6224 = vunpack.c.l.b16 %v5389
    %v6225 = vunpack.c.l.b16 %v5390
    %v6226 = vunpack.c.h.b16 %v5390
    %v6227 = vunpack.c.l.b16 %v5391
    %v6228 = vunpack.c.l.b16 %v5392
    %v6229 = vunpack.c.h.b16 %v5392
    %v6230 = vunpack.c.l.b16 %v5393
    %v6231 = vunpack.c.l.b16 %v5394
    %v6232 = vunpack.c.h.b16 %v5394
    %v6233 = vunpack.c.l.b16 %v5395
    %v6234 = vunpack.c.l.b16 %v5396
    %v6235 = vunpack.c.h.b16 %v5396
    %v6236 = vunpack.c.l.b16 %v5397
    %v6237 = vunpack.c.l.b16 %v5398
    %v6238 = vunpack.c.h.b16 %v5398
    %v6239 = vunpack.c.l.b16 %v5399
    %v6240 = vunpack.c.l.b16 %v5400
    %v6241 = vunpack.c.h.b16 %v5400
    %v6242 = vunpack.c.l.b16 %v5401
    %v6243 = vunpack.c.l.b16 %v5402
    %v6244 = vunpack.c.h.b16 %v5402
    %v6245 = vunpack.c.l.b16 %v5403
    %v6246 = vunpack.c.l.b16 %v5404
    %v6247 = vunpack.c.h.b16 %v5404
    %v6248 = vunpack.c.l.b16 %v5405
    %v6249 = vunpack.c.l.b16 %v5406
    %v6250 = vunpack.c.h.b16 %v5406
    %v6251 = vunpack.c.l.b16 %v5407
    %v6252 = vunpack.c.l.b16 %v5408
    %v6253 = vunpack.c.h.b16 %v5408
    %v6254 = vunpack.c.l.b16 %v5409
    %v6255 = vunpack.c.l.b16 %v5410
    %v6256 = vunpack.c.h.b16 %v5410
    %v6257 = vunpack.c.l.b16 %v5411
    %v6258 = vunpack.c.l.b16 %v5412
    %v6259 = vunpack.c.h.b16 %v5412
    %v6260 = vunpack.c.l.b16 %v5413
    %v6261 = vunpack.c.l.b16 %v5414
    %v6262 = vunpack.c.h.b16 %v5414
    %v6263 = vunpack.c.l.b16 %v5415
    %v6264 = vunpack.c.l.b16 %v5416
    %v6265 = vunpack.c.h.b16 %v5416
    %v6266 = vunpack.c.l.b16 %v5417
    %v6267 = vunpack.c.l.b16 %v5418
    %v6268 = vunpack.c.h.b16 %v5418
    %v6269 = vunpack.c.l.b16 %v5419
    %v6270 = vunpack.c.l.b16 %v5420
    %v6271 = vunpack.c.h.b16 %v5420
    %v6272 = vunpack.c.l.b16 %v5421
    %v6273 = vunpack.c.l.b16 %v5422
    %v6274 = vunpack.c.h.b16 %v5422
    %v6275 = vunpack.c.l.b16 %v5423
    %v6276 = vunpack.c.l.b16 %v5424
    %v6277 = vunpack.c.h.b16 %v5424
    %v6278 = vunpack.c.l.b16 %v5425
    %v6279 = vunpack.c.l.b16 %v5426
    %v6280 = vunpack.c.h.b16 %v5426
    %v6281 = vunpack.c.l.b16 %v5427
    %v6282 = vunpack.c.l.b16 %v5428
    %v6283 = vunpack.c.h.b16 %v5428
    %v6284 = vunpack.c.l.b16 %v5429
    %v6285 = vunpack.c.l.b16 %v5430
    %v6286 = vunpack.c.h.b16 %v5430
    %v6287 = vunpack.c.l.b16 %v5431
    %v6288 = vunpack.c.l.b16 %v5432
    %v6289 = vunpack.c.h.b16 %v5432
    %v6290 = vunpack.c.l.b16 %v5433
    %v6291 = vunpack.c.l.b16 %v5434
    %v6292 = vunpack.c.h.b16 %v5434
    %v6293 = vunpack.c.l.b16 %v5435
    %v6294 = vunpack.c.l.b16 %v5436
    %v6295 = vunpack.c.h.b16 %v5436
    %v6296 = vunpack.c.l.b16 %v5437
    %v6297 = vunpack.c.l.b16 %v5438
    %v6298 = vunpack.c.h.b16 %v5438
    %v6299 = vunpack.c.l.b16 %v5439
    %v6300 = vunpack.c.l.b16 %v5440
    %v6301 = vunpack.c.h.b16 %v5440
    %v6302 = vunpack.c.l.b16 %v5441
    %v6303 = vunpack.c.l.b16 %v5442
    %v6304 = vunpack.c.h.b16 %v5442
    %v6305 = vunpack.c.l.b16 %v5443
    %v6306 = vunpack.c.l.b16 %v5444
    %v6307 = vunpack.c.h.b16 %v5444
    %v6308 = vunpack.c.l.b16 %v5445
    %v6309 = vunpack.c.l.b16 %v5446
    %v6310 = vunpack.c.h.b16 %v5446
    %v6311 = vunpack.c.l.b16 %v5447
    %v6312 = vunpack.c.l.b16 %v5448
    %v6313 = vunpack.c.h.b16 %v5448
    %v6314 = vunpack.c.l.b16 %v5449
    %v6315 = vunpack.c.l.b16 %v5450
    %v6316 = vunpack.c.h.b16 %v5450
    %v6317 = vunpack.c.l.b16 %v5451
    %v6318 = vunpack.c.l.b16 %v5452
    %v6319 = vunpack.c.h.b16 %v5452
    %v6320 = vunpack.c.l.b16 %v5453
    %v6321 = vunpack.c.l.b16 %v5454
    %v6322 = vunpack.c.h.b16 %v5454
    %v6323 = vunpack.c.l.b16 %v5455
    %v6324 = vunpack.c.l.b16 %v5456
    %v6325 = vunpack.c.h.b16 %v5456
    %v6326 = vunpack.c.l.b16 %v5457
    %v6327 = vunpack.c.l.b16 %v5458
    %v6328 = vunpack.c.h.b16 %v5458
    %v6329 = vunpack.c.l.b16 %v5459
    %v6330 = vunpack.c.l.b16 %v5460
    %v6331 = vunpack.c.h.b16 %v5460
    %v6332 = vunpack.c.l.b16 %v5461
    %v6333 = vunpack.c.l.b16 %v5462
    %v6334 = vunpack.c.h.b16 %v5462
    %v6335 = vunpack.c.l.b16 %v5463
    %v6336 = vunpack.c.l.b16 %v5464
    %v6337 = vunpack.c.h.b16 %v5464
    %v6338 = vunpack.c.l.b16 %v5465
    %v6339 = vpack.c.b16 %v6198, %v6195
    %v6340 = vpack.c.b16 %v6199, %v6196
    %v6341 = vpack.c.b16 %v6200, %v6197
    %v6342 = vpack.c.b16 %v6204, %v6201
    %v6343 = vpack.c.b16 %v6205, %v6202
    %v6344 = vpack.c.b16 %v6206, %v6203
    %v6345 = vpack.c.b16 %v6210, %v6207
    %v6346 = vpack.c.b16 %v6211, %v6208
    %v6347 = vpack.c.b16 %v6212, %v6209
    %v6348 = vpack.c.b16 %v6216, %v6213
    %v6349 = vpack.c.b16 %v6217, %v6214
    %v6350 = vpack.c.b16 %v6218, %v6215
    %v6351 = vpack.c.b16 %v6222, %v6219
    %v6352 = vpack.c.b16 %v6223, %v6220
    %v6353 = vpack.c.b16 %v6224, %v6221
    %v6354 = vpack.c.b16 %v6228, %v6225
    %v6355 = vpack.c.b16 %v6229, %v6226
    %v6356 = vpack.c.b16 %v6230, %v6227
    %v6357 = vpack.c.b16 %v6234, %v6231
    %v6358 = vpack.c.b16 %v6235, %v6232
    %v6359 = vpack.c.b16 %v6236, %v6233
    %v6360 = vpack.c.b16 %v6240, %v6237
    %v6361 = vpack.c.b16 %v6241, %v6238
    %v6362 = vpack.c.b16 %v6242, %v6239
    %v6363 = vpack.c.b16 %v6246, %v6243
    %v6364 = vpack.c.b16 %v6247, %v6244
    %v6365 = vpack.c.b16 %v6248, %v6245
    %v6366 = vpack.c.b16 %v6252, %v6249
    %v6367 = vpack.c.b16 %v6253, %v6250
    %v6368 = vpack.c.b16 %v6254, %v6251
    %v6369 = vpack.c.b16 %v6258, %v6255
    %v6370 = vpack.c.b16 %v6259, %v6256
    %v6371 = vpack.c.b16 %v6260, %v6257
    %v6372 = vpack.c.b16 %v6264, %v6261
    %v6373 = vpack.c.b16 %v6265, %v6262
    %v6374 = vpack.c.b16 %v6266, %v6263
    %v6375 = vpack.c.b16 %v6270, %v6267
    %v6376 = vpack.c.b16 %v6271, %v6268
    %v6377 = vpack.c.b16 %v6272, %v6269
    %v6378 = vpack.c.b16 %v6276, %v6273
    %v6379 = vpack.c.b16 %v6277, %v6274
    %v6380 = vpack.c.b16 %v6278, %v6275
    %v6381 = vpack.c.b16 %v6282, %v6279
    %v6382 = vpack.c.b16 %v6283, %v6280
    %v6383 = vpack.c.b16 %v6284, %v6281
    %v6384 = vpack.c.b16 %v6288, %v6285
    %v6385 = vpack.c.b16 %v6289, %v6286
    %v6386 = vpack.c.b16 %v6290, %v6287
    %v6387 = vpack.c.b16 %v6294, %v6291
    %v6388 = vpack.c.b16 %v6295, %v6292
    %v6389 = vpack.c.b16 %v6296, %v6293
    %v6390 = vpack.c.b16 %v6300, %v6297
    %v6391 = vpack.c.b16 %v6301, %v6298
    %v6392 = vpack.c.b16 %v6302, %v6299
    %v6393 = vpack.c.b16 %v6306, %v6303
    %v6394 = vpack.c.b16 %v6307, %v6304
    %v6395 = vpack.c.b16 %v6308, %v6305
    %v6396 = vpack.c.b16 %v6312, %v6309
    %v6397 = vpack.c.b16 %v6313, %v6310
    %v6398 = vpack.c.b16 %v6314, %v6311
    %v6399 = vpack.c.b16 %v6318, %v6315
    %v6400 = vpack.c.b16 %v6319, %v6316
    %v6401 = vpack.c.b16 %v6320, %v6317
    %v6402 = vpack.c.b16 %v6324, %v6321
    %v6403 = vpack.c.b16 %v6325, %v6322
    %v6404 = vpack.c.b16 %v6326, %v6323
    %v6405 = vpack.c.b16 %v6330, %v6327
    %v6406 = vpack.c.b16 %v6331, %v6328
    %v6407 = vpack.c.b16 %v6332, %v6329
    %v6408 = vpack.c.b16 %v6336, %v6333
    %v6409 = vpack.c.b16 %v6337, %v6334
    %v6410 = vpack.c.b16 %v6338, %v6335
    %6483 = vmatpush.bf16.msra.mxu0 %v6360
    %6484 = vmatpush.bf16.msra.mxu0 %v6357
    %6485 = vmatpush.bf16.msra.mxu0 %v6354
    %6486 = vmatpush.bf16.msra.mxu0 %v6351
    %6487 = vmatpush.bf16.msra.mxu0 %v6348
    %6488 = vmatpush.bf16.msra.mxu0 %v6345
    %6489 = vmatpush.bf16.msra.mxu0 %v6342
    %6490 = vmatpush.bf16.msra.mxu0 %v6339
    %6491 = vmatmul.bf16.gmra.mxu0 %v5466
    %v6492 = vpop.f32.mrf.mxu0
    %v6493 = vadd.f32 %v6011, %v6492
    %v6494 = vpop.f32.mrf.mxu0
    %v6495 = vadd.f32 %v6013, %v6494
    %6496 = vdwg.mxu0
    %6497 = vmatpush.bf16.msra.mxu0 %v6384
    %6498 = vmatpush.bf16.msra.mxu0 %v6381
    %6499 = vmatpush.bf16.msra.mxu0 %v6378
    %6500 = vmatpush.bf16.msra.mxu0 %v6375
    %6501 = vmatpush.bf16.msra.mxu0 %v6372
    %6502 = vmatpush.bf16.msra.mxu0 %v6369
    %6503 = vmatpush.bf16.msra.mxu0 %v6366
    %6504 = vmatpush.bf16.msra.mxu0 %v6363
    %6505 = vmatmul.bf16.gmra.mxu0 %v5467
    %v6506 = vpop.f32.mrf.mxu0
    %v6507 = vadd.f32 %v6493, %v6506
    %v6508 = vpop.f32.mrf.mxu0
    %v6509 = vadd.f32 %v6495, %v6508
    %6510 = vdwg.mxu0
    %6511 = vmatpush.bf16.msra.mxu0 %v6408
    %6512 = vmatpush.bf16.msra.mxu0 %v6405
    %6513 = vmatpush.bf16.msra.mxu0 %v6402
    %6514 = vmatpush.bf16.msra.mxu0 %v6399
    %6515 = vmatpush.bf16.msra.mxu0 %v6396
    %6516 = vmatpush.bf16.msra.mxu0 %v6393
    %6517 = vmatpush.bf16.msra.mxu0 %v6390
    %6518 = vmatpush.bf16.msra.mxu0 %v6387
    %6519 = vmatmul.bf16.gmra.mxu0 %v5468
    %v6520 = vpop.f32.mrf.mxu0
    %v6521 = vadd.f32 %v6507, %v6520
    %v6522 = vpop.f32.mrf.mxu0
    %v6523 = vadd.f32 %v6509, %v6522
    %6524 = vdwg.mxu0
    %6525 = vmatpush.bf16.msra.mxu0 %v6361
    %6526 = vmatpush.bf16.msra.mxu0 %v6358
    %6527 = vmatpush.bf16.msra.mxu0 %v6355
    %6528 = vmatpush.bf16.msra.mxu0 %v6352
    %6529 = vmatpush.bf16.msra.mxu0 %v6349
    %6530 = vmatpush.bf16.msra.mxu0 %v6346
    %6531 = vmatpush.bf16.msra.mxu0 %v6343
    %6532 = vmatpush.bf16.msra.mxu0 %v6340
    %6533 = vmatmul.bf16.gmra.mxu0 %v5466
    %v6534 = vpop.f32.mrf.mxu0
    %v6535 = vadd.f32 %v6053, %v6534
    %v6536 = vpop.f32.mrf.mxu0
    %v6537 = vadd.f32 %v6055, %v6536
    %6538 = vdwg.mxu0
    %6539 = vmatpush.bf16.msra.mxu0 %v6385
    %6540 = vmatpush.bf16.msra.mxu0 %v6382
    %6541 = vmatpush.bf16.msra.mxu0 %v6379
    %6542 = vmatpush.bf16.msra.mxu0 %v6376
    %6543 = vmatpush.bf16.msra.mxu0 %v6373
    %6544 = vmatpush.bf16.msra.mxu0 %v6370
    %6545 = vmatpush.bf16.msra.mxu0 %v6367
    %6546 = vmatpush.bf16.msra.mxu0 %v6364
    %6547 = vmatmul.bf16.gmra.mxu0 %v5467
    %v6548 = vpop.f32.mrf.mxu0
    %v6549 = vadd.f32 %v6535, %v6548
    %v6550 = vpop.f32.mrf.mxu0
    %v6551 = vadd.f32 %v6537, %v6550
    %6552 = vdwg.mxu0
    %6553 = vmatpush.bf16.msra.mxu0 %v6409
    %6554 = vmatpush.bf16.msra.mxu0 %v6406
    %6555 = vmatpush.bf16.msra.mxu0 %v6403
    %6556 = vmatpush.bf16.msra.mxu0 %v6400
    %6557 = vmatpush.bf16.msra.mxu0 %v6397
    %6558 = vmatpush.bf16.msra.mxu0 %v6394
    %6559 = vmatpush.bf16.msra.mxu0 %v6391
    %6560 = vmatpush.bf16.msra.mxu0 %v6388
    %6561 = vmatmul.bf16.gmra.mxu0 %v5468
    %v6562 = vpop.f32.mrf.mxu0
    %v6563 = vadd.f32 %v6549, %v6562
    %v6564 = vpop.f32.mrf.mxu0
    %v6565 = vadd.f32 %v6551, %v6564
    %6566 = vdwg.mxu0
    %6567 = vmatpush.bf16.msra.mxu0 %v6362
    %6568 = vmatpush.bf16.msra.mxu0 %v6359
    %6569 = vmatpush.bf16.msra.mxu0 %v6356
    %6570 = vmatpush.bf16.msra.mxu0 %v6353
    %6571 = vmatpush.bf16.msra.mxu0 %v6350
    %6572 = vmatpush.bf16.msra.mxu0 %v6347
    %6573 = vmatpush.bf16.msra.mxu0 %v6344
    %6574 = vmatpush.bf16.msra.mxu0 %v6341
    %6575 = vmatmul.bf16.gmra.mxu0 %v5466
    %v6576 = vpop.f32.mrf.mxu0
    %v6577 = vadd.f32 %v6095, %v6576
    %v6578 = vpop.f32.mrf.mxu0
    %v6579 = vadd.f32 %v6097, %v6578
    %6580 = vdwg.mxu0
    %6581 = vmatpush.bf16.msra.mxu0 %v6386
    %6582 = vmatpush.bf16.msra.mxu0 %v6383
    %6583 = vmatpush.bf16.msra.mxu0 %v6380
    %6584 = vmatpush.bf16.msra.mxu0 %v6377
    %6585 = vmatpush.bf16.msra.mxu0 %v6374
    %6586 = vmatpush.bf16.msra.mxu0 %v6371
    %6587 = vmatpush.bf16.msra.mxu0 %v6368
    %6588 = vmatpush.bf16.msra.mxu0 %v6365
    %6589 = vmatmul.bf16.gmra.mxu0 %v5467
    %v6590 = vpop.f32.mrf.mxu0
    %v6591 = vadd.f32 %v6577, %v6590
    %v6592 = vpop.f32.mrf.mxu0
    %v6593 = vadd.f32 %v6579, %v6592
    %6594 = vdwg.mxu0
    %6595 = vmatpush.bf16.msra.mxu0 %v6410
    %6596 = vmatpush.bf16.msra.mxu0 %v6407
    %6597 = vmatpush.bf16.msra.mxu0 %v6404
    %6598 = vmatpush.bf16.msra.mxu0 %v6401
    %6599 = vmatpush.bf16.msra.mxu0 %v6398
    %6600 = vmatpush.bf16.msra.mxu0 %v6395
    %6601 = vmatpush.bf16.msra.mxu0 %v6392
    %6602 = vmatpush.bf16.msra.mxu0 %v6389
    %6603 = vmatmul.bf16.gmra.mxu0 %v5468
    %v6604 = vpop.f32.mrf.mxu0
    %v6605 = vadd.f32 %v6591, %v6604
    %v6606 = vpop.f32.mrf.mxu0
    %v6607 = vadd.f32 %v6593, %v6606
    %6608 = vdwg.mxu0
    %v6609 = vld [vmem:[%s1816] sm:$0xff]
    %v6610 = vld [vmem:[%s1816 + $0x8] sm:$0xf]
    %v6611 = vld [vmem:[%s1816 + $0xc] sm:$0xff]
    %v6612 = vld [vmem:[%s1816 + $0x14] sm:$0xf]
    %v6613 = vld [vmem:[%s1816 + $0x18] sm:$0xff]
    %v6614 = vld [vmem:[%s1816 + $0x20] sm:$0xf]
    %v6615 = vld [vmem:[%s1816 + $0x24] sm:$0xff]
    %v6616 = vld [vmem:[%s1816 + $0x2c] sm:$0xf]
    %v6617 = vld [vmem:[%s1816 + $0x30] sm:$0xff]
    %v6618 = vld [vmem:[%s1816 + $0x38] sm:$0xf]
    %v6619 = vld [vmem:[%s1816 + $0x3c] sm:$0xff]
    %v6620 = vld [vmem:[%s1816 + $0x44] sm:$0xf]
    %v6621 = vld [vmem:[%s1816 + $0x48] sm:$0xff]
    %v6622 = vld [vmem:[%s1816 + $0x50] sm:$0xf]
    %v6623 = vld [vmem:[%s1816 + $0x54] sm:$0xff]
    %v6624 = vld [vmem:[%s1816 + $0x5c] sm:$0xf]
    %v6625 = vld [vmem:[%s1816 + $0x60] sm:$0xff]
    %v6626 = vld [vmem:[%s1816 + $0x68] sm:$0xf]
    %v6627 = vld [vmem:[%s1816 + $0x6c] sm:$0xff]
    %v6628 = vld [vmem:[%s1816 + $0x74] sm:$0xf]
    %v6629 = vld [vmem:[%s1816 + $0x78] sm:$0xff]
    %v6630 = vld [vmem:[%s1816 + $0x80] sm:$0xf]
    %v6631 = vld [vmem:[%s1816 + $0x84] sm:$0xff]
    %v6632 = vld [vmem:[%s1816 + $0x8c] sm:$0xf]
    %v6633 = vld [vmem:[%s1816 + $0x90] sm:$0xff]
    %v6634 = vld [vmem:[%s1816 + $0x98] sm:$0xf]
    %v6635 = vld [vmem:[%s1816 + $0x9c] sm:$0xff]
    %v6636 = vld [vmem:[%s1816 + $0xa4] sm:$0xf]
    %v6637 = vld [vmem:[%s1816 + $0xa8] sm:$0xff]
    %v6638 = vld [vmem:[%s1816 + $0xb0] sm:$0xf]
    %v6639 = vld [vmem:[%s1816 + $0xb4] sm:$0xff]
    %v6640 = vld [vmem:[%s1816 + $0xbc] sm:$0xf]
    %v6641 = vld [vmem:[%s1816 + $0xc0] sm:$0xff]
    %v6642 = vld [vmem:[%s1816 + $0xc8] sm:$0xf]
    %v6643 = vld [vmem:[%s1816 + $0xcc] sm:$0xff]
    %v6644 = vld [vmem:[%s1816 + $0xd4] sm:$0xf]
    %v6645 = vld [vmem:[%s1816 + $0xd8] sm:$0xff]
    %v6646 = vld [vmem:[%s1816 + $0xe0] sm:$0xf]
    %v6647 = vld [vmem:[%s1816 + $0xe4] sm:$0xff]
    %v6648 = vld [vmem:[%s1816 + $0xec] sm:$0xf]
    %v6649 = vld [vmem:[%s1816 + $0xf0] sm:$0xff]
    %v6650 = vld [vmem:[%s1816 + $0xf8] sm:$0xf]
    %v6651 = vld [vmem:[%s1816 + $0xfc] sm:$0xff]
    %v6652 = vld [vmem:[%s1816 + $0x104] sm:$0xf]
    %v6653 = vld [vmem:[%s1816 + $0x108] sm:$0xff]
    %v6654 = vld [vmem:[%s1816 + $0x110] sm:$0xf]
    %v6655 = vld [vmem:[%s1816 + $0x114] sm:$0xff]
    %v6656 = vld [vmem:[%s1816 + $0x11c] sm:$0xf]
    %v6657 = vld [vmem:[%s1816 + $0x120] sm:$0xff]
    %v6658 = vld [vmem:[%s1816 + $0x128] sm:$0xf]
    %v6659 = vld [vmem:[%s1816 + $0x12c] sm:$0xff]
    %v6660 = vld [vmem:[%s1816 + $0x134] sm:$0xf]
    %v6661 = vld [vmem:[%s1816 + $0x138] sm:$0xff]
    %v6662 = vld [vmem:[%s1816 + $0x140] sm:$0xf]
    %v6663 = vld [vmem:[%s1816 + $0x144] sm:$0xff]
    %v6664 = vld [vmem:[%s1816 + $0x14c] sm:$0xf]
    %v6665 = vld [vmem:[%s1816 + $0x150] sm:$0xff]
    %v6666 = vld [vmem:[%s1816 + $0x158] sm:$0xf]
    %v6667 = vld [vmem:[%s1816 + $0x15c] sm:$0xff]
    %v6668 = vld [vmem:[%s1816 + $0x164] sm:$0xf]
    %v6669 = vld [vmem:[%s1816 + $0x168] sm:$0xff]
    %v6670 = vld [vmem:[%s1816 + $0x170] sm:$0xf]
    %v6671 = vld [vmem:[%s1816 + $0x174] sm:$0xff]
    %v6672 = vld [vmem:[%s1816 + $0x17c] sm:$0xf]
    %v6673 = vld [vmem:[%s1816 + $0x180] sm:$0xff]
    %v6674 = vld [vmem:[%s1816 + $0x188] sm:$0xf]
    %v6675 = vld [vmem:[%s1816 + $0x18c] sm:$0xff]
    %v6676 = vld [vmem:[%s1816 + $0x194] sm:$0xf]
    %v6677 = vld [vmem:[%s1816 + $0x198] sm:$0xff]
    %v6678 = vld [vmem:[%s1816 + $0x1a0] sm:$0xf]
    %v6679 = vld [vmem:[%s1816 + $0x1a4] sm:$0xff]
    %v6680 = vld [vmem:[%s1816 + $0x1ac] sm:$0xf]
    %v6681 = vld [vmem:[%s1816 + $0x1b0] sm:$0xff]
    %v6682 = vld [vmem:[%s1816 + $0x1b8] sm:$0xf]
    %v6683 = vld [vmem:[%s1816 + $0x1bc] sm:$0xff]
    %v6684 = vld [vmem:[%s1816 + $0x1c4] sm:$0xf]
    %v6685 = vld [vmem:[%s1816 + $0x1c8] sm:$0xff]
    %v6686 = vld [vmem:[%s1816 + $0x1d0] sm:$0xf]
    %v6687 = vld [vmem:[%s1816 + $0x1d4] sm:$0xff]
    %v6688 = vld [vmem:[%s1816 + $0x1dc] sm:$0xf]
    %v6689 = vld [vmem:[%s1816 + $0x1e0] sm:$0xff]
    %v6690 = vld [vmem:[%s1816 + $0x1e8] sm:$0xf]
    %v6691 = vld [vmem:[%s1816 + $0x1ec] sm:$0xff]
    %v6692 = vld [vmem:[%s1816 + $0x1f4] sm:$0xf]
    %v6693 = vld [vmem:[%s1816 + $0x1f8] sm:$0xff]
    %v6694 = vld [vmem:[%s1816 + $0x200] sm:$0xf]
    %v6695 = vld [vmem:[%s1816 + $0x204] sm:$0xff]
    %v6696 = vld [vmem:[%s1816 + $0x20c] sm:$0xf]
    %v6697 = vld [vmem:[%s1816 + $0x210] sm:$0xff]
    %v6698 = vld [vmem:[%s1816 + $0x218] sm:$0xf]
    %v6699 = vld [vmem:[%s1816 + $0x21c] sm:$0xff]
    %v6700 = vld [vmem:[%s1816 + $0x224] sm:$0xf]
    %v6701 = vld [vmem:[%s1816 + $0x228] sm:$0xff]
    %v6702 = vld [vmem:[%s1816 + $0x230] sm:$0xf]
    %v6703 = vld [vmem:[%s1816 + $0x234] sm:$0xff]
    %v6704 = vld [vmem:[%s1816 + $0x23c] sm:$0xf]
    %v6708 = vrot.slane %v5466, 1
    %v6709 = vrot.slane %v5467, 1
    %v6710 = vrot.slane %v5468, 1
    %v6810 = vunpack.c.l.b16 %v6609
    %v6811 = vunpack.c.h.b16 %v6609
    %v6812 = vunpack.c.l.b16 %v6610
    %v6813 = vunpack.c.l.b16 %v6611
    %v6814 = vunpack.c.h.b16 %v6611
    %v6815 = vunpack.c.l.b16 %v6612
    %v6816 = vunpack.c.l.b16 %v6613
    %v6817 = vunpack.c.h.b16 %v6613
    %v6818 = vunpack.c.l.b16 %v6614
    %v6819 = vunpack.c.l.b16 %v6615
    %v6820 = vunpack.c.h.b16 %v6615
    %v6821 = vunpack.c.l.b16 %v6616
    %v6822 = vunpack.c.l.b16 %v6617
    %v6823 = vunpack.c.h.b16 %v6617
    %v6824 = vunpack.c.l.b16 %v6618
    %v6825 = vunpack.c.l.b16 %v6619
    %v6826 = vunpack.c.h.b16 %v6619
    %v6827 = vunpack.c.l.b16 %v6620
    %v6828 = vunpack.c.l.b16 %v6621
    %v6829 = vunpack.c.h.b16 %v6621
    %v6830 = vunpack.c.l.b16 %v6622
    %v6831 = vunpack.c.l.b16 %v6623
    %v6832 = vunpack.c.h.b16 %v6623
    %v6833 = vunpack.c.l.b16 %v6624
    %v6834 = vunpack.c.l.b16 %v6625
    %v6835 = vunpack.c.h.b16 %v6625
    %v6836 = vunpack.c.l.b16 %v6626
    %v6837 = vunpack.c.l.b16 %v6627
    %v6838 = vunpack.c.h.b16 %v6627
    %v6839 = vunpack.c.l.b16 %v6628
    %v6840 = vunpack.c.l.b16 %v6629
    %v6841 = vunpack.c.h.b16 %v6629
    %v6842 = vunpack.c.l.b16 %v6630
    %v6843 = vunpack.c.l.b16 %v6631
    %v6844 = vunpack.c.h.b16 %v6631
    %v6845 = vunpack.c.l.b16 %v6632
    %v6846 = vunpack.c.l.b16 %v6633
    %v6847 = vunpack.c.h.b16 %v6633
    %v6848 = vunpack.c.l.b16 %v6634
    %v6849 = vunpack.c.l.b16 %v6635
    %v6850 = vunpack.c.h.b16 %v6635
    %v6851 = vunpack.c.l.b16 %v6636
    %v6852 = vunpack.c.l.b16 %v6637
    %v6853 = vunpack.c.h.b16 %v6637
    %v6854 = vunpack.c.l.b16 %v6638
    %v6855 = vunpack.c.l.b16 %v6639
    %v6856 = vunpack.c.h.b16 %v6639
    %v6857 = vunpack.c.l.b16 %v6640
    %v6858 = vunpack.c.l.b16 %v6641
    %v6859 = vunpack.c.h.b16 %v6641
    %v6860 = vunpack.c.l.b16 %v6642
    %v6861 = vunpack.c.l.b16 %v6643
    %v6862 = vunpack.c.h.b16 %v6643
    %v6863 = vunpack.c.l.b16 %v6644
    %v6864 = vunpack.c.l.b16 %v6645
    %v6865 = vunpack.c.h.b16 %v6645
    %v6866 = vunpack.c.l.b16 %v6646
    %v6867 = vunpack.c.l.b16 %v6647
    %v6868 = vunpack.c.h.b16 %v6647
    %v6869 = vunpack.c.l.b16 %v6648
    %v6870 = vunpack.c.l.b16 %v6649
    %v6871 = vunpack.c.h.b16 %v6649
    %v6872 = vunpack.c.l.b16 %v6650
    %v6873 = vunpack.c.l.b16 %v6651
    %v6874 = vunpack.c.h.b16 %v6651
    %v6875 = vunpack.c.l.b16 %v6652
    %v6876 = vunpack.c.l.b16 %v6653
    %v6877 = vunpack.c.h.b16 %v6653
    %v6878 = vunpack.c.l.b16 %v6654
    %v6879 = vunpack.c.l.b16 %v6655
    %v6880 = vunpack.c.h.b16 %v6655
    %v6881 = vunpack.c.l.b16 %v6656
    %v6882 = vunpack.c.l.b16 %v6657
    %v6883 = vunpack.c.h.b16 %v6657
    %v6884 = vunpack.c.l.b16 %v6658
    %v6885 = vunpack.c.l.b16 %v6659
    %v6886 = vunpack.c.h.b16 %v6659
    %v6887 = vunpack.c.l.b16 %v6660
    %v6888 = vunpack.c.l.b16 %v6661
    %v6889 = vunpack.c.h.b16 %v6661
    %v6890 = vunpack.c.l.b16 %v6662
    %v6891 = vunpack.c.l.b16 %v6663
    %v6892 = vunpack.c.h.b16 %v6663
    %v6893 = vunpack.c.l.b16 %v6664
    %v6894 = vunpack.c.l.b16 %v6665
    %v6895 = vunpack.c.h.b16 %v6665
    %v6896 = vunpack.c.l.b16 %v6666
    %v6897 = vunpack.c.l.b16 %v6667
    %v6898 = vunpack.c.h.b16 %v6667
    %v6899 = vunpack.c.l.b16 %v6668
    %v6900 = vunpack.c.l.b16 %v6669
    %v6901 = vunpack.c.h.b16 %v6669
    %v6902 = vunpack.c.l.b16 %v6670
    %v6903 = vunpack.c.l.b16 %v6671
    %v6904 = vunpack.c.h.b16 %v6671
    %v6905 = vunpack.c.l.b16 %v6672
    %v6906 = vunpack.c.l.b16 %v6673
    %v6907 = vunpack.c.h.b16 %v6673
    %v6908 = vunpack.c.l.b16 %v6674
    %v6909 = vunpack.c.l.b16 %v6675
    %v6910 = vunpack.c.h.b16 %v6675
    %v6911 = vunpack.c.l.b16 %v6676
    %v6912 = vunpack.c.l.b16 %v6677
    %v6913 = vunpack.c.h.b16 %v6677
    %v6914 = vunpack.c.l.b16 %v6678
    %v6915 = vunpack.c.l.b16 %v6679
    %v6916 = vunpack.c.h.b16 %v6679
    %v6917 = vunpack.c.l.b16 %v6680
    %v6918 = vunpack.c.l.b16 %v6681
    %v6919 = vunpack.c.h.b16 %v6681
    %v6920 = vunpack.c.l.b16 %v6682
    %v6921 = vunpack.c.l.b16 %v6683
    %v6922 = vunpack.c.h.b16 %v6683
    %v6923 = vunpack.c.l.b16 %v6684
    %v6924 = vunpack.c.l.b16 %v6685
    %v6925 = vunpack.c.h.b16 %v6685
    %v6926 = vunpack.c.l.b16 %v6686
    %v6927 = vunpack.c.l.b16 %v6687
    %v6928 = vunpack.c.h.b16 %v6687
    %v6929 = vunpack.c.l.b16 %v6688
    %v6930 = vunpack.c.l.b16 %v6689
    %v6931 = vunpack.c.h.b16 %v6689
    %v6932 = vunpack.c.l.b16 %v6690
    %v6933 = vunpack.c.l.b16 %v6691
    %v6934 = vunpack.c.h.b16 %v6691
    %v6935 = vunpack.c.l.b16 %v6692
    %v6936 = vunpack.c.l.b16 %v6693
    %v6937 = vunpack.c.h.b16 %v6693
    %v6938 = vunpack.c.l.b16 %v6694
    %v6939 = vunpack.c.l.b16 %v6695
    %v6940 = vunpack.c.h.b16 %v6695
    %v6941 = vunpack.c.l.b16 %v6696
    %v6942 = vunpack.c.l.b16 %v6697
    %v6943 = vunpack.c.h.b16 %v6697
    %v6944 = vunpack.c.l.b16 %v6698
    %v6945 = vunpack.c.l.b16 %v6699
    %v6946 = vunpack.c.h.b16 %v6699
    %v6947 = vunpack.c.l.b16 %v6700
    %v6948 = vunpack.c.l.b16 %v6701
    %v6949 = vunpack.c.h.b16 %v6701
    %v6950 = vunpack.c.l.b16 %v6702
    %v6951 = vunpack.c.l.b16 %v6703
    %v6952 = vunpack.c.h.b16 %v6703
    %v6953 = vunpack.c.l.b16 %v6704
    %v6954 = vpack.c.b16 %v6813, %v6810
    %v6955 = vpack.c.b16 %v6814, %v6811
    %v6956 = vpack.c.b16 %v6815, %v6812
    %v6957 = vpack.c.b16 %v6819, %v6816
    %v6958 = vpack.c.b16 %v6820, %v6817
    %v6959 = vpack.c.b16 %v6821, %v6818
    %v6960 = vpack.c.b16 %v6825, %v6822
    %v6961 = vpack.c.b16 %v6826, %v6823
    %v6962 = vpack.c.b16 %v6827, %v6824
    %v6963 = vpack.c.b16 %v6831, %v6828
    %v6964 = vpack.c.b16 %v6832, %v6829
    %v6965 = vpack.c.b16 %v6833, %v6830
    %v6966 = vpack.c.b16 %v6837, %v6834
    %v6967 = vpack.c.b16 %v6838, %v6835
    %v6968 = vpack.c.b16 %v6839, %v6836
    %v6969 = vpack.c.b16 %v6843, %v6840
    %v6970 = vpack.c.b16 %v6844, %v6841
    %v6971 = vpack.c.b16 %v6845, %v6842
    %v6972 = vpack.c.b16 %v6849, %v6846
    %v6973 = vpack.c.b16 %v6850, %v6847
    %v6974 = vpack.c.b16 %v6851, %v6848
    %v6975 = vpack.c.b16 %v6855, %v6852
    %v6976 = vpack.c.b16 %v6856, %v6853
    %v6977 = vpack.c.b16 %v6857, %v6854
    %v6978 = vpack.c.b16 %v6861, %v6858
    %v6979 = vpack.c.b16 %v6862, %v6859
    %v6980 = vpack.c.b16 %v6863, %v6860
    %v6981 = vpack.c.b16 %v6867, %v6864
    %v6982 = vpack.c.b16 %v6868, %v6865
    %v6983 = vpack.c.b16 %v6869, %v6866
    %v6984 = vpack.c.b16 %v6873, %v6870
    %v6985 = vpack.c.b16 %v6874, %v6871
    %v6986 = vpack.c.b16 %v6875, %v6872
    %v6987 = vpack.c.b16 %v6879, %v6876
    %v6988 = vpack.c.b16 %v6880, %v6877
    %v6989 = vpack.c.b16 %v6881, %v6878
    %v6990 = vpack.c.b16 %v6885, %v6882
    %v6991 = vpack.c.b16 %v6886, %v6883
    %v6992 = vpack.c.b16 %v6887, %v6884
    %v6993 = vpack.c.b16 %v6891, %v6888
    %v6994 = vpack.c.b16 %v6892, %v6889
    %v6995 = vpack.c.b16 %v6893, %v6890
    %v6996 = vpack.c.b16 %v6897, %v6894
    %v6997 = vpack.c.b16 %v6898, %v6895
    %v6998 = vpack.c.b16 %v6899, %v6896
    %v6999 = vpack.c.b16 %v6903, %v6900
    %v7000 = vpack.c.b16 %v6904, %v6901
    %v7001 = vpack.c.b16 %v6905, %v6902
    %v7002 = vpack.c.b16 %v6909, %v6906
    %v7003 = vpack.c.b16 %v6910, %v6907
    %v7004 = vpack.c.b16 %v6911, %v6908
    %v7005 = vpack.c.b16 %v6915, %v6912
    %v7006 = vpack.c.b16 %v6916, %v6913
    %v7007 = vpack.c.b16 %v6917, %v6914
    %v7008 = vpack.c.b16 %v6921, %v6918
    %v7009 = vpack.c.b16 %v6922, %v6919
    %v7010 = vpack.c.b16 %v6923, %v6920
    %v7011 = vpack.c.b16 %v6927, %v6924
    %v7012 = vpack.c.b16 %v6928, %v6925
    %v7013 = vpack.c.b16 %v6929, %v6926
    %v7014 = vpack.c.b16 %v6933, %v6930
    %v7015 = vpack.c.b16 %v6934, %v6931
    %v7016 = vpack.c.b16 %v6935, %v6932
    %v7017 = vpack.c.b16 %v6939, %v6936
    %v7018 = vpack.c.b16 %v6940, %v6937
    %v7019 = vpack.c.b16 %v6941, %v6938
    %v7020 = vpack.c.b16 %v6945, %v6942
    %v7021 = vpack.c.b16 %v6946, %v6943
    %v7022 = vpack.c.b16 %v6947, %v6944
    %v7023 = vpack.c.b16 %v6951, %v6948
    %v7024 = vpack.c.b16 %v6952, %v6949
    %v7025 = vpack.c.b16 %v6953, %v6950
    %7098 = vmatpush.bf16.msra.mxu0 %v6975
    %7099 = vmatpush.bf16.msra.mxu0 %v6972
    %7100 = vmatpush.bf16.msra.mxu0 %v6969
    %7101 = vmatpush.bf16.msra.mxu0 %v6966
    %7102 = vmatpush.bf16.msra.mxu0 %v6963
    %7103 = vmatpush.bf16.msra.mxu0 %v6960
    %7104 = vmatpush.bf16.msra.mxu0 %v6957
    %7105 = vmatpush.bf16.msra.mxu0 %v6954
    %7106 = vmatmul.bf16.gmra.mxu0 %v6708
    %v7107 = vpop.f32.mrf.mxu0
    %v7108 = vadd.f32 0.0, %v7107
    %v7109 = vpop.f32.mrf.mxu0
    %v7110 = vadd.f32 0.0, %v7109
    %7111 = vdwg.mxu0
    %7112 = vmatpush.bf16.msra.mxu0 %v6999
    %7113 = vmatpush.bf16.msra.mxu0 %v6996
    %7114 = vmatpush.bf16.msra.mxu0 %v6993
    %7115 = vmatpush.bf16.msra.mxu0 %v6990
    %7116 = vmatpush.bf16.msra.mxu0 %v6987
    %7117 = vmatpush.bf16.msra.mxu0 %v6984
    %7118 = vmatpush.bf16.msra.mxu0 %v6981
    %7119 = vmatpush.bf16.msra.mxu0 %v6978
    %7120 = vmatmul.bf16.gmra.mxu0 %v6709
    %v7121 = vpop.f32.mrf.mxu0
    %v7122 = vadd.f32 %v7108, %v7121
    %v7123 = vpop.f32.mrf.mxu0
    %v7124 = vadd.f32 %v7110, %v7123
    %7125 = vdwg.mxu0
    %7126 = vmatpush.bf16.msra.mxu0 %v7023
    %7127 = vmatpush.bf16.msra.mxu0 %v7020
    %7128 = vmatpush.bf16.msra.mxu0 %v7017
    %7129 = vmatpush.bf16.msra.mxu0 %v7014
    %7130 = vmatpush.bf16.msra.mxu0 %v7011
    %7131 = vmatpush.bf16.msra.mxu0 %v7008
    %7132 = vmatpush.bf16.msra.mxu0 %v7005
    %7133 = vmatpush.bf16.msra.mxu0 %v7002
    %7134 = vmatmul.bf16.gmra.mxu0 %v6710
    %v7135 = vpop.f32.mrf.mxu0
    %v7136 = vadd.f32 %v7122, %v7135
    %v7137 = vpop.f32.mrf.mxu0
    %v7138 = vadd.f32 %v7124, %v7137
    %7139 = vdwg.mxu0
    %7140 = vmatpush.bf16.msra.mxu0 %v6976
    %7141 = vmatpush.bf16.msra.mxu0 %v6973
    %7142 = vmatpush.bf16.msra.mxu0 %v6970
    %7143 = vmatpush.bf16.msra.mxu0 %v6967
    %7144 = vmatpush.bf16.msra.mxu0 %v6964
    %7145 = vmatpush.bf16.msra.mxu0 %v6961
    %7146 = vmatpush.bf16.msra.mxu0 %v6958
    %7147 = vmatpush.bf16.msra.mxu0 %v6955
    %7148 = vmatmul.bf16.gmra.mxu0 %v6708
    %v7149 = vpop.f32.mrf.mxu0
    %v7150 = vadd.f32 0.0, %v7149
    %v7151 = vpop.f32.mrf.mxu0
    %v7152 = vadd.f32 0.0, %v7151
    %7153 = vdwg.mxu0
    %7154 = vmatpush.bf16.msra.mxu0 %v7000
    %7155 = vmatpush.bf16.msra.mxu0 %v6997
    %7156 = vmatpush.bf16.msra.mxu0 %v6994
    %7157 = vmatpush.bf16.msra.mxu0 %v6991
    %7158 = vmatpush.bf16.msra.mxu0 %v6988
    %7159 = vmatpush.bf16.msra.mxu0 %v6985
    %7160 = vmatpush.bf16.msra.mxu0 %v6982
    %7161 = vmatpush.bf16.msra.mxu0 %v6979
    %7162 = vmatmul.bf16.gmra.mxu0 %v6709
    %v7163 = vpop.f32.mrf.mxu0
    %v7164 = vadd.f32 %v7150, %v7163
    %v7165 = vpop.f32.mrf.mxu0
    %v7166 = vadd.f32 %v7152, %v7165
    %7167 = vdwg.mxu0
    %7168 = vmatpush.bf16.msra.mxu0 %v7024
    %7169 = vmatpush.bf16.msra.mxu0 %v7021
    %7170 = vmatpush.bf16.msra.mxu0 %v7018
    %7171 = vmatpush.bf16.msra.mxu0 %v7015
    %7172 = vmatpush.bf16.msra.mxu0 %v7012
    %7173 = vmatpush.bf16.msra.mxu0 %v7009
    %7174 = vmatpush.bf16.msra.mxu0 %v7006
    %7175 = vmatpush.bf16.msra.mxu0 %v7003
    %7176 = vmatmul.bf16.gmra.mxu0 %v6710
    %v7177 = vpop.f32.mrf.mxu0
    %v7178 = vadd.f32 %v7164, %v7177
    %v7179 = vpop.f32.mrf.mxu0
    %v7180 = vadd.f32 %v7166, %v7179
    %7181 = vdwg.mxu0
    %7182 = vmatpush.bf16.msra.mxu0 %v6977
    %7183 = vmatpush.bf16.msra.mxu0 %v6974
    %7184 = vmatpush.bf16.msra.mxu0 %v6971
    %7185 = vmatpush.bf16.msra.mxu0 %v6968
    %7186 = vmatpush.bf16.msra.mxu0 %v6965
    %7187 = vmatpush.bf16.msra.mxu0 %v6962
    %7188 = vmatpush.bf16.msra.mxu0 %v6959
    %7189 = vmatpush.bf16.msra.mxu0 %v6956
    %7190 = vmatmul.bf16.gmra.mxu0 %v6708
    %v7191 = vpop.f32.mrf.mxu0
    %v7192 = vadd.f32 0.0, %v7191
    %v7193 = vpop.f32.mrf.mxu0
    %v7194 = vadd.f32 0.0, %v7193
    %7195 = vdwg.mxu0
    %7196 = vmatpush.bf16.msra.mxu0 %v7001
    %7197 = vmatpush.bf16.msra.mxu0 %v6998
    %7198 = vmatpush.bf16.msra.mxu0 %v6995
    %7199 = vmatpush.bf16.msra.mxu0 %v6992
    %7200 = vmatpush.bf16.msra.mxu0 %v6989
    %7201 = vmatpush.bf16.msra.mxu0 %v6986
    %7202 = vmatpush.bf16.msra.mxu0 %v6983
    %7203 = vmatpush.bf16.msra.mxu0 %v6980
    %7204 = vmatmul.bf16.gmra.mxu0 %v6709
    %v7205 = vpop.f32.mrf.mxu0
    %v7206 = vadd.f32 %v7192, %v7205
    %v7207 = vpop.f32.mrf.mxu0
    %v7208 = vadd.f32 %v7194, %v7207
    %7209 = vdwg.mxu0
    %7210 = vmatpush.bf16.msra.mxu0 %v7025
    %7211 = vmatpush.bf16.msra.mxu0 %v7022
    %7212 = vmatpush.bf16.msra.mxu0 %v7019
    %7213 = vmatpush.bf16.msra.mxu0 %v7016
    %7214 = vmatpush.bf16.msra.mxu0 %v7013
    %7215 = vmatpush.bf16.msra.mxu0 %v7010
    %7216 = vmatpush.bf16.msra.mxu0 %v7007
    %7217 = vmatpush.bf16.msra.mxu0 %v7004
    %7218 = vmatmul.bf16.gmra.mxu0 %v6710
    %v7219 = vpop.f32.mrf.mxu0
    %v7220 = vadd.f32 %v7206, %v7219
    %v7221 = vpop.f32.mrf.mxu0
    %v7222 = vadd.f32 %v7208, %v7221
    %7223 = vdwg.mxu0
    %v7224 = vadd.f32 %v6521, %v7136
    %v7225 = vadd.f32 %v6563, %v7178
    %v7226 = vadd.f32 %v6605, %v7220
    %v7227 = vadd.f32 %v6523, %v7138
    %v7228 = vadd.f32 %v6565, %v7180
    %v7229 = vadd.f32 %v6607, %v7222
    %v7230 = vadd.f32 %v7224, %v2439
    %v7231 = vadd.f32 %v7225, %v2440
    %v7232 = vadd.f32 %v7226, %v2441
    %v7233 = vadd.f32 %v7227, %v2439
    %v7234 = vadd.f32 %v7228, %v2440
    %v7235 = vadd.f32 %v7229, %v2441
    %vm7236 = vcmp.gt.f32.partialorder %v7230, 0.0
    %vm7237 = vcmp.gt.f32.partialorder %v7231, 0.0
    %vm7238 = vcmp.gt.f32.partialorder %v7232, 0.0
    %vm7239 = vcmp.gt.f32.partialorder %v7233, 0.0
    %vm7240 = vcmp.gt.f32.partialorder %v7234, 0.0
    %vm7241 = vcmp.gt.f32.partialorder %v7235, 0.0
    %v7242 = vmul.f32 %v7230, 0.1
    %v7243 = vmul.f32 %v7231, 0.1
    %v7244 = vmul.f32 %v7232, 0.1
    %v7245 = vmul.f32 %v7233, 0.1
    %v7246 = vmul.f32 %v7234, 0.1
    %v7247 = vmul.f32 %v7235, 0.1
    %v7248 = vsel %vm7236, %v7230, %v7242
    %v7249 = vsel %vm7237, %v7231, %v7243
    %v7250 = vsel %vm7238, %v7232, %v7244
    %v7251 = vsel %vm7239, %v7233, %v7245
    %v7252 = vsel %vm7240, %v7234, %v7246
    %v7253 = vsel %vm7241, %v7235, %v7247
    %v7254 = vld [vmem:[%s3] sm:$0xff]
    %v7255 = vld [vmem:[%s3 + $0x8] sm:$0xff]
    %v7256 = vld [vmem:[%s3 + $0x10] sm:$0xff]
    %v7257 = vld [vmem:[%s3 + $0x18] sm:$0xff]
    %v7258 = vld [vmem:[%s3 + $0x20] sm:$0xff]
    %v7259 = vld [vmem:[%s3 + $0x28] sm:$0xff]
    %v7260 = vld [vmem:[%s3 + $0x30] sm:$0xff]
    %v7261 = vld [vmem:[%s3 + $0x38] sm:$0xff]
    %v7262 = vld [vmem:[%s3 + $0x40] sm:$0xff]
    %v7263 = vld [vmem:[%s3 + $0x48] sm:$0xff]
    %v7264 = vld [vmem:[%s3 + $0x50] sm:$0xff]
    %v7265 = vld [vmem:[%s3 + $0x58] sm:$0xff]
    %v7266 = vld [vmem:[%s3 + $0x60] sm:$0xff]
    %v7267 = vld [vmem:[%s3 + $0x68] sm:$0xff]
    %v7268 = vld [vmem:[%s3 + $0x70] sm:$0xff]
    %v7269 = vld [vmem:[%s3 + $0x78] sm:$0xff]
    %v7270 = vld [vmem:[%s3 + $0x80] sm:$0xff]
    %v7271 = vld [vmem:[%s3 + $0x88] sm:$0xff]
    %v7272 = vld [vmem:[%s3 + $0x90] sm:$0xff]
    %v7273 = vld [vmem:[%s3 + $0x98] sm:$0xff]
    %v7274 = vld [vmem:[%s3 + $0xa0] sm:$0xff]
    %v7275 = vld [vmem:[%s3 + $0xa8] sm:$0xff]
    %v7276 = vld [vmem:[%s3 + $0xb0] sm:$0xff]
    %v7277 = vld [vmem:[%s3 + $0xb8] sm:$0xff]
    %v7278 = vld [vmem:[%s3 + $0xc0] sm:$0xff]
    %v7279 = vld [vmem:[%s3 + $0xc8] sm:$0xff]
    %v7280 = vld [vmem:[%s3 + $0xd0] sm:$0xff]
    %v7281 = vld [vmem:[%s3 + $0xd8] sm:$0xff]
    %v7282 = vld [vmem:[%s3 + $0xe0] sm:$0xff]
    %v7283 = vld [vmem:[%s3 + $0xe8] sm:$0xff]
    %v7284 = vld [vmem:[%s3 + $0xf0] sm:$0xff]
    %v7285 = vld [vmem:[%s3 + $0xf8] sm:$0xff]
    %v7286 = vld [vmem:[%s3 + $0x100] sm:$0xff]
    %v7287 = vld [vmem:[%s3 + $0x108] sm:$0xff]
    %v7288 = vld [vmem:[%s3 + $0x110] sm:$0xff]
    %v7289 = vld [vmem:[%s3 + $0x118] sm:$0xff]
    %v7290 = vld [vmem:[%s3 + $0x120] sm:$0xff]
    %v7291 = vld [vmem:[%s3 + $0x128] sm:$0xff]
    %v7292 = vld [vmem:[%s3 + $0x130] sm:$0xff]
    %v7293 = vld [vmem:[%s3 + $0x138] sm:$0xff]
    %v7294 = vpack.c.bf16 %v7248, %v7248
    %v7295 = vpack.c.bf16 %v7249, %v7249
    %v7296 = vpack.c.bf16 %v7250, %v7250
    %v7297 = vld [vmem:[%s2512] sm:$0xff]
    %v7298 = vld [vmem:[%s2512 + $0x8] sm:$0xff]
    %v7299 = vld [vmem:[%s2512 + $0x10] sm:$0xff]
    %v7300 = vld [vmem:[%s2512 + $0x18] sm:$0xff]
    %v7301 = vld [vmem:[%s2512 + $0x20] sm:$0xff]
    %v7302 = vld [vmem:[%s2512 + $0x28] sm:$0xff]
    %v7303 = vld [vmem:[%s2512 + $0x30] sm:$0xff]
    %v7304 = vld [vmem:[%s2512 + $0x38] sm:$0xff]
    %v7305 = vld [vmem:[%s2512 + $0x40] sm:$0xff]
    %v7306 = vld [vmem:[%s2512 + $0x48] sm:$0xff]
    %v7307 = vld [vmem:[%s2512 + $0x50] sm:$0xff]
    %v7308 = vld [vmem:[%s2512 + $0x58] sm:$0xff]
    %v7309 = vld [vmem:[%s2512 + $0x60] sm:$0xff]
    %v7310 = vld [vmem:[%s2512 + $0x68] sm:$0xff]
    %v7311 = vld [vmem:[%s2512 + $0x70] sm:$0xff]
    %v7312 = vld [vmem:[%s2512 + $0x78] sm:$0xff]
    %v7313 = vld [vmem:[%s2512 + $0x80] sm:$0xff]
    %v7314 = vld [vmem:[%s2512 + $0x88] sm:$0xff]
    %v7315 = vld [vmem:[%s2512 + $0x90] sm:$0xff]
    %v7316 = vld [vmem:[%s2512 + $0x98] sm:$0xff]
    %v7317 = vld [vmem:[%s2512 + $0xa0] sm:$0xff]
    %v7318 = vld [vmem:[%s2512 + $0xa8] sm:$0xff]
    %v7319 = vld [vmem:[%s2512 + $0xb0] sm:$0xff]
    %v7320 = vld [vmem:[%s2512 + $0xb8] sm:$0xff]
    %v7321 = vld [vmem:[%s2512 + $0xc0] sm:$0xff]
    %v7322 = vld [vmem:[%s2512 + $0xc8] sm:$0xff]
    %v7323 = vld [vmem:[%s2512 + $0xd0] sm:$0xff]
    %v7324 = vld [vmem:[%s2512 + $0xd8] sm:$0xff]
    %v7325 = vld [vmem:[%s2512 + $0xe0] sm:$0xff]
    %v7326 = vld [vmem:[%s2512 + $0xe8] sm:$0xff]
    %v7327 = vld [vmem:[%s2512 + $0xf0] sm:$0xff]
    %v7328 = vld [vmem:[%s2512 + $0xf8] sm:$0xff]
    %v7329 = vld [vmem:[%s2512 + $0x100] sm:$0xff]
    %v7330 = vld [vmem:[%s2512 + $0x108] sm:$0xff]
    %v7331 = vld [vmem:[%s2512 + $0x110] sm:$0xff]
    %v7332 = vld [vmem:[%s2512 + $0x118] sm:$0xff]
    %v7333 = vld [vmem:[%s2512 + $0x120] sm:$0xff]
    %v7334 = vld [vmem:[%s2512 + $0x128] sm:$0xff]
    %v7335 = vld [vmem:[%s2512 + $0x130] sm:$0xff]
    %v7336 = vld [vmem:[%s2512 + $0x138] sm:$0xff]
    %v7337 = vpack.c.bf16 %v7251, %v7248
    %v7338 = vpack.c.bf16 %v7252, %v7249
    %v7339 = vpack.c.bf16 %v7253, %v7250
    %v7341 = vshrl.u32 %v7337, 16
    %v7343 = vshll.u32 %v7337, 16
    %v7345 = vrot.slane %v7343, 1
    %v7346 = vor.u32 %v7341, %v7345
    %v7348 = vshrl.u32 %v7338, 16
    %v7350 = vshll.u32 %v7338, 16
    %v7352 = vrot.slane %v7350, 1
    %v7353 = vor.u32 %v7348, %v7352
    %v7355 = vshrl.u32 %v7339, 16
    %v7357 = vshll.u32 %v7339, 16
    %v7359 = vrot.slane %v7357, 1
    %v7360 = vor.u32 %v7355, %v7359
    %v7403 = vunpack.c.l.b16 %v7297
    %v7404 = vunpack.c.h.b16 %v7297
    %v7405 = vunpack.c.l.b16 %v7298
    %v7406 = vunpack.c.h.b16 %v7298
    %v7407 = vunpack.c.l.b16 %v7299
    %v7408 = vunpack.c.h.b16 %v7299
    %v7409 = vunpack.c.l.b16 %v7300
    %v7410 = vunpack.c.h.b16 %v7300
    %v7411 = vunpack.c.l.b16 %v7301
    %v7412 = vunpack.c.h.b16 %v7301
    %v7413 = vunpack.c.l.b16 %v7302
    %v7414 = vunpack.c.h.b16 %v7302
    %v7415 = vunpack.c.l.b16 %v7303
    %v7416 = vunpack.c.h.b16 %v7303
    %v7417 = vunpack.c.l.b16 %v7304
    %v7418 = vunpack.c.h.b16 %v7304
    %v7419 = vunpack.c.l.b16 %v7305
    %v7420 = vunpack.c.h.b16 %v7305
    %v7421 = vunpack.c.l.b16 %v7306
    %v7422 = vunpack.c.h.b16 %v7306
    %v7423 = vunpack.c.l.b16 %v7307
    %v7424 = vunpack.c.h.b16 %v7307
    %v7425 = vunpack.c.l.b16 %v7308
    %v7426 = vunpack.c.h.b16 %v7308
    %v7427 = vunpack.c.l.b16 %v7309
    %v7428 = vunpack.c.h.b16 %v7309
    %v7429 = vunpack.c.l.b16 %v7310
    %v7430 = vunpack.c.h.b16 %v7310
    %v7431 = vunpack.c.l.b16 %v7311
    %v7432 = vunpack.c.h.b16 %v7311
    %v7433 = vunpack.c.l.b16 %v7312
    %v7434 = vunpack.c.h.b16 %v7312
    %v7435 = vunpack.c.l.b16 %v7313
    %v7436 = vunpack.c.h.b16 %v7313
    %v7437 = vunpack.c.l.b16 %v7314
    %v7438 = vunpack.c.h.b16 %v7314
    %v7439 = vunpack.c.l.b16 %v7315
    %v7440 = vunpack.c.h.b16 %v7315
    %v7441 = vunpack.c.l.b16 %v7316
    %v7442 = vunpack.c.h.b16 %v7316
    %v7443 = vunpack.c.l.b16 %v7317
    %v7444 = vunpack.c.h.b16 %v7317
    %v7445 = vunpack.c.l.b16 %v7318
    %v7446 = vunpack.c.h.b16 %v7318
    %v7447 = vunpack.c.l.b16 %v7319
    %v7448 = vunpack.c.h.b16 %v7319
    %v7449 = vunpack.c.l.b16 %v7320
    %v7450 = vunpack.c.h.b16 %v7320
    %v7451 = vunpack.c.l.b16 %v7321
    %v7452 = vunpack.c.h.b16 %v7321
    %v7453 = vunpack.c.l.b16 %v7322
    %v7454 = vunpack.c.h.b16 %v7322
    %v7455 = vunpack.c.l.b16 %v7323
    %v7456 = vunpack.c.h.b16 %v7323
    %v7457 = vunpack.c.l.b16 %v7324
    %v7458 = vunpack.c.h.b16 %v7324
    %v7459 = vunpack.c.l.b16 %v7325
    %v7460 = vunpack.c.h.b16 %v7325
    %v7461 = vunpack.c.l.b16 %v7326
    %v7462 = vunpack.c.h.b16 %v7326
    %v7463 = vunpack.c.l.b16 %v7327
    %v7464 = vunpack.c.h.b16 %v7327
    %v7465 = vunpack.c.l.b16 %v7328
    %v7466 = vunpack.c.h.b16 %v7328
    %v7467 = vunpack.c.l.b16 %v7329
    %v7468 = vunpack.c.h.b16 %v7329
    %v7469 = vunpack.c.l.b16 %v7330
    %v7470 = vunpack.c.h.b16 %v7330
    %v7471 = vunpack.c.l.b16 %v7331
    %v7472 = vunpack.c.h.b16 %v7331
    %v7473 = vunpack.c.l.b16 %v7332
    %v7474 = vunpack.c.h.b16 %v7332
    %v7475 = vunpack.c.l.b16 %v7333
    %v7476 = vunpack.c.h.b16 %v7333
    %v7477 = vunpack.c.l.b16 %v7334
    %v7478 = vunpack.c.h.b16 %v7334
    %v7479 = vunpack.c.l.b16 %v7335
    %v7480 = vunpack.c.h.b16 %v7335
    %v7481 = vunpack.c.l.b16 %v7336
    %v7482 = vunpack.c.h.b16 %v7336
    %v7483 = vpack.c.b16 %v7405, %v7403
    %v7484 = vpack.c.b16 %v7406, %v7404
    %v7485 = vpack.c.b16 %v7409, %v7407
    %v7486 = vpack.c.b16 %v7410, %v7408
    %v7487 = vpack.c.b16 %v7413, %v7411
    %v7488 = vpack.c.b16 %v7414, %v7412
    %v7489 = vpack.c.b16 %v7417, %v7415
    %v7490 = vpack.c.b16 %v7418, %v7416
    %v7491 = vpack.c.b16 %v7421, %v7419
    %v7492 = vpack.c.b16 %v7422, %v7420
    %v7493 = vpack.c.b16 %v7425, %v7423
    %v7494 = vpack.c.b16 %v7426, %v7424
    %v7495 = vpack.c.b16 %v7429, %v7427
    %v7496 = vpack.c.b16 %v7430, %v7428
    %v7497 = vpack.c.b16 %v7433, %v7431
    %v7498 = vpack.c.b16 %v7434, %v7432
    %v7499 = vpack.c.b16 %v7437, %v7435
    %v7500 = vpack.c.b16 %v7438, %v7436
    %v7501 = vpack.c.b16 %v7441, %v7439
    %v7502 = vpack.c.b16 %v7442, %v7440
    %v7503 = vpack.c.b16 %v7445, %v7443
    %v7504 = vpack.c.b16 %v7446, %v7444
    %v7505 = vpack.c.b16 %v7449, %v7447
    %v7506 = vpack.c.b16 %v7450, %v7448
    %v7507 = vpack.c.b16 %v7453, %v7451
    %v7508 = vpack.c.b16 %v7454, %v7452
    %v7509 = vpack.c.b16 %v7457, %v7455
    %v7510 = vpack.c.b16 %v7458, %v7456
    %v7511 = vpack.c.b16 %v7461, %v7459
    %v7512 = vpack.c.b16 %v7462, %v7460
    %v7513 = vpack.c.b16 %v7465, %v7463
    %v7514 = vpack.c.b16 %v7466, %v7464
    %v7515 = vpack.c.b16 %v7469, %v7467
    %v7516 = vpack.c.b16 %v7470, %v7468
    %v7517 = vpack.c.b16 %v7473, %v7471
    %v7518 = vpack.c.b16 %v7474, %v7472
    %v7519 = vpack.c.b16 %v7477, %v7475
    %v7520 = vpack.c.b16 %v7478, %v7476
    %v7521 = vpack.c.b16 %v7481, %v7479
    %v7522 = vpack.c.b16 %v7482, %v7480
    %v7564 = vsel %vm2779, %v7360, 0
    %7566 = vmatpush.bf16.msra.mxu0 %v7497
    %7567 = vmatpush.bf16.msra.mxu0 %v7495
    %7568 = vmatpush.bf16.msra.mxu0 %v7493
    %7569 = vmatpush.bf16.msra.mxu0 %v7491
    %7570 = vmatpush.bf16.msra.mxu0 %v7489
    %7571 = vmatpush.bf16.msra.mxu0 %v7487
    %7572 = vmatpush.bf16.msra.mxu0 %v7485
    %7573 = vmatpush.bf16.msra.mxu0 %v7483
    %7574 = vmatmul.bf16.gmra.mxu0 %v7346
    %v7575 = vpop.f32.mrf.mxu0
    %v7576 = vadd.f32 0.0, %v7575
    %v7577 = vpop.f32.mrf.mxu0
    %7578 = vdwg.mxu0
    %7579 = vmatpush.bf16.msra.mxu0 %v7513
    %7580 = vmatpush.bf16.msra.mxu0 %v7511
    %7581 = vmatpush.bf16.msra.mxu0 %v7509
    %7582 = vmatpush.bf16.msra.mxu0 %v7507
    %7583 = vmatpush.bf16.msra.mxu0 %v7505
    %7584 = vmatpush.bf16.msra.mxu0 %v7503
    %7585 = vmatpush.bf16.msra.mxu0 %v7501
    %7586 = vmatpush.bf16.msra.mxu0 %v7499
    %7587 = vmatmul.bf16.gmra.mxu0 %v7353
    %v7588 = vpop.f32.mrf.mxu0
    %v7589 = vadd.f32 %v7576, %v7588
    %v7590 = vpop.f32.mrf.mxu0
    %7591 = vdwg.mxu0
    %7592 = vmatpush.bf16.msra.mxu0 0
    %7593 = vmatpush.bf16.msra.mxu0 0
    %7594 = vmatpush.bf16.msra.mxu0 0
    %7595 = vmatpush.bf16.msra.mxu0 0
    %7596 = vmatpush.bf16.msra.mxu0 %v7521
    %7597 = vmatpush.bf16.msra.mxu0 %v7519
    %7598 = vmatpush.bf16.msra.mxu0 %v7517
    %7599 = vmatpush.bf16.msra.mxu0 %v7515
    %7600 = vmatmul.bf16.gmra.mxu0 %v7564
    %v7601 = vpop.f32.mrf.mxu0
    %v7602 = vadd.f32 %v7589, %v7601
    %v7603 = vpop.f32.mrf.mxu0
    %7604 = vdwg.mxu0
    %7605 = vmatpush.bf16.msra.mxu0 %v7498
    %7606 = vmatpush.bf16.msra.mxu0 %v7496
    %7607 = vmatpush.bf16.msra.mxu0 %v7494
    %7608 = vmatpush.bf16.msra.mxu0 %v7492
    %7609 = vmatpush.bf16.msra.mxu0 %v7490
    %7610 = vmatpush.bf16.msra.mxu0 %v7488
    %7611 = vmatpush.bf16.msra.mxu0 %v7486
    %7612 = vmatpush.bf16.msra.mxu0 %v7484
    %7613 = vmatmul.bf16.gmra.mxu0 %v7346
    %v7614 = vpop.f32.mrf.mxu0
    %v7615 = vadd.f32 0.0, %v7614
    %v7616 = vpop.f32.mrf.mxu0
    %7617 = vdwg.mxu0
    %7618 = vmatpush.bf16.msra.mxu0 %v7514
    %7619 = vmatpush.bf16.msra.mxu0 %v7512
    %7620 = vmatpush.bf16.msra.mxu0 %v7510
    %7621 = vmatpush.bf16.msra.mxu0 %v7508
    %7622 = vmatpush.bf16.msra.mxu0 %v7506
    %7623 = vmatpush.bf16.msra.mxu0 %v7504
    %7624 = vmatpush.bf16.msra.mxu0 %v7502
    %7625 = vmatpush.bf16.msra.mxu0 %v7500
    %7626 = vmatmul.bf16.gmra.mxu0 %v7353
    %v7627 = vpop.f32.mrf.mxu0
    %v7628 = vadd.f32 %v7615, %v7627
    %v7629 = vpop.f32.mrf.mxu0
    %7630 = vdwg.mxu0
    %7631 = vmatpush.bf16.msra.mxu0 0
    %7632 = vmatpush.bf16.msra.mxu0 0
    %7633 = vmatpush.bf16.msra.mxu0 0
    %7634 = vmatpush.bf16.msra.mxu0 0
    %7635 = vmatpush.bf16.msra.mxu0 %v7522
    %7636 = vmatpush.bf16.msra.mxu0 %v7520
    %7637 = vmatpush.bf16.msra.mxu0 %v7518
    %7638 = vmatpush.bf16.msra.mxu0 %v7516
    %7639 = vmatmul.bf16.gmra.mxu0 %v7564
    %v7640 = vpop.f32.mrf.mxu0
    %v7641 = vadd.f32 %v7628, %v7640
    %v7642 = vpop.f32.mrf.mxu0
    %7643 = vdwg.mxu0
    %v7684 = vunpack.c.l.b16 %v7254
    %v7685 = vunpack.c.h.b16 %v7254
    %v7686 = vunpack.c.l.b16 %v7255
    %v7687 = vunpack.c.h.b16 %v7255
    %v7688 = vunpack.c.l.b16 %v7256
    %v7689 = vunpack.c.h.b16 %v7256
    %v7690 = vunpack.c.l.b16 %v7257
    %v7691 = vunpack.c.h.b16 %v7257
    %v7692 = vunpack.c.l.b16 %v7258
    %v7693 = vunpack.c.h.b16 %v7258
    %v7694 = vunpack.c.l.b16 %v7259
    %v7695 = vunpack.c.h.b16 %v7259
    %v7696 = vunpack.c.l.b16 %v7260
    %v7697 = vunpack.c.h.b16 %v7260
    %v7698 = vunpack.c.l.b16 %v7261
    %v7699 = vunpack.c.h.b16 %v7261
    %v7700 = vunpack.c.l.b16 %v7262
    %v7701 = vunpack.c.h.b16 %v7262
    %v7702 = vunpack.c.l.b16 %v7263
    %v7703 = vunpack.c.h.b16 %v7263
    %v7704 = vunpack.c.l.b16 %v7264
    %v7705 = vunpack.c.h.b16 %v7264
    %v7706 = vunpack.c.l.b16 %v7265
    %v7707 = vunpack.c.h.b16 %v7265
    %v7708 = vunpack.c.l.b16 %v7266
    %v7709 = vunpack.c.h.b16 %v7266
    %v7710 = vunpack.c.l.b16 %v7267
    %v7711 = vunpack.c.h.b16 %v7267
    %v7712 = vunpack.c.l.b16 %v7268
    %v7713 = vunpack.c.h.b16 %v7268
    %v7714 = vunpack.c.l.b16 %v7269
    %v7715 = vunpack.c.h.b16 %v7269
    %v7716 = vunpack.c.l.b16 %v7270
    %v7717 = vunpack.c.h.b16 %v7270
    %v7718 = vunpack.c.l.b16 %v7271
    %v7719 = vunpack.c.h.b16 %v7271
    %v7720 = vunpack.c.l.b16 %v7272
    %v7721 = vunpack.c.h.b16 %v7272
    %v7722 = vunpack.c.l.b16 %v7273
    %v7723 = vunpack.c.h.b16 %v7273
    %v7724 = vunpack.c.l.b16 %v7274
    %v7725 = vunpack.c.h.b16 %v7274
    %v7726 = vunpack.c.l.b16 %v7275
    %v7727 = vunpack.c.h.b16 %v7275
    %v7728 = vunpack.c.l.b16 %v7276
    %v7729 = vunpack.c.h.b16 %v7276
    %v7730 = vunpack.c.l.b16 %v7277
    %v7731 = vunpack.c.h.b16 %v7277
    %v7732 = vunpack.c.l.b16 %v7278
    %v7733 = vunpack.c.h.b16 %v7278
    %v7734 = vunpack.c.l.b16 %v7279
    %v7735 = vunpack.c.h.b16 %v7279
    %v7736 = vunpack.c.l.b16 %v7280
    %v7737 = vunpack.c.h.b16 %v7280
    %v7738 = vunpack.c.l.b16 %v7281
    %v7739 = vunpack.c.h.b16 %v7281
    %v7740 = vunpack.c.l.b16 %v7282
    %v7741 = vunpack.c.h.b16 %v7282
    %v7742 = vunpack.c.l.b16 %v7283
    %v7743 = vunpack.c.h.b16 %v7283
    %v7744 = vunpack.c.l.b16 %v7284
    %v7745 = vunpack.c.h.b16 %v7284
    %v7746 = vunpack.c.l.b16 %v7285
    %v7747 = vunpack.c.h.b16 %v7285
    %v7748 = vunpack.c.l.b16 %v7286
    %v7749 = vunpack.c.h.b16 %v7286
    %v7750 = vunpack.c.l.b16 %v7287
    %v7751 = vunpack.c.h.b16 %v7287
    %v7752 = vunpack.c.l.b16 %v7288
    %v7753 = vunpack.c.h.b16 %v7288
    %v7754 = vunpack.c.l.b16 %v7289
    %v7755 = vunpack.c.h.b16 %v7289
    %v7756 = vunpack.c.l.b16 %v7290
    %v7757 = vunpack.c.h.b16 %v7290
    %v7758 = vunpack.c.l.b16 %v7291
    %v7759 = vunpack.c.h.b16 %v7291
    %v7760 = vunpack.c.l.b16 %v7292
    %v7761 = vunpack.c.h.b16 %v7292
    %v7762 = vunpack.c.l.b16 %v7293
    %v7763 = vunpack.c.h.b16 %v7293
    %v7764 = vpack.c.b16 %v7686, %v7684
    %v7765 = vpack.c.b16 %v7687, %v7685
    %v7766 = vpack.c.b16 %v7690, %v7688
    %v7767 = vpack.c.b16 %v7691, %v7689
    %v7768 = vpack.c.b16 %v7694, %v7692
    %v7769 = vpack.c.b16 %v7695, %v7693
    %v7770 = vpack.c.b16 %v7698, %v7696
    %v7771 = vpack.c.b16 %v7699, %v7697
    %v7772 = vpack.c.b16 %v7702, %v7700
    %v7773 = vpack.c.b16 %v7703, %v7701
    %v7774 = vpack.c.b16 %v7706, %v7704
    %v7775 = vpack.c.b16 %v7707, %v7705
    %v7776 = vpack.c.b16 %v7710, %v7708
    %v7777 = vpack.c.b16 %v7711, %v7709
    %v7778 = vpack.c.b16 %v7714, %v7712
    %v7779 = vpack.c.b16 %v7715, %v7713
    %v7780 = vpack.c.b16 %v7718, %v7716
    %v7781 = vpack.c.b16 %v7719, %v7717
    %v7782 = vpack.c.b16 %v7722, %v7720
    %v7783 = vpack.c.b16 %v7723, %v7721
    %v7784 = vpack.c.b16 %v7726, %v7724
    %v7785 = vpack.c.b16 %v7727, %v7725
    %v7786 = vpack.c.b16 %v7730, %v7728
    %v7787 = vpack.c.b16 %v7731, %v7729
    %v7788 = vpack.c.b16 %v7734, %v7732
    %v7789 = vpack.c.b16 %v7735, %v7733
    %v7790 = vpack.c.b16 %v7738, %v7736
    %v7791 = vpack.c.b16 %v7739, %v7737
    %v7792 = vpack.c.b16 %v7742, %v7740
    %v7793 = vpack.c.b16 %v7743, %v7741
    %v7794 = vpack.c.b16 %v7746, %v7744
    %v7795 = vpack.c.b16 %v7747, %v7745
    %v7796 = vpack.c.b16 %v7750, %v7748
    %v7797 = vpack.c.b16 %v7751, %v7749
    %v7798 = vpack.c.b16 %v7754, %v7752
    %v7799 = vpack.c.b16 %v7755, %v7753
    %v7800 = vpack.c.b16 %v7758, %v7756
    %v7801 = vpack.c.b16 %v7759, %v7757
    %v7802 = vpack.c.b16 %v7762, %v7760
    %v7803 = vpack.c.b16 %v7763, %v7761
    %v7845 = vsel %vm2779, %v7296, 0
    %7847 = vmatpush.bf16.msra.mxu0 %v7778
    %7848 = vmatpush.bf16.msra.mxu0 %v7776
    %7849 = vmatpush.bf16.msra.mxu0 %v7774
    %7850 = vmatpush.bf16.msra.mxu0 %v7772
    %7851 = vmatpush.bf16.msra.mxu0 %v7770
    %7852 = vmatpush.bf16.msra.mxu0 %v7768
    %7853 = vmatpush.bf16.msra.mxu0 %v7766
    %7854 = vmatpush.bf16.msra.mxu0 %v7764
    %7855 = vmatmul.bf16.gmra.mxu0 %v7294
    %v7856 = vpop.f32.mrf.mxu0
    %v7857 = vadd.f32 %v7602, %v7856
    %v7858 = vpop.f32.mrf.mxu0
    %7859 = vdwg.mxu0
    %7860 = vmatpush.bf16.msra.mxu0 %v7794
    %7861 = vmatpush.bf16.msra.mxu0 %v7792
    %7862 = vmatpush.bf16.msra.mxu0 %v7790
    %7863 = vmatpush.bf16.msra.mxu0 %v7788
    %7864 = vmatpush.bf16.msra.mxu0 %v7786
    %7865 = vmatpush.bf16.msra.mxu0 %v7784
    %7866 = vmatpush.bf16.msra.mxu0 %v7782
    %7867 = vmatpush.bf16.msra.mxu0 %v7780
    %7868 = vmatmul.bf16.gmra.mxu0 %v7295
    %v7869 = vpop.f32.mrf.mxu0
    %v7870 = vadd.f32 %v7857, %v7869
    %v7871 = vpop.f32.mrf.mxu0
    %7872 = vdwg.mxu0
    %7873 = vmatpush.bf16.msra.mxu0 0
    %7874 = vmatpush.bf16.msra.mxu0 0
    %7875 = vmatpush.bf16.msra.mxu0 0
    %7876 = vmatpush.bf16.msra.mxu0 0
    %7877 = vmatpush.bf16.msra.mxu0 %v7802
    %7878 = vmatpush.bf16.msra.mxu0 %v7800
    %7879 = vmatpush.bf16.msra.mxu0 %v7798
    %7880 = vmatpush.bf16.msra.mxu0 %v7796
    %7881 = vmatmul.bf16.gmra.mxu0 %v7845
    %v7882 = vpop.f32.mrf.mxu0
    %v7883 = vadd.f32 %v7870, %v7882
    %v7884 = vpop.f32.mrf.mxu0
    %7885 = vdwg.mxu0
    %7886 = vmatpush.bf16.msra.mxu0 %v7779
    %7887 = vmatpush.bf16.msra.mxu0 %v7777
    %7888 = vmatpush.bf16.msra.mxu0 %v7775
    %7889 = vmatpush.bf16.msra.mxu0 %v7773
    %7890 = vmatpush.bf16.msra.mxu0 %v7771
    %7891 = vmatpush.bf16.msra.mxu0 %v7769
    %7892 = vmatpush.bf16.msra.mxu0 %v7767
    %7893 = vmatpush.bf16.msra.mxu0 %v7765
    %7894 = vmatmul.bf16.gmra.mxu0 %v7294
    %v7895 = vpop.f32.mrf.mxu0
    %v7896 = vadd.f32 %v7641, %v7895
    %v7897 = vpop.f32.mrf.mxu0
    %7898 = vdwg.mxu0
    %7899 = vmatpush.bf16.msra.mxu0 %v7795
    %7900 = vmatpush.bf16.msra.mxu0 %v7793
    %7901 = vmatpush.bf16.msra.mxu0 %v7791
    %7902 = vmatpush.bf16.msra.mxu0 %v7789
    %7903 = vmatpush.bf16.msra.mxu0 %v7787
    %7904 = vmatpush.bf16.msra.mxu0 %v7785
    %7905 = vmatpush.bf16.msra.mxu0 %v7783
    %7906 = vmatpush.bf16.msra.mxu0 %v7781
    %7907 = vmatmul.bf16.gmra.mxu0 %v7295
    %v7908 = vpop.f32.mrf.mxu0
    %v7909 = vadd.f32 %v7896, %v7908
    %v7910 = vpop.f32.mrf.mxu0
    %7911 = vdwg.mxu0
    %7912 = vmatpush.bf16.msra.mxu0 0
    %7913 = vmatpush.bf16.msra.mxu0 0
    %7914 = vmatpush.bf16.msra.mxu0 0
    %7915 = vmatpush.bf16.msra.mxu0 0
    %7916 = vmatpush.bf16.msra.mxu0 %v7803
    %7917 = vmatpush.bf16.msra.mxu0 %v7801
    %7918 = vmatpush.bf16.msra.mxu0 %v7799
    %7919 = vmatpush.bf16.msra.mxu0 %v7797
    %7920 = vmatmul.bf16.gmra.mxu0 %v7845
    %v7921 = vpop.f32.mrf.mxu0
    %v7922 = vadd.f32 %v7909, %v7921
    %v7923 = vpop.f32.mrf.mxu0
    %7924 = vdwg.mxu0
    %v7925 = vld [vmem:[%s3142] sm:$0xff]
    %v7926 = vld [vmem:[%s3142 + $0x8] sm:$0xff]
    %v7927 = vld [vmem:[%s3142 + $0x10] sm:$0xff]
    %v7928 = vld [vmem:[%s3142 + $0x18] sm:$0xff]
    %v7929 = vld [vmem:[%s3142 + $0x20] sm:$0xff]
    %v7930 = vld [vmem:[%s3142 + $0x28] sm:$0xff]
    %v7931 = vld [vmem:[%s3142 + $0x30] sm:$0xff]
    %v7932 = vld [vmem:[%s3142 + $0x38] sm:$0xff]
    %v7933 = vld [vmem:[%s3142 + $0x40] sm:$0xff]
    %v7934 = vld [vmem:[%s3142 + $0x48] sm:$0xff]
    %v7935 = vld [vmem:[%s3142 + $0x50] sm:$0xff]
    %v7936 = vld [vmem:[%s3142 + $0x58] sm:$0xff]
    %v7937 = vld [vmem:[%s3142 + $0x60] sm:$0xff]
    %v7938 = vld [vmem:[%s3142 + $0x68] sm:$0xff]
    %v7939 = vld [vmem:[%s3142 + $0x70] sm:$0xff]
    %v7940 = vld [vmem:[%s3142 + $0x78] sm:$0xff]
    %v7941 = vld [vmem:[%s3142 + $0x80] sm:$0xff]
    %v7942 = vld [vmem:[%s3142 + $0x88] sm:$0xff]
    %v7943 = vld [vmem:[%s3142 + $0x90] sm:$0xff]
    %v7944 = vld [vmem:[%s3142 + $0x98] sm:$0xff]
    %v7945 = vld [vmem:[%s3142 + $0xa0] sm:$0xff]
    %v7946 = vld [vmem:[%s3142 + $0xa8] sm:$0xff]
    %v7947 = vld [vmem:[%s3142 + $0xb0] sm:$0xff]
    %v7948 = vld [vmem:[%s3142 + $0xb8] sm:$0xff]
    %v7949 = vld [vmem:[%s3142 + $0xc0] sm:$0xff]
    %v7950 = vld [vmem:[%s3142 + $0xc8] sm:$0xff]
    %v7951 = vld [vmem:[%s3142 + $0xd0] sm:$0xff]
    %v7952 = vld [vmem:[%s3142 + $0xd8] sm:$0xff]
    %v7953 = vld [vmem:[%s3142 + $0xe0] sm:$0xff]
    %v7954 = vld [vmem:[%s3142 + $0xe8] sm:$0xff]
    %v7955 = vld [vmem:[%s3142 + $0xf0] sm:$0xff]
    %v7956 = vld [vmem:[%s3142 + $0xf8] sm:$0xff]
    %v7957 = vld [vmem:[%s3142 + $0x100] sm:$0xff]
    %v7958 = vld [vmem:[%s3142 + $0x108] sm:$0xff]
    %v7959 = vld [vmem:[%s3142 + $0x110] sm:$0xff]
    %v7960 = vld [vmem:[%s3142 + $0x118] sm:$0xff]
    %v7961 = vld [vmem:[%s3142 + $0x120] sm:$0xff]
    %v7962 = vld [vmem:[%s3142 + $0x128] sm:$0xff]
    %v7963 = vld [vmem:[%s3142 + $0x130] sm:$0xff]
    %v7964 = vld [vmem:[%s3142 + $0x138] sm:$0xff]
    %v7968 = vrot.slane %v7337, 1
    %v7969 = vrot.slane %v7338, 1
    %v7970 = vrot.slane %v7339, 1
    %v8013 = vunpack.c.l.b16 %v7925
    %v8014 = vunpack.c.h.b16 %v7925
    %v8015 = vunpack.c.l.b16 %v7926
    %v8016 = vunpack.c.h.b16 %v7926
    %v8017 = vunpack.c.l.b16 %v7927
    %v8018 = vunpack.c.h.b16 %v7927
    %v8019 = vunpack.c.l.b16 %v7928
    %v8020 = vunpack.c.h.b16 %v7928
    %v8021 = vunpack.c.l.b16 %v7929
    %v8022 = vunpack.c.h.b16 %v7929
    %v8023 = vunpack.c.l.b16 %v7930
    %v8024 = vunpack.c.h.b16 %v7930
    %v8025 = vunpack.c.l.b16 %v7931
    %v8026 = vunpack.c.h.b16 %v7931
    %v8027 = vunpack.c.l.b16 %v7932
    %v8028 = vunpack.c.h.b16 %v7932
    %v8029 = vunpack.c.l.b16 %v7933
    %v8030 = vunpack.c.h.b16 %v7933
    %v8031 = vunpack.c.l.b16 %v7934
    %v8032 = vunpack.c.h.b16 %v7934
    %v8033 = vunpack.c.l.b16 %v7935
    %v8034 = vunpack.c.h.b16 %v7935
    %v8035 = vunpack.c.l.b16 %v7936
    %v8036 = vunpack.c.h.b16 %v7936
    %v8037 = vunpack.c.l.b16 %v7937
    %v8038 = vunpack.c.h.b16 %v7937
    %v8039 = vunpack.c.l.b16 %v7938
    %v8040 = vunpack.c.h.b16 %v7938
    %v8041 = vunpack.c.l.b16 %v7939
    %v8042 = vunpack.c.h.b16 %v7939
    %v8043 = vunpack.c.l.b16 %v7940
    %v8044 = vunpack.c.h.b16 %v7940
    %v8045 = vunpack.c.l.b16 %v7941
    %v8046 = vunpack.c.h.b16 %v7941
    %v8047 = vunpack.c.l.b16 %v7942
    %v8048 = vunpack.c.h.b16 %v7942
    %v8049 = vunpack.c.l.b16 %v7943
    %v8050 = vunpack.c.h.b16 %v7943
    %v8051 = vunpack.c.l.b16 %v7944
    %v8052 = vunpack.c.h.b16 %v7944
    %v8053 = vunpack.c.l.b16 %v7945
    %v8054 = vunpack.c.h.b16 %v7945
    %v8055 = vunpack.c.l.b16 %v7946
    %v8056 = vunpack.c.h.b16 %v7946
    %v8057 = vunpack.c.l.b16 %v7947
    %v8058 = vunpack.c.h.b16 %v7947
    %v8059 = vunpack.c.l.b16 %v7948
    %v8060 = vunpack.c.h.b16 %v7948
    %v8061 = vunpack.c.l.b16 %v7949
    %v8062 = vunpack.c.h.b16 %v7949
    %v8063 = vunpack.c.l.b16 %v7950
    %v8064 = vunpack.c.h.b16 %v7950
    %v8065 = vunpack.c.l.b16 %v7951
    %v8066 = vunpack.c.h.b16 %v7951
    %v8067 = vunpack.c.l.b16 %v7952
    %v8068 = vunpack.c.h.b16 %v7952
    %v8069 = vunpack.c.l.b16 %v7953
    %v8070 = vunpack.c.h.b16 %v7953
    %v8071 = vunpack.c.l.b16 %v7954
    %v8072 = vunpack.c.h.b16 %v7954
    %v8073 = vunpack.c.l.b16 %v7955
    %v8074 = vunpack.c.h.b16 %v7955
    %v8075 = vunpack.c.l.b16 %v7956
    %v8076 = vunpack.c.h.b16 %v7956
    %v8077 = vunpack.c.l.b16 %v7957
    %v8078 = vunpack.c.h.b16 %v7957
    %v8079 = vunpack.c.l.b16 %v7958
    %v8080 = vunpack.c.h.b16 %v7958
    %v8081 = vunpack.c.l.b16 %v7959
    %v8082 = vunpack.c.h.b16 %v7959
    %v8083 = vunpack.c.l.b16 %v7960
    %v8084 = vunpack.c.h.b16 %v7960
    %v8085 = vunpack.c.l.b16 %v7961
    %v8086 = vunpack.c.h.b16 %v7961
    %v8087 = vunpack.c.l.b16 %v7962
    %v8088 = vunpack.c.h.b16 %v7962
    %v8089 = vunpack.c.l.b16 %v7963
    %v8090 = vunpack.c.h.b16 %v7963
    %v8091 = vunpack.c.l.b16 %v7964
    %v8092 = vunpack.c.h.b16 %v7964
    %v8093 = vpack.c.b16 %v8015, %v8013
    %v8094 = vpack.c.b16 %v8016, %v8014
    %v8095 = vpack.c.b16 %v8019, %v8017
    %v8096 = vpack.c.b16 %v8020, %v8018
    %v8097 = vpack.c.b16 %v8023, %v8021
    %v8098 = vpack.c.b16 %v8024, %v8022
    %v8099 = vpack.c.b16 %v8027, %v8025
    %v8100 = vpack.c.b16 %v8028, %v8026
    %v8101 = vpack.c.b16 %v8031, %v8029
    %v8102 = vpack.c.b16 %v8032, %v8030
    %v8103 = vpack.c.b16 %v8035, %v8033
    %v8104 = vpack.c.b16 %v8036, %v8034
    %v8105 = vpack.c.b16 %v8039, %v8037
    %v8106 = vpack.c.b16 %v8040, %v8038
    %v8107 = vpack.c.b16 %v8043, %v8041
    %v8108 = vpack.c.b16 %v8044, %v8042
    %v8109 = vpack.c.b16 %v8047, %v8045
    %v8110 = vpack.c.b16 %v8048, %v8046
    %v8111 = vpack.c.b16 %v8051, %v8049
    %v8112 = vpack.c.b16 %v8052, %v8050
    %v8113 = vpack.c.b16 %v8055, %v8053
    %v8114 = vpack.c.b16 %v8056, %v8054
    %v8115 = vpack.c.b16 %v8059, %v8057
    %v8116 = vpack.c.b16 %v8060, %v8058
    %v8117 = vpack.c.b16 %v8063, %v8061
    %v8118 = vpack.c.b16 %v8064, %v8062
    %v8119 = vpack.c.b16 %v8067, %v8065
    %v8120 = vpack.c.b16 %v8068, %v8066
    %v8121 = vpack.c.b16 %v8071, %v8069
    %v8122 = vpack.c.b16 %v8072, %v8070
    %v8123 = vpack.c.b16 %v8075, %v8073
    %v8124 = vpack.c.b16 %v8076, %v8074
    %v8125 = vpack.c.b16 %v8079, %v8077
    %v8126 = vpack.c.b16 %v8080, %v8078
    %v8127 = vpack.c.b16 %v8083, %v8081
    %v8128 = vpack.c.b16 %v8084, %v8082
    %v8129 = vpack.c.b16 %v8087, %v8085
    %v8130 = vpack.c.b16 %v8088, %v8086
    %v8131 = vpack.c.b16 %v8091, %v8089
    %v8132 = vpack.c.b16 %v8092, %v8090
    %v8174 = vsel %vm2779, %v7970, 0
    %8176 = vmatpush.bf16.msra.mxu0 %v8107
    %8177 = vmatpush.bf16.msra.mxu0 %v8105
    %8178 = vmatpush.bf16.msra.mxu0 %v8103
    %8179 = vmatpush.bf16.msra.mxu0 %v8101
    %8180 = vmatpush.bf16.msra.mxu0 %v8099
    %8181 = vmatpush.bf16.msra.mxu0 %v8097
    %8182 = vmatpush.bf16.msra.mxu0 %v8095
    %8183 = vmatpush.bf16.msra.mxu0 %v8093
    %8184 = vmatmul.bf16.gmra.mxu0 %v7968
    %v8185 = vpop.f32.mrf.mxu0
    %v8186 = vadd.f32 0.0, %v8185
    %v8187 = vpop.f32.mrf.mxu0
    %8188 = vdwg.mxu0
    %8189 = vmatpush.bf16.msra.mxu0 %v8123
    %8190 = vmatpush.bf16.msra.mxu0 %v8121
    %8191 = vmatpush.bf16.msra.mxu0 %v8119
    %8192 = vmatpush.bf16.msra.mxu0 %v8117
    %8193 = vmatpush.bf16.msra.mxu0 %v8115
    %8194 = vmatpush.bf16.msra.mxu0 %v8113
    %8195 = vmatpush.bf16.msra.mxu0 %v8111
    %8196 = vmatpush.bf16.msra.mxu0 %v8109
    %8197 = vmatmul.bf16.gmra.mxu0 %v7969
    %v8198 = vpop.f32.mrf.mxu0
    %v8199 = vadd.f32 %v8186, %v8198
    %v8200 = vpop.f32.mrf.mxu0
    %8201 = vdwg.mxu0
    %8202 = vmatpush.bf16.msra.mxu0 0
    %8203 = vmatpush.bf16.msra.mxu0 0
    %8204 = vmatpush.bf16.msra.mxu0 0
    %8205 = vmatpush.bf16.msra.mxu0 0
    %8206 = vmatpush.bf16.msra.mxu0 %v8131
    %8207 = vmatpush.bf16.msra.mxu0 %v8129
    %8208 = vmatpush.bf16.msra.mxu0 %v8127
    %8209 = vmatpush.bf16.msra.mxu0 %v8125
    %8210 = vmatmul.bf16.gmra.mxu0 %v8174
    %v8211 = vpop.f32.mrf.mxu0
    %v8212 = vadd.f32 %v8199, %v8211
    %v8213 = vpop.f32.mrf.mxu0
    %8214 = vdwg.mxu0
    %8215 = vmatpush.bf16.msra.mxu0 %v8108
    %8216 = vmatpush.bf16.msra.mxu0 %v8106
    %8217 = vmatpush.bf16.msra.mxu0 %v8104
    %8218 = vmatpush.bf16.msra.mxu0 %v8102
    %8219 = vmatpush.bf16.msra.mxu0 %v8100
    %8220 = vmatpush.bf16.msra.mxu0 %v8098
    %8221 = vmatpush.bf16.msra.mxu0 %v8096
    %8222 = vmatpush.bf16.msra.mxu0 %v8094
    %8223 = vmatmul.bf16.gmra.mxu0 %v7968
    %v8224 = vpop.f32.mrf.mxu0
    %v8225 = vadd.f32 0.0, %v8224
    %v8226 = vpop.f32.mrf.mxu0
    %8227 = vdwg.mxu0
    %8228 = vmatpush.bf16.msra.mxu0 %v8124
    %8229 = vmatpush.bf16.msra.mxu0 %v8122
    %8230 = vmatpush.bf16.msra.mxu0 %v8120
    %8231 = vmatpush.bf16.msra.mxu0 %v8118
    %8232 = vmatpush.bf16.msra.mxu0 %v8116
    %8233 = vmatpush.bf16.msra.mxu0 %v8114
    %8234 = vmatpush.bf16.msra.mxu0 %v8112
    %8235 = vmatpush.bf16.msra.mxu0 %v8110
    %8236 = vmatmul.bf16.gmra.mxu0 %v7969
    %v8237 = vpop.f32.mrf.mxu0
    %v8238 = vadd.f32 %v8225, %v8237
    %v8239 = vpop.f32.mrf.mxu0
    %8240 = vdwg.mxu0
    %8241 = vmatpush.bf16.msra.mxu0 0
    %8242 = vmatpush.bf16.msra.mxu0 0
    %8243 = vmatpush.bf16.msra.mxu0 0
    %8244 = vmatpush.bf16.msra.mxu0 0
    %8245 = vmatpush.bf16.msra.mxu0 %v8132
    %8246 = vmatpush.bf16.msra.mxu0 %v8130
    %8247 = vmatpush.bf16.msra.mxu0 %v8128
    %8248 = vmatpush.bf16.msra.mxu0 %v8126
    %8249 = vmatmul.bf16.gmra.mxu0 %v8174
    %v8250 = vpop.f32.mrf.mxu0
    %v8251 = vadd.f32 %v8238, %v8250
    %v8252 = vpop.f32.mrf.mxu0
    %8253 = vdwg.mxu0
    %v8254 = vadd.f32 %v7883, %v8212
    %v8255 = vadd.f32 %v7922, %v8251
    %v8256 = vadd.f32 %v8254, %v3475
    %v8257 = vadd.f32 %v8255, %v3476
    %vm8258 = vcmp.gt.f32.partialorder %v8256, 0.0
    %vm8259 = vcmp.gt.f32.partialorder %v8257, 0.0
    %v8260 = vmul.f32 %v8256, 0.1
    %v8261 = vmul.f32 %v8257, 0.1
    %v8262 = vsel %vm8258, %v8256, %v8260
    %v8263 = vsel %vm8259, %v8257, %v8261
    %v8264 = vld [vmem:[%s4] sm:$0xf]
    %v8265 = vld [vmem:[%s4 + $0x4] sm:$0xf]
    %v8266 = vld [vmem:[%s4 + $0x8] sm:$0xf]
    %v8267 = vld [vmem:[%s4 + $0xc] sm:$0xf]
    %v8268 = vld [vmem:[%s4 + $0x10] sm:$0xf]
    %v8269 = vld [vmem:[%s4 + $0x14] sm:$0xf]
    %v8270 = vld [vmem:[%s4 + $0x18] sm:$0xf]
    %v8271 = vld [vmem:[%s4 + $0x1c] sm:$0xf]
    %v8272 = vld [vmem:[%s4 + $0x20] sm:$0xf]
    %v8273 = vld [vmem:[%s4 + $0x24] sm:$0xf]
    %v8274 = vld [vmem:[%s4 + $0x28] sm:$0xf]
    %v8275 = vld [vmem:[%s4 + $0x2c] sm:$0xf]
    %v8276 = vld [vmem:[%s4 + $0x30] sm:$0xf]
    %v8277 = vld [vmem:[%s4 + $0x34] sm:$0xf]
    %v8278 = vld [vmem:[%s4 + $0x38] sm:$0xf]
    %v8279 = vld [vmem:[%s4 + $0x3c] sm:$0xf]
    %v8280 = vld [vmem:[%s4 + $0x40] sm:$0xf]
    %v8281 = vld [vmem:[%s4 + $0x44] sm:$0xf]
    %v8282 = vld [vmem:[%s4 + $0x48] sm:$0xf]
    %v8283 = vld [vmem:[%s4 + $0x4c] sm:$0xf]
    %v8284 = vld [vmem:[%s4 + $0x50] sm:$0xf]
    %v8285 = vld [vmem:[%s4 + $0x54] sm:$0xf]
    %v8286 = vld [vmem:[%s4 + $0x58] sm:$0xf]
    %v8287 = vld [vmem:[%s4 + $0x5c] sm:$0xf]
    %v8288 = vld [vmem:[%s4 + $0x60] sm:$0xf]
    %v8289 = vld [vmem:[%s4 + $0x64] sm:$0xf]
    %v8290 = vld [vmem:[%s4 + $0x68] sm:$0xf]
    %v8291 = vld [vmem:[%s4 + $0x6c] sm:$0xf]
    %v8292 = vld [vmem:[%s4 + $0x70] sm:$0xf]
    %v8293 = vld [vmem:[%s4 + $0x74] sm:$0xf]
    %v8294 = vld [vmem:[%s4 + $0x78] sm:$0xf]
    %v8295 = vld [vmem:[%s4 + $0x7c] sm:$0xf]
    %v8296 = vpack.c.bf16 %v8262, %v8262
    %v8297 = vpack.c.bf16 %v8263, %v8263
    %v8298 = vld [vmem:[%s3521] sm:$0xf]
    %v8299 = vld [vmem:[%s3521 + $0x4] sm:$0xf]
    %v8300 = vld [vmem:[%s3521 + $0x8] sm:$0xf]
    %v8301 = vld [vmem:[%s3521 + $0xc] sm:$0xf]
    %v8302 = vld [vmem:[%s3521 + $0x10] sm:$0xf]
    %v8303 = vld [vmem:[%s3521 + $0x14] sm:$0xf]
    %v8304 = vld [vmem:[%s3521 + $0x18] sm:$0xf]
    %v8305 = vld [vmem:[%s3521 + $0x1c] sm:$0xf]
    %v8306 = vld [vmem:[%s3521 + $0x20] sm:$0xf]
    %v8307 = vld [vmem:[%s3521 + $0x24] sm:$0xf]
    %v8308 = vld [vmem:[%s3521 + $0x28] sm:$0xf]
    %v8309 = vld [vmem:[%s3521 + $0x2c] sm:$0xf]
    %v8310 = vld [vmem:[%s3521 + $0x30] sm:$0xf]
    %v8311 = vld [vmem:[%s3521 + $0x34] sm:$0xf]
    %v8312 = vld [vmem:[%s3521 + $0x38] sm:$0xf]
    %v8313 = vld [vmem:[%s3521 + $0x3c] sm:$0xf]
    %v8314 = vld [vmem:[%s3521 + $0x40] sm:$0xf]
    %v8315 = vld [vmem:[%s3521 + $0x44] sm:$0xf]
    %v8316 = vld [vmem:[%s3521 + $0x48] sm:$0xf]
    %v8317 = vld [vmem:[%s3521 + $0x4c] sm:$0xf]
    %v8318 = vld [vmem:[%s3521 + $0x50] sm:$0xf]
    %v8319 = vld [vmem:[%s3521 + $0x54] sm:$0xf]
    %v8320 = vld [vmem:[%s3521 + $0x58] sm:$0xf]
    %v8321 = vld [vmem:[%s3521 + $0x5c] sm:$0xf]
    %v8322 = vld [vmem:[%s3521 + $0x60] sm:$0xf]
    %v8323 = vld [vmem:[%s3521 + $0x64] sm:$0xf]
    %v8324 = vld [vmem:[%s3521 + $0x68] sm:$0xf]
    %v8325 = vld [vmem:[%s3521 + $0x6c] sm:$0xf]
    %v8326 = vld [vmem:[%s3521 + $0x70] sm:$0xf]
    %v8327 = vld [vmem:[%s3521 + $0x74] sm:$0xf]
    %v8328 = vld [vmem:[%s3521 + $0x78] sm:$0xf]
    %v8329 = vld [vmem:[%s3521 + $0x7c] sm:$0xf]
    %v8331 = vshrl.u32 %v8296, 16
    %v8334 = vshrl.u32 %v8297, 16
    %v8370 = vunpack.c.l.b16 %v8298
    %v8371 = vunpack.c.l.b16 %v8299
    %v8372 = vunpack.c.l.b16 %v8300
    %v8373 = vunpack.c.l.b16 %v8301
    %v8374 = vunpack.c.l.b16 %v8302
    %v8375 = vunpack.c.l.b16 %v8303
    %v8376 = vunpack.c.l.b16 %v8304
    %v8377 = vunpack.c.l.b16 %v8305
    %v8378 = vunpack.c.l.b16 %v8306
    %v8379 = vunpack.c.l.b16 %v8307
    %v8380 = vunpack.c.l.b16 %v8308
    %v8381 = vunpack.c.l.b16 %v8309
    %v8382 = vunpack.c.l.b16 %v8310
    %v8383 = vunpack.c.l.b16 %v8311
    %v8384 = vunpack.c.l.b16 %v8312
    %v8385 = vunpack.c.l.b16 %v8313
    %v8386 = vunpack.c.l.b16 %v8314
    %v8387 = vunpack.c.l.b16 %v8315
    %v8388 = vunpack.c.l.b16 %v8316
    %v8389 = vunpack.c.l.b16 %v8317
    %v8390 = vunpack.c.l.b16 %v8318
    %v8391 = vunpack.c.l.b16 %v8319
    %v8392 = vunpack.c.l.b16 %v8320
    %v8393 = vunpack.c.l.b16 %v8321
    %v8394 = vunpack.c.l.b16 %v8322
    %v8395 = vunpack.c.l.b16 %v8323
    %v8396 = vunpack.c.l.b16 %v8324
    %v8397 = vunpack.c.l.b16 %v8325
    %v8398 = vunpack.c.l.b16 %v8326
    %v8399 = vunpack.c.l.b16 %v8327
    %v8400 = vunpack.c.l.b16 %v8328
    %v8401 = vunpack.c.l.b16 %v8329
    %v8402 = vpack.c.b16 %v8371, %v8370
    %v8403 = vpack.c.b16 %v8373, %v8372
    %v8404 = vpack.c.b16 %v8375, %v8374
    %v8405 = vpack.c.b16 %v8377, %v8376
    %v8406 = vpack.c.b16 %v8379, %v8378
    %v8407 = vpack.c.b16 %v8381, %v8380
    %v8408 = vpack.c.b16 %v8383, %v8382
    %v8409 = vpack.c.b16 %v8385, %v8384
    %v8410 = vpack.c.b16 %v8387, %v8386
    %v8411 = vpack.c.b16 %v8389, %v8388
    %v8412 = vpack.c.b16 %v8391, %v8390
    %v8413 = vpack.c.b16 %v8393, %v8392
    %v8414 = vpack.c.b16 %v8395, %v8394
    %v8415 = vpack.c.b16 %v8397, %v8396
    %v8416 = vpack.c.b16 %v8399, %v8398
    %v8417 = vpack.c.b16 %v8401, %v8400
    %8434 = vmatpush.bf16.msra.mxu0 %v8409
    %8435 = vmatpush.bf16.msra.mxu0 %v8408
    %8436 = vmatpush.bf16.msra.mxu0 %v8407
    %8437 = vmatpush.bf16.msra.mxu0 %v8406
    %8438 = vmatpush.bf16.msra.mxu0 %v8405
    %8439 = vmatpush.bf16.msra.mxu0 %v8404
    %8440 = vmatpush.bf16.msra.mxu0 %v8403
    %8441 = vmatpush.bf16.msra.mxu0 %v8402
    %8442 = vmatmul.bf16.gmra.mxu0 %v8331
    %v8443 = vpop.f32.mrf.mxu0
    %v8444 = vadd.f32 0.0, %v8443
    %v8445 = vpop.f32.mrf.mxu0
    %8446 = vdwg.mxu0
    %8447 = vmatpush.bf16.msra.mxu0 %v8417
    %8448 = vmatpush.bf16.msra.mxu0 %v8416
    %8449 = vmatpush.bf16.msra.mxu0 %v8415
    %8450 = vmatpush.bf16.msra.mxu0 %v8414
    %8451 = vmatpush.bf16.msra.mxu0 %v8413
    %8452 = vmatpush.bf16.msra.mxu0 %v8412
    %8453 = vmatpush.bf16.msra.mxu0 %v8411
    %8454 = vmatpush.bf16.msra.mxu0 %v8410
    %8455 = vmatmul.bf16.gmra.mxu0 %v8334
    %v8456 = vpop.f32.mrf.mxu0
    %v8457 = vadd.f32 %v8444, %v8456
    %v8458 = vpop.f32.mrf.mxu0
    %8459 = vdwg.mxu0
    %v8492 = vunpack.c.l.b16 %v8264
    %v8493 = vunpack.c.l.b16 %v8265
    %v8494 = vunpack.c.l.b16 %v8266
    %v8495 = vunpack.c.l.b16 %v8267
    %v8496 = vunpack.c.l.b16 %v8268
    %v8497 = vunpack.c.l.b16 %v8269
    %v8498 = vunpack.c.l.b16 %v8270
    %v8499 = vunpack.c.l.b16 %v8271
    %v8500 = vunpack.c.l.b16 %v8272
    %v8501 = vunpack.c.l.b16 %v8273
    %v8502 = vunpack.c.l.b16 %v8274
    %v8503 = vunpack.c.l.b16 %v8275
    %v8504 = vunpack.c.l.b16 %v8276
    %v8505 = vunpack.c.l.b16 %v8277
    %v8506 = vunpack.c.l.b16 %v8278
    %v8507 = vunpack.c.l.b16 %v8279
    %v8508 = vunpack.c.l.b16 %v8280
    %v8509 = vunpack.c.l.b16 %v8281
    %v8510 = vunpack.c.l.b16 %v8282
    %v8511 = vunpack.c.l.b16 %v8283
    %v8512 = vunpack.c.l.b16 %v8284
    %v8513 = vunpack.c.l.b16 %v8285
    %v8514 = vunpack.c.l.b16 %v8286
    %v8515 = vunpack.c.l.b16 %v8287
    %v8516 = vunpack.c.l.b16 %v8288
    %v8517 = vunpack.c.l.b16 %v8289
    %v8518 = vunpack.c.l.b16 %v8290
    %v8519 = vunpack.c.l.b16 %v8291
    %v8520 = vunpack.c.l.b16 %v8292
    %v8521 = vunpack.c.l.b16 %v8293
    %v8522 = vunpack.c.l.b16 %v8294
    %v8523 = vunpack.c.l.b16 %v8295
    %v8524 = vpack.c.b16 %v8493, %v8492
    %v8525 = vpack.c.b16 %v8495, %v8494
    %v8526 = vpack.c.b16 %v8497, %v8496
    %v8527 = vpack.c.b16 %v8499, %v8498
    %v8528 = vpack.c.b16 %v8501, %v8500
    %v8529 = vpack.c.b16 %v8503, %v8502
    %v8530 = vpack.c.b16 %v8505, %v8504
    %v8531 = vpack.c.b16 %v8507, %v8506
    %v8532 = vpack.c.b16 %v8509, %v8508
    %v8533 = vpack.c.b16 %v8511, %v8510
    %v8534 = vpack.c.b16 %v8513, %v8512
    %v8535 = vpack.c.b16 %v8515, %v8514
    %v8536 = vpack.c.b16 %v8517, %v8516
    %v8537 = vpack.c.b16 %v8519, %v8518
    %v8538 = vpack.c.b16 %v8521, %v8520
    %v8539 = vpack.c.b16 %v8523, %v8522
    %8556 = vmatpush.bf16.msra.mxu0 %v8531
    %8557 = vmatpush.bf16.msra.mxu0 %v8530
    %8558 = vmatpush.bf16.msra.mxu0 %v8529
    %8559 = vmatpush.bf16.msra.mxu0 %v8528
    %8560 = vmatpush.bf16.msra.mxu0 %v8527
    %8561 = vmatpush.bf16.msra.mxu0 %v8526
    %8562 = vmatpush.bf16.msra.mxu0 %v8525
    %8563 = vmatpush.bf16.msra.mxu0 %v8524
    %8564 = vmatmul.bf16.gmra.mxu0 %v8296
    %v8565 = vpop.f32.mrf.mxu0
    %v8566 = vadd.f32 %v8457, %v8565
    %v8567 = vpop.f32.mrf.mxu0
    %8568 = vdwg.mxu0
    %8569 = vmatpush.bf16.msra.mxu0 %v8539
    %8570 = vmatpush.bf16.msra.mxu0 %v8538
    %8571 = vmatpush.bf16.msra.mxu0 %v8537
    %8572 = vmatpush.bf16.msra.mxu0 %v8536
    %8573 = vmatpush.bf16.msra.mxu0 %v8535
    %8574 = vmatpush.bf16.msra.mxu0 %v8534
    %8575 = vmatpush.bf16.msra.mxu0 %v8533
    %8576 = vmatpush.bf16.msra.mxu0 %v8532
    %8577 = vmatmul.bf16.gmra.mxu0 %v8297
    %v8578 = vpop.f32.mrf.mxu0
    %v8579 = vadd.f32 %v8566, %v8578
    %v8580 = vpop.f32.mrf.mxu0
    %8581 = vdwg.mxu0
    %v8582 = vld [vmem:[%s3806] sm:$0xf]
    %v8583 = vld [vmem:[%s3806 + $0x4] sm:$0xf]
    %v8584 = vld [vmem:[%s3806 + $0x8] sm:$0xf]
    %v8585 = vld [vmem:[%s3806 + $0xc] sm:$0xf]
    %v8586 = vld [vmem:[%s3806 + $0x10] sm:$0xf]
    %v8587 = vld [vmem:[%s3806 + $0x14] sm:$0xf]
    %v8588 = vld [vmem:[%s3806 + $0x18] sm:$0xf]
    %v8589 = vld [vmem:[%s3806 + $0x1c] sm:$0xf]
    %v8590 = vld [vmem:[%s3806 + $0x20] sm:$0xf]
    %v8591 = vld [vmem:[%s3806 + $0x24] sm:$0xf]
    %v8592 = vld [vmem:[%s3806 + $0x28] sm:$0xf]
    %v8593 = vld [vmem:[%s3806 + $0x2c] sm:$0xf]
    %v8594 = vld [vmem:[%s3806 + $0x30] sm:$0xf]
    %v8595 = vld [vmem:[%s3806 + $0x34] sm:$0xf]
    %v8596 = vld [vmem:[%s3806 + $0x38] sm:$0xf]
    %v8597 = vld [vmem:[%s3806 + $0x3c] sm:$0xf]
    %v8598 = vld [vmem:[%s3806 + $0x40] sm:$0xf]
    %v8599 = vld [vmem:[%s3806 + $0x44] sm:$0xf]
    %v8600 = vld [vmem:[%s3806 + $0x48] sm:$0xf]
    %v8601 = vld [vmem:[%s3806 + $0x4c] sm:$0xf]
    %v8602 = vld [vmem:[%s3806 + $0x50] sm:$0xf]
    %v8603 = vld [vmem:[%s3806 + $0x54] sm:$0xf]
    %v8604 = vld [vmem:[%s3806 + $0x58] sm:$0xf]
    %v8605 = vld [vmem:[%s3806 + $0x5c] sm:$0xf]
    %v8606 = vld [vmem:[%s3806 + $0x60] sm:$0xf]
    %v8607 = vld [vmem:[%s3806 + $0x64] sm:$0xf]
    %v8608 = vld [vmem:[%s3806 + $0x68] sm:$0xf]
    %v8609 = vld [vmem:[%s3806 + $0x6c] sm:$0xf]
    %v8610 = vld [vmem:[%s3806 + $0x70] sm:$0xf]
    %v8611 = vld [vmem:[%s3806 + $0x74] sm:$0xf]
    %v8612 = vld [vmem:[%s3806 + $0x78] sm:$0xf]
    %v8613 = vld [vmem:[%s3806 + $0x7c] sm:$0xf]
    %v8616 = vrot.slane %v8296, 1
    %v8617 = vrot.slane %v8297, 1
    %v8652 = vunpack.c.l.b16 %v8582
    %v8653 = vunpack.c.l.b16 %v8583
    %v8654 = vunpack.c.l.b16 %v8584
    %v8655 = vunpack.c.l.b16 %v8585
    %v8656 = vunpack.c.l.b16 %v8586
    %v8657 = vunpack.c.l.b16 %v8587
    %v8658 = vunpack.c.l.b16 %v8588
    %v8659 = vunpack.c.l.b16 %v8589
    %v8660 = vunpack.c.l.b16 %v8590
    %v8661 = vunpack.c.l.b16 %v8591
    %v8662 = vunpack.c.l.b16 %v8592
    %v8663 = vunpack.c.l.b16 %v8593
    %v8664 = vunpack.c.l.b16 %v8594
    %v8665 = vunpack.c.l.b16 %v8595
    %v8666 = vunpack.c.l.b16 %v8596
    %v8667 = vunpack.c.l.b16 %v8597
    %v8668 = vunpack.c.l.b16 %v8598
    %v8669 = vunpack.c.l.b16 %v8599
    %v8670 = vunpack.c.l.b16 %v8600
    %v8671 = vunpack.c.l.b16 %v8601
    %v8672 = vunpack.c.l.b16 %v8602
    %v8673 = vunpack.c.l.b16 %v8603
    %v8674 = vunpack.c.l.b16 %v8604
    %v8675 = vunpack.c.l.b16 %v8605
    %v8676 = vunpack.c.l.b16 %v8606
    %v8677 = vunpack.c.l.b16 %v8607
    %v8678 = vunpack.c.l.b16 %v8608
    %v8679 = vunpack.c.l.b16 %v8609
    %v8680 = vunpack.c.l.b16 %v8610
    %v8681 = vunpack.c.l.b16 %v8611
    %v8682 = vunpack.c.l.b16 %v8612
    %v8683 = vunpack.c.l.b16 %v8613
    %v8684 = vpack.c.b16 %v8653, %v8652
    %v8685 = vpack.c.b16 %v8655, %v8654
    %v8686 = vpack.c.b16 %v8657, %v8656
    %v8687 = vpack.c.b16 %v8659, %v8658
    %v8688 = vpack.c.b16 %v8661, %v8660
    %v8689 = vpack.c.b16 %v8663, %v8662
    %v8690 = vpack.c.b16 %v8665, %v8664
    %v8691 = vpack.c.b16 %v8667, %v8666
    %v8692 = vpack.c.b16 %v8669, %v8668
    %v8693 = vpack.c.b16 %v8671, %v8670
    %v8694 = vpack.c.b16 %v8673, %v8672
    %v8695 = vpack.c.b16 %v8675, %v8674
    %v8696 = vpack.c.b16 %v8677, %v8676
    %v8697 = vpack.c.b16 %v8679, %v8678
    %v8698 = vpack.c.b16 %v8681, %v8680
    %v8699 = vpack.c.b16 %v8683, %v8682
    %8716 = vmatpush.bf16.msra.mxu0 %v8691
    %8717 = vmatpush.bf16.msra.mxu0 %v8690
    %8718 = vmatpush.bf16.msra.mxu0 %v8689
    %8719 = vmatpush.bf16.msra.mxu0 %v8688
    %8720 = vmatpush.bf16.msra.mxu0 %v8687
    %8721 = vmatpush.bf16.msra.mxu0 %v8686
    %8722 = vmatpush.bf16.msra.mxu0 %v8685
    %8723 = vmatpush.bf16.msra.mxu0 %v8684
    %8724 = vmatmul.bf16.gmra.mxu0 %v8616
    %v8725 = vpop.f32.mrf.mxu0
    %v8726 = vadd.f32 0.0, %v8725
    %v8727 = vpop.f32.mrf.mxu0
    %8728 = vdwg.mxu0
    %8729 = vmatpush.bf16.msra.mxu0 %v8699
    %8730 = vmatpush.bf16.msra.mxu0 %v8698
    %8731 = vmatpush.bf16.msra.mxu0 %v8697
    %8732 = vmatpush.bf16.msra.mxu0 %v8696
    %8733 = vmatpush.bf16.msra.mxu0 %v8695
    %8734 = vmatpush.bf16.msra.mxu0 %v8694
    %8735 = vmatpush.bf16.msra.mxu0 %v8693
    %8736 = vmatpush.bf16.msra.mxu0 %v8692
    %8737 = vmatmul.bf16.gmra.mxu0 %v8617
    %v8738 = vpop.f32.mrf.mxu0
    %v8739 = vadd.f32 %v8726, %v8738
    %v8740 = vpop.f32.mrf.mxu0
    %8741 = vdwg.mxu0
    %v8742 = vadd.f32 %v8579, %v8739
    %v8743 = vld [vmem:[%s3968] sm:$0xf]
    %v8744 = vld [vmem:[%s3968 + $0x4] sm:$0xf]
    %v8745 = vld [vmem:[%s3968 + $0x8] sm:$0xf]
    %v8746 = vld [vmem:[%s3968 + $0xc] sm:$0xf]
    %v8747 = vld [vmem:[%s3968 + $0x10] sm:$0xf]
    %v8748 = vld [vmem:[%s3968 + $0x14] sm:$0xf]
    %v8749 = vld [vmem:[%s3968 + $0x18] sm:$0xf]
    %v8750 = vld [vmem:[%s3968 + $0x1c] sm:$0xf]
    %v8751 = vld [vmem:[%s3968 + $0x20] sm:$0xf]
    %v8752 = vld [vmem:[%s3968 + $0x24] sm:$0xf]
    %v8753 = vld [vmem:[%s3968 + $0x28] sm:$0xf]
    %v8754 = vld [vmem:[%s3968 + $0x2c] sm:$0xf]
    %v8755 = vld [vmem:[%s3968 + $0x30] sm:$0xf]
    %v8756 = vld [vmem:[%s3968 + $0x34] sm:$0xf]
    %v8757 = vld [vmem:[%s3968 + $0x38] sm:$0xf]
    %v8758 = vld [vmem:[%s3968 + $0x3c] sm:$0xf]
    %v8759 = vld [vmem:[%s3968 + $0x40] sm:$0xf]
    %v8760 = vld [vmem:[%s3968 + $0x44] sm:$0xf]
    %v8761 = vld [vmem:[%s3968 + $0x48] sm:$0xf]
    %v8762 = vld [vmem:[%s3968 + $0x4c] sm:$0xf]
    %v8763 = vld [vmem:[%s3968 + $0x50] sm:$0xf]
    %v8764 = vld [vmem:[%s3968 + $0x54] sm:$0xf]
    %v8765 = vld [vmem:[%s3968 + $0x58] sm:$0xf]
    %v8766 = vld [vmem:[%s3968 + $0x5c] sm:$0xf]
    %v8767 = vld [vmem:[%s3968 + $0x60] sm:$0xf]
    %v8768 = vld [vmem:[%s3968 + $0x64] sm:$0xf]
    %v8769 = vld [vmem:[%s3968 + $0x68] sm:$0xf]
    %v8770 = vld [vmem:[%s3968 + $0x6c] sm:$0xf]
    %v8771 = vld [vmem:[%s3968 + $0x70] sm:$0xf]
    %v8772 = vld [vmem:[%s3968 + $0x74] sm:$0xf]
    %v8773 = vld [vmem:[%s3968 + $0x78] sm:$0xf]
    %v8774 = vld [vmem:[%s3968 + $0x7c] sm:$0xf]
    %v8775 = vrot.slane %v8331, 1
    %v8776 = vrot.slane %v8334, 1
    %v8811 = vunpack.c.l.b16 %v8743
    %v8812 = vunpack.c.l.b16 %v8744
    %v8813 = vunpack.c.l.b16 %v8745
    %v8814 = vunpack.c.l.b16 %v8746
    %v8815 = vunpack.c.l.b16 %v8747
    %v8816 = vunpack.c.l.b16 %v8748
    %v8817 = vunpack.c.l.b16 %v8749
    %v8818 = vunpack.c.l.b16 %v8750
    %v8819 = vunpack.c.l.b16 %v8751
    %v8820 = vunpack.c.l.b16 %v8752
    %v8821 = vunpack.c.l.b16 %v8753
    %v8822 = vunpack.c.l.b16 %v8754
    %v8823 = vunpack.c.l.b16 %v8755
    %v8824 = vunpack.c.l.b16 %v8756
    %v8825 = vunpack.c.l.b16 %v8757
    %v8826 = vunpack.c.l.b16 %v8758
    %v8827 = vunpack.c.l.b16 %v8759
    %v8828 = vunpack.c.l.b16 %v8760
    %v8829 = vunpack.c.l.b16 %v8761
    %v8830 = vunpack.c.l.b16 %v8762
    %v8831 = vunpack.c.l.b16 %v8763
    %v8832 = vunpack.c.l.b16 %v8764
    %v8833 = vunpack.c.l.b16 %v8765
    %v8834 = vunpack.c.l.b16 %v8766
    %v8835 = vunpack.c.l.b16 %v8767
    %v8836 = vunpack.c.l.b16 %v8768
    %v8837 = vunpack.c.l.b16 %v8769
    %v8838 = vunpack.c.l.b16 %v8770
    %v8839 = vunpack.c.l.b16 %v8771
    %v8840 = vunpack.c.l.b16 %v8772
    %v8841 = vunpack.c.l.b16 %v8773
    %v8842 = vunpack.c.l.b16 %v8774
    %v8843 = vpack.c.b16 %v8812, %v8811
    %v8844 = vpack.c.b16 %v8814, %v8813
    %v8845 = vpack.c.b16 %v8816, %v8815
    %v8846 = vpack.c.b16 %v8818, %v8817
    %v8847 = vpack.c.b16 %v8820, %v8819
    %v8848 = vpack.c.b16 %v8822, %v8821
    %v8849 = vpack.c.b16 %v8824, %v8823
    %v8850 = vpack.c.b16 %v8826, %v8825
    %v8851 = vpack.c.b16 %v8828, %v8827
    %v8852 = vpack.c.b16 %v8830, %v8829
    %v8853 = vpack.c.b16 %v8832, %v8831
    %v8854 = vpack.c.b16 %v8834, %v8833
    %v8855 = vpack.c.b16 %v8836, %v8835
    %v8856 = vpack.c.b16 %v8838, %v8837
    %v8857 = vpack.c.b16 %v8840, %v8839
    %v8858 = vpack.c.b16 %v8842, %v8841
    %8875 = vmatpush.bf16.msra.mxu0 %v8850
    %8876 = vmatpush.bf16.msra.mxu0 %v8849
    %8877 = vmatpush.bf16.msra.mxu0 %v8848
    %8878 = vmatpush.bf16.msra.mxu0 %v8847
    %8879 = vmatpush.bf16.msra.mxu0 %v8846
    %8880 = vmatpush.bf16.msra.mxu0 %v8845
    %8881 = vmatpush.bf16.msra.mxu0 %v8844
    %8882 = vmatpush.bf16.msra.mxu0 %v8843
    %8883 = vmatmul.bf16.gmra.mxu0 %v8775
    %v8884 = vpop.f32.mrf.mxu0
    %v8885 = vadd.f32 0.0, %v8884
    %v8886 = vpop.f32.mrf.mxu0
    %8887 = vdwg.mxu0
    %8888 = vmatpush.bf16.msra.mxu0 %v8858
    %8889 = vmatpush.bf16.msra.mxu0 %v8857
    %8890 = vmatpush.bf16.msra.mxu0 %v8856
    %8891 = vmatpush.bf16.msra.mxu0 %v8855
    %8892 = vmatpush.bf16.msra.mxu0 %v8854
    %8893 = vmatpush.bf16.msra.mxu0 %v8853
    %8894 = vmatpush.bf16.msra.mxu0 %v8852
    %8895 = vmatpush.bf16.msra.mxu0 %v8851
    %8896 = vmatmul.bf16.gmra.mxu0 %v8776
    %v8897 = vpop.f32.mrf.mxu0
    %v8898 = vadd.f32 %v8885, %v8897
    %v8899 = vpop.f32.mrf.mxu0
    %8900 = vdwg.mxu0
    %v8901 = vadd.f32 %v8742, %v8898
    %v8902 = vld [vmem:[%s4128] sm:$0xf]
    %v8903 = vld [vmem:[%s4128 + $0x4] sm:$0xf]
    %v8904 = vld [vmem:[%s4128 + $0x8] sm:$0xf]
    %v8905 = vld [vmem:[%s4128 + $0xc] sm:$0xf]
    %v8906 = vld [vmem:[%s4128 + $0x10] sm:$0xf]
    %v8907 = vld [vmem:[%s4128 + $0x14] sm:$0xf]
    %v8908 = vld [vmem:[%s4128 + $0x18] sm:$0xf]
    %v8909 = vld [vmem:[%s4128 + $0x1c] sm:$0xf]
    %v8910 = vld [vmem:[%s4128 + $0x20] sm:$0xf]
    %v8911 = vld [vmem:[%s4128 + $0x24] sm:$0xf]
    %v8912 = vld [vmem:[%s4128 + $0x28] sm:$0xf]
    %v8913 = vld [vmem:[%s4128 + $0x2c] sm:$0xf]
    %v8914 = vld [vmem:[%s4128 + $0x30] sm:$0xf]
    %v8915 = vld [vmem:[%s4128 + $0x34] sm:$0xf]
    %v8916 = vld [vmem:[%s4128 + $0x38] sm:$0xf]
    %v8917 = vld [vmem:[%s4128 + $0x3c] sm:$0xf]
    %v8918 = vld [vmem:[%s4128 + $0x40] sm:$0xf]
    %v8919 = vld [vmem:[%s4128 + $0x44] sm:$0xf]
    %v8920 = vld [vmem:[%s4128 + $0x48] sm:$0xf]
    %v8921 = vld [vmem:[%s4128 + $0x4c] sm:$0xf]
    %v8922 = vld [vmem:[%s4128 + $0x50] sm:$0xf]
    %v8923 = vld [vmem:[%s4128 + $0x54] sm:$0xf]
    %v8924 = vld [vmem:[%s4128 + $0x58] sm:$0xf]
    %v8925 = vld [vmem:[%s4128 + $0x5c] sm:$0xf]
    %v8926 = vld [vmem:[%s4128 + $0x60] sm:$0xf]
    %v8927 = vld [vmem:[%s4128 + $0x64] sm:$0xf]
    %v8928 = vld [vmem:[%s4128 + $0x68] sm:$0xf]
    %v8929 = vld [vmem:[%s4128 + $0x6c] sm:$0xf]
    %v8930 = vld [vmem:[%s4128 + $0x70] sm:$0xf]
    %v8931 = vld [vmem:[%s4128 + $0x74] sm:$0xf]
    %v8932 = vld [vmem:[%s4128 + $0x78] sm:$0xf]
    %v8933 = vld [vmem:[%s4128 + $0x7c] sm:$0xf]
    %v8934 = vrot.slane %v8296, 2
    %v8935 = vrot.slane %v8297, 2
    %v8970 = vunpack.c.l.b16 %v8902
    %v8971 = vunpack.c.l.b16 %v8903
    %v8972 = vunpack.c.l.b16 %v8904
    %v8973 = vunpack.c.l.b16 %v8905
    %v8974 = vunpack.c.l.b16 %v8906
    %v8975 = vunpack.c.l.b16 %v8907
    %v8976 = vunpack.c.l.b16 %v8908
    %v8977 = vunpack.c.l.b16 %v8909
    %v8978 = vunpack.c.l.b16 %v8910
    %v8979 = vunpack.c.l.b16 %v8911
    %v8980 = vunpack.c.l.b16 %v8912
    %v8981 = vunpack.c.l.b16 %v8913
    %v8982 = vunpack.c.l.b16 %v8914
    %v8983 = vunpack.c.l.b16 %v8915
    %v8984 = vunpack.c.l.b16 %v8916
    %v8985 = vunpack.c.l.b16 %v8917
    %v8986 = vunpack.c.l.b16 %v8918
    %v8987 = vunpack.c.l.b16 %v8919
    %v8988 = vunpack.c.l.b16 %v8920
    %v8989 = vunpack.c.l.b16 %v8921
    %v8990 = vunpack.c.l.b16 %v8922
    %v8991 = vunpack.c.l.b16 %v8923
    %v8992 = vunpack.c.l.b16 %v8924
    %v8993 = vunpack.c.l.b16 %v8925
    %v8994 = vunpack.c.l.b16 %v8926
    %v8995 = vunpack.c.l.b16 %v8927
    %v8996 = vunpack.c.l.b16 %v8928
    %v8997 = vunpack.c.l.b16 %v8929
    %v8998 = vunpack.c.l.b16 %v8930
    %v8999 = vunpack.c.l.b16 %v8931
    %v9000 = vunpack.c.l.b16 %v8932
    %v9001 = vunpack.c.l.b16 %v8933
    %v9002 = vpack.c.b16 %v8971, %v8970
    %v9003 = vpack.c.b16 %v8973, %v8972
    %v9004 = vpack.c.b16 %v8975, %v8974
    %v9005 = vpack.c.b16 %v8977, %v8976
    %v9006 = vpack.c.b16 %v8979, %v8978
    %v9007 = vpack.c.b16 %v8981, %v8980
    %v9008 = vpack.c.b16 %v8983, %v8982
    %v9009 = vpack.c.b16 %v8985, %v8984
    %v9010 = vpack.c.b16 %v8987, %v8986
    %v9011 = vpack.c.b16 %v8989, %v8988
    %v9012 = vpack.c.b16 %v8991, %v8990
    %v9013 = vpack.c.b16 %v8993, %v8992
    %v9014 = vpack.c.b16 %v8995, %v8994
    %v9015 = vpack.c.b16 %v8997, %v8996
    %v9016 = vpack.c.b16 %v8999, %v8998
    %v9017 = vpack.c.b16 %v9001, %v9000
    %9034 = vmatpush.bf16.msra.mxu0 %v9009
    %9035 = vmatpush.bf16.msra.mxu0 %v9008
    %9036 = vmatpush.bf16.msra.mxu0 %v9007
    %9037 = vmatpush.bf16.msra.mxu0 %v9006
    %9038 = vmatpush.bf16.msra.mxu0 %v9005
    %9039 = vmatpush.bf16.msra.mxu0 %v9004
    %9040 = vmatpush.bf16.msra.mxu0 %v9003
    %9041 = vmatpush.bf16.msra.mxu0 %v9002
    %9042 = vmatmul.bf16.gmra.mxu0 %v8934
    %v9043 = vpop.f32.mrf.mxu0
    %v9044 = vadd.f32 0.0, %v9043
    %v9045 = vpop.f32.mrf.mxu0
    %9046 = vdwg.mxu0
    %9047 = vmatpush.bf16.msra.mxu0 %v9017
    %9048 = vmatpush.bf16.msra.mxu0 %v9016
    %9049 = vmatpush.bf16.msra.mxu0 %v9015
    %9050 = vmatpush.bf16.msra.mxu0 %v9014
    %9051 = vmatpush.bf16.msra.mxu0 %v9013
    %9052 = vmatpush.bf16.msra.mxu0 %v9012
    %9053 = vmatpush.bf16.msra.mxu0 %v9011
    %9054 = vmatpush.bf16.msra.mxu0 %v9010
    %9055 = vmatmul.bf16.gmra.mxu0 %v8935
    %v9056 = vpop.f32.mrf.mxu0
    %v9057 = vadd.f32 %v9044, %v9056
    %v9058 = vpop.f32.mrf.mxu0
    %9059 = vdwg.mxu0
    %v9060 = vadd.f32 %v8901, %v9057
    %v9061 = vld [vmem:[%s4288] sm:$0xf]
    %v9062 = vld [vmem:[%s4288 + $0x4] sm:$0xf]
    %v9063 = vld [vmem:[%s4288 + $0x8] sm:$0xf]
    %v9064 = vld [vmem:[%s4288 + $0xc] sm:$0xf]
    %v9065 = vld [vmem:[%s4288 + $0x10] sm:$0xf]
    %v9066 = vld [vmem:[%s4288 + $0x14] sm:$0xf]
    %v9067 = vld [vmem:[%s4288 + $0x18] sm:$0xf]
    %v9068 = vld [vmem:[%s4288 + $0x1c] sm:$0xf]
    %v9069 = vld [vmem:[%s4288 + $0x20] sm:$0xf]
    %v9070 = vld [vmem:[%s4288 + $0x24] sm:$0xf]
    %v9071 = vld [vmem:[%s4288 + $0x28] sm:$0xf]
    %v9072 = vld [vmem:[%s4288 + $0x2c] sm:$0xf]
    %v9073 = vld [vmem:[%s4288 + $0x30] sm:$0xf]
    %v9074 = vld [vmem:[%s4288 + $0x34] sm:$0xf]
    %v9075 = vld [vmem:[%s4288 + $0x38] sm:$0xf]
    %v9076 = vld [vmem:[%s4288 + $0x3c] sm:$0xf]
    %v9077 = vld [vmem:[%s4288 + $0x40] sm:$0xf]
    %v9078 = vld [vmem:[%s4288 + $0x44] sm:$0xf]
    %v9079 = vld [vmem:[%s4288 + $0x48] sm:$0xf]
    %v9080 = vld [vmem:[%s4288 + $0x4c] sm:$0xf]
    %v9081 = vld [vmem:[%s4288 + $0x50] sm:$0xf]
    %v9082 = vld [vmem:[%s4288 + $0x54] sm:$0xf]
    %v9083 = vld [vmem:[%s4288 + $0x58] sm:$0xf]
    %v9084 = vld [vmem:[%s4288 + $0x5c] sm:$0xf]
    %v9085 = vld [vmem:[%s4288 + $0x60] sm:$0xf]
    %v9086 = vld [vmem:[%s4288 + $0x64] sm:$0xf]
    %v9087 = vld [vmem:[%s4288 + $0x68] sm:$0xf]
    %v9088 = vld [vmem:[%s4288 + $0x6c] sm:$0xf]
    %v9089 = vld [vmem:[%s4288 + $0x70] sm:$0xf]
    %v9090 = vld [vmem:[%s4288 + $0x74] sm:$0xf]
    %v9091 = vld [vmem:[%s4288 + $0x78] sm:$0xf]
    %v9092 = vld [vmem:[%s4288 + $0x7c] sm:$0xf]
    %v9093 = vrot.slane %v8331, 2
    %v9094 = vrot.slane %v8334, 2
    %v9129 = vunpack.c.l.b16 %v9061
    %v9130 = vunpack.c.l.b16 %v9062
    %v9131 = vunpack.c.l.b16 %v9063
    %v9132 = vunpack.c.l.b16 %v9064
    %v9133 = vunpack.c.l.b16 %v9065
    %v9134 = vunpack.c.l.b16 %v9066
    %v9135 = vunpack.c.l.b16 %v9067
    %v9136 = vunpack.c.l.b16 %v9068
    %v9137 = vunpack.c.l.b16 %v9069
    %v9138 = vunpack.c.l.b16 %v9070
    %v9139 = vunpack.c.l.b16 %v9071
    %v9140 = vunpack.c.l.b16 %v9072
    %v9141 = vunpack.c.l.b16 %v9073
    %v9142 = vunpack.c.l.b16 %v9074
    %v9143 = vunpack.c.l.b16 %v9075
    %v9144 = vunpack.c.l.b16 %v9076
    %v9145 = vunpack.c.l.b16 %v9077
    %v9146 = vunpack.c.l.b16 %v9078
    %v9147 = vunpack.c.l.b16 %v9079
    %v9148 = vunpack.c.l.b16 %v9080
    %v9149 = vunpack.c.l.b16 %v9081
    %v9150 = vunpack.c.l.b16 %v9082
    %v9151 = vunpack.c.l.b16 %v9083
    %v9152 = vunpack.c.l.b16 %v9084
    %v9153 = vunpack.c.l.b16 %v9085
    %v9154 = vunpack.c.l.b16 %v9086
    %v9155 = vunpack.c.l.b16 %v9087
    %v9156 = vunpack.c.l.b16 %v9088
    %v9157 = vunpack.c.l.b16 %v9089
    %v9158 = vunpack.c.l.b16 %v9090
    %v9159 = vunpack.c.l.b16 %v9091
    %v9160 = vunpack.c.l.b16 %v9092
    %v9161 = vpack.c.b16 %v9130, %v9129
    %v9162 = vpack.c.b16 %v9132, %v9131
    %v9163 = vpack.c.b16 %v9134, %v9133
    %v9164 = vpack.c.b16 %v9136, %v9135
    %v9165 = vpack.c.b16 %v9138, %v9137
    %v9166 = vpack.c.b16 %v9140, %v9139
    %v9167 = vpack.c.b16 %v9142, %v9141
    %v9168 = vpack.c.b16 %v9144, %v9143
    %v9169 = vpack.c.b16 %v9146, %v9145
    %v9170 = vpack.c.b16 %v9148, %v9147
    %v9171 = vpack.c.b16 %v9150, %v9149
    %v9172 = vpack.c.b16 %v9152, %v9151
    %v9173 = vpack.c.b16 %v9154, %v9153
    %v9174 = vpack.c.b16 %v9156, %v9155
    %v9175 = vpack.c.b16 %v9158, %v9157
    %v9176 = vpack.c.b16 %v9160, %v9159
    %9193 = vmatpush.bf16.msra.mxu0 %v9168
    %9194 = vmatpush.bf16.msra.mxu0 %v9167
    %9195 = vmatpush.bf16.msra.mxu0 %v9166
    %9196 = vmatpush.bf16.msra.mxu0 %v9165
    %9197 = vmatpush.bf16.msra.mxu0 %v9164
    %9198 = vmatpush.bf16.msra.mxu0 %v9163
    %9199 = vmatpush.bf16.msra.mxu0 %v9162
    %9200 = vmatpush.bf16.msra.mxu0 %v9161
    %9201 = vmatmul.bf16.gmra.mxu0 %v9093
    %v9202 = vpop.f32.mrf.mxu0
    %v9203 = vadd.f32 0.0, %v9202
    %v9204 = vpop.f32.mrf.mxu0
    %9205 = vdwg.mxu0
    %9206 = vmatpush.bf16.msra.mxu0 %v9176
    %9207 = vmatpush.bf16.msra.mxu0 %v9175
    %9208 = vmatpush.bf16.msra.mxu0 %v9174
    %9209 = vmatpush.bf16.msra.mxu0 %v9173
    %9210 = vmatpush.bf16.msra.mxu0 %v9172
    %9211 = vmatpush.bf16.msra.mxu0 %v9171
    %9212 = vmatpush.bf16.msra.mxu0 %v9170
    %9213 = vmatpush.bf16.msra.mxu0 %v9169
    %9214 = vmatmul.bf16.gmra.mxu0 %v9094
    %v9215 = vpop.f32.mrf.mxu0
    %v9216 = vadd.f32 %v9203, %v9215
    %v9217 = vpop.f32.mrf.mxu0
    %9218 = vdwg.mxu0
    %v9219 = vadd.f32 %v9060, %v9216
    %v9220 = vld [vmem:[%s4448] sm:$0xf]
    %v9221 = vld [vmem:[%s4448 + $0x4] sm:$0xf]
    %v9222 = vld [vmem:[%s4448 + $0x8] sm:$0xf]
    %v9223 = vld [vmem:[%s4448 + $0xc] sm:$0xf]
    %v9224 = vld [vmem:[%s4448 + $0x10] sm:$0xf]
    %v9225 = vld [vmem:[%s4448 + $0x14] sm:$0xf]
    %v9226 = vld [vmem:[%s4448 + $0x18] sm:$0xf]
    %v9227 = vld [vmem:[%s4448 + $0x1c] sm:$0xf]
    %v9228 = vld [vmem:[%s4448 + $0x20] sm:$0xf]
    %v9229 = vld [vmem:[%s4448 + $0x24] sm:$0xf]
    %v9230 = vld [vmem:[%s4448 + $0x28] sm:$0xf]
    %v9231 = vld [vmem:[%s4448 + $0x2c] sm:$0xf]
    %v9232 = vld [vmem:[%s4448 + $0x30] sm:$0xf]
    %v9233 = vld [vmem:[%s4448 + $0x34] sm:$0xf]
    %v9234 = vld [vmem:[%s4448 + $0x38] sm:$0xf]
    %v9235 = vld [vmem:[%s4448 + $0x3c] sm:$0xf]
    %v9236 = vld [vmem:[%s4448 + $0x40] sm:$0xf]
    %v9237 = vld [vmem:[%s4448 + $0x44] sm:$0xf]
    %v9238 = vld [vmem:[%s4448 + $0x48] sm:$0xf]
    %v9239 = vld [vmem:[%s4448 + $0x4c] sm:$0xf]
    %v9240 = vld [vmem:[%s4448 + $0x50] sm:$0xf]
    %v9241 = vld [vmem:[%s4448 + $0x54] sm:$0xf]
    %v9242 = vld [vmem:[%s4448 + $0x58] sm:$0xf]
    %v9243 = vld [vmem:[%s4448 + $0x5c] sm:$0xf]
    %v9244 = vld [vmem:[%s4448 + $0x60] sm:$0xf]
    %v9245 = vld [vmem:[%s4448 + $0x64] sm:$0xf]
    %v9246 = vld [vmem:[%s4448 + $0x68] sm:$0xf]
    %v9247 = vld [vmem:[%s4448 + $0x6c] sm:$0xf]
    %v9248 = vld [vmem:[%s4448 + $0x70] sm:$0xf]
    %v9249 = vld [vmem:[%s4448 + $0x74] sm:$0xf]
    %v9250 = vld [vmem:[%s4448 + $0x78] sm:$0xf]
    %v9251 = vld [vmem:[%s4448 + $0x7c] sm:$0xf]
    %v9252 = vrot.slane %v8296, 3
    %v9253 = vrot.slane %v8297, 3
    %v9288 = vunpack.c.l.b16 %v9220
    %v9289 = vunpack.c.l.b16 %v9221
    %v9290 = vunpack.c.l.b16 %v9222
    %v9291 = vunpack.c.l.b16 %v9223
    %v9292 = vunpack.c.l.b16 %v9224
    %v9293 = vunpack.c.l.b16 %v9225
    %v9294 = vunpack.c.l.b16 %v9226
    %v9295 = vunpack.c.l.b16 %v9227
    %v9296 = vunpack.c.l.b16 %v9228
    %v9297 = vunpack.c.l.b16 %v9229
    %v9298 = vunpack.c.l.b16 %v9230
    %v9299 = vunpack.c.l.b16 %v9231
    %v9300 = vunpack.c.l.b16 %v9232
    %v9301 = vunpack.c.l.b16 %v9233
    %v9302 = vunpack.c.l.b16 %v9234
    %v9303 = vunpack.c.l.b16 %v9235
    %v9304 = vunpack.c.l.b16 %v9236
    %v9305 = vunpack.c.l.b16 %v9237
    %v9306 = vunpack.c.l.b16 %v9238
    %v9307 = vunpack.c.l.b16 %v9239
    %v9308 = vunpack.c.l.b16 %v9240
    %v9309 = vunpack.c.l.b16 %v9241
    %v9310 = vunpack.c.l.b16 %v9242
    %v9311 = vunpack.c.l.b16 %v9243
    %v9312 = vunpack.c.l.b16 %v9244
    %v9313 = vunpack.c.l.b16 %v9245
    %v9314 = vunpack.c.l.b16 %v9246
    %v9315 = vunpack.c.l.b16 %v9247
    %v9316 = vunpack.c.l.b16 %v9248
    %v9317 = vunpack.c.l.b16 %v9249
    %v9318 = vunpack.c.l.b16 %v9250
    %v9319 = vunpack.c.l.b16 %v9251
    %v9320 = vpack.c.b16 %v9289, %v9288
    %v9321 = vpack.c.b16 %v9291, %v9290
    %v9322 = vpack.c.b16 %v9293, %v9292
    %v9323 = vpack.c.b16 %v9295, %v9294
    %v9324 = vpack.c.b16 %v9297, %v9296
    %v9325 = vpack.c.b16 %v9299, %v9298
    %v9326 = vpack.c.b16 %v9301, %v9300
    %v9327 = vpack.c.b16 %v9303, %v9302
    %v9328 = vpack.c.b16 %v9305, %v9304
    %v9329 = vpack.c.b16 %v9307, %v9306
    %v9330 = vpack.c.b16 %v9309, %v9308
    %v9331 = vpack.c.b16 %v9311, %v9310
    %v9332 = vpack.c.b16 %v9313, %v9312
    %v9333 = vpack.c.b16 %v9315, %v9314
    %v9334 = vpack.c.b16 %v9317, %v9316
    %v9335 = vpack.c.b16 %v9319, %v9318
    %9352 = vmatpush.bf16.msra.mxu0 %v9327
    %9353 = vmatpush.bf16.msra.mxu0 %v9326
    %9354 = vmatpush.bf16.msra.mxu0 %v9325
    %9355 = vmatpush.bf16.msra.mxu0 %v9324
    %9356 = vmatpush.bf16.msra.mxu0 %v9323
    %9357 = vmatpush.bf16.msra.mxu0 %v9322
    %9358 = vmatpush.bf16.msra.mxu0 %v9321
    %9359 = vmatpush.bf16.msra.mxu0 %v9320
    %9360 = vmatmul.bf16.gmra.mxu0 %v9252
    %v9361 = vpop.f32.mrf.mxu0
    %v9362 = vadd.f32 0.0, %v9361
    %v9363 = vpop.f32.mrf.mxu0
    %9364 = vdwg.mxu0
    %9365 = vmatpush.bf16.msra.mxu0 %v9335
    %9366 = vmatpush.bf16.msra.mxu0 %v9334
    %9367 = vmatpush.bf16.msra.mxu0 %v9333
    %9368 = vmatpush.bf16.msra.mxu0 %v9332
    %9369 = vmatpush.bf16.msra.mxu0 %v9331
    %9370 = vmatpush.bf16.msra.mxu0 %v9330
    %9371 = vmatpush.bf16.msra.mxu0 %v9329
    %9372 = vmatpush.bf16.msra.mxu0 %v9328
    %9373 = vmatmul.bf16.gmra.mxu0 %v9253
    %v9374 = vpop.f32.mrf.mxu0
    %v9375 = vadd.f32 %v9362, %v9374
    %v9376 = vpop.f32.mrf.mxu0
    %9377 = vdwg.mxu0
    %v9378 = vadd.f32 %v9219, %v9375
    %v9379 = vld [vmem:[%s4608] sm:$0xf]
    %v9380 = vld [vmem:[%s4608 + $0x4] sm:$0xf]
    %v9381 = vld [vmem:[%s4608 + $0x8] sm:$0xf]
    %v9382 = vld [vmem:[%s4608 + $0xc] sm:$0xf]
    %v9383 = vld [vmem:[%s4608 + $0x10] sm:$0xf]
    %v9384 = vld [vmem:[%s4608 + $0x14] sm:$0xf]
    %v9385 = vld [vmem:[%s4608 + $0x18] sm:$0xf]
    %v9386 = vld [vmem:[%s4608 + $0x1c] sm:$0xf]
    %v9387 = vld [vmem:[%s4608 + $0x20] sm:$0xf]
    %v9388 = vld [vmem:[%s4608 + $0x24] sm:$0xf]
    %v9389 = vld [vmem:[%s4608 + $0x28] sm:$0xf]
    %v9390 = vld [vmem:[%s4608 + $0x2c] sm:$0xf]
    %v9391 = vld [vmem:[%s4608 + $0x30] sm:$0xf]
    %v9392 = vld [vmem:[%s4608 + $0x34] sm:$0xf]
    %v9393 = vld [vmem:[%s4608 + $0x38] sm:$0xf]
    %v9394 = vld [vmem:[%s4608 + $0x3c] sm:$0xf]
    %v9395 = vld [vmem:[%s4608 + $0x40] sm:$0xf]
    %v9396 = vld [vmem:[%s4608 + $0x44] sm:$0xf]
    %v9397 = vld [vmem:[%s4608 + $0x48] sm:$0xf]
    %v9398 = vld [vmem:[%s4608 + $0x4c] sm:$0xf]
    %v9399 = vld [vmem:[%s4608 + $0x50] sm:$0xf]
    %v9400 = vld [vmem:[%s4608 + $0x54] sm:$0xf]
    %v9401 = vld [vmem:[%s4608 + $0x58] sm:$0xf]
    %v9402 = vld [vmem:[%s4608 + $0x5c] sm:$0xf]
    %v9403 = vld [vmem:[%s4608 + $0x60] sm:$0xf]
    %v9404 = vld [vmem:[%s4608 + $0x64] sm:$0xf]
    %v9405 = vld [vmem:[%s4608 + $0x68] sm:$0xf]
    %v9406 = vld [vmem:[%s4608 + $0x6c] sm:$0xf]
    %v9407 = vld [vmem:[%s4608 + $0x70] sm:$0xf]
    %v9408 = vld [vmem:[%s4608 + $0x74] sm:$0xf]
    %v9409 = vld [vmem:[%s4608 + $0x78] sm:$0xf]
    %v9410 = vld [vmem:[%s4608 + $0x7c] sm:$0xf]
    %v9411 = vrot.slane %v8331, 3
    %v9412 = vrot.slane %v8334, 3
    %v9447 = vunpack.c.l.b16 %v9379
    %v9448 = vunpack.c.l.b16 %v9380
    %v9449 = vunpack.c.l.b16 %v9381
    %v9450 = vunpack.c.l.b16 %v9382
    %v9451 = vunpack.c.l.b16 %v9383
    %v9452 = vunpack.c.l.b16 %v9384
    %v9453 = vunpack.c.l.b16 %v9385
    %v9454 = vunpack.c.l.b16 %v9386
    %v9455 = vunpack.c.l.b16 %v9387
    %v9456 = vunpack.c.l.b16 %v9388
    %v9457 = vunpack.c.l.b16 %v9389
    %v9458 = vunpack.c.l.b16 %v9390
    %v9459 = vunpack.c.l.b16 %v9391
    %v9460 = vunpack.c.l.b16 %v9392
    %v9461 = vunpack.c.l.b16 %v9393
    %v9462 = vunpack.c.l.b16 %v9394
    %v9463 = vunpack.c.l.b16 %v9395
    %v9464 = vunpack.c.l.b16 %v9396
    %v9465 = vunpack.c.l.b16 %v9397
    %v9466 = vunpack.c.l.b16 %v9398
    %v9467 = vunpack.c.l.b16 %v9399
    %v9468 = vunpack.c.l.b16 %v9400
    %v9469 = vunpack.c.l.b16 %v9401
    %v9470 = vunpack.c.l.b16 %v9402
    %v9471 = vunpack.c.l.b16 %v9403
    %v9472 = vunpack.c.l.b16 %v9404
    %v9473 = vunpack.c.l.b16 %v9405
    %v9474 = vunpack.c.l.b16 %v9406
    %v9475 = vunpack.c.l.b16 %v9407
    %v9476 = vunpack.c.l.b16 %v9408
    %v9477 = vunpack.c.l.b16 %v9409
    %v9478 = vunpack.c.l.b16 %v9410
    %v9479 = vpack.c.b16 %v9448, %v9447
    %v9480 = vpack.c.b16 %v9450, %v9449
    %v9481 = vpack.c.b16 %v9452, %v9451
    %v9482 = vpack.c.b16 %v9454, %v9453
    %v9483 = vpack.c.b16 %v9456, %v9455
    %v9484 = vpack.c.b16 %v9458, %v9457
    %v9485 = vpack.c.b16 %v9460, %v9459
    %v9486 = vpack.c.b16 %v9462, %v9461
    %v9487 = vpack.c.b16 %v9464, %v9463
    %v9488 = vpack.c.b16 %v9466, %v9465
    %v9489 = vpack.c.b16 %v9468, %v9467
    %v9490 = vpack.c.b16 %v9470, %v9469
    %v9491 = vpack.c.b16 %v9472, %v9471
    %v9492 = vpack.c.b16 %v9474, %v9473
    %v9493 = vpack.c.b16 %v9476, %v9475
    %v9494 = vpack.c.b16 %v9478, %v9477
    %9511 = vmatpush.bf16.msra.mxu0 %v9486
    %9512 = vmatpush.bf16.msra.mxu0 %v9485
    %9513 = vmatpush.bf16.msra.mxu0 %v9484
    %9514 = vmatpush.bf16.msra.mxu0 %v9483
    %9515 = vmatpush.bf16.msra.mxu0 %v9482
    %9516 = vmatpush.bf16.msra.mxu0 %v9481
    %9517 = vmatpush.bf16.msra.mxu0 %v9480
    %9518 = vmatpush.bf16.msra.mxu0 %v9479
    %9519 = vmatmul.bf16.gmra.mxu0 %v9411
    %v9520 = vpop.f32.mrf.mxu0
    %v9521 = vadd.f32 0.0, %v9520
    %v9522 = vpop.f32.mrf.mxu0
    %9523 = vdwg.mxu0
    %9524 = vmatpush.bf16.msra.mxu0 %v9494
    %9525 = vmatpush.bf16.msra.mxu0 %v9493
    %9526 = vmatpush.bf16.msra.mxu0 %v9492
    %9527 = vmatpush.bf16.msra.mxu0 %v9491
    %9528 = vmatpush.bf16.msra.mxu0 %v9490
    %9529 = vmatpush.bf16.msra.mxu0 %v9489
    %9530 = vmatpush.bf16.msra.mxu0 %v9488
    %9531 = vmatpush.bf16.msra.mxu0 %v9487
    %9532 = vmatmul.bf16.gmra.mxu0 %v9412
    %v9533 = vpop.f32.mrf.mxu0
    %v9534 = vadd.f32 %v9521, %v9533
    %v9535 = vpop.f32.mrf.mxu0
    %9536 = vdwg.mxu0
    %v9537 = vadd.f32 %v9378, %v9534
    %v9538 = vadd.f32 %v9537, %v43
    %vm9539 = vcmp.gt.f32.partialorder %v9538, 0.0
    %v9540 = vmul.f32 %v9538, 0.1
    %v9541 = vsel %vm9539, %v9538, %v9540
    %v9542 = vld [vmem:[%s5] sm:$0xf]
    %v9543 = vld [vmem:[%s5 + $0x4] sm:$0xf]
    %v9544 = vld [vmem:[%s5 + $0x8] sm:$0xf]
    %v9545 = vld [vmem:[%s5 + $0xc] sm:$0xf]
    %v9546 = vld [vmem:[%s5 + $0x10] sm:$0xf]
    %v9547 = vld [vmem:[%s5 + $0x14] sm:$0xf]
    %v9548 = vld [vmem:[%s5 + $0x18] sm:$0xf]
    %v9549 = vld [vmem:[%s5 + $0x1c] sm:$0xf]
    %v9550 = vld [vmem:[%s5 + $0x20] sm:$0xf]
    %v9551 = vld [vmem:[%s5 + $0x24] sm:$0xf]
    %v9552 = vld [vmem:[%s5 + $0x28] sm:$0xf]
    %v9553 = vld [vmem:[%s5 + $0x2c] sm:$0xf]
    %v9554 = vld [vmem:[%s5 + $0x30] sm:$0xf]
    %v9555 = vld [vmem:[%s5 + $0x34] sm:$0xf]
    %v9556 = vld [vmem:[%s5 + $0x38] sm:$0xf]
    %v9557 = vld [vmem:[%s5 + $0x3c] sm:$0xf]
    %v9558 = vpack.c.bf16 %v9541, %v9541
    %v9575 = vunpack.c.l.b16 %v9542
    %v9576 = vunpack.c.l.b16 %v9543
    %v9577 = vunpack.c.l.b16 %v9544
    %v9578 = vunpack.c.l.b16 %v9545
    %v9579 = vunpack.c.l.b16 %v9546
    %v9580 = vunpack.c.l.b16 %v9547
    %v9581 = vunpack.c.l.b16 %v9548
    %v9582 = vunpack.c.l.b16 %v9549
    %v9583 = vunpack.c.l.b16 %v9550
    %v9584 = vunpack.c.l.b16 %v9551
    %v9585 = vunpack.c.l.b16 %v9552
    %v9586 = vunpack.c.l.b16 %v9553
    %v9587 = vunpack.c.l.b16 %v9554
    %v9588 = vunpack.c.l.b16 %v9555
    %v9589 = vunpack.c.l.b16 %v9556
    %v9590 = vunpack.c.l.b16 %v9557
    %v9591 = vpack.c.b16 %v9576, %v9575
    %v9592 = vpack.c.b16 %v9578, %v9577
    %v9593 = vpack.c.b16 %v9580, %v9579
    %v9594 = vpack.c.b16 %v9582, %v9581
    %v9595 = vpack.c.b16 %v9584, %v9583
    %v9596 = vpack.c.b16 %v9586, %v9585
    %v9597 = vpack.c.b16 %v9588, %v9587
    %v9598 = vpack.c.b16 %v9590, %v9589
    %9607 = vmatpush.bf16.msra.mxu0 %v9598
    %9608 = vmatpush.bf16.msra.mxu0 %v9597
    %9609 = vmatpush.bf16.msra.mxu0 %v9596
    %9610 = vmatpush.bf16.msra.mxu0 %v9595
    %9611 = vmatpush.bf16.msra.mxu0 %v9594
    %9612 = vmatpush.bf16.msra.mxu0 %v9593
    %9613 = vmatpush.bf16.msra.mxu0 %v9592
    %9614 = vmatpush.bf16.msra.mxu0 %v9591
    %9615 = vmatmul.bf16.gmra.mxu0 %v9558
    %v9616 = vpop.f32.mrf.mxu0
    %v9617 = vadd.f32 %v44, %v9616
    %v9618 = vpop.f32.mrf.mxu0
    %9619 = vdwg.mxu0
    %9620 = vst [vmem:[#allocation2 + $0x1] sm:$0x1] %v9617
    // Predicated region
    $region46: #{net_forward.1} parent=1 // pred_check
      _
    $region47: #{net_forward.1} parent=1 // pred_check_branch
      %9622 = sbr.rel (0) target = $region49
    $region48: #{net_forward.1} parent=1 // pred_region
      %9624 = vsyncadd [#allocation3], 0
      %s9626 = sshll.u32 [#allocation2], 4
      %s9627 = int_to_ptr.vmem [resolvable:$true] %s9626
      %s9628 = sshll.u32 %s11, 4
      %s9629 = int_to_ptr.hbm [resolvable:$true] %s9628
      %9631 = dma.vmem_to_hbm [thread:$0]  %s9627, 32, %s9629, [#allocation3]
    $region49: #{net_forward.1} parent=1 // pred_fallthru
      _
    // Predicated region
    $region50: #{net_forward.1} parent=1 // pred_check
      _
    $region51: #{net_forward.1} parent=1 // pred_check_branch
      %9633 = sbr.rel (0) target = $region53
    $region52: #{net_forward.1} parent=1 // pred_region
      %9635 = dma.done [#allocation3], 32
    $region53: #{net_forward.1} parent=1 // pred_fallthru
      _
    %9636 = vsyncpa [#allocation3], 1

</llo_original>
